<compile_context>
chip_gen: v5e
topology: v5e:2x2
jax: 0.10.0
libtpu: 0.0.40
codegen_flags: <defaults>
</compile_context>

<pallas_src>
import functools
import math

import jax
import jax.numpy as jnp
from jax.experimental import pallas as pl
from jax.experimental.pallas import tpu as pltpu

# ------------------------- model hyper-params (small, synthetic) -------------------------
LAYER = 1                       # SSLExtractor(layer=1) -> hidden_states[2] == output of encoder layer 1
N_LAYERS = LAYER + 1            # only need layers up to `layer`
# wav2vec2/HuBERT conv schedule: total stride = 5*2*2*2*2*2*2 = 320 (-> ~50 Hz)
CONV_CFG = [(32, 10, 5), (32, 3, 2), (32, 3, 2), (32, 3, 2), (32, 3, 2), (32, 2, 2), (32, 2, 2)]
C_FEAT = CONV_CFG[-1][0]
D_MODEL = 32
N_HEADS = 4
D_HEAD = D_MODEL // N_HEADS
D_FF = 64
POS_KERNEL = 3                  # small stand-in for the kernel-128 positional conv
POS_GROUPS = 4
LN_EPS = 1e-5

_VMEM_LIMIT = 32 * 1024 * 1024  # explicit scoped-VMEM limit; safe on v5e/v6e (128 MiB) and v7x (64 MiB)


def _cparams(n_parallel):
    return pltpu.CompilerParams(
        dimension_semantics=("parallel",) * n_parallel,
        vmem_limit_bytes=_VMEM_LIMIT)


def _round_up(x, m):
    return ((x + m - 1) // m) * m


def _ln(x, g, b, eps):
    """LayerNorm over last axis (f32 math); g/b are (1, D)."""
    mean = jnp.mean(x, axis=-1, keepdims=True)
    var = jnp.mean(jnp.square(x - mean), axis=-1, keepdims=True)
    return (x - mean) * jax.lax.rsqrt(var + eps) * g + b


# ------------------------------------ Pallas kernels -------------------------------------
def _matmul_act_kernel(x_ref, w_ref, b_ref, o_ref, *, act):
    """o = act(x @ w + b). x tile (TM,K) f32 -> bf16, w (K,N) bf16, f32 accumulate."""
    x = x_ref[...].astype(jnp.bfloat16)
    y = jnp.dot(x, w_ref[...], preferred_element_type=jnp.float32) + b_ref[...]
    if act == "gelu":
        y = jax.nn.gelu(y, approximate=True)
    o_ref[...] = y.astype(o_ref.dtype)


def matmul_act(x, w, b, act="none", tm=256):
    """M-gridded matmul with fused bias/GELU epilogue (parallel grid -> both v7x TCs)."""
    M, K = x.shape
    N = w.shape[1]
    tm = min(tm, _round_up(M, 8))
    Mp = _round_up(M, tm)
    if Mp != M:
        x = jnp.pad(x, ((0, Mp - M), (0, 0)))
    out = pl.pallas_call(
        functools.partial(_matmul_act_kernel, act=act),
        out_shape=jax.ShapeDtypeStruct((Mp, N), jnp.float32),
        grid=(Mp // tm,),
        in_specs=[pl.BlockSpec((tm, K), lambda i: (i, 0)),
                  pl.BlockSpec((K, N), lambda i: (0, 0)),
                  pl.BlockSpec((1, N), lambda i: (0, 0))],
        out_specs=pl.BlockSpec((tm, N), lambda i: (i, 0)),
        compiler_params=_cparams(1),
    )(x, w.astype(jnp.bfloat16), b.reshape(1, N).astype(jnp.float32))
    return out[:M] if Mp != M else out


def _conv0_gn_gelu_kernel(p_ref, w_ref, g_ref, b_ref, o_ref, *, eps):
    """Fused first conv layer: matmul + GroupNorm(num_groups=C) over time + GELU.
    Blocks: patches (1, Lout, K0), w (K0, C), g/b (1, C)."""
    pt = p_ref[...][0].astype(jnp.bfloat16)                               # (Lout, K0)
    y = jnp.dot(pt, w_ref[...], preferred_element_type=jnp.float32)       # (Lout, C)
    mean = jnp.mean(y, axis=0, keepdims=True)                             # per-channel over time
    var = jnp.mean(jnp.square(y - mean), axis=0, keepdims=True)
    y = (y - mean) * jax.lax.rsqrt(var + eps) * g_ref[...] + b_ref[...]
    y = jax.nn.gelu(y, approximate=True)
    o_ref[...] = y[None].astype(o_ref.dtype)


def _fproj_kernel(x_ref, lg_ref, lb_ref, w_ref, b_ref, o_ref, *, eps):
    """Fused feature projection: LayerNorm -> Linear.  Block (1, T, C)."""
    x = x_ref[...][0].astype(jnp.float32)                                 # (T, C)
    xh = _ln(x, lg_ref[...], lb_ref[...], eps)
    y = jnp.dot(xh.astype(jnp.bfloat16), w_ref[...],
                preferred_element_type=jnp.float32) + b_ref[...]
    o_ref[...] = y[None].astype(o_ref.dtype)


def _posconv_ln_kernel(hp_ref, w_ref, pb_ref, lg_ref, lb_ref, o_ref, *, T, pad, eps):
    """Fused positional (grouped) conv + GELU + residual + encoder LayerNorm.
    hp block (1, T+2p, D); w (K*D, D) dense block-diagonal per-tap weights."""
    hp = hp_ref[...][0].astype(jnp.float32)                               # (T+2p, D)
    hpb = hp.astype(jnp.bfloat16)
    w = w_ref[...]                                                        # (K*D, D) bf16
    acc = jnp.zeros((T, D_MODEL), jnp.float32)
    for j in range(POS_KERNEL):
        acc = acc + jnp.dot(hpb[j:j + T, :], w[j * D_MODEL:(j + 1) * D_MODEL, :],
                            preferred_element_type=jnp.float32)
    pos = jax.nn.gelu(acc + pb_ref[...], approximate=True)
    h = hp[pad:pad + T, :] + pos                                          # residual add
    o_ref[...] = _ln(h, lg_ref[...], lb_ref[...], eps)[None].astype(o_ref.dtype)


def _encoder_layer_kernel(h_ref, wqkv_ref, bqkv_ref, wo_ref, bo_ref,
                          ln1g_ref, ln1b_ref, w1_ref, b1_ref, w2_ref, b2_ref,
                          ln2g_ref, ln2b_ref, o_ref, *, eps):
    """Whole post-LN encoder layer fused: fused-QKV, per-head attention (in-kernel slices),
    out-proj, residual+LN1, FFN (GELU), residual+LN2.  Hidden block (1, T, D)."""
    x = h_ref[...][0].astype(jnp.float32)                                 # (T, D)
    qkv = jnp.dot(x.astype(jnp.bfloat16), wqkv_ref[...],
                  preferred_element_type=jnp.float32) + bqkv_ref[...]     # (T, 3D)
    scale = 1.0 / math.sqrt(D_HEAD)
    heads = []
    for hh in range(N_HEADS):                                             # unrolled head loop
        lo = hh * D_HEAD
        q = qkv[:, lo:lo + D_HEAD] * scale                                # (T, dh)
        k = qkv[:, D_MODEL + lo:D_MODEL + lo + D_HEAD]
        v = qkv[:, 2 * D_MODEL + lo:2 * D_MODEL + lo + D_HEAD]
        s = jnp.dot(q, k.T, preferred_element_type=jnp.float32)           # (T, T)
        s = s - jnp.max(s, axis=-1, keepdims=True)
        p = jnp.exp(s)
        p = p * pl.reciprocal(jnp.sum(p, axis=-1, keepdims=True), approx=True)
        heads.append(jnp.dot(p, v, preferred_element_type=jnp.float32))   # (T, dh)
    attn = jnp.concatenate(heads, axis=-1)                                # (T, D)
    attn = jnp.dot(attn.astype(jnp.bfloat16), wo_ref[...],
                   preferred_element_type=jnp.float32) + bo_ref[...]
    h1 = _ln(x + attn, ln1g_ref[...], ln1b_ref[...], eps)
    ff = jnp.dot(h1.astype(jnp.bfloat16), w1_ref[...],
                 preferred_element_type=jnp.float32) + b1_ref[...]
    ff = jax.nn.gelu(ff, approximate=True)
    ff = jnp.dot(ff.astype(jnp.bfloat16), w2_ref[...],
                 preferred_element_type=jnp.float32) + b2_ref[...]
    h2 = _ln(h1 + ff, ln2g_ref[...], ln2b_ref[...], eps)
    o_ref[...] = h2[None].astype(o_ref.dtype)


# --------------------------------------- glue + wrappers ----------------------------------
def _im2col_time(x, kernel, stride):
    """Channels-last sliding-window gather: x (B, L, Cin) -> (B, Lout, kernel*Cin)."""
    B, L, Cin = x.shape
    Lout = (L - kernel) // stride + 1
    idx = jnp.arange(Lout)[:, None] * stride + jnp.arange(kernel)[None, :]   # (Lout, K)
    patches = x[:, idx, :]                                                   # (B, Lout, K, Cin)
    return patches.reshape(B, Lout, kernel * Cin), Lout


def feature_extractor(params, wav):
    """wav (B, T) -> conv features (B, T', C_FEAT), channels-last throughout (no NCW transposes)."""
    B = wav.shape[0]
    x = wav[:, :, None]                                                      # (B, T, 1)
    for i, ((cout, k, s), wmat) in enumerate(zip(CONV_CFG, params["conv_w_mats"])):
        patches, Lout = _im2col_time(x, k, s)                                # (B, Lout, k*Cin)
        if i == 0:
            # fused conv + GroupNorm(groups=C) + GELU, gridded over batch (needs full time axis)
            x = pl.pallas_call(
                functools.partial(_conv0_gn_gelu_kernel, eps=LN_EPS),
                out_shape=jax.ShapeDtypeStruct((B, Lout, cout), jnp.float32),
                grid=(B,),
                in_specs=[
                    pl.BlockSpec((1, Lout, k), lambda b: (b, 0, 0)),
                    pl.BlockSpec((k, cout), lambda b: (0, 0)),
                    pl.BlockSpec((1, cout), lambda b: (0, 0)),
                    pl.BlockSpec((1, cout), lambda b: (0, 0)),
                ],
                out_specs=pl.BlockSpec((1, Lout, cout), lambda b: (b, 0, 0)),
                compiler_params=_cparams(1),
            )(patches, wmat.astype(jnp.bfloat16),
              params["gn_g"].reshape(1, cout), params["gn_b"].reshape(1, cout))
        else:
            # conv (bias-free) + GELU as an M-gridded matmul
            y = matmul_act(patches.reshape(B * Lout, -1), wmat,
                           jnp.zeros((cout,), jnp.float32), act="gelu")
            x = y.reshape(B, Lout, cout)
    return x                                                                 # (B, T', C_FEAT)


def feature_projection(params, feats):
    """Fused LayerNorm + Linear (C_FEAT -> D_MODEL), gridded over batch."""
    B, Tf, C = feats.shape
    return pl.pallas_call(
        functools.partial(_fproj_kernel, eps=LN_EPS),
        out_shape=jax.ShapeDtypeStruct((B, Tf, D_MODEL), jnp.float32),
        grid=(B,),
        in_specs=[
            pl.BlockSpec((1, Tf, C), lambda b: (b, 0, 0)),
            pl.BlockSpec((1, C), lambda b: (0, 0)),
            pl.BlockSpec((1, C), lambda b: (0, 0)),
            pl.BlockSpec((C, D_MODEL), lambda b: (0, 0)),
            pl.BlockSpec((1, D_MODEL), lambda b: (0, 0)),
        ],
        out_specs=pl.BlockSpec((1, Tf, D_MODEL), lambda b: (b, 0, 0)),
        compiler_params=_cparams(1),
    )(feats, params["fp_ln_g"].reshape(1, C), params["fp_ln_b"].reshape(1, C),
      params["fp_w"].astype(jnp.bfloat16), params["fp_b"].reshape(1, D_MODEL))


def pos_conv_and_prenorm(params, h):
    """hidden += pos_conv(hidden); hidden = LayerNorm(hidden)  — all in one kernel."""
    B, T, D = h.shape
    pad = POS_KERNEL // 2
    hp = jnp.pad(h, ((0, 0), (pad, pad), (0, 0)))                            # 'same' padding
    return pl.pallas_call(
        functools.partial(_posconv_ln_kernel, T=T, pad=pad, eps=LN_EPS),
        out_shape=jax.ShapeDtypeStruct((B, T, D), jnp.float32),
        grid=(B,),
        in_specs=[
            pl.BlockSpec((1, T + 2 * pad, D), lambda b: (b, 0, 0)),
            pl.BlockSpec((POS_KERNEL * D, D), lambda b: (0, 0)),
            pl.BlockSpec((1, D), lambda b: (0, 0)),
            pl.BlockSpec((1, D), lambda b: (0, 0)),
            pl.BlockSpec((1, D), lambda b: (0, 0)),
        ],
        out_specs=pl.BlockSpec((1, T, D), lambda b: (b, 0, 0)),
        compiler_params=_cparams(1),
    )(hp, params["pos_w_taps"].astype(jnp.bfloat16),
      params["pos_b"].reshape(1, D), params["enc_ln_g"].reshape(1, D),
      params["enc_ln_b"].reshape(1, D))


def encoder_layer(lp, h):
    """One fused pallas_call per encoder layer (weights ~<50 KiB -> whole layer fits VMEM)."""
    B, T, D = h.shape
    args = (h,
            lp["wqkv"].astype(jnp.bfloat16), lp["bqkv"].reshape(1, 3 * D),
            lp["wo"].astype(jnp.bfloat16), lp["bo"].reshape(1, D),
            lp["ln1_g"].reshape(1, D), lp["ln1_b"].reshape(1, D),
            lp["w1"].astype(jnp.bfloat16), lp["b1"].reshape(1, D_FF),
            lp["w2"].astype(jnp.bfloat16), lp["b2"].reshape(1, D),
            lp["ln2_g"].reshape(1, D), lp["ln2_b"].reshape(1, D))
    in_specs = [pl.BlockSpec((1, T, D), lambda b: (b, 0, 0))]
    in_specs += [pl.BlockSpec(a.shape, lambda b: (0, 0)) for a in args[1:]]  # all params are 2-D
    return pl.pallas_call(
        functools.partial(_encoder_layer_kernel, eps=LN_EPS),
        out_shape=jax.ShapeDtypeStruct((B, T, D), jnp.float32),
        grid=(B,),
        in_specs=in_specs,
        out_specs=pl.BlockSpec((1, T, D), lambda b: (b, 0, 0)),
        compiler_params=_cparams(1),
    )(*args)


def ssl_extractor_forward(params, wav):
    """wav (B, T) float32 in [-1, 1]  ->  feat (B, D_MODEL, ~T/320)."""
    feats = feature_extractor(params, wav)            # (B, T', C_FEAT)
    h = feature_projection(params, feats)             # (B, T', D)
    h = pos_conv_and_prenorm(params, h)               # hidden_states[0]
    for lp in params["layers"]:                       # hidden_states[LAYER+1] after last layer
        h = encoder_layer(lp, h)
    return h.transpose(0, 2, 1)                       # (B, D, T') == hs[layer+1].transpose(1,2)


# ---------------------------------- deterministic params ---------------------------------
def init_params(key):
    keys = iter(jax.random.split(key, 128))

    def nrm(shape, scale=0.02):
        return (scale * jax.random.normal(next(keys), shape)).astype(jnp.float32)

    p = {}
    # conv feature extractor: PyTorch (Cout, Cin, K) weights stored kernel-ready as (K*Cin, Cout)
    conv_mats = []
    cin = 1
    for (cout, k, _s) in CONV_CFG:
        w = nrm((cout, cin, k))
        conv_mats.append(w.transpose(2, 1, 0).reshape(k * cin, cout))
        cin = cout
    p["conv_w_mats"] = conv_mats
    p["gn_g"] = jnp.ones((CONV_CFG[0][0],), jnp.float32)
    p["gn_b"] = jnp.zeros((CONV_CFG[0][0],), jnp.float32)

    p["fp_ln_g"] = jnp.ones((C_FEAT,), jnp.float32)
    p["fp_ln_b"] = jnp.zeros((C_FEAT,), jnp.float32)
    p["fp_w"] = nrm((C_FEAT, D_MODEL))
    p["fp_b"] = nrm((D_MODEL,), 0.01)

    # grouped positional conv -> dense block-diagonal per-tap matrices, flattened to (K*D, D)
    pos_w = nrm((D_MODEL, D_MODEL // POS_GROUPS, POS_KERNEL))   # (Cout, Cin/groups, K)
    dg = D_MODEL // POS_GROUPS
    taps = jnp.zeros((POS_KERNEL, D_MODEL, D_MODEL), jnp.float32)
    for g in range(POS_GROUPS):
        blk = pos_w[g * dg:(g + 1) * dg]                        # (dg_out, dg_in, K)
        taps = taps.at[:, g * dg:(g + 1) * dg, g * dg:(g + 1) * dg].set(blk.transpose(2, 1, 0))
    p["pos_w_taps"] = taps.reshape(POS_KERNEL * D_MODEL, D_MODEL)
    p["pos_b"] = nrm((D_MODEL,), 0.01)
    p["enc_ln_g"] = jnp.ones((D_MODEL,), jnp.float32)
    p["enc_ln_b"] = jnp.zeros((D_MODEL,), jnp.float32)

    layers = []
    for _ in range(N_LAYERS):
        wq, wk, wv = nrm((D_MODEL, D_MODEL)), nrm((D_MODEL, D_MODEL)), nrm((D_MODEL, D_MODEL))
        bq, bk, bv = nrm((D_MODEL,), 0.01), nrm((D_MODEL,), 0.01), nrm((D_MODEL,), 0.01)
        layers.append({
            "wqkv": jnp.concatenate([wq, wk, wv], axis=1),      # fused QKV (D, 3D) lane-dense
            "bqkv": jnp.concatenate([bq, bk, bv]),
            "wo": nrm((D_MODEL, D_MODEL)), "bo": nrm((D_MODEL,), 0.01),
            "ln1_g": jnp.ones((D_MODEL,), jnp.float32), "ln1_b": jnp.zeros((D_MODEL,), jnp.float32),
            "w1": nrm((D_MODEL, D_FF)), "b1": nrm((D_FF,), 0.01),
            "w2": nrm((D_FF, D_MODEL)), "b2": nrm((D_MODEL,), 0.01),
            "ln2_g": jnp.ones((D_MODEL,), jnp.float32), "ln2_b": jnp.zeros((D_MODEL,), jnp.float32),
        })
    p["layers"] = layers
    return p


# -------------------------------------------- main ---------------------------------------
if __name__ == "__main__":
    key = jax.random.PRNGKey(0)
    k_param, k_wav = jax.random.split(key)

    B, T = 2, 1600                                    # 1600 samples @ 16 kHz -> ~T/320 frames
    wav = jax.random.uniform(k_wav, (B, T), minval=-1.0, maxval=1.0, dtype=jnp.float32)
    params = init_params(k_param)

    feat = jax.jit(ssl_extractor_forward)(params, wav)
    feat = jax.block_until_ready(feat)

    assert feat.ndim == 3 and feat.shape[0] == B and feat.shape[1] == D_MODEL, feat.shape
    assert jnp.all(jnp.isfinite(feat))
    print("KERNEL_OK")
</pallas_src>

<mosaic_0001>
module attributes {stable_mosaic.version = 11 : i64} {
  func.func @_conv0_gn_gelu_kernel(%arg0: i32, %arg1: memref<1x319x10xf32, #tpu.memory_space<vmem>>, %arg2: memref<10x32xbf16, #tpu.memory_space<vmem>>, %arg3: memref<1x32xf32, #tpu.memory_space<vmem>>, %arg4: memref<1x32xf32, #tpu.memory_space<vmem>>, %arg5: memref<1x319x32xf32, #tpu.memory_space<vmem>>) attributes {dimension_semantics = [#tpu.dimension_semantics<parallel>], iteration_bounds = array<i64: 2>, scalar_prefetch = 0 : i64, scratch_operands = 0 : i64, tpu.core_type = #tpu.core_type<tc>, window_params = [{transform_indices = @transform_0, window_bounds = array<i64: 1, 319, 10>}, {pipeline_mode = #tpu.pipeline_mode<synchronous>, transform_indices = @transform_1, window_bounds = array<i64: 10, 32>}, {pipeline_mode = #tpu.pipeline_mode<synchronous>, transform_indices = @transform_2, window_bounds = array<i64: 1, 32>}, {pipeline_mode = #tpu.pipeline_mode<synchronous>, transform_indices = @transform_3, window_bounds = array<i64: 1, 32>}, {transform_indices = @transform_4, window_bounds = array<i64: 1, 319, 32>}]} {
    %c0 = arith.constant 0 : index
    %c0_0 = arith.constant 0 : index
    %c0_1 = arith.constant 0 : index
    %0 = vector.load %arg1[%c0, %c0_0, %c0_1] : memref<1x319x10xf32, #tpu.memory_space<vmem>>, vector<1x319x10xf32>
    %1 = vector.shape_cast %0 : vector<1x319x10xf32> to vector<319x10xf32>
    %2 = arith.truncf %1 : vector<319x10xf32> to vector<319x10xbf16>
    %c0_2 = arith.constant 0 : index
    %c0_3 = arith.constant 0 : index
    %3 = vector.load %arg2[%c0_2, %c0_3] : memref<10x32xbf16, #tpu.memory_space<vmem>>, vector<10x32xbf16>
    %cst = arith.constant dense<0.000000e+00> : vector<319x32xf32>
    %4 = tpu.matmul %2, %3, %cst {dimension_numbers = #tpu.dot_dimension_numbers<[1], [0], [0], [1], [0, 0, 1, 1], [], []>} : vector<319x10xbf16>, vector<10x32xbf16>, vector<319x32xf32> -> vector<319x32xf32>
    %cst_4 = arith.constant dense<0.000000e+00> : vector<32xf32>
    %5 = vector.multi_reduction <add>, %4, %cst_4 [0] : vector<319x32xf32> to vector<32xf32>
    %6 = vector.shape_cast %5 : vector<32xf32> to vector<1x32xf32>
    %cst_5 = arith.constant 3.190000e+02 : f32
    %7 = vector.broadcast %cst_5 : f32 to vector<1x32xf32>
    %8 = arith.divf %6, %7 : vector<1x32xf32>
    %9 = vector.broadcast %8 : vector<1x32xf32> to vector<319x32xf32>
    %10 = arith.subf %4, %9 : vector<319x32xf32>
    %11 = arith.mulf %10, %10 : vector<319x32xf32>
    %cst_6 = arith.constant dense<0.000000e+00> : vector<32xf32>
    %12 = vector.multi_reduction <add>, %11, %cst_6 [0] : vector<319x32xf32> to vector<32xf32>
    %13 = vector.shape_cast %12 : vector<32xf32> to vector<1x32xf32>
    %cst_7 = arith.constant 3.190000e+02 : f32
    %14 = vector.broadcast %cst_7 : f32 to vector<1x32xf32>
    %15 = arith.divf %13, %14 : vector<1x32xf32>
    %16 = vector.broadcast %8 : vector<1x32xf32> to vector<319x32xf32>
    %17 = arith.subf %4, %16 : vector<319x32xf32>
    %cst_8 = arith.constant 9.99999974E-6 : f32
    %18 = vector.broadcast %cst_8 : f32 to vector<1x32xf32>
    %19 = arith.addf %15, %18 : vector<1x32xf32>
    %20 = math.rsqrt %19 : vector<1x32xf32>
    %21 = vector.broadcast %20 : vector<1x32xf32> to vector<319x32xf32>
    %22 = arith.mulf %17, %21 : vector<319x32xf32>
    %c0_9 = arith.constant 0 : index
    %c0_10 = arith.constant 0 : index
    %23 = vector.load %arg3[%c0_9, %c0_10] : memref<1x32xf32, #tpu.memory_space<vmem>>, vector<1x32xf32>
    %24 = vector.broadcast %23 : vector<1x32xf32> to vector<319x32xf32>
    %25 = arith.mulf %22, %24 : vector<319x32xf32>
    %c0_11 = arith.constant 0 : index
    %c0_12 = arith.constant 0 : index
    %26 = vector.load %arg4[%c0_11, %c0_12] : memref<1x32xf32, #tpu.memory_space<vmem>>, vector<1x32xf32>
    %27 = vector.broadcast %26 : vector<1x32xf32> to vector<319x32xf32>
    %28 = arith.addf %25, %27 : vector<319x32xf32>
    %29 = arith.mulf %28, %28 : vector<319x32xf32>
    %30 = arith.mulf %28, %29 : vector<319x32xf32>
    %cst_13 = arith.constant 4.471500e-02 : f32
    %31 = vector.broadcast %cst_13 : f32 to vector<319x32xf32>
    %32 = arith.mulf %31, %30 : vector<319x32xf32>
    %33 = arith.addf %28, %32 : vector<319x32xf32>
    %cst_14 = arith.constant 0.797884583 : f32
    %34 = vector.broadcast %cst_14 : f32 to vector<319x32xf32>
    %35 = arith.mulf %34, %33 : vector<319x32xf32>
    %36 = math.tanh %35 : vector<319x32xf32>
    %cst_15 = arith.constant 1.000000e+00 : f32
    %37 = vector.broadcast %cst_15 : f32 to vector<319x32xf32>
    %38 = arith.addf %37, %36 : vector<319x32xf32>
    %cst_16 = arith.constant 5.000000e-01 : f32
    %39 = vector.broadcast %cst_16 : f32 to vector<319x32xf32>
    %40 = arith.mulf %39, %38 : vector<319x32xf32>
    %41 = arith.mulf %28, %40 : vector<319x32xf32>
    %42 = vector.shape_cast %41 : vector<319x32xf32> to vector<1x319x32xf32>
    %c0_17 = arith.constant 0 : index
    %c0_18 = arith.constant 0 : index
    %c0_19 = arith.constant 0 : index
    %43 = vector.load %arg5[%c0_17, %c0_18, %c0_19] : memref<1x319x32xf32, #tpu.memory_space<vmem>>, vector<1x319x32xf32>
    tpu.vector_store %arg5[%c0_17, %c0_18, %c0_19], %42 {strides = array<i32>} : memref<1x319x32xf32, #tpu.memory_space<vmem>>, vector<1x319x32xf32>,
    return
  }
  func.func @transform_0(%arg0: i32) -> (i32, i32, i32) {
    %c0_i32 = arith.constant 0 : i32
    %c0_i32_0 = arith.constant 0 : i32
    %c0_i32_1 = arith.constant 0 : i32
    return %arg0, %c0_i32, %c0_i32_0 : i32, i32, i32
  }
  func.func @transform_1(%arg0: i32) -> (i32, i32) {
    %c0_i32 = arith.constant 0 : i32
    %c0_i32_0 = arith.constant 0 : i32
    %c0_i32_1 = arith.constant 0 : i32
    return %c0_i32, %c0_i32_0 : i32, i32
  }
  func.func @transform_2(%arg0: i32) -> (i32, i32) {
    %c0_i32 = arith.constant 0 : i32
    %c0_i32_0 = arith.constant 0 : i32
    %c0_i32_1 = arith.constant 0 : i32
    return %c0_i32, %c0_i32_0 : i32, i32
  }
  func.func @transform_3(%arg0: i32) -> (i32, i32) {
    %c0_i32 = arith.constant 0 : i32
    %c0_i32_0 = arith.constant 0 : i32
    %c0_i32_1 = arith.constant 0 : i32
    return %c0_i32, %c0_i32_0 : i32, i32
  }
  func.func @transform_4(%arg0: i32) -> (i32, i32, i32) {
    %c0_i32 = arith.constant 0 : i32
    %c0_i32_0 = arith.constant 0 : i32
    %c0_i32_1 = arith.constant 0 : i32
    return %arg0, %c0_i32, %c0_i32_0 : i32, i32, i32
  }
}

module attributes {stable_mosaic.version = 11 : i64} {
  func.func @_matmul_act_kernel(%arg0: i32, %arg1: memref<256x96xf32, #tpu.memory_space<vmem>>, %arg2: memref<96x32xbf16, #tpu.memory_space<vmem>>, %arg3: memref<1x32xf32, #tpu.memory_space<vmem>>, %arg4: memref<256x32xf32, #tpu.memory_space<vmem>>) attributes {dimension_semantics = [#tpu.dimension_semantics<parallel>], iteration_bounds = array<i64: 2>, scalar_prefetch = 0 : i64, scratch_operands = 0 : i64, tpu.core_type = #tpu.core_type<tc>, window_params = [{transform_indices = @transform_0, window_bounds = array<i64: 256, 96>}, {pipeline_mode = #tpu.pipeline_mode<synchronous>, transform_indices = @transform_1, window_bounds = array<i64: 96, 32>}, {pipeline_mode = #tpu.pipeline_mode<synchronous>, transform_indices = @transform_2, window_bounds = array<i64: 1, 32>}, {transform_indices = @transform_3, window_bounds = array<i64: 256, 32>}]} {
    %c0 = arith.constant 0 : index
    %c0_0 = arith.constant 0 : index
    %0 = vector.load %arg1[%c0, %c0_0] : memref<256x96xf32, #tpu.memory_space<vmem>>, vector<256x96xf32>
    %1 = arith.truncf %0 : vector<256x96xf32> to vector<256x96xbf16>
    %c0_1 = arith.constant 0 : index
    %c0_2 = arith.constant 0 : index
    %2 = vector.load %arg2[%c0_1, %c0_2] : memref<96x32xbf16, #tpu.memory_space<vmem>>, vector<96x32xbf16>
    %cst = arith.constant dense<0.000000e+00> : vector<256x32xf32>
    %3 = tpu.matmul %1, %2, %cst {dimension_numbers = #tpu.dot_dimension_numbers<[1], [0], [0], [1], [0, 0, 1, 1], [], []>} : vector<256x96xbf16>, vector<96x32xbf16>, vector<256x32xf32> -> vector<256x32xf32>
    %c0_3 = arith.constant 0 : index
    %c0_4 = arith.constant 0 : index
    %4 = vector.load %arg3[%c0_3, %c0_4] : memref<1x32xf32, #tpu.memory_space<vmem>>, vector<1x32xf32>
    %5 = vector.broadcast %4 : vector<1x32xf32> to vector<256x32xf32>
    %6 = arith.addf %3, %5 : vector<256x32xf32>
    %7 = arith.mulf %6, %6 : vector<256x32xf32>
    %8 = arith.mulf %6, %7 : vector<256x32xf32>
    %cst_5 = arith.constant 4.471500e-02 : f32
    %9 = vector.broadcast %cst_5 : f32 to vector<256x32xf32>
    %10 = arith.mulf %9, %8 : vector<256x32xf32>
    %11 = arith.addf %6, %10 : vector<256x32xf32>
    %cst_6 = arith.constant 0.797884583 : f32
    %12 = vector.broadcast %cst_6 : f32 to vector<256x32xf32>
    %13 = arith.mulf %12, %11 : vector<256x32xf32>
    %14 = math.tanh %13 : vector<256x32xf32>
    %cst_7 = arith.constant 1.000000e+00 : f32
    %15 = vector.broadcast %cst_7 : f32 to vector<256x32xf32>
    %16 = arith.addf %15, %14 : vector<256x32xf32>
    %cst_8 = arith.constant 5.000000e-01 : f32
    %17 = vector.broadcast %cst_8 : f32 to vector<256x32xf32>
    %18 = arith.mulf %17, %16 : vector<256x32xf32>
    %19 = arith.mulf %6, %18 : vector<256x32xf32>
    %c0_9 = arith.constant 0 : index
    %c0_10 = arith.constant 0 : index
    %20 = vector.load %arg4[%c0_9, %c0_10] : memref<256x32xf32, #tpu.memory_space<vmem>>, vector<256x32xf32>
    tpu.vector_store %arg4[%c0_9, %c0_10], %19 {strides = array<i32>} : memref<256x32xf32, #tpu.memory_space<vmem>>, vector<256x32xf32>,
    return
  }
  func.func @transform_0(%arg0: i32) -> (i32, i32) {
    %c0_i32 = arith.constant 0 : i32
    %c0_i32_0 = arith.constant 0 : i32
    return %arg0, %c0_i32 : i32, i32
  }
  func.func @transform_1(%arg0: i32) -> (i32, i32) {
    %c0_i32 = arith.constant 0 : i32
    %c0_i32_0 = arith.constant 0 : i32
    %c0_i32_1 = arith.constant 0 : i32
    return %c0_i32, %c0_i32_0 : i32, i32
  }
  func.func @transform_2(%arg0: i32) -> (i32, i32) {
    %c0_i32 = arith.constant 0 : i32
    %c0_i32_0 = arith.constant 0 : i32
    %c0_i32_1 = arith.constant 0 : i32
    return %c0_i32, %c0_i32_0 : i32, i32
  }
  func.func @transform_3(%arg0: i32) -> (i32, i32) {
    %c0_i32 = arith.constant 0 : i32
    %c0_i32_0 = arith.constant 0 : i32
    return %arg0, %c0_i32 : i32, i32
  }
}

module attributes {stable_mosaic.version = 11 : i64} {
  func.func @_matmul_act_kernel(%arg0: i32, %arg1: memref<160x96xf32, #tpu.memory_space<vmem>>, %arg2: memref<96x32xbf16, #tpu.memory_space<vmem>>, %arg3: memref<1x32xf32, #tpu.memory_space<vmem>>, %arg4: memref<160x32xf32, #tpu.memory_space<vmem>>) attributes {dimension_semantics = [#tpu.dimension_semantics<parallel>], iteration_bounds = array<i64: 1>, scalar_prefetch = 0 : i64, scratch_operands = 0 : i64, tpu.core_type = #tpu.core_type<tc>, window_params = [{transform_indices = @transform_0, window_bounds = array<i64: 160, 96>}, {pipeline_mode = #tpu.pipeline_mode<synchronous>, transform_indices = @transform_1, window_bounds = array<i64: 96, 32>}, {pipeline_mode = #tpu.pipeline_mode<synchronous>, transform_indices = @transform_2, window_bounds = array<i64: 1, 32>}, {transform_indices = @transform_3, window_bounds = array<i64: 160, 32>}]} {
    %c0 = arith.constant 0 : index
    %c0_0 = arith.constant 0 : index
    %0 = vector.load %arg1[%c0, %c0_0] : memref<160x96xf32, #tpu.memory_space<vmem>>, vector<160x96xf32>
    %1 = arith.truncf %0 : vector<160x96xf32> to vector<160x96xbf16>
    %c0_1 = arith.constant 0 : index
    %c0_2 = arith.constant 0 : index
    %2 = vector.load %arg2[%c0_1, %c0_2] : memref<96x32xbf16, #tpu.memory_space<vmem>>, vector<96x32xbf16>
    %cst = arith.constant dense<0.000000e+00> : vector<160x32xf32>
    %3 = tpu.matmul %1, %2, %cst {dimension_numbers = #tpu.dot_dimension_numbers<[1], [0], [0], [1], [0, 0, 1, 1], [], []>} : vector<160x96xbf16>, vector<96x32xbf16>, vector<160x32xf32> -> vector<160x32xf32>
    %c0_3 = arith.constant 0 : index
    %c0_4 = arith.constant 0 : index
    %4 = vector.load %arg3[%c0_3, %c0_4] : memref<1x32xf32, #tpu.memory_space<vmem>>, vector<1x32xf32>
    %5 = vector.broadcast %4 : vector<1x32xf32> to vector<160x32xf32>
    %6 = arith.addf %3, %5 : vector<160x32xf32>
    %7 = arith.mulf %6, %6 : vector<160x32xf32>
    %8 = arith.mulf %6, %7 : vector<160x32xf32>
    %cst_5 = arith.constant 4.471500e-02 : f32
    %9 = vector.broadcast %cst_5 : f32 to vector<160x32xf32>
    %10 = arith.mulf %9, %8 : vector<160x32xf32>
    %11 = arith.addf %6, %10 : vector<160x32xf32>
    %cst_6 = arith.constant 0.797884583 : f32
    %12 = vector.broadcast %cst_6 : f32 to vector<160x32xf32>
    %13 = arith.mulf %12, %11 : vector<160x32xf32>
    %14 = math.tanh %13 : vector<160x32xf32>
    %cst_7 = arith.constant 1.000000e+00 : f32
    %15 = vector.broadcast %cst_7 : f32 to vector<160x32xf32>
    %16 = arith.addf %15, %14 : vector<160x32xf32>
    %cst_8 = arith.constant 5.000000e-01 : f32
    %17 = vector.broadcast %cst_8 : f32 to vector<160x32xf32>
    %18 = arith.mulf %17, %16 : vector<160x32xf32>
    %19 = arith.mulf %6, %18 : vector<160x32xf32>
    %c0_9 = arith.constant 0 : index
    %c0_10 = arith.constant 0 : index
    %20 = vector.load %arg4[%c0_9, %c0_10] : memref<160x32xf32, #tpu.memory_space<vmem>>, vector<160x32xf32>
    tpu.vector_store %arg4[%c0_9, %c0_10], %19 {strides = array<i32>} : memref<160x32xf32, #tpu.memory_space<vmem>>, vector<160x32xf32>,
    return
  }
  func.func @transform_0(%arg0: i32) -> (i32, i32) {
    %c0_i32 = arith.constant 0 : i32
    %c0_i32_0 = arith.constant 0 : i32
    return %arg0, %c0_i32 : i32, i32
  }
  func.func @transform_1(%arg0: i32) -> (i32, i32) {
    %c0_i32 = arith.constant 0 : i32
    %c0_i32_0 = arith.constant 0 : i32
    %c0_i32_1 = arith.constant 0 : i32
    return %c0_i32, %c0_i32_0 : i32, i32
  }
  func.func @transform_2(%arg0: i32) -> (i32, i32) {
    %c0_i32 = arith.constant 0 : i32
    %c0_i32_0 = arith.constant 0 : i32
    %c0_i32_1 = arith.constant 0 : i32
    return %c0_i32, %c0_i32_0 : i32, i32
  }
  func.func @transform_3(%arg0: i32) -> (i32, i32) {
    %c0_i32 = arith.constant 0 : i32
    %c0_i32_0 = arith.constant 0 : i32
    return %arg0, %c0_i32 : i32, i32
  }
}

module attributes {stable_mosaic.version = 11 : i64} {
  func.func @_matmul_act_kernel(%arg0: i32, %arg1: memref<80x96xf32, #tpu.memory_space<vmem>>, %arg2: memref<96x32xbf16, #tpu.memory_space<vmem>>, %arg3: memref<1x32xf32, #tpu.memory_space<vmem>>, %arg4: memref<80x32xf32, #tpu.memory_space<vmem>>) attributes {dimension_semantics = [#tpu.dimension_semantics<parallel>], iteration_bounds = array<i64: 1>, scalar_prefetch = 0 : i64, scratch_operands = 0 : i64, tpu.core_type = #tpu.core_type<tc>, window_params = [{transform_indices = @transform_0, window_bounds = array<i64: 80, 96>}, {pipeline_mode = #tpu.pipeline_mode<synchronous>, transform_indices = @transform_1, window_bounds = array<i64: 96, 32>}, {pipeline_mode = #tpu.pipeline_mode<synchronous>, transform_indices = @transform_2, window_bounds = array<i64: 1, 32>}, {transform_indices = @transform_3, window_bounds = array<i64: 80, 32>}]} {
    %c0 = arith.constant 0 : index
    %c0_0 = arith.constant 0 : index
    %0 = vector.load %arg1[%c0, %c0_0] : memref<80x96xf32, #tpu.memory_space<vmem>>, vector<80x96xf32>
    %1 = arith.truncf %0 : vector<80x96xf32> to vector<80x96xbf16>
    %c0_1 = arith.constant 0 : index
    %c0_2 = arith.constant 0 : index
    %2 = vector.load %arg2[%c0_1, %c0_2] : memref<96x32xbf16, #tpu.memory_space<vmem>>, vector<96x32xbf16>
    %cst = arith.constant dense<0.000000e+00> : vector<80x32xf32>
    %3 = tpu.matmul %1, %2, %cst {dimension_numbers = #tpu.dot_dimension_numbers<[1], [0], [0], [1], [0, 0, 1, 1], [], []>} : vector<80x96xbf16>, vector<96x32xbf16>, vector<80x32xf32> -> vector<80x32xf32>
    %c0_3 = arith.constant 0 : index
    %c0_4 = arith.constant 0 : index
    %4 = vector.load %arg3[%c0_3, %c0_4] : memref<1x32xf32, #tpu.memory_space<vmem>>, vector<1x32xf32>
    %5 = vector.broadcast %4 : vector<1x32xf32> to vector<80x32xf32>
    %6 = arith.addf %3, %5 : vector<80x32xf32>
    %7 = arith.mulf %6, %6 : vector<80x32xf32>
    %8 = arith.mulf %6, %7 : vector<80x32xf32>
    %cst_5 = arith.constant 4.471500e-02 : f32
    %9 = vector.broadcast %cst_5 : f32 to vector<80x32xf32>
    %10 = arith.mulf %9, %8 : vector<80x32xf32>
    %11 = arith.addf %6, %10 : vector<80x32xf32>
    %cst_6 = arith.constant 0.797884583 : f32
    %12 = vector.broadcast %cst_6 : f32 to vector<80x32xf32>
    %13 = arith.mulf %12, %11 : vector<80x32xf32>
    %14 = math.tanh %13 : vector<80x32xf32>
    %cst_7 = arith.constant 1.000000e+00 : f32
    %15 = vector.broadcast %cst_7 : f32 to vector<80x32xf32>
    %16 = arith.addf %15, %14 : vector<80x32xf32>
    %cst_8 = arith.constant 5.000000e-01 : f32
    %17 = vector.broadcast %cst_8 : f32 to vector<80x32xf32>
    %18 = arith.mulf %17, %16 : vector<80x32xf32>
    %19 = arith.mulf %6, %18 : vector<80x32xf32>
    %c0_9 = arith.constant 0 : index
    %c0_10 = arith.constant 0 : index
    %20 = vector.load %arg4[%c0_9, %c0_10] : memref<80x32xf32, #tpu.memory_space<vmem>>, vector<80x32xf32>
    tpu.vector_store %arg4[%c0_9, %c0_10], %19 {strides = array<i32>} : memref<80x32xf32, #tpu.memory_space<vmem>>, vector<80x32xf32>,
    return
  }
  func.func @transform_0(%arg0: i32) -> (i32, i32) {
    %c0_i32 = arith.constant 0 : i32
    %c0_i32_0 = arith.constant 0 : i32
    return %arg0, %c0_i32 : i32, i32
  }
  func.func @transform_1(%arg0: i32) -> (i32, i32) {
    %c0_i32 = arith.constant 0 : i32
    %c0_i32_0 = arith.constant 0 : i32
    %c0_i32_1 = arith.constant 0 : i32
    return %c0_i32, %c0_i32_0 : i32, i32
  }
  func.func @transform_2(%arg0: i32) -> (i32, i32) {
    %c0_i32 = arith.constant 0 : i32
    %c0_i32_0 = arith.constant 0 : i32
    %c0_i32_1 = arith.constant 0 : i32
    return %c0_i32, %c0_i32_0 : i32, i32
  }
  func.func @transform_3(%arg0: i32) -> (i32, i32) {
    %c0_i32 = arith.constant 0 : i32
    %c0_i32_0 = arith.constant 0 : i32
    return %arg0, %c0_i32 : i32, i32
  }
}

module attributes {stable_mosaic.version = 11 : i64} {
  func.func @_matmul_act_kernel(%arg0: i32, %arg1: memref<40x96xf32, #tpu.memory_space<vmem>>, %arg2: memref<96x32xbf16, #tpu.memory_space<vmem>>, %arg3: memref<1x32xf32, #tpu.memory_space<vmem>>, %arg4: memref<40x32xf32, #tpu.memory_space<vmem>>) attributes {dimension_semantics = [#tpu.dimension_semantics<parallel>], iteration_bounds = array<i64: 1>, scalar_prefetch = 0 : i64, scratch_operands = 0 : i64, tpu.core_type = #tpu.core_type<tc>, window_params = [{transform_indices = @transform_0, window_bounds = array<i64: 40, 96>}, {pipeline_mode = #tpu.pipeline_mode<synchronous>, transform_indices = @transform_1, window_bounds = array<i64: 96, 32>}, {pipeline_mode = #tpu.pipeline_mode<synchronous>, transform_indices = @transform_2, window_bounds = array<i64: 1, 32>}, {transform_indices = @transform_3, window_bounds = array<i64: 40, 32>}]} {
    %c0 = arith.constant 0 : index
    %c0_0 = arith.constant 0 : index
    %0 = vector.load %arg1[%c0, %c0_0] : memref<40x96xf32, #tpu.memory_space<vmem>>, vector<40x96xf32>
    %1 = arith.truncf %0 : vector<40x96xf32> to vector<40x96xbf16>
    %c0_1 = arith.constant 0 : index
    %c0_2 = arith.constant 0 : index
    %2 = vector.load %arg2[%c0_1, %c0_2] : memref<96x32xbf16, #tpu.memory_space<vmem>>, vector<96x32xbf16>
    %cst = arith.constant dense<0.000000e+00> : vector<40x32xf32>
    %3 = tpu.matmul %1, %2, %cst {dimension_numbers = #tpu.dot_dimension_numbers<[1], [0], [0], [1], [0, 0, 1, 1], [], []>} : vector<40x96xbf16>, vector<96x32xbf16>, vector<40x32xf32> -> vector<40x32xf32>
    %c0_3 = arith.constant 0 : index
    %c0_4 = arith.constant 0 : index
    %4 = vector.load %arg3[%c0_3, %c0_4] : memref<1x32xf32, #tpu.memory_space<vmem>>, vector<1x32xf32>
    %5 = vector.broadcast %4 : vector<1x32xf32> to vector<40x32xf32>
    %6 = arith.addf %3, %5 : vector<40x32xf32>
    %7 = arith.mulf %6, %6 : vector<40x32xf32>
    %8 = arith.mulf %6, %7 : vector<40x32xf32>
    %cst_5 = arith.constant 4.471500e-02 : f32
    %9 = vector.broadcast %cst_5 : f32 to vector<40x32xf32>
    %10 = arith.mulf %9, %8 : vector<40x32xf32>
    %11 = arith.addf %6, %10 : vector<40x32xf32>
    %cst_6 = arith.constant 0.797884583 : f32
    %12 = vector.broadcast %cst_6 : f32 to vector<40x32xf32>
    %13 = arith.mulf %12, %11 : vector<40x32xf32>
    %14 = math.tanh %13 : vector<40x32xf32>
    %cst_7 = arith.constant 1.000000e+00 : f32
    %15 = vector.broadcast %cst_7 : f32 to vector<40x32xf32>
    %16 = arith.addf %15, %14 : vector<40x32xf32>
    %cst_8 = arith.constant 5.000000e-01 : f32
    %17 = vector.broadcast %cst_8 : f32 to vector<40x32xf32>
    %18 = arith.mulf %17, %16 : vector<40x32xf32>
    %19 = arith.mulf %6, %18 : vector<40x32xf32>
    %c0_9 = arith.constant 0 : index
    %c0_10 = arith.constant 0 : index
    %20 = vector.load %arg4[%c0_9, %c0_10] : memref<40x32xf32, #tpu.memory_space<vmem>>, vector<40x32xf32>
    tpu.vector_store %arg4[%c0_9, %c0_10], %19 {strides = array<i32>} : memref<40x32xf32, #tpu.memory_space<vmem>>, vector<40x32xf32>,
    return
  }
  func.func @transform_0(%arg0: i32) -> (i32, i32) {
    %c0_i32 = arith.constant 0 : i32
    %c0_i32_0 = arith.constant 0 : i32
    return %arg0, %c0_i32 : i32, i32
  }
  func.func @transform_1(%arg0: i32) -> (i32, i32) {
    %c0_i32 = arith.constant 0 : i32
    %c0_i32_0 = arith.constant 0 : i32
    %c0_i32_1 = arith.constant 0 : i32
    return %c0_i32, %c0_i32_0 : i32, i32
  }
  func.func @transform_2(%arg0: i32) -> (i32, i32) {
    %c0_i32 = arith.constant 0 : i32
    %c0_i32_0 = arith.constant 0 : i32
    %c0_i32_1 = arith.constant 0 : i32
    return %c0_i32, %c0_i32_0 : i32, i32
  }
  func.func @transform_3(%arg0: i32) -> (i32, i32) {
    %c0_i32 = arith.constant 0 : i32
    %c0_i32_0 = arith.constant 0 : i32
    return %arg0, %c0_i32 : i32, i32
  }
}

module attributes {stable_mosaic.version = 11 : i64} {
  func.func @_matmul_act_kernel(%arg0: i32, %arg1: memref<24x64xf32, #tpu.memory_space<vmem>>, %arg2: memref<64x32xbf16, #tpu.memory_space<vmem>>, %arg3: memref<1x32xf32, #tpu.memory_space<vmem>>, %arg4: memref<24x32xf32, #tpu.memory_space<vmem>>) attributes {dimension_semantics = [#tpu.dimension_semantics<parallel>], iteration_bounds = array<i64: 1>, scalar_prefetch = 0 : i64, scratch_operands = 0 : i64, tpu.core_type = #tpu.core_type<tc>, window_params = [{transform_indices = @transform_0, window_bounds = array<i64: 24, 64>}, {pipeline_mode = #tpu.pipeline_mode<synchronous>, transform_indices = @transform_1, window_bounds = array<i64: 64, 32>}, {pipeline_mode = #tpu.pipeline_mode<synchronous>, transform_indices = @transform_2, window_bounds = array<i64: 1, 32>}, {transform_indices = @transform_3, window_bounds = array<i64: 24, 32>}]} {
    %c0 = arith.constant 0 : index
    %c0_0 = arith.constant 0 : index
    %0 = vector.load %arg1[%c0, %c0_0] : memref<24x64xf32, #tpu.memory_space<vmem>>, vector<24x64xf32>
    %1 = arith.truncf %0 : vector<24x64xf32> to vector<24x64xbf16>
    %c0_1 = arith.constant 0 : index
    %c0_2 = arith.constant 0 : index
    %2 = vector.load %arg2[%c0_1, %c0_2] : memref<64x32xbf16, #tpu.memory_space<vmem>>, vector<64x32xbf16>
    %cst = arith.constant dense<0.000000e+00> : vector<24x32xf32>
    %3 = tpu.matmul %1, %2, %cst {dimension_numbers = #tpu.dot_dimension_numbers<[1], [0], [0], [1], [0, 0, 1, 1], [], []>} : vector<24x64xbf16>, vector<64x32xbf16>, vector<24x32xf32> -> vector<24x32xf32>
    %c0_3 = arith.constant 0 : index
    %c0_4 = arith.constant 0 : index
    %4 = vector.load %arg3[%c0_3, %c0_4] : memref<1x32xf32, #tpu.memory_space<vmem>>, vector<1x32xf32>
    %5 = vector.broadcast %4 : vector<1x32xf32> to vector<24x32xf32>
    %6 = arith.addf %3, %5 : vector<24x32xf32>
    %7 = arith.mulf %6, %6 : vector<24x32xf32>
    %8 = arith.mulf %6, %7 : vector<24x32xf32>
    %cst_5 = arith.constant 4.471500e-02 : f32
    %9 = vector.broadcast %cst_5 : f32 to vector<24x32xf32>
    %10 = arith.mulf %9, %8 : vector<24x32xf32>
    %11 = arith.addf %6, %10 : vector<24x32xf32>
    %cst_6 = arith.constant 0.797884583 : f32
    %12 = vector.broadcast %cst_6 : f32 to vector<24x32xf32>
    %13 = arith.mulf %12, %11 : vector<24x32xf32>
    %14 = math.tanh %13 : vector<24x32xf32>
    %cst_7 = arith.constant 1.000000e+00 : f32
    %15 = vector.broadcast %cst_7 : f32 to vector<24x32xf32>
    %16 = arith.addf %15, %14 : vector<24x32xf32>
    %cst_8 = arith.constant 5.000000e-01 : f32
    %17 = vector.broadcast %cst_8 : f32 to vector<24x32xf32>
    %18 = arith.mulf %17, %16 : vector<24x32xf32>
    %19 = arith.mulf %6, %18 : vector<24x32xf32>
    %c0_9 = arith.constant 0 : index
    %c0_10 = arith.constant 0 : index
    %20 = vector.load %arg4[%c0_9, %c0_10] : memref<24x32xf32, #tpu.memory_space<vmem>>, vector<24x32xf32>
    tpu.vector_store %arg4[%c0_9, %c0_10], %19 {strides = array<i32>} : memref<24x32xf32, #tpu.memory_space<vmem>>, vector<24x32xf32>,
    return
  }
  func.func @transform_0(%arg0: i32) -> (i32, i32) {
    %c0_i32 = arith.constant 0 : i32
    %c0_i32_0 = arith.constant 0 : i32
    return %arg0, %c0_i32 : i32, i32
  }
  func.func @transform_1(%arg0: i32) -> (i32, i32) {
    %c0_i32 = arith.constant 0 : i32
    %c0_i32_0 = arith.constant 0 : i32
    %c0_i32_1 = arith.constant 0 : i32
    return %c0_i32, %c0_i32_0 : i32, i32
  }
  func.func @transform_2(%arg0: i32) -> (i32, i32) {
    %c0_i32 = arith.constant 0 : i32
    %c0_i32_0 = arith.constant 0 : i32
    %c0_i32_1 = arith.constant 0 : i32
    return %c0_i32, %c0_i32_0 : i32, i32
  }
  func.func @transform_3(%arg0: i32) -> (i32, i32) {
    %c0_i32 = arith.constant 0 : i32
    %c0_i32_0 = arith.constant 0 : i32
    return %arg0, %c0_i32 : i32, i32
  }
}

module attributes {stable_mosaic.version = 11 : i64} {
  func.func @_posconv_ln_kernel(%arg0: i32, %arg1: memref<1x6x32xf32, #tpu.memory_space<vmem>>, %arg2: memref<96x32xbf16, #tpu.memory_space<vmem>>, %arg3: memref<1x32xf32, #tpu.memory_space<vmem>>, %arg4: memref<1x32xf32, #tpu.memory_space<vmem>>, %arg5: memref<1x32xf32, #tpu.memory_space<vmem>>, %arg6: memref<1x4x32xf32, #tpu.memory_space<vmem>>) attributes {dimension_semantics = [#tpu.dimension_semantics<parallel>], iteration_bounds = array<i64: 2>, scalar_prefetch = 0 : i64, scratch_operands = 0 : i64, tpu.core_type = #tpu.core_type<tc>, window_params = [{transform_indices = @transform_0, window_bounds = array<i64: 1, 6, 32>}, {pipeline_mode = #tpu.pipeline_mode<synchronous>, transform_indices = @transform_1, window_bounds = array<i64: 96, 32>}, {pipeline_mode = #tpu.pipeline_mode<synchronous>, transform_indices = @transform_2, window_bounds = array<i64: 1, 32>}, {pipeline_mode = #tpu.pipeline_mode<synchronous>, transform_indices = @transform_3, window_bounds = array<i64: 1, 32>}, {pipeline_mode = #tpu.pipeline_mode<synchronous>, transform_indices = @transform_4, window_bounds = array<i64: 1, 32>}, {transform_indices = @transform_5, window_bounds = array<i64: 1, 4, 32>}]} {
    %c0 = arith.constant 0 : index
    %c0_0 = arith.constant 0 : index
    %c0_1 = arith.constant 0 : index
    %0 = vector.load %arg1[%c0, %c0_0, %c0_1] : memref<1x6x32xf32, #tpu.memory_space<vmem>>, vector<1x6x32xf32>
    %1 = vector.shape_cast %0 : vector<1x6x32xf32> to vector<6x32xf32>
    %2 = arith.truncf %1 : vector<6x32xf32> to vector<6x32xbf16>
    %c0_2 = arith.constant 0 : index
    %c0_3 = arith.constant 0 : index
    %3 = vector.load %arg2[%c0_2, %c0_3] : memref<96x32xbf16, #tpu.memory_space<vmem>>, vector<96x32xbf16>
    %cst = arith.constant 0.000000e+00 : f32
    %4 = vector.broadcast %cst : f32 to vector<4x32xf32>
    %5 = vector.extract_strided_slice %2 {offsets = [0, 0], sizes = [4, 32], strides = [1, 1]} : vector<6x32xbf16> to vector<4x32xbf16>
    %6 = vector.extract_strided_slice %3 {offsets = [0, 0], sizes = [32, 32], strides = [1, 1]} : vector<96x32xbf16> to vector<32x32xbf16>
    %cst_4 = arith.constant dense<0.000000e+00> : vector<4x32xf32>
    %7 = tpu.matmul %5, %6, %cst_4 {dimension_numbers = #tpu.dot_dimension_numbers<[1], [0], [0], [1], [0, 0, 1, 1], [], []>} : vector<4x32xbf16>, vector<32x32xbf16>, vector<4x32xf32> -> vector<4x32xf32>
    %8 = arith.addf %4, %7 : vector<4x32xf32>
    %9 = vector.extract_strided_slice %2 {offsets = [1, 0], sizes = [4, 32], strides = [1, 1]} : vector<6x32xbf16> to vector<4x32xbf16>
    %10 = vector.extract_strided_slice %3 {offsets = [32, 0], sizes = [32, 32], strides = [1, 1]} : vector<96x32xbf16> to vector<32x32xbf16>
    %cst_5 = arith.constant dense<0.000000e+00> : vector<4x32xf32>
    %11 = tpu.matmul %9, %10, %cst_5 {dimension_numbers = #tpu.dot_dimension_numbers<[1], [0], [0], [1], [0, 0, 1, 1], [], []>} : vector<4x32xbf16>, vector<32x32xbf16>, vector<4x32xf32> -> vector<4x32xf32>
    %12 = arith.addf %8, %11 : vector<4x32xf32>
    %13 = vector.extract_strided_slice %2 {offsets = [2, 0], sizes = [4, 32], strides = [1, 1]} : vector<6x32xbf16> to vector<4x32xbf16>
    %14 = vector.extract_strided_slice %3 {offsets = [64, 0], sizes = [32, 32], strides = [1, 1]} : vector<96x32xbf16> to vector<32x32xbf16>
    %cst_6 = arith.constant dense<0.000000e+00> : vector<4x32xf32>
    %15 = tpu.matmul %13, %14, %cst_6 {dimension_numbers = #tpu.dot_dimension_numbers<[1], [0], [0], [1], [0, 0, 1, 1], [], []>} : vector<4x32xbf16>, vector<32x32xbf16>, vector<4x32xf32> -> vector<4x32xf32>
    %16 = arith.addf %12, %15 : vector<4x32xf32>
    %c0_7 = arith.constant 0 : index
    %c0_8 = arith.constant 0 : index
    %17 = vector.load %arg3[%c0_7, %c0_8] : memref<1x32xf32, #tpu.memory_space<vmem>>, vector<1x32xf32>
    %18 = vector.broadcast %17 : vector<1x32xf32> to vector<4x32xf32>
    %19 = arith.addf %16, %18 : vector<4x32xf32>
    %20 = arith.mulf %19, %19 : vector<4x32xf32>
    %21 = arith.mulf %19, %20 : vector<4x32xf32>
    %cst_9 = arith.constant 4.471500e-02 : f32
    %22 = vector.broadcast %cst_9 : f32 to vector<4x32xf32>
    %23 = arith.mulf %22, %21 : vector<4x32xf32>
    %24 = arith.addf %19, %23 : vector<4x32xf32>
    %cst_10 = arith.constant 0.797884583 : f32
    %25 = vector.broadcast %cst_10 : f32 to vector<4x32xf32>
    %26 = arith.mulf %25, %24 : vector<4x32xf32>
    %27 = math.tanh %26 : vector<4x32xf32>
    %cst_11 = arith.constant 1.000000e+00 : f32
    %28 = vector.broadcast %cst_11 : f32 to vector<4x32xf32>
    %29 = arith.addf %28, %27 : vector<4x32xf32>
    %cst_12 = arith.constant 5.000000e-01 : f32
    %30 = vector.broadcast %cst_12 : f32 to vector<4x32xf32>
    %31 = arith.mulf %30, %29 : vector<4x32xf32>
    %32 = arith.mulf %19, %31 : vector<4x32xf32>
    %33 = vector.extract_strided_slice %1 {offsets = [1, 0], sizes = [4, 32], strides = [1, 1]} : vector<6x32xf32> to vector<4x32xf32>
    %34 = arith.addf %33, %32 : vector<4x32xf32>
    %c0_13 = arith.constant 0 : index
    %c0_14 = arith.constant 0 : index
    %35 = vector.load %arg4[%c0_13, %c0_14] : memref<1x32xf32, #tpu.memory_space<vmem>>, vector<1x32xf32>
    %c0_15 = arith.constant 0 : index
    %c0_16 = arith.constant 0 : index
    %36 = vector.load %arg5[%c0_15, %c0_16] : memref<1x32xf32, #tpu.memory_space<vmem>>, vector<1x32xf32>
    %cst_17 = arith.constant dense<0.000000e+00> : vector<4xf32>
    %37 = vector.multi_reduction <add>, %34, %cst_17 [1] : vector<4x32xf32> to vector<4xf32>
    %38 = vector.shape_cast %37 : vector<4xf32> to vector<4x1xf32>
    %cst_18 = arith.constant 3.200000e+01 : f32
    %39 = vector.broadcast %cst_18 : f32 to vector<4x1xf32>
    %40 = arith.divf %38, %39 : vector<4x1xf32>
    %41 = vector.broadcast %40 : vector<4x1xf32> to vector<4x32xf32>
    %42 = arith.subf %34, %41 : vector<4x32xf32>
    %43 = arith.mulf %42, %42 : vector<4x32xf32>
    %cst_19 = arith.constant dense<0.000000e+00> : vector<4xf32>
    %44 = vector.multi_reduction <add>, %43, %cst_19 [1] : vector<4x32xf32> to vector<4xf32>
    %45 = vector.shape_cast %44 : vector<4xf32> to vector<4x1xf32>
    %cst_20 = arith.constant 3.200000e+01 : f32
    %46 = vector.broadcast %cst_20 : f32 to vector<4x1xf32>
    %47 = arith.divf %45, %46 : vector<4x1xf32>
    %48 = vector.broadcast %40 : vector<4x1xf32> to vector<4x32xf32>
    %49 = arith.subf %34, %48 : vector<4x32xf32>
    %cst_21 = arith.constant 9.99999974E-6 : f32
    %50 = vector.broadcast %cst_21 : f32 to vector<4x1xf32>
    %51 = arith.addf %47, %50 : vector<4x1xf32>
    %52 = math.rsqrt %51 : vector<4x1xf32>
    %53 = vector.broadcast %52 : vector<4x1xf32> to vector<4x32xf32>
    %54 = arith.mulf %49, %53 : vector<4x32xf32>
    %55 = vector.broadcast %35 : vector<1x32xf32> to vector<4x32xf32>
    %56 = arith.mulf %54, %55 : vector<4x32xf32>
    %57 = vector.broadcast %36 : vector<1x32xf32> to vector<4x32xf32>
    %58 = arith.addf %56, %57 : vector<4x32xf32>
    %59 = vector.shape_cast %58 : vector<4x32xf32> to vector<1x4x32xf32>
    %c0_22 = arith.constant 0 : index
    %c0_23 = arith.constant 0 : index
    %c0_24 = arith.constant 0 : index
    %60 = vector.load %arg6[%c0_22, %c0_23, %c0_24] : memref<1x4x32xf32, #tpu.memory_space<vmem>>, vector<1x4x32xf32>
    tpu.vector_store %arg6[%c0_22, %c0_23, %c0_24], %59 {strides = array<i32>} : memref<1x4x32xf32, #tpu.memory_space<vmem>>, vector<1x4x32xf32>,
    return
  }
  func.func @transform_0(%arg0: i32) -> (i32, i32, i32) {
    %c0_i32 = arith.constant 0 : i32
    %c0_i32_0 = arith.constant 0 : i32
    %c0_i32_1 = arith.constant 0 : i32
    return %arg0, %c0_i32, %c0_i32_0 : i32, i32, i32
  }
  func.func @transform_1(%arg0: i32) -> (i32, i32) {
    %c0_i32 = arith.constant 0 : i32
    %c0_i32_0 = arith.constant 0 : i32
    %c0_i32_1 = arith.constant 0 : i32
    return %c0_i32, %c0_i32_0 : i32, i32
  }
  func.func @transform_2(%arg0: i32) -> (i32, i32) {
    %c0_i32 = arith.constant 0 : i32
    %c0_i32_0 = arith.constant 0 : i32
    %c0_i32_1 = arith.constant 0 : i32
    return %c0_i32, %c0_i32_0 : i32, i32
  }
  func.func @transform_3(%arg0: i32) -> (i32, i32) {
    %c0_i32 = arith.constant 0 : i32
    %c0_i32_0 = arith.constant 0 : i32
    %c0_i32_1 = arith.constant 0 : i32
    return %c0_i32, %c0_i32_0 : i32, i32
  }
  func.func @transform_4(%arg0: i32) -> (i32, i32) {
    %c0_i32 = arith.constant 0 : i32
    %c0_i32_0 = arith.constant 0 : i32
    %c0_i32_1 = arith.constant 0 : i32
    return %c0_i32, %c0_i32_0 : i32, i32
  }
  func.func @transform_5(%arg0: i32) -> (i32, i32, i32) {
    %c0_i32 = arith.constant 0 : i32
    %c0_i32_0 = arith.constant 0 : i32
    %c0_i32_1 = arith.constant 0 : i32
    return %arg0, %c0_i32, %c0_i32_0 : i32, i32, i32
  }
}

module attributes {stable_mosaic.version = 11 : i64} {
  func.func @_encoder_layer_kernel(%arg0: i32, %arg1: memref<1x4x32xf32, #tpu.memory_space<vmem>>, %arg2: memref<32x96xbf16, #tpu.memory_space<vmem>>, %arg3: memref<1x96xf32, #tpu.memory_space<vmem>>, %arg4: memref<32x32xbf16, #tpu.memory_space<vmem>>, %arg5: memref<1x32xf32, #tpu.memory_space<vmem>>, %arg6: memref<1x32xf32, #tpu.memory_space<vmem>>, %arg7: memref<1x32xf32, #tpu.memory_space<vmem>>, %arg8: memref<32x64xbf16, #tpu.memory_space<vmem>>, %arg9: memref<1x64xf32, #tpu.memory_space<vmem>>, %arg10: memref<64x32xbf16, #tpu.memory_space<vmem>>, %arg11: memref<1x32xf32, #tpu.memory_space<vmem>>, %arg12: memref<1x32xf32, #tpu.memory_space<vmem>>, %arg13: memref<1x32xf32, #tpu.memory_space<vmem>>, %arg14: memref<1x4x32xf32, #tpu.memory_space<vmem>>) attributes {dimension_semantics = [#tpu.dimension_semantics<parallel>], iteration_bounds = array<i64: 2>, scalar_prefetch = 0 : i64, scratch_operands = 0 : i64, tpu.core_type = #tpu.core_type<tc>, window_params = [{transform_indices = @transform_0, window_bounds = array<i64: 1, 4, 32>}, {pipeline_mode = #tpu.pipeline_mode<synchronous>, transform_indices = @transform_1, window_bounds = array<i64: 32, 96>}, {pipeline_mode = #tpu.pipeline_mode<synchronous>, transform_indices = @transform_2, window_bounds = array<i64: 1, 96>}, {pipeline_mode = #tpu.pipeline_mode<synchronous>, transform_indices = @transform_3, window_bounds = array<i64: 32, 32>}, {pipeline_mode = #tpu.pipeline_mode<synchronous>, transform_indices = @transform_4, window_bounds = array<i64: 1, 32>}, {pipeline_mode = #tpu.pipeline_mode<synchronous>, transform_indices = @transform_5, window_bounds = array<i64: 1, 32>}, {pipeline_mode = #tpu.pipeline_mode<synchronous>, transform_indices = @transform_6, window_bounds = array<i64: 1, 32>}, {pipeline_mode = #tpu.pipeline_mode<synchronous>, transform_indices = @transform_7, window_bounds = array<i64: 32, 64>}, {pipeline_mode = #tpu.pipeline_mode<synchronous>, transform_indices = @transform_8, window_bounds = array<i64: 1, 64>}, {pipeline_mode = #tpu.pipeline_mode<synchronous>, transform_indices = @transform_9, window_bounds = array<i64: 64, 32>}, {pipeline_mode = #tpu.pipeline_mode<synchronous>, transform_indices = @transform_10, window_bounds = array<i64: 1, 32>}, {pipeline_mode = #tpu.pipeline_mode<synchronous>, transform_indices = @transform_11, window_bounds = array<i64: 1, 32>}, {pipeline_mode = #tpu.pipeline_mode<synchronous>, transform_indices = @transform_12, window_bounds = array<i64: 1, 32>}, {transform_indices = @transform_13, window_bounds = array<i64: 1, 4, 32>}]} {
    %c0 = arith.constant 0 : index
    %c0_0 = arith.constant 0 : index
    %c0_1 = arith.constant 0 : index
    %0 = vector.load %arg1[%c0, %c0_0, %c0_1] : memref<1x4x32xf32, #tpu.memory_space<vmem>>, vector<1x4x32xf32>
    %1 = vector.shape_cast %0 : vector<1x4x32xf32> to vector<4x32xf32>
    %2 = arith.truncf %1 : vector<4x32xf32> to vector<4x32xbf16>
    %c0_2 = arith.constant 0 : index
    %c0_3 = arith.constant 0 : index
    %3 = vector.load %arg2[%c0_2, %c0_3] : memref<32x96xbf16, #tpu.memory_space<vmem>>, vector<32x96xbf16>
    %cst = arith.constant dense<0.000000e+00> : vector<4x96xf32>
    %4 = tpu.matmul %2, %3, %cst {dimension_numbers = #tpu.dot_dimension_numbers<[1], [0], [0], [1], [0, 0, 1, 1], [], []>} : vector<4x32xbf16>, vector<32x96xbf16>, vector<4x96xf32> -> vector<4x96xf32>
    %c0_4 = arith.constant 0 : index
    %c0_5 = arith.constant 0 : index
    %5 = vector.load %arg3[%c0_4, %c0_5] : memref<1x96xf32, #tpu.memory_space<vmem>>, vector<1x96xf32>
    %6 = vector.broadcast %5 : vector<1x96xf32> to vector<4x96xf32>
    %7 = arith.addf %4, %6 : vector<4x96xf32>
    %8 = vector.extract_strided_slice %7 {offsets = [0, 0], sizes = [4, 8], strides = [1, 1]} : vector<4x96xf32> to vector<4x8xf32>
    %cst_6 = arith.constant 0.353553385 : f32
    %9 = vector.broadcast %cst_6 : f32 to vector<4x8xf32>
    %10 = arith.mulf %8, %9 : vector<4x8xf32>
    %11 = vector.extract_strided_slice %7 {offsets = [0, 32], sizes = [4, 8], strides = [1, 1]} : vector<4x96xf32> to vector<4x8xf32>
    %12 = vector.extract_strided_slice %7 {offsets = [0, 64], sizes = [4, 8], strides = [1, 1]} : vector<4x96xf32> to vector<4x8xf32>
    %13 = tpu.transpose %11, [1, 0] : vector<4x8xf32> -> vector<8x4xf32>
    %cst_7 = arith.constant dense<0.000000e+00> : vector<4x4xf32>
    %14 = tpu.matmul %10, %13, %cst_7 {dimension_numbers = #tpu.dot_dimension_numbers<[1], [0], [0], [1], [0, 0, 1, 1], [], []>} : vector<4x8xf32>, vector<8x4xf32>, vector<4x4xf32> -> vector<4x4xf32>
    %cst_8 = arith.constant dense<0xFF800000> : vector<4xf32>
    %15 = vector.multi_reduction <maximumf>, %14, %cst_8 [1] : vector<4x4xf32> to vector<4xf32>
    %16 = vector.shape_cast %15 : vector<4xf32> to vector<4x1xf32>
    %17 = vector.broadcast %16 : vector<4x1xf32> to vector<4x4xf32>
    %18 = arith.subf %14, %17 : vector<4x4xf32>
    %19 = math.exp %18 : vector<4x4xf32>
    %cst_9 = arith.constant dense<0.000000e+00> : vector<4xf32>
    %20 = vector.multi_reduction <add>, %19, %cst_9 [1] : vector<4x4xf32> to vector<4xf32>
    %21 = vector.shape_cast %20 : vector<4xf32> to vector<4x1xf32>
    %22 = tpu.reciprocal %21 {approx = true} : vector<4x1xf32> -> vector<4x1xf32>
    %23 = vector.broadcast %22 : vector<4x1xf32> to vector<4x4xf32>
    %24 = arith.mulf %19, %23 : vector<4x4xf32>
    %cst_10 = arith.constant dense<0.000000e+00> : vector<4x8xf32>
    %25 = tpu.matmul %24, %12, %cst_10 {dimension_numbers = #tpu.dot_dimension_numbers<[1], [0], [0], [1], [0, 0, 1, 1], [], []>} : vector<4x4xf32>, vector<4x8xf32>, vector<4x8xf32> -> vector<4x8xf32>
    %26 = vector.extract_strided_slice %7 {offsets = [0, 8], sizes = [4, 8], strides = [1, 1]} : vector<4x96xf32> to vector<4x8xf32>
    %cst_11 = arith.constant 0.353553385 : f32
    %27 = vector.broadcast %cst_11 : f32 to vector<4x8xf32>
    %28 = arith.mulf %26, %27 : vector<4x8xf32>
    %29 = vector.extract_strided_slice %7 {offsets = [0, 40], sizes = [4, 8], strides = [1, 1]} : vector<4x96xf32> to vector<4x8xf32>
    %30 = vector.extract_strided_slice %7 {offsets = [0, 72], sizes = [4, 8], strides = [1, 1]} : vector<4x96xf32> to vector<4x8xf32>
    %31 = tpu.transpose %29, [1, 0] : vector<4x8xf32> -> vector<8x4xf32>
    %cst_12 = arith.constant dense<0.000000e+00> : vector<4x4xf32>
    %32 = tpu.matmul %28, %31, %cst_12 {dimension_numbers = #tpu.dot_dimension_numbers<[1], [0], [0], [1], [0, 0, 1, 1], [], []>} : vector<4x8xf32>, vector<8x4xf32>, vector<4x4xf32> -> vector<4x4xf32>
    %cst_13 = arith.constant dense<0xFF800000> : vector<4xf32>
    %33 = vector.multi_reduction <maximumf>, %32, %cst_13 [1] : vector<4x4xf32> to vector<4xf32>
    %34 = vector.shape_cast %33 : vector<4xf32> to vector<4x1xf32>
    %35 = vector.broadcast %34 : vector<4x1xf32> to vector<4x4xf32>
    %36 = arith.subf %32, %35 : vector<4x4xf32>
    %37 = math.exp %36 : vector<4x4xf32>
    %cst_14 = arith.constant dense<0.000000e+00> : vector<4xf32>
    %38 = vector.multi_reduction <add>, %37, %cst_14 [1] : vector<4x4xf32> to vector<4xf32>
    %39 = vector.shape_cast %38 : vector<4xf32> to vector<4x1xf32>
    %40 = tpu.reciprocal %39 {approx = true} : vector<4x1xf32> -> vector<4x1xf32>
    %41 = vector.broadcast %40 : vector<4x1xf32> to vector<4x4xf32>
    %42 = arith.mulf %37, %41 : vector<4x4xf32>
    %cst_15 = arith.constant dense<0.000000e+00> : vector<4x8xf32>
    %43 = tpu.matmul %42, %30, %cst_15 {dimension_numbers = #tpu.dot_dimension_numbers<[1], [0], [0], [1], [0, 0, 1, 1], [], []>} : vector<4x4xf32>, vector<4x8xf32>, vector<4x8xf32> -> vector<4x8xf32>
    %44 = vector.extract_strided_slice %7 {offsets = [0, 16], sizes = [4, 8], strides = [1, 1]} : vector<4x96xf32> to vector<4x8xf32>
    %cst_16 = arith.constant 0.353553385 : f32
    %45 = vector.broadcast %cst_16 : f32 to vector<4x8xf32>
    %46 = arith.mulf %44, %45 : vector<4x8xf32>
    %47 = vector.extract_strided_slice %7 {offsets = [0, 48], sizes = [4, 8], strides = [1, 1]} : vector<4x96xf32> to vector<4x8xf32>
    %48 = vector.extract_strided_slice %7 {offsets = [0, 80], sizes = [4, 8], strides = [1, 1]} : vector<4x96xf32> to vector<4x8xf32>
    %49 = tpu.transpose %47, [1, 0] : vector<4x8xf32> -> vector<8x4xf32>
    %cst_17 = arith.constant dense<0.000000e+00> : vector<4x4xf32>
    %50 = tpu.matmul %46, %49, %cst_17 {dimension_numbers = #tpu.dot_dimension_numbers<[1], [0], [0], [1], [0, 0, 1, 1], [], []>} : vector<4x8xf32>, vector<8x4xf32>, vector<4x4xf32> -> vector<4x4xf32>
    %cst_18 = arith.constant dense<0xFF800000> : vector<4xf32>
    %51 = vector.multi_reduction <maximumf>, %50, %cst_18 [1] : vector<4x4xf32> to vector<4xf32>
    %52 = vector.shape_cast %51 : vector<4xf32> to vector<4x1xf32>
    %53 = vector.broadcast %52 : vector<4x1xf32> to vector<4x4xf32>
    %54 = arith.subf %50, %53 : vector<4x4xf32>
    %55 = math.exp %54 : vector<4x4xf32>
    %cst_19 = arith.constant dense<0.000000e+00> : vector<4xf32>
    %56 = vector.multi_reduction <add>, %55, %cst_19 [1] : vector<4x4xf32> to vector<4xf32>
    %57 = vector.shape_cast %56 : vector<4xf32> to vector<4x1xf32>
    %58 = tpu.reciprocal %57 {approx = true} : vector<4x1xf32> -> vector<4x1xf32>
    %59 = vector.broadcast %58 : vector<4x1xf32> to vector<4x4xf32>
    %60 = arith.mulf %55, %59 : vector<4x4xf32>
    %cst_20 = arith.constant dense<0.000000e+00> : vector<4x8xf32>
    %61 = tpu.matmul %60, %48, %cst_20 {dimension_numbers = #tpu.dot_dimension_numbers<[1], [0], [0], [1], [0, 0, 1, 1], [], []>} : vector<4x4xf32>, vector<4x8xf32>, vector<4x8xf32> -> vector<4x8xf32>
    %62 = vector.extract_strided_slice %7 {offsets = [0, 24], sizes = [4, 8], strides = [1, 1]} : vector<4x96xf32> to vector<4x8xf32>
    %cst_21 = arith.constant 0.353553385 : f32
    %63 = vector.broadcast %cst_21 : f32 to vector<4x8xf32>
    %64 = arith.mulf %62, %63 : vector<4x8xf32>
    %65 = vector.extract_strided_slice %7 {offsets = [0, 56], sizes = [4, 8], strides = [1, 1]} : vector<4x96xf32> to vector<4x8xf32>
    %66 = vector.extract_strided_slice %7 {offsets = [0, 88], sizes = [4, 8], strides = [1, 1]} : vector<4x96xf32> to vector<4x8xf32>
    %67 = tpu.transpose %65, [1, 0] : vector<4x8xf32> -> vector<8x4xf32>
    %cst_22 = arith.constant dense<0.000000e+00> : vector<4x4xf32>
    %68 = tpu.matmul %64, %67, %cst_22 {dimension_numbers = #tpu.dot_dimension_numbers<[1], [0], [0], [1], [0, 0, 1, 1], [], []>} : vector<4x8xf32>, vector<8x4xf32>, vector<4x4xf32> -> vector<4x4xf32>
    %cst_23 = arith.constant dense<0xFF800000> : vector<4xf32>
    %69 = vector.multi_reduction <maximumf>, %68, %cst_23 [1] : vector<4x4xf32> to vector<4xf32>
    %70 = vector.shape_cast %69 : vector<4xf32> to vector<4x1xf32>
    %71 = vector.broadcast %70 : vector<4x1xf32> to vector<4x4xf32>
    %72 = arith.subf %68, %71 : vector<4x4xf32>
    %73 = math.exp %72 : vector<4x4xf32>
    %cst_24 = arith.constant dense<0.000000e+00> : vector<4xf32>
    %74 = vector.multi_reduction <add>, %73, %cst_24 [1] : vector<4x4xf32> to vector<4xf32>
    %75 = vector.shape_cast %74 : vector<4xf32> to vector<4x1xf32>
    %76 = tpu.reciprocal %75 {approx = true} : vector<4x1xf32> -> vector<4x1xf32>
    %77 = vector.broadcast %76 : vector<4x1xf32> to vector<4x4xf32>
    %78 = arith.mulf %73, %77 : vector<4x4xf32>
    %cst_25 = arith.constant dense<0.000000e+00> : vector<4x8xf32>
    %79 = tpu.matmul %78, %66, %cst_25 {dimension_numbers = #tpu.dot_dimension_numbers<[1], [0], [0], [1], [0, 0, 1, 1], [], []>} : vector<4x4xf32>, vector<4x8xf32>, vector<4x8xf32> -> vector<4x8xf32>
    %80 = tpu.concatenate %25, %43, %61, %79 in 1 : vector<4x8xf32>, vector<4x8xf32>, vector<4x8xf32>, vector<4x8xf32> -> vector<4x32xf32>
    %81 = arith.truncf %80 : vector<4x32xf32> to vector<4x32xbf16>
    %c0_26 = arith.constant 0 : index
    %c0_27 = arith.constant 0 : index
    %82 = vector.load %arg4[%c0_26, %c0_27] : memref<32x32xbf16, #tpu.memory_space<vmem>>, vector<32x32xbf16>
    %cst_28 = arith.constant dense<0.000000e+00> : vector<4x32xf32>
    %83 = tpu.matmul %81, %82, %cst_28 {dimension_numbers = #tpu.dot_dimension_numbers<[1], [0], [0], [1], [0, 0, 1, 1], [], []>} : vector<4x32xbf16>, vector<32x32xbf16>, vector<4x32xf32> -> vector<4x32xf32>
    %c0_29 = arith.constant 0 : index
    %c0_30 = arith.constant 0 : index
    %84 = vector.load %arg5[%c0_29, %c0_30] : memref<1x32xf32, #tpu.memory_space<vmem>>, vector<1x32xf32>
    %85 = vector.broadcast %84 : vector<1x32xf32> to vector<4x32xf32>
    %86 = arith.addf %83, %85 : vector<4x32xf32>
    %87 = arith.addf %1, %86 : vector<4x32xf32>
    %c0_31 = arith.constant 0 : index
    %c0_32 = arith.constant 0 : index
    %88 = vector.load %arg6[%c0_31, %c0_32] : memref<1x32xf32, #tpu.memory_space<vmem>>, vector<1x32xf32>
    %c0_33 = arith.constant 0 : index
    %c0_34 = arith.constant 0 : index
    %89 = vector.load %arg7[%c0_33, %c0_34] : memref<1x32xf32, #tpu.memory_space<vmem>>, vector<1x32xf32>
    %cst_35 = arith.constant dense<0.000000e+00> : vector<4xf32>
    %90 = vector.multi_reduction <add>, %87, %cst_35 [1] : vector<4x32xf32> to vector<4xf32>
    %91 = vector.shape_cast %90 : vector<4xf32> to vector<4x1xf32>
    %cst_36 = arith.constant 3.200000e+01 : f32
    %92 = vector.broadcast %cst_36 : f32 to vector<4x1xf32>
    %93 = arith.divf %91, %92 : vector<4x1xf32>
    %94 = vector.broadcast %93 : vector<4x1xf32> to vector<4x32xf32>
    %95 = arith.subf %87, %94 : vector<4x32xf32>
    %96 = arith.mulf %95, %95 : vector<4x32xf32>
    %cst_37 = arith.constant dense<0.000000e+00> : vector<4xf32>
    %97 = vector.multi_reduction <add>, %96, %cst_37 [1] : vector<4x32xf32> to vector<4xf32>
    %98 = vector.shape_cast %97 : vector<4xf32> to vector<4x1xf32>
    %cst_38 = arith.constant 3.200000e+01 : f32
    %99 = vector.broadcast %cst_38 : f32 to vector<4x1xf32>
    %100 = arith.divf %98, %99 : vector<4x1xf32>
    %101 = vector.broadcast %93 : vector<4x1xf32> to vector<4x32xf32>
    %102 = arith.subf %87, %101 : vector<4x32xf32>
    %cst_39 = arith.constant 9.99999974E-6 : f32
    %103 = vector.broadcast %cst_39 : f32 to vector<4x1xf32>
    %104 = arith.addf %100, %103 : vector<4x1xf32>
    %105 = math.rsqrt %104 : vector<4x1xf32>
    %106 = vector.broadcast %105 : vector<4x1xf32> to vector<4x32xf32>
    %107 = arith.mulf %102, %106 : vector<4x32xf32>
    %108 = vector.broadcast %88 : vector<1x32xf32> to vector<4x32xf32>
    %109 = arith.mulf %107, %108 : vector<4x32xf32>
    %110 = vector.broadcast %89 : vector<1x32xf32> to vector<4x32xf32>
    %111 = arith.addf %109, %110 : vector<4x32xf32>
    %112 = arith.truncf %111 : vector<4x32xf32> to vector<4x32xbf16>
    %c0_40 = arith.constant 0 : index
    %c0_41 = arith.constant 0 : index
    %113 = vector.load %arg8[%c0_40, %c0_41] : memref<32x64xbf16, #tpu.memory_space<vmem>>, vector<32x64xbf16>
    %cst_42 = arith.constant dense<0.000000e+00> : vector<4x64xf32>
    %114 = tpu.matmul %112, %113, %cst_42 {dimension_numbers = #tpu.dot_dimension_numbers<[1], [0], [0], [1], [0, 0, 1, 1], [], []>} : vector<4x32xbf16>, vector<32x64xbf16>, vector<4x64xf32> -> vector<4x64xf32>
    %c0_43 = arith.constant 0 : index
    %c0_44 = arith.constant 0 : index
    %115 = vector.load %arg9[%c0_43, %c0_44] : memref<1x64xf32, #tpu.memory_space<vmem>>, vector<1x64xf32>
    %116 = vector.broadcast %115 : vector<1x64xf32> to vector<4x64xf32>
    %117 = arith.addf %114, %116 : vector<4x64xf32>
    %118 = arith.mulf %117, %117 : vector<4x64xf32>
    %119 = arith.mulf %117, %118 : vector<4x64xf32>
    %cst_45 = arith.constant 4.471500e-02 : f32
    %120 = vector.broadcast %cst_45 : f32 to vector<4x64xf32>
    %121 = arith.mulf %120, %119 : vector<4x64xf32>
    %122 = arith.addf %117, %121 : vector<4x64xf32>
    %cst_46 = arith.constant 0.797884583 : f32
    %123 = vector.broadcast %cst_46 : f32 to vector<4x64xf32>
    %124 = arith.mulf %123, %122 : vector<4x64xf32>
    %125 = math.tanh %124 : vector<4x64xf32>
    %cst_47 = arith.constant 1.000000e+00 : f32
    %126 = vector.broadcast %cst_47 : f32 to vector<4x64xf32>
    %127 = arith.addf %126, %125 : vector<4x64xf32>
    %cst_48 = arith.constant 5.000000e-01 : f32
    %128 = vector.broadcast %cst_48 : f32 to vector<4x64xf32>
    %129 = arith.mulf %128, %127 : vector<4x64xf32>
    %130 = arith.mulf %117, %129 : vector<4x64xf32>
    %131 = arith.truncf %130 : vector<4x64xf32> to vector<4x64xbf16>
    %c0_49 = arith.constant 0 : index
    %c0_50 = arith.constant 0 : index
    %132 = vector.load %arg10[%c0_49, %c0_50] : memref<64x32xbf16, #tpu.memory_space<vmem>>, vector<64x32xbf16>
    %cst_51 = arith.constant dense<0.000000e+00> : vector<4x32xf32>
    %133 = tpu.matmul %131, %132, %cst_51 {dimension_numbers = #tpu.dot_dimension_numbers<[1], [0], [0], [1], [0, 0, 1, 1], [], []>} : vector<4x64xbf16>, vector<64x32xbf16>, vector<4x32xf32> -> vector<4x32xf32>
    %c0_52 = arith.constant 0 : index
    %c0_53 = arith.constant 0 : index
    %134 = vector.load %arg11[%c0_52, %c0_53] : memref<1x32xf32, #tpu.memory_space<vmem>>, vector<1x32xf32>
    %135 = vector.broadcast %134 : vector<1x32xf32> to vector<4x32xf32>
    %136 = arith.addf %133, %135 : vector<4x32xf32>
    %137 = arith.addf %111, %136 : vector<4x32xf32>
    %c0_54 = arith.constant 0 : index
    %c0_55 = arith.constant 0 : index
    %138 = vector.load %arg12[%c0_54, %c0_55] : memref<1x32xf32, #tpu.memory_space<vmem>>, vector<1x32xf32>
    %c0_56 = arith.constant 0 : index
    %c0_57 = arith.constant 0 : index
    %139 = vector.load %arg13[%c0_56, %c0_57] : memref<1x32xf32, #tpu.memory_space<vmem>>, vector<1x32xf32>
    %cst_58 = arith.constant dense<0.000000e+00> : vector<4xf32>
    %140 = vector.multi_reduction <add>, %137, %cst_58 [1] : vector<4x32xf32> to vector<4xf32>
    %141 = vector.shape_cast %140 : vector<4xf32> to vector<4x1xf32>
    %cst_59 = arith.constant 3.200000e+01 : f32
    %142 = vector.broadcast %cst_59 : f32 to vector<4x1xf32>
    %143 = arith.divf %141, %142 : vector<4x1xf32>
    %144 = vector.broadcast %143 : vector<4x1xf32> to vector<4x32xf32>
    %145 = arith.subf %137, %144 : vector<4x32xf32>
    %146 = arith.mulf %145, %145 : vector<4x32xf32>
    %cst_60 = arith.constant dense<0.000000e+00> : vector<4xf32>
    %147 = vector.multi_reduction <add>, %146, %cst_60 [1] : vector<4x32xf32> to vector<4xf32>
    %148 = vector.shape_cast %147 : vector<4xf32> to vector<4x1xf32>
    %cst_61 = arith.constant 3.200000e+01 : f32
    %149 = vector.broadcast %cst_61 : f32 to vector<4x1xf32>
    %150 = arith.divf %148, %149 : vector<4x1xf32>
    %151 = vector.broadcast %143 : vector<4x1xf32> to vector<4x32xf32>
    %152 = arith.subf %137, %151 : vector<4x32xf32>
    %cst_62 = arith.constant 9.99999974E-6 : f32
    %153 = vector.broadcast %cst_62 : f32 to vector<4x1xf32>
    %154 = arith.addf %150, %153 : vector<4x1xf32>
    %155 = math.rsqrt %154 : vector<4x1xf32>
    %156 = vector.broadcast %155 : vector<4x1xf32> to vector<4x32xf32>
    %157 = arith.mulf %152, %156 : vector<4x32xf32>
    %158 = vector.broadcast %138 : vector<1x32xf32> to vector<4x32xf32>
    %159 = arith.mulf %157, %158 : vector<4x32xf32>
    %160 = vector.broadcast %139 : vector<1x32xf32> to vector<4x32xf32>
    %161 = arith.addf %159, %160 : vector<4x32xf32>
    %162 = vector.shape_cast %161 : vector<4x32xf32> to vector<1x4x32xf32>
    %c0_63 = arith.constant 0 : index
    %c0_64 = arith.constant 0 : index
    %c0_65 = arith.constant 0 : index
    %163 = vector.load %arg14[%c0_63, %c0_64, %c0_65] : memref<1x4x32xf32, #tpu.memory_space<vmem>>, vector<1x4x32xf32>
    tpu.vector_store %arg14[%c0_63, %c0_64, %c0_65], %162 {strides = array<i32>} : memref<1x4x32xf32, #tpu.memory_space<vmem>>, vector<1x4x32xf32>,
    return
  }
  func.func @transform_0(%arg0: i32) -> (i32, i32, i32) {
    %c0_i32 = arith.constant 0 : i32
    %c0_i32_0 = arith.constant 0 : i32
    %c0_i32_1 = arith.constant 0 : i32
    return %arg0, %c0_i32, %c0_i32_0 : i32, i32, i32
  }
  func.func @transform_1(%arg0: i32) -> (i32, i32) {
    %c0_i32 = arith.constant 0 : i32
    %c0_i32_0 = arith.constant 0 : i32
    %c0_i32_1 = arith.constant 0 : i32
    return %c0_i32, %c0_i32_0 : i32, i32
  }
  func.func @transform_2(%arg0: i32) -> (i32, i32) {
    %c0_i32 = arith.constant 0 : i32
    %c0_i32_0 = arith.constant 0 : i32
    %c0_i32_1 = arith.constant 0 : i32
    return %c0_i32, %c0_i32_0 : i32, i32
  }
  func.func @transform_3(%arg0: i32) -> (i32, i32) {
    %c0_i32 = arith.constant 0 : i32
    %c0_i32_0 = arith.constant 0 : i32
    %c0_i32_1 = arith.constant 0 : i32
    return %c0_i32, %c0_i32_0 : i32, i32
  }
  func.func @transform_4(%arg0: i32) -> (i32, i32) {
    %c0_i32 = arith.constant 0 : i32
    %c0_i32_0 = arith.constant 0 : i32
    %c0_i32_1 = arith.constant 0 : i32
    return %c0_i32, %c0_i32_0 : i32, i32
  }
  func.func @transform_5(%arg0: i32) -> (i32, i32) {
    %c0_i32 = arith.constant 0 : i32
    %c0_i32_0 = arith.constant 0 : i32
    %c0_i32_1 = arith.constant 0 : i32
    return %c0_i32, %c0_i32_0 : i32, i32
  }
  func.func @transform_6(%arg0: i32) -> (i32, i32) {
    %c0_i32 = arith.constant 0 : i32
    %c0_i32_0 = arith.constant 0 : i32
    %c0_i32_1 = arith.constant 0 : i32
    return %c0_i32, %c0_i32_0 : i32, i32
  }
  func.func @transform_7(%arg0: i32) -> (i32, i32) {
    %c0_i32 = arith.constant 0 : i32
    %c0_i32_0 = arith.constant 0 : i32
    %c0_i32_1 = arith.constant 0 : i32
    return %c0_i32, %c0_i32_0 : i32, i32
  }
  func.func @transform_8(%arg0: i32) -> (i32, i32) {
    %c0_i32 = arith.constant 0 : i32
    %c0_i32_0 = arith.constant 0 : i32
    %c0_i32_1 = arith.constant 0 : i32
    return %c0_i32, %c0_i32_0 : i32, i32
  }
  func.func @transform_9(%arg0: i32) -> (i32, i32) {
    %c0_i32 = arith.constant 0 : i32
    %c0_i32_0 = arith.constant 0 : i32
    %c0_i32_1 = arith.constant 0 : i32
    return %c0_i32, %c0_i32_0 : i32, i32
  }
  func.func @transform_10(%arg0: i32) -> (i32, i32) {
    %c0_i32 = arith.constant 0 : i32
    %c0_i32_0 = arith.constant 0 : i32
    %c0_i32_1 = arith.constant 0 : i32
    return %c0_i32, %c0_i32_0 : i32, i32
  }
  func.func @transform_11(%arg0: i32) -> (i32, i32) {
    %c0_i32 = arith.constant 0 : i32
    %c0_i32_0 = arith.constant 0 : i32
    %c0_i32_1 = arith.constant 0 : i32
    return %c0_i32, %c0_i32_0 : i32, i32
  }
  func.func @transform_12(%arg0: i32) -> (i32, i32) {
    %c0_i32 = arith.constant 0 : i32
    %c0_i32_0 = arith.constant 0 : i32
    %c0_i32_1 = arith.constant 0 : i32
    return %c0_i32, %c0_i32_0 : i32, i32
  }
  func.func @transform_13(%arg0: i32) -> (i32, i32, i32) {
    %c0_i32 = arith.constant 0 : i32
    %c0_i32_0 = arith.constant 0 : i32
    %c0_i32_1 = arith.constant 0 : i32
    return %arg0, %c0_i32, %c0_i32_0 : i32, i32, i32
  }
}

module attributes {stable_mosaic.version = 11 : i64} {
  func.func @_fproj_kernel(%arg0: i32, %arg1: memref<1x4x32xf32, #tpu.memory_space<vmem>>, %arg2: memref<1x32xf32, #tpu.memory_space<vmem>>, %arg3: memref<1x32xf32, #tpu.memory_space<vmem>>, %arg4: memref<32x32xbf16, #tpu.memory_space<vmem>>, %arg5: memref<1x32xf32, #tpu.memory_space<vmem>>, %arg6: memref<1x4x32xf32, #tpu.memory_space<vmem>>) attributes {dimension_semantics = [#tpu.dimension_semantics<parallel>], iteration_bounds = array<i64: 2>, scalar_prefetch = 0 : i64, scratch_operands = 0 : i64, tpu.core_type = #tpu.core_type<tc>, window_params = [{transform_indices = @transform_0, window_bounds = array<i64: 1, 4, 32>}, {pipeline_mode = #tpu.pipeline_mode<synchronous>, transform_indices = @transform_1, window_bounds = array<i64: 1, 32>}, {pipeline_mode = #tpu.pipeline_mode<synchronous>, transform_indices = @transform_2, window_bounds = array<i64: 1, 32>}, {pipeline_mode = #tpu.pipeline_mode<synchronous>, transform_indices = @transform_3, window_bounds = array<i64: 32, 32>}, {pipeline_mode = #tpu.pipeline_mode<synchronous>, transform_indices = @transform_4, window_bounds = array<i64: 1, 32>}, {transform_indices = @transform_5, window_bounds = array<i64: 1, 4, 32>}]} {
    %c0 = arith.constant 0 : index
    %c0_0 = arith.constant 0 : index
    %c0_1 = arith.constant 0 : index
    %0 = vector.load %arg1[%c0, %c0_0, %c0_1] : memref<1x4x32xf32, #tpu.memory_space<vmem>>, vector<1x4x32xf32>
    %1 = vector.shape_cast %0 : vector<1x4x32xf32> to vector<4x32xf32>
    %c0_2 = arith.constant 0 : index
    %c0_3 = arith.constant 0 : index
    %2 = vector.load %arg2[%c0_2, %c0_3] : memref<1x32xf32, #tpu.memory_space<vmem>>, vector<1x32xf32>
    %c0_4 = arith.constant 0 : index
    %c0_5 = arith.constant 0 : index
    %3 = vector.load %arg3[%c0_4, %c0_5] : memref<1x32xf32, #tpu.memory_space<vmem>>, vector<1x32xf32>
    %cst = arith.constant dense<0.000000e+00> : vector<4xf32>
    %4 = vector.multi_reduction <add>, %1, %cst [1] : vector<4x32xf32> to vector<4xf32>
    %5 = vector.shape_cast %4 : vector<4xf32> to vector<4x1xf32>
    %cst_6 = arith.constant 3.200000e+01 : f32
    %6 = vector.broadcast %cst_6 : f32 to vector<4x1xf32>
    %7 = arith.divf %5, %6 : vector<4x1xf32>
    %8 = vector.broadcast %7 : vector<4x1xf32> to vector<4x32xf32>
    %9 = arith.subf %1, %8 : vector<4x32xf32>
    %10 = arith.mulf %9, %9 : vector<4x32xf32>
    %cst_7 = arith.constant dense<0.000000e+00> : vector<4xf32>
    %11 = vector.multi_reduction <add>, %10, %cst_7 [1] : vector<4x32xf32> to vector<4xf32>
    %12 = vector.shape_cast %11 : vector<4xf32> to vector<4x1xf32>
    %cst_8 = arith.constant 3.200000e+01 : f32
    %13 = vector.broadcast %cst_8 : f32 to vector<4x1xf32>
    %14 = arith.divf %12, %13 : vector<4x1xf32>
    %15 = vector.broadcast %7 : vector<4x1xf32> to vector<4x32xf32>
    %16 = arith.subf %1, %15 : vector<4x32xf32>
    %cst_9 = arith.constant 9.99999974E-6 : f32
    %17 = vector.broadcast %cst_9 : f32 to vector<4x1xf32>
    %18 = arith.addf %14, %17 : vector<4x1xf32>
    %19 = math.rsqrt %18 : vector<4x1xf32>
    %20 = vector.broadcast %19 : vector<4x1xf32> to vector<4x32xf32>
    %21 = arith.mulf %16, %20 : vector<4x32xf32>
    %22 = vector.broadcast %2 : vector<1x32xf32> to vector<4x32xf32>
    %23 = arith.mulf %21, %22 : vector<4x32xf32>
    %24 = vector.broadcast %3 : vector<1x32xf32> to vector<4x32xf32>
    %25 = arith.addf %23, %24 : vector<4x32xf32>
    %26 = arith.truncf %25 : vector<4x32xf32> to vector<4x32xbf16>
    %c0_10 = arith.constant 0 : index
    %c0_11 = arith.constant 0 : index
    %27 = vector.load %arg4[%c0_10, %c0_11] : memref<32x32xbf16, #tpu.memory_space<vmem>>, vector<32x32xbf16>
    %cst_12 = arith.constant dense<0.000000e+00> : vector<4x32xf32>
    %28 = tpu.matmul %26, %27, %cst_12 {dimension_numbers = #tpu.dot_dimension_numbers<[1], [0], [0], [1], [0, 0, 1, 1], [], []>} : vector<4x32xbf16>, vector<32x32xbf16>, vector<4x32xf32> -> vector<4x32xf32>
    %c0_13 = arith.constant 0 : index
    %c0_14 = arith.constant 0 : index
    %29 = vector.load %arg5[%c0_13, %c0_14] : memref<1x32xf32, #tpu.memory_space<vmem>>, vector<1x32xf32>
    %30 = vector.broadcast %29 : vector<1x32xf32> to vector<4x32xf32>
    %31 = arith.addf %28, %30 : vector<4x32xf32>
    %32 = vector.shape_cast %31 : vector<4x32xf32> to vector<1x4x32xf32>
    %c0_15 = arith.constant 0 : index
    %c0_16 = arith.constant 0 : index
    %c0_17 = arith.constant 0 : index
    %33 = vector.load %arg6[%c0_15, %c0_16, %c0_17] : memref<1x4x32xf32, #tpu.memory_space<vmem>>, vector<1x4x32xf32>
    tpu.vector_store %arg6[%c0_15, %c0_16, %c0_17], %32 {strides = array<i32>} : memref<1x4x32xf32, #tpu.memory_space<vmem>>, vector<1x4x32xf32>,
    return
  }
  func.func @transform_0(%arg0: i32) -> (i32, i32, i32) {
    %c0_i32 = arith.constant 0 : i32
    %c0_i32_0 = arith.constant 0 : i32
    %c0_i32_1 = arith.constant 0 : i32
    return %arg0, %c0_i32, %c0_i32_0 : i32, i32, i32
  }
  func.func @transform_1(%arg0: i32) -> (i32, i32) {
    %c0_i32 = arith.constant 0 : i32
    %c0_i32_0 = arith.constant 0 : i32
    %c0_i32_1 = arith.constant 0 : i32
    return %c0_i32, %c0_i32_0 : i32, i32
  }
  func.func @transform_2(%arg0: i32) -> (i32, i32) {
    %c0_i32 = arith.constant 0 : i32
    %c0_i32_0 = arith.constant 0 : i32
    %c0_i32_1 = arith.constant 0 : i32
    return %c0_i32, %c0_i32_0 : i32, i32
  }
  func.func @transform_3(%arg0: i32) -> (i32, i32) {
    %c0_i32 = arith.constant 0 : i32
    %c0_i32_0 = arith.constant 0 : i32
    %c0_i32_1 = arith.constant 0 : i32
    return %c0_i32, %c0_i32_0 : i32, i32
  }
  func.func @transform_4(%arg0: i32) -> (i32, i32) {
    %c0_i32 = arith.constant 0 : i32
    %c0_i32_0 = arith.constant 0 : i32
    %c0_i32_1 = arith.constant 0 : i32
    return %c0_i32, %c0_i32_0 : i32, i32
  }
  func.func @transform_5(%arg0: i32) -> (i32, i32, i32) {
    %c0_i32 = arith.constant 0 : i32
    %c0_i32_0 = arith.constant 0 : i32
    %c0_i32_1 = arith.constant 0 : i32
    return %arg0, %c0_i32, %c0_i32_0 : i32, i32, i32
  }
}

module attributes {stable_mosaic.version = 11 : i64} {
  func.func @_matmul_act_kernel(%arg0: i32, %arg1: memref<8x64xf32, #tpu.memory_space<vmem>>, %arg2: memref<64x32xbf16, #tpu.memory_space<vmem>>, %arg3: memref<1x32xf32, #tpu.memory_space<vmem>>, %arg4: memref<8x32xf32, #tpu.memory_space<vmem>>) attributes {dimension_semantics = [#tpu.dimension_semantics<parallel>], iteration_bounds = array<i64: 1>, scalar_prefetch = 0 : i64, scratch_operands = 0 : i64, tpu.core_type = #tpu.core_type<tc>, window_params = [{transform_indices = @transform_0, window_bounds = array<i64: 8, 64>}, {pipeline_mode = #tpu.pipeline_mode<synchronous>, transform_indices = @transform_1, window_bounds = array<i64: 64, 32>}, {pipeline_mode = #tpu.pipeline_mode<synchronous>, transform_indices = @transform_2, window_bounds = array<i64: 1, 32>}, {transform_indices = @transform_3, window_bounds = array<i64: 8, 32>}]} {
    %c0 = arith.constant 0 : index
    %c0_0 = arith.constant 0 : index
    %0 = vector.load %arg1[%c0, %c0_0] : memref<8x64xf32, #tpu.memory_space<vmem>>, vector<8x64xf32>
    %1 = arith.truncf %0 : vector<8x64xf32> to vector<8x64xbf16>
    %c0_1 = arith.constant 0 : index
    %c0_2 = arith.constant 0 : index
    %2 = vector.load %arg2[%c0_1, %c0_2] : memref<64x32xbf16, #tpu.memory_space<vmem>>, vector<64x32xbf16>
    %cst = arith.constant dense<0.000000e+00> : vector<8x32xf32>
    %3 = tpu.matmul %1, %2, %cst {dimension_numbers = #tpu.dot_dimension_numbers<[1], [0], [0], [1], [0, 0, 1, 1], [], []>} : vector<8x64xbf16>, vector<64x32xbf16>, vector<8x32xf32> -> vector<8x32xf32>
    %c0_3 = arith.constant 0 : index
    %c0_4 = arith.constant 0 : index
    %4 = vector.load %arg3[%c0_3, %c0_4] : memref<1x32xf32, #tpu.memory_space<vmem>>, vector<1x32xf32>
    %5 = vector.broadcast %4 : vector<1x32xf32> to vector<8x32xf32>
    %6 = arith.addf %3, %5 : vector<8x32xf32>
    %7 = arith.mulf %6, %6 : vector<8x32xf32>
    %8 = arith.mulf %6, %7 : vector<8x32xf32>
    %cst_5 = arith.constant 4.471500e-02 : f32
    %9 = vector.broadcast %cst_5 : f32 to vector<8x32xf32>
    %10 = arith.mulf %9, %8 : vector<8x32xf32>
    %11 = arith.addf %6, %10 : vector<8x32xf32>
    %cst_6 = arith.constant 0.797884583 : f32
    %12 = vector.broadcast %cst_6 : f32 to vector<8x32xf32>
    %13 = arith.mulf %12, %11 : vector<8x32xf32>
    %14 = math.tanh %13 : vector<8x32xf32>
    %cst_7 = arith.constant 1.000000e+00 : f32
    %15 = vector.broadcast %cst_7 : f32 to vector<8x32xf32>
    %16 = arith.addf %15, %14 : vector<8x32xf32>
    %cst_8 = arith.constant 5.000000e-01 : f32
    %17 = vector.broadcast %cst_8 : f32 to vector<8x32xf32>
    %18 = arith.mulf %17, %16 : vector<8x32xf32>
    %19 = arith.mulf %6, %18 : vector<8x32xf32>
    %c0_9 = arith.constant 0 : index
    %c0_10 = arith.constant 0 : index
    %20 = vector.load %arg4[%c0_9, %c0_10] : memref<8x32xf32, #tpu.memory_space<vmem>>, vector<8x32xf32>
    tpu.vector_store %arg4[%c0_9, %c0_10], %19 {strides = array<i32>} : memref<8x32xf32, #tpu.memory_space<vmem>>, vector<8x32xf32>,
    return
  }
  func.func @transform_0(%arg0: i32) -> (i32, i32) {
    %c0_i32 = arith.constant 0 : i32
    %c0_i32_0 = arith.constant 0 : i32
    return %arg0, %c0_i32 : i32, i32
  }
  func.func @transform_1(%arg0: i32) -> (i32, i32) {
    %c0_i32 = arith.constant 0 : i32
    %c0_i32_0 = arith.constant 0 : i32
    %c0_i32_1 = arith.constant 0 : i32
    return %c0_i32, %c0_i32_0 : i32, i32
  }
  func.func @transform_2(%arg0: i32) -> (i32, i32) {
    %c0_i32 = arith.constant 0 : i32
    %c0_i32_0 = arith.constant 0 : i32
    %c0_i32_1 = arith.constant 0 : i32
    return %c0_i32, %c0_i32_0 : i32, i32
  }
  func.func @transform_3(%arg0: i32) -> (i32, i32) {
    %c0_i32 = arith.constant 0 : i32
    %c0_i32_0 = arith.constant 0 : i32
    return %arg0, %c0_i32 : i32, i32
  }
}

module attributes {stable_mosaic.version = 11 : i64} {
  func.func @_encoder_layer_kernel(%arg0: i32, %arg1: memref<1x4x32xf32, #tpu.memory_space<vmem>>, %arg2: memref<32x96xbf16, #tpu.memory_space<vmem>>, %arg3: memref<1x96xf32, #tpu.memory_space<vmem>>, %arg4: memref<32x32xbf16, #tpu.memory_space<vmem>>, %arg5: memref<1x32xf32, #tpu.memory_space<vmem>>, %arg6: memref<1x32xf32, #tpu.memory_space<vmem>>, %arg7: memref<1x32xf32, #tpu.memory_space<vmem>>, %arg8: memref<32x64xbf16, #tpu.memory_space<vmem>>, %arg9: memref<1x64xf32, #tpu.memory_space<vmem>>, %arg10: memref<64x32xbf16, #tpu.memory_space<vmem>>, %arg11: memref<1x32xf32, #tpu.memory_space<vmem>>, %arg12: memref<1x32xf32, #tpu.memory_space<vmem>>, %arg13: memref<1x32xf32, #tpu.memory_space<vmem>>, %arg14: memref<1x4x32xf32, #tpu.memory_space<vmem>>) attributes {dimension_semantics = [#tpu.dimension_semantics<parallel>], iteration_bounds = array<i64: 2>, scalar_prefetch = 0 : i64, scratch_operands = 0 : i64, tpu.core_type = #tpu.core_type<tc>, window_params = [{transform_indices = @transform_0, window_bounds = array<i64: 1, 4, 32>}, {pipeline_mode = #tpu.pipeline_mode<synchronous>, transform_indices = @transform_1, window_bounds = array<i64: 32, 96>}, {pipeline_mode = #tpu.pipeline_mode<synchronous>, transform_indices = @transform_2, window_bounds = array<i64: 1, 96>}, {pipeline_mode = #tpu.pipeline_mode<synchronous>, transform_indices = @transform_3, window_bounds = array<i64: 32, 32>}, {pipeline_mode = #tpu.pipeline_mode<synchronous>, transform_indices = @transform_4, window_bounds = array<i64: 1, 32>}, {pipeline_mode = #tpu.pipeline_mode<synchronous>, transform_indices = @transform_5, window_bounds = array<i64: 1, 32>}, {pipeline_mode = #tpu.pipeline_mode<synchronous>, transform_indices = @transform_6, window_bounds = array<i64: 1, 32>}, {pipeline_mode = #tpu.pipeline_mode<synchronous>, transform_indices = @transform_7, window_bounds = array<i64: 32, 64>}, {pipeline_mode = #tpu.pipeline_mode<synchronous>, transform_indices = @transform_8, window_bounds = array<i64: 1, 64>}, {pipeline_mode = #tpu.pipeline_mode<synchronous>, transform_indices = @transform_9, window_bounds = array<i64: 64, 32>}, {pipeline_mode = #tpu.pipeline_mode<synchronous>, transform_indices = @transform_10, window_bounds = array<i64: 1, 32>}, {pipeline_mode = #tpu.pipeline_mode<synchronous>, transform_indices = @transform_11, window_bounds = array<i64: 1, 32>}, {pipeline_mode = #tpu.pipeline_mode<synchronous>, transform_indices = @transform_12, window_bounds = array<i64: 1, 32>}, {transform_indices = @transform_13, window_bounds = array<i64: 1, 4, 32>}]} {
    %c0 = arith.constant 0 : index
    %c0_0 = arith.constant 0 : index
    %c0_1 = arith.constant 0 : index
    %0 = vector.load %arg1[%c0, %c0_0, %c0_1] : memref<1x4x32xf32, #tpu.memory_space<vmem>>, vector<1x4x32xf32>
    %1 = vector.shape_cast %0 : vector<1x4x32xf32> to vector<4x32xf32>
    %2 = arith.truncf %1 : vector<4x32xf32> to vector<4x32xbf16>
    %c0_2 = arith.constant 0 : index
    %c0_3 = arith.constant 0 : index
    %3 = vector.load %arg2[%c0_2, %c0_3] : memref<32x96xbf16, #tpu.memory_space<vmem>>, vector<32x96xbf16>
    %cst = arith.constant dense<0.000000e+00> : vector<4x96xf32>
    %4 = tpu.matmul %2, %3, %cst {dimension_numbers = #tpu.dot_dimension_numbers<[1], [0], [0], [1], [0, 0, 1, 1], [], []>} : vector<4x32xbf16>, vector<32x96xbf16>, vector<4x96xf32> -> vector<4x96xf32>
    %c0_4 = arith.constant 0 : index
    %c0_5 = arith.constant 0 : index
    %5 = vector.load %arg3[%c0_4, %c0_5] : memref<1x96xf32, #tpu.memory_space<vmem>>, vector<1x96xf32>
    %6 = vector.broadcast %5 : vector<1x96xf32> to vector<4x96xf32>
    %7 = arith.addf %4, %6 : vector<4x96xf32>
    %8 = vector.extract_strided_slice %7 {offsets = [0, 0], sizes = [4, 8], strides = [1, 1]} : vector<4x96xf32> to vector<4x8xf32>
    %cst_6 = arith.constant 0.353553385 : f32
    %9 = vector.broadcast %cst_6 : f32 to vector<4x8xf32>
    %10 = arith.mulf %8, %9 : vector<4x8xf32>
    %11 = vector.extract_strided_slice %7 {offsets = [0, 32], sizes = [4, 8], strides = [1, 1]} : vector<4x96xf32> to vector<4x8xf32>
    %12 = vector.extract_strided_slice %7 {offsets = [0, 64], sizes = [4, 8], strides = [1, 1]} : vector<4x96xf32> to vector<4x8xf32>
    %13 = tpu.transpose %11, [1, 0] : vector<4x8xf32> -> vector<8x4xf32>
    %cst_7 = arith.constant dense<0.000000e+00> : vector<4x4xf32>
    %14 = tpu.matmul %10, %13, %cst_7 {dimension_numbers = #tpu.dot_dimension_numbers<[1], [0], [0], [1], [0, 0, 1, 1], [], []>} : vector<4x8xf32>, vector<8x4xf32>, vector<4x4xf32> -> vector<4x4xf32>
    %cst_8 = arith.constant dense<0xFF800000> : vector<4xf32>
    %15 = vector.multi_reduction <maximumf>, %14, %cst_8 [1] : vector<4x4xf32> to vector<4xf32>
    %16 = vector.shape_cast %15 : vector<4xf32> to vector<4x1xf32>
    %17 = vector.broadcast %16 : vector<4x1xf32> to vector<4x4xf32>
    %18 = arith.subf %14, %17 : vector<4x4xf32>
    %19 = math.exp %18 : vector<4x4xf32>
    %cst_9 = arith.constant dense<0.000000e+00> : vector<4xf32>
    %20 = vector.multi_reduction <add>, %19, %cst_9 [1] : vector<4x4xf32> to vector<4xf32>
    %21 = vector.shape_cast %20 : vector<4xf32> to vector<4x1xf32>
    %22 = tpu.reciprocal %21 {approx = true} : vector<4x1xf32> -> vector<4x1xf32>
    %23 = vector.broadcast %22 : vector<4x1xf32> to vector<4x4xf32>
    %24 = arith.mulf %19, %23 : vector<4x4xf32>
    %cst_10 = arith.constant dense<0.000000e+00> : vector<4x8xf32>
    %25 = tpu.matmul %24, %12, %cst_10 {dimension_numbers = #tpu.dot_dimension_numbers<[1], [0], [0], [1], [0, 0, 1, 1], [], []>} : vector<4x4xf32>, vector<4x8xf32>, vector<4x8xf32> -> vector<4x8xf32>
    %26 = vector.extract_strided_slice %7 {offsets = [0, 8], sizes = [4, 8], strides = [1, 1]} : vector<4x96xf32> to vector<4x8xf32>
    %cst_11 = arith.constant 0.353553385 : f32
    %27 = vector.broadcast %cst_11 : f32 to vector<4x8xf32>
    %28 = arith.mulf %26, %27 : vector<4x8xf32>
    %29 = vector.extract_strided_slice %7 {offsets = [0, 40], sizes = [4, 8], strides = [1, 1]} : vector<4x96xf32> to vector<4x8xf32>
    %30 = vector.extract_strided_slice %7 {offsets = [0, 72], sizes = [4, 8], strides = [1, 1]} : vector<4x96xf32> to vector<4x8xf32>
    %31 = tpu.transpose %29, [1, 0] : vector<4x8xf32> -> vector<8x4xf32>
    %cst_12 = arith.constant dense<0.000000e+00> : vector<4x4xf32>
    %32 = tpu.matmul %28, %31, %cst_12 {dimension_numbers = #tpu.dot_dimension_numbers<[1], [0], [0], [1], [0, 0, 1, 1], [], []>} : vector<4x8xf32>, vector<8x4xf32>, vector<4x4xf32> -> vector<4x4xf32>
    %cst_13 = arith.constant dense<0xFF800000> : vector<4xf32>
    %33 = vector.multi_reduction <maximumf>, %32, %cst_13 [1] : vector<4x4xf32> to vector<4xf32>
    %34 = vector.shape_cast %33 : vector<4xf32> to vector<4x1xf32>
    %35 = vector.broadcast %34 : vector<4x1xf32> to vector<4x4xf32>
    %36 = arith.subf %32, %35 : vector<4x4xf32>
    %37 = math.exp %36 : vector<4x4xf32>
    %cst_14 = arith.constant dense<0.000000e+00> : vector<4xf32>
    %38 = vector.multi_reduction <add>, %37, %cst_14 [1] : vector<4x4xf32> to vector<4xf32>
    %39 = vector.shape_cast %38 : vector<4xf32> to vector<4x1xf32>
    %40 = tpu.reciprocal %39 {approx = true} : vector<4x1xf32> -> vector<4x1xf32>
    %41 = vector.broadcast %40 : vector<4x1xf32> to vector<4x4xf32>
    %42 = arith.mulf %37, %41 : vector<4x4xf32>
    %cst_15 = arith.constant dense<0.000000e+00> : vector<4x8xf32>
    %43 = tpu.matmul %42, %30, %cst_15 {dimension_numbers = #tpu.dot_dimension_numbers<[1], [0], [0], [1], [0, 0, 1, 1], [], []>} : vector<4x4xf32>, vector<4x8xf32>, vector<4x8xf32> -> vector<4x8xf32>
    %44 = vector.extract_strided_slice %7 {offsets = [0, 16], sizes = [4, 8], strides = [1, 1]} : vector<4x96xf32> to vector<4x8xf32>
    %cst_16 = arith.constant 0.353553385 : f32
    %45 = vector.broadcast %cst_16 : f32 to vector<4x8xf32>
    %46 = arith.mulf %44, %45 : vector<4x8xf32>
    %47 = vector.extract_strided_slice %7 {offsets = [0, 48], sizes = [4, 8], strides = [1, 1]} : vector<4x96xf32> to vector<4x8xf32>
    %48 = vector.extract_strided_slice %7 {offsets = [0, 80], sizes = [4, 8], strides = [1, 1]} : vector<4x96xf32> to vector<4x8xf32>
    %49 = tpu.transpose %47, [1, 0] : vector<4x8xf32> -> vector<8x4xf32>
    %cst_17 = arith.constant dense<0.000000e+00> : vector<4x4xf32>
    %50 = tpu.matmul %46, %49, %cst_17 {dimension_numbers = #tpu.dot_dimension_numbers<[1], [0], [0], [1], [0, 0, 1, 1], [], []>} : vector<4x8xf32>, vector<8x4xf32>, vector<4x4xf32> -> vector<4x4xf32>
    %cst_18 = arith.constant dense<0xFF800000> : vector<4xf32>
    %51 = vector.multi_reduction <maximumf>, %50, %cst_18 [1] : vector<4x4xf32> to vector<4xf32>
    %52 = vector.shape_cast %51 : vector<4xf32> to vector<4x1xf32>
    %53 = vector.broadcast %52 : vector<4x1xf32> to vector<4x4xf32>
    %54 = arith.subf %50, %53 : vector<4x4xf32>
    %55 = math.exp %54 : vector<4x4xf32>
    %cst_19 = arith.constant dense<0.000000e+00> : vector<4xf32>
    %56 = vector.multi_reduction <add>, %55, %cst_19 [1] : vector<4x4xf32> to vector<4xf32>
    %57 = vector.shape_cast %56 : vector<4xf32> to vector<4x1xf32>
    %58 = tpu.reciprocal %57 {approx = true} : vector<4x1xf32> -> vector<4x1xf32>
    %59 = vector.broadcast %58 : vector<4x1xf32> to vector<4x4xf32>
    %60 = arith.mulf %55, %59 : vector<4x4xf32>
    %cst_20 = arith.constant dense<0.000000e+00> : vector<4x8xf32>
    %61 = tpu.matmul %60, %48, %cst_20 {dimension_numbers = #tpu.dot_dimension_numbers<[1], [0], [0], [1], [0, 0, 1, 1], [], []>} : vector<4x4xf32>, vector<4x8xf32>, vector<4x8xf32> -> vector<4x8xf32>
    %62 = vector.extract_strided_slice %7 {offsets = [0, 24], sizes = [4, 8], strides = [1, 1]} : vector<4x96xf32> to vector<4x8xf32>
    %cst_21 = arith.constant 0.353553385 : f32
    %63 = vector.broadcast %cst_21 : f32 to vector<4x8xf32>
    %64 = arith.mulf %62, %63 : vector<4x8xf32>
    %65 = vector.extract_strided_slice %7 {offsets = [0, 56], sizes = [4, 8], strides = [1, 1]} : vector<4x96xf32> to vector<4x8xf32>
    %66 = vector.extract_strided_slice %7 {offsets = [0, 88], sizes = [4, 8], strides = [1, 1]} : vector<4x96xf32> to vector<4x8xf32>
    %67 = tpu.transpose %65, [1, 0] : vector<4x8xf32> -> vector<8x4xf32>
    %cst_22 = arith.constant dense<0.000000e+00> : vector<4x4xf32>
    %68 = tpu.matmul %64, %67, %cst_22 {dimension_numbers = #tpu.dot_dimension_numbers<[1], [0], [0], [1], [0, 0, 1, 1], [], []>} : vector<4x8xf32>, vector<8x4xf32>, vector<4x4xf32> -> vector<4x4xf32>
    %cst_23 = arith.constant dense<0xFF800000> : vector<4xf32>
    %69 = vector.multi_reduction <maximumf>, %68, %cst_23 [1] : vector<4x4xf32> to vector<4xf32>
    %70 = vector.shape_cast %69 : vector<4xf32> to vector<4x1xf32>
    %71 = vector.broadcast %70 : vector<4x1xf32> to vector<4x4xf32>
    %72 = arith.subf %68, %71 : vector<4x4xf32>
    %73 = math.exp %72 : vector<4x4xf32>
    %cst_24 = arith.constant dense<0.000000e+00> : vector<4xf32>
    %74 = vector.multi_reduction <add>, %73, %cst_24 [1] : vector<4x4xf32> to vector<4xf32>
    %75 = vector.shape_cast %74 : vector<4xf32> to vector<4x1xf32>
    %76 = tpu.reciprocal %75 {approx = true} : vector<4x1xf32> -> vector<4x1xf32>
    %77 = vector.broadcast %76 : vector<4x1xf32> to vector<4x4xf32>
    %78 = arith.mulf %73, %77 : vector<4x4xf32>
    %cst_25 = arith.constant dense<0.000000e+00> : vector<4x8xf32>
    %79 = tpu.matmul %78, %66, %cst_25 {dimension_numbers = #tpu.dot_dimension_numbers<[1], [0], [0], [1], [0, 0, 1, 1], [], []>} : vector<4x4xf32>, vector<4x8xf32>, vector<4x8xf32> -> vector<4x8xf32>
    %80 = tpu.concatenate %25, %43, %61, %79 in 1 : vector<4x8xf32>, vector<4x8xf32>, vector<4x8xf32>, vector<4x8xf32> -> vector<4x32xf32>
    %81 = arith.truncf %80 : vector<4x32xf32> to vector<4x32xbf16>
    %c0_26 = arith.constant 0 : index
    %c0_27 = arith.constant 0 : index
    %82 = vector.load %arg4[%c0_26, %c0_27] : memref<32x32xbf16, #tpu.memory_space<vmem>>, vector<32x32xbf16>
    %cst_28 = arith.constant dense<0.000000e+00> : vector<4x32xf32>
    %83 = tpu.matmul %81, %82, %cst_28 {dimension_numbers = #tpu.dot_dimension_numbers<[1], [0], [0], [1], [0, 0, 1, 1], [], []>} : vector<4x32xbf16>, vector<32x32xbf16>, vector<4x32xf32> -> vector<4x32xf32>
    %c0_29 = arith.constant 0 : index
    %c0_30 = arith.constant 0 : index
    %84 = vector.load %arg5[%c0_29, %c0_30] : memref<1x32xf32, #tpu.memory_space<vmem>>, vector<1x32xf32>
    %85 = vector.broadcast %84 : vector<1x32xf32> to vector<4x32xf32>
    %86 = arith.addf %83, %85 : vector<4x32xf32>
    %87 = arith.addf %1, %86 : vector<4x32xf32>
    %c0_31 = arith.constant 0 : index
    %c0_32 = arith.constant 0 : index
    %88 = vector.load %arg6[%c0_31, %c0_32] : memref<1x32xf32, #tpu.memory_space<vmem>>, vector<1x32xf32>
    %c0_33 = arith.constant 0 : index
    %c0_34 = arith.constant 0 : index
    %89 = vector.load %arg7[%c0_33, %c0_34] : memref<1x32xf32, #tpu.memory_space<vmem>>, vector<1x32xf32>
    %cst_35 = arith.constant dense<0.000000e+00> : vector<4xf32>
    %90 = vector.multi_reduction <add>, %87, %cst_35 [1] : vector<4x32xf32> to vector<4xf32>
    %91 = vector.shape_cast %90 : vector<4xf32> to vector<4x1xf32>
    %cst_36 = arith.constant 3.200000e+01 : f32
    %92 = vector.broadcast %cst_36 : f32 to vector<4x1xf32>
    %93 = arith.divf %91, %92 : vector<4x1xf32>
    %94 = vector.broadcast %93 : vector<4x1xf32> to vector<4x32xf32>
    %95 = arith.subf %87, %94 : vector<4x32xf32>
    %96 = arith.mulf %95, %95 : vector<4x32xf32>
    %cst_37 = arith.constant dense<0.000000e+00> : vector<4xf32>
    %97 = vector.multi_reduction <add>, %96, %cst_37 [1] : vector<4x32xf32> to vector<4xf32>
    %98 = vector.shape_cast %97 : vector<4xf32> to vector<4x1xf32>
    %cst_38 = arith.constant 3.200000e+01 : f32
    %99 = vector.broadcast %cst_38 : f32 to vector<4x1xf32>
    %100 = arith.divf %98, %99 : vector<4x1xf32>
    %101 = vector.broadcast %93 : vector<4x1xf32> to vector<4x32xf32>
    %102 = arith.subf %87, %101 : vector<4x32xf32>
    %cst_39 = arith.constant 9.99999974E-6 : f32
    %103 = vector.broadcast %cst_39 : f32 to vector<4x1xf32>
    %104 = arith.addf %100, %103 : vector<4x1xf32>
    %105 = math.rsqrt %104 : vector<4x1xf32>
    %106 = vector.broadcast %105 : vector<4x1xf32> to vector<4x32xf32>
    %107 = arith.mulf %102, %106 : vector<4x32xf32>
    %108 = vector.broadcast %88 : vector<1x32xf32> to vector<4x32xf32>
    %109 = arith.mulf %107, %108 : vector<4x32xf32>
    %110 = vector.broadcast %89 : vector<1x32xf32> to vector<4x32xf32>
    %111 = arith.addf %109, %110 : vector<4x32xf32>
    %112 = arith.truncf %111 : vector<4x32xf32> to vector<4x32xbf16>
    %c0_40 = arith.constant 0 : index
    %c0_41 = arith.constant 0 : index
    %113 = vector.load %arg8[%c0_40, %c0_41] : memref<32x64xbf16, #tpu.memory_space<vmem>>, vector<32x64xbf16>
    %cst_42 = arith.constant dense<0.000000e+00> : vector<4x64xf32>
    %114 = tpu.matmul %112, %113, %cst_42 {dimension_numbers = #tpu.dot_dimension_numbers<[1], [0], [0], [1], [0, 0, 1, 1], [], []>} : vector<4x32xbf16>, vector<32x64xbf16>, vector<4x64xf32> -> vector<4x64xf32>
    %c0_43 = arith.constant 0 : index
    %c0_44 = arith.constant 0 : index
    %115 = vector.load %arg9[%c0_43, %c0_44] : memref<1x64xf32, #tpu.memory_space<vmem>>, vector<1x64xf32>
    %116 = vector.broadcast %115 : vector<1x64xf32> to vector<4x64xf32>
    %117 = arith.addf %114, %116 : vector<4x64xf32>
    %118 = arith.mulf %117, %117 : vector<4x64xf32>
    %119 = arith.mulf %117, %118 : vector<4x64xf32>
    %cst_45 = arith.constant 4.471500e-02 : f32
    %120 = vector.broadcast %cst_45 : f32 to vector<4x64xf32>
    %121 = arith.mulf %120, %119 : vector<4x64xf32>
    %122 = arith.addf %117, %121 : vector<4x64xf32>
    %cst_46 = arith.constant 0.797884583 : f32
    %123 = vector.broadcast %cst_46 : f32 to vector<4x64xf32>
    %124 = arith.mulf %123, %122 : vector<4x64xf32>
    %125 = math.tanh %124 : vector<4x64xf32>
    %cst_47 = arith.constant 1.000000e+00 : f32
    %126 = vector.broadcast %cst_47 : f32 to vector<4x64xf32>
    %127 = arith.addf %126, %125 : vector<4x64xf32>
    %cst_48 = arith.constant 5.000000e-01 : f32
    %128 = vector.broadcast %cst_48 : f32 to vector<4x64xf32>
    %129 = arith.mulf %128, %127 : vector<4x64xf32>
    %130 = arith.mulf %117, %129 : vector<4x64xf32>
    %131 = arith.truncf %130 : vector<4x64xf32> to vector<4x64xbf16>
    %c0_49 = arith.constant 0 : index
    %c0_50 = arith.constant 0 : index
    %132 = vector.load %arg10[%c0_49, %c0_50] : memref<64x32xbf16, #tpu.memory_space<vmem>>, vector<64x32xbf16>
    %cst_51 = arith.constant dense<0.000000e+00> : vector<4x32xf32>
    %133 = tpu.matmul %131, %132, %cst_51 {dimension_numbers = #tpu.dot_dimension_numbers<[1], [0], [0], [1], [0, 0, 1, 1], [], []>} : vector<4x64xbf16>, vector<64x32xbf16>, vector<4x32xf32> -> vector<4x32xf32>
    %c0_52 = arith.constant 0 : index
    %c0_53 = arith.constant 0 : index
    %134 = vector.load %arg11[%c0_52, %c0_53] : memref<1x32xf32, #tpu.memory_space<vmem>>, vector<1x32xf32>
    %135 = vector.broadcast %134 : vector<1x32xf32> to vector<4x32xf32>
    %136 = arith.addf %133, %135 : vector<4x32xf32>
    %137 = arith.addf %111, %136 : vector<4x32xf32>
    %c0_54 = arith.constant 0 : index
    %c0_55 = arith.constant 0 : index
    %138 = vector.load %arg12[%c0_54, %c0_55] : memref<1x32xf32, #tpu.memory_space<vmem>>, vector<1x32xf32>
    %c0_56 = arith.constant 0 : index
    %c0_57 = arith.constant 0 : index
    %139 = vector.load %arg13[%c0_56, %c0_57] : memref<1x32xf32, #tpu.memory_space<vmem>>, vector<1x32xf32>
    %cst_58 = arith.constant dense<0.000000e+00> : vector<4xf32>
    %140 = vector.multi_reduction <add>, %137, %cst_58 [1] : vector<4x32xf32> to vector<4xf32>
    %141 = vector.shape_cast %140 : vector<4xf32> to vector<4x1xf32>
    %cst_59 = arith.constant 3.200000e+01 : f32
    %142 = vector.broadcast %cst_59 : f32 to vector<4x1xf32>
    %143 = arith.divf %141, %142 : vector<4x1xf32>
    %144 = vector.broadcast %143 : vector<4x1xf32> to vector<4x32xf32>
    %145 = arith.subf %137, %144 : vector<4x32xf32>
    %146 = arith.mulf %145, %145 : vector<4x32xf32>
    %cst_60 = arith.constant dense<0.000000e+00> : vector<4xf32>
    %147 = vector.multi_reduction <add>, %146, %cst_60 [1] : vector<4x32xf32> to vector<4xf32>
    %148 = vector.shape_cast %147 : vector<4xf32> to vector<4x1xf32>
    %cst_61 = arith.constant 3.200000e+01 : f32
    %149 = vector.broadcast %cst_61 : f32 to vector<4x1xf32>
    %150 = arith.divf %148, %149 : vector<4x1xf32>
    %151 = vector.broadcast %143 : vector<4x1xf32> to vector<4x32xf32>
    %152 = arith.subf %137, %151 : vector<4x32xf32>
    %cst_62 = arith.constant 9.99999974E-6 : f32
    %153 = vector.broadcast %cst_62 : f32 to vector<4x1xf32>
    %154 = arith.addf %150, %153 : vector<4x1xf32>
    %155 = math.rsqrt %154 : vector<4x1xf32>
    %156 = vector.broadcast %155 : vector<4x1xf32> to vector<4x32xf32>
    %157 = arith.mulf %152, %156 : vector<4x32xf32>
    %158 = vector.broadcast %138 : vector<1x32xf32> to vector<4x32xf32>
    %159 = arith.mulf %157, %158 : vector<4x32xf32>
    %160 = vector.broadcast %139 : vector<1x32xf32> to vector<4x32xf32>
    %161 = arith.addf %159, %160 : vector<4x32xf32>
    %162 = vector.shape_cast %161 : vector<4x32xf32> to vector<1x4x32xf32>
    %c0_63 = arith.constant 0 : index
    %c0_64 = arith.constant 0 : index
    %c0_65 = arith.constant 0 : index
    %163 = vector.load %arg14[%c0_63, %c0_64, %c0_65] : memref<1x4x32xf32, #tpu.memory_space<vmem>>, vector<1x4x32xf32>
    tpu.vector_store %arg14[%c0_63, %c0_64, %c0_65], %162 {strides = array<i32>} : memref<1x4x32xf32, #tpu.memory_space<vmem>>, vector<1x4x32xf32>,
    return
  }
  func.func @transform_0(%arg0: i32) -> (i32, i32, i32) {
    %c0_i32 = arith.constant 0 : i32
    %c0_i32_0 = arith.constant 0 : i32
    %c0_i32_1 = arith.constant 0 : i32
    return %arg0, %c0_i32, %c0_i32_0 : i32, i32, i32
  }
  func.func @transform_1(%arg0: i32) -> (i32, i32) {
    %c0_i32 = arith.constant 0 : i32
    %c0_i32_0 = arith.constant 0 : i32
    %c0_i32_1 = arith.constant 0 : i32
    return %c0_i32, %c0_i32_0 : i32, i32
  }
  func.func @transform_2(%arg0: i32) -> (i32, i32) {
    %c0_i32 = arith.constant 0 : i32
    %c0_i32_0 = arith.constant 0 : i32
    %c0_i32_1 = arith.constant 0 : i32
    return %c0_i32, %c0_i32_0 : i32, i32
  }
  func.func @transform_3(%arg0: i32) -> (i32, i32) {
    %c0_i32 = arith.constant 0 : i32
    %c0_i32_0 = arith.constant 0 : i32
    %c0_i32_1 = arith.constant 0 : i32
    return %c0_i32, %c0_i32_0 : i32, i32
  }
  func.func @transform_4(%arg0: i32) -> (i32, i32) {
    %c0_i32 = arith.constant 0 : i32
    %c0_i32_0 = arith.constant 0 : i32
    %c0_i32_1 = arith.constant 0 : i32
    return %c0_i32, %c0_i32_0 : i32, i32
  }
  func.func @transform_5(%arg0: i32) -> (i32, i32) {
    %c0_i32 = arith.constant 0 : i32
    %c0_i32_0 = arith.constant 0 : i32
    %c0_i32_1 = arith.constant 0 : i32
    return %c0_i32, %c0_i32_0 : i32, i32
  }
  func.func @transform_6(%arg0: i32) -> (i32, i32) {
    %c0_i32 = arith.constant 0 : i32
    %c0_i32_0 = arith.constant 0 : i32
    %c0_i32_1 = arith.constant 0 : i32
    return %c0_i32, %c0_i32_0 : i32, i32
  }
  func.func @transform_7(%arg0: i32) -> (i32, i32) {
    %c0_i32 = arith.constant 0 : i32
    %c0_i32_0 = arith.constant 0 : i32
    %c0_i32_1 = arith.constant 0 : i32
    return %c0_i32, %c0_i32_0 : i32, i32
  }
  func.func @transform_8(%arg0: i32) -> (i32, i32) {
    %c0_i32 = arith.constant 0 : i32
    %c0_i32_0 = arith.constant 0 : i32
    %c0_i32_1 = arith.constant 0 : i32
    return %c0_i32, %c0_i32_0 : i32, i32
  }
  func.func @transform_9(%arg0: i32) -> (i32, i32) {
    %c0_i32 = arith.constant 0 : i32
    %c0_i32_0 = arith.constant 0 : i32
    %c0_i32_1 = arith.constant 0 : i32
    return %c0_i32, %c0_i32_0 : i32, i32
  }
  func.func @transform_10(%arg0: i32) -> (i32, i32) {
    %c0_i32 = arith.constant 0 : i32
    %c0_i32_0 = arith.constant 0 : i32
    %c0_i32_1 = arith.constant 0 : i32
    return %c0_i32, %c0_i32_0 : i32, i32
  }
  func.func @transform_11(%arg0: i32) -> (i32, i32) {
    %c0_i32 = arith.constant 0 : i32
    %c0_i32_0 = arith.constant 0 : i32
    %c0_i32_1 = arith.constant 0 : i32
    return %c0_i32, %c0_i32_0 : i32, i32
  }
  func.func @transform_12(%arg0: i32) -> (i32, i32) {
    %c0_i32 = arith.constant 0 : i32
    %c0_i32_0 = arith.constant 0 : i32
    %c0_i32_1 = arith.constant 0 : i32
    return %c0_i32, %c0_i32_0 : i32, i32
  }
  func.func @transform_13(%arg0: i32) -> (i32, i32, i32) {
    %c0_i32 = arith.constant 0 : i32
    %c0_i32_0 = arith.constant 0 : i32
    %c0_i32_1 = arith.constant 0 : i32
    return %arg0, %c0_i32, %c0_i32_0 : i32, i32, i32
  }
}

</mosaic_0001>

<llo_original>
// kernel: ssl_extractor_forward.11
$region0: #{ssl_extractor_forward.11}
  #allocation0 [shape = 'u32[]', space=smem, size = 0x4, offset = 0x4, fixed_abs, tag = 'smem constant byte address 0x4 - core index']
  #allocation1 [shape = 'u32[72,128]{1,0:T(1,128)}', space=vmem, size = 0x9000, scoped, tag = 'internal scratch']
  %s0 = inlined_call_operand.vmem [shape: f32[2,319,10], index: 0, kind: input, shape index: {}]
  %s1 = inlined_call_operand.vmem [shape: bf16[10,32], index: 1, kind: input, shape index: {}]
  %s2 = inlined_call_operand.vmem [shape: f32[1,32], index: 2, kind: input, shape index: {}]
  %s3 = inlined_call_operand.vmem [shape: f32[1,32], index: 3, kind: input, shape index: {}]
  %s4 = inlined_call_operand.vmem [shape: f32[2,319,32], index: 4, kind: output, shape index: {}]
  %s5 = sld [smem:[#allocation0]]
  $region49: #{ssl_extractor_forward.11} parent=0
    _
  %s7 = ssub.s32 1, %s5
  %s8 = scalar_select 0, %s7, %s5
  loop: start=0, step=1, limit=4
  $region2: #{ssl_extractor_forward.11} parent=0 // loop_pre_header
    _
  $region3: #{ssl_extractor_forward.11} parent=0 // loop_header
    %s10 = sphi 0, %s14
    %p11 = scmp.ge.s32.totalorder %s10, 4
    %s20 = sphi 0, %s22
    %s23 = sphi 0, %s20
    %s24 = sphi 0, %s23
    %s40 = sphi 0, %s24
    %s44 = sphi 0, %s44
    %s46 = sphi 0, %s44
    %s47 = sphi 0, %s46
    %s61 = sphi 0, %s47
    %s65 = sphi 0, %s65
    %s67 = sphi 0, %s65
    %s68 = sphi 0, %s67
    %s82 = sphi 0, %s68
    %s86 = sphi 0, %s86
    %s88 = sphi 0, %s86
    %s89 = sphi 0, %s88
    %s103 = sphi 0, %s89
    %s109 = sphi 0, %s111
    %s112 = sphi 0, %s109
    %s113 = sphi 0, %s112
    %s129 = sphi 0, %s113
  $region4: #{ssl_extractor_forward.11} parent=0 // loop_header_branch
    %13 = sbr.rel (%p11) target = $region8
  $region5: #{ssl_extractor_forward.11} parent=0 // loop_body
    %s15 = ssub.s32 %s10, 1
    %s16 = ssub.s32 %s10, 2
    %s17 = sadd.s32 %s10, 1
    %s18 = ssub.s32 %s10, %s17
    %p19 = scmp.eq.s32.totalorder %s18, 0
    %s21 = sadd.s32 %s20, 1
    %s22 = scalar_select %p19, %s20, %s21
    %p25 = pneg %p19
    %p26 = scmp.eq.s32.totalorder %s10, 1
    %p27 = por %p25, %p26
    %p28 = scmp.ne.s32.totalorder %s20, %s23
    %p29 = scmp.eq.s32.totalorder %s10, 0
    %p30 = por %p28, %p29
    %p31 = scmp.ne.s32.totalorder %s20, %s23
    %p32 = scmp.eq.s32.totalorder %s15, 1
    %p33 = por %p31, %p32
    %p34 = scmp.ne.s32.totalorder %s23, %s24
    %p35 = scmp.eq.s32.totalorder %s15, 0
    %p36 = por %p34, %p35
    %p37 = scmp.ne.s32.totalorder %s23, %s24
    %p38 = scmp.eq.s32.totalorder %s16, 1
    %p39 = por %p37, %p38
    %p41 = scmp.ne.s32.totalorder %s24, %s40
    %p42 = scmp.eq.s32.totalorder %s16, 0
    %p43 = por %p41, %p42
    %s45 = sadd.s32 %s44, 1
    %p48 = scmp.eq.s32.totalorder %s10, 1
    %p49 = scmp.ne.s32.totalorder %s44, %s46
    %p50 = scmp.eq.s32.totalorder %s10, 0
    %p51 = por %p49, %p50
    %p52 = scmp.ne.s32.totalorder %s44, %s46
    %p53 = scmp.eq.s32.totalorder %s15, 1
    %p54 = por %p52, %p53
    %p55 = scmp.ne.s32.totalorder %s46, %s47
    %p56 = scmp.eq.s32.totalorder %s15, 0
    %p57 = por %p55, %p56
    %p58 = scmp.ne.s32.totalorder %s46, %s47
    %p59 = scmp.eq.s32.totalorder %s16, 1
    %p60 = por %p58, %p59
    %p62 = scmp.ne.s32.totalorder %s47, %s61
    %p63 = scmp.eq.s32.totalorder %s16, 0
    %p64 = por %p62, %p63
    %s66 = sadd.s32 %s65, 1
    %p69 = scmp.eq.s32.totalorder %s10, 1
    %p70 = scmp.ne.s32.totalorder %s65, %s67
    %p71 = scmp.eq.s32.totalorder %s10, 0
    %p72 = por %p70, %p71
    %p73 = scmp.ne.s32.totalorder %s65, %s67
    %p74 = scmp.eq.s32.totalorder %s15, 1
    %p75 = por %p73, %p74
    %p76 = scmp.ne.s32.totalorder %s67, %s68
    %p77 = scmp.eq.s32.totalorder %s15, 0
    %p78 = por %p76, %p77
    %p79 = scmp.ne.s32.totalorder %s67, %s68
    %p80 = scmp.eq.s32.totalorder %s16, 1
    %p81 = por %p79, %p80
    %p83 = scmp.ne.s32.totalorder %s68, %s82
    %p84 = scmp.eq.s32.totalorder %s16, 0
    %p85 = por %p83, %p84
    %s87 = sadd.s32 %s86, 1
    %p90 = scmp.eq.s32.totalorder %s10, 1
    %p91 = scmp.ne.s32.totalorder %s86, %s88
    %p92 = scmp.eq.s32.totalorder %s10, 0
    %p93 = por %p91, %p92
    %p94 = scmp.ne.s32.totalorder %s86, %s88
    %p95 = scmp.eq.s32.totalorder %s15, 1
    %p96 = por %p94, %p95
    %p97 = scmp.ne.s32.totalorder %s88, %s89
    %p98 = scmp.eq.s32.totalorder %s15, 0
    %p99 = por %p97, %p98
    %p100 = scmp.ne.s32.totalorder %s88, %s89
    %p101 = scmp.eq.s32.totalorder %s16, 1
    %p102 = por %p100, %p101
    %p104 = scmp.ne.s32.totalorder %s89, %s103
    %p105 = scmp.eq.s32.totalorder %s16, 0
    %p106 = por %p104, %p105
    %s107 = ssub.s32 %s10, %s17
    %p108 = scmp.eq.s32.totalorder %s107, 0
    %s110 = sadd.s32 %s109, 1
    %s111 = scalar_select %p108, %s109, %s110
    %p114 = pneg %p108
    %p115 = scmp.eq.s32.totalorder %s10, 1
    %p116 = por %p114, %p115
    %p117 = scmp.ne.s32.totalorder %s109, %s112
    %p118 = scmp.eq.s32.totalorder %s10, 0
    %p119 = por %p117, %p118
    %p120 = scmp.ne.s32.totalorder %s109, %s112
    %p121 = scmp.eq.s32.totalorder %s15, 1
    %p122 = por %p120, %p121
    %p123 = scmp.ne.s32.totalorder %s112, %s113
    %p124 = scmp.eq.s32.totalorder %s15, 0
    %p125 = por %p123, %p124
    %p126 = scmp.ne.s32.totalorder %s112, %s113
    %p127 = scmp.eq.s32.totalorder %s16, 1
    %p128 = por %p126, %p127
    %p130 = scmp.ne.s32.totalorder %s113, %s129
    %p131 = scmp.eq.s32.totalorder %s16, 0
    %p132 = por %p130, %p131
    %p133 = scmp.le.s32.totalorder 1, %s10
    %p134 = scmp.lt.s32.totalorder %s10, 3
    %p135 = pnand %p133, %p134
    %p136 = pneg %p135
    // Predicated region
    $region9: #{ssl_extractor_forward.11} parent=5 // pred_check
      _
    $region10: #{ssl_extractor_forward.11} parent=5 // pred_check_branch
      %138 = sbr.rel (%p135) target = $region12
    $region11: #{ssl_extractor_forward.11} parent=5 // pred_region
      %s139 = ssub.s32 %s10, 1
      // Predicated region
      $region13: #{ssl_extractor_forward.11} parent=11 // pred_check
        %p140 = pneg %p57
      $region14: #{ssl_extractor_forward.11} parent=11 // pred_check_branch
        %142 = sbr.rel (%p140) target = $region16
      $region15: #{ssl_extractor_forward.11} parent=11 // pred_region
        _
      $region16: #{ssl_extractor_forward.11} parent=11 // pred_fallthru
        _
      // Predicated region
      $region17: #{ssl_extractor_forward.11} parent=11 // pred_check
        %p143 = pneg %p78
      $region18: #{ssl_extractor_forward.11} parent=11 // pred_check_branch
        %145 = sbr.rel (%p143) target = $region20
      $region19: #{ssl_extractor_forward.11} parent=11 // pred_region
        _
      $region20: #{ssl_extractor_forward.11} parent=11 // pred_fallthru
        _
      // Predicated region
      $region21: #{ssl_extractor_forward.11} parent=11 // pred_check
        %p146 = pneg %p99
      $region22: #{ssl_extractor_forward.11} parent=11 // pred_check_branch
        %148 = sbr.rel (%p146) target = $region24
      $region23: #{ssl_extractor_forward.11} parent=11 // pred_region
        _
      $region24: #{ssl_extractor_forward.11} parent=11 // pred_fallthru
        _
    $region12: #{ssl_extractor_forward.11} parent=5 // pred_fallthru
      _
    %p149 = scmp.lt.s32.totalorder %s10, 2
    // Predicated region
    $region25: #{ssl_extractor_forward.11} parent=5 // pred_check
      %p150 = pneg %p149
    $region26: #{ssl_extractor_forward.11} parent=5 // pred_check_branch
      %152 = sbr.rel (%p150) target = $region28
    $region27: #{ssl_extractor_forward.11} parent=5 // pred_region
      // Predicated region
      $region29: #{ssl_extractor_forward.11} parent=27 // pred_check
        %p153 = pneg %p30
      $region30: #{ssl_extractor_forward.11} parent=27 // pred_check_branch
        %155 = sbr.rel (%p153) target = $region32
      $region31: #{ssl_extractor_forward.11} parent=27 // pred_region
        %p156 = scmp.lt.s32.totalorder %s10, 1
        %s157 = scalar_select %p156, %s10, 1
        %s158 = smul.addr %s157, 40
        %s159 = smul.addr %s158, 8
        %s160 = scalar_lea.vmem %s0, %s159
      $region32: #{ssl_extractor_forward.11} parent=27 // pred_fallthru
        _
    $region28: #{ssl_extractor_forward.11} parent=5 // pred_fallthru
      _
    %p161 = scmp.le.s32.totalorder 1, %s10
    %p162 = scmp.lt.s32.totalorder %s10, 3
    %p163 = pnand %p161, %p162
    %p164 = pneg %p163
    // Predicated region
    $region33: #{ssl_extractor_forward.11} parent=5 // pred_check
      _
    $region34: #{ssl_extractor_forward.11} parent=5 // pred_check_branch
      %166 = sbr.rel (%p163) target = $region36
    $region35: #{ssl_extractor_forward.11} parent=5 // pred_region
      %s167 = ssub.s32 %s10, 1
      %p168 = scmp.lt.s32.totalorder %s15, 1
      %s169 = scalar_select %p168, %s15, 1
      %s170 = smul.addr %s169, 40
      %s171 = smul.addr %s170, 8
      %s172 = scalar_lea.vmem %s0, %s171
      %p173 = pneg %p36
      %p174 = pneg %p33
      %p175 = pneg %p57
      %p176 = pneg %p54
      %p177 = pneg %p78
      %p178 = pneg %p75
      %p179 = pneg %p99
      %p180 = pneg %p96
      %p181 = pneg %p125
      %p182 = pneg %p122
      %p183 = scmp.lt.s32.totalorder %s15, 1
      %s184 = scalar_select %p183, %s15, 1
      %s185 = smul.addr %s184, 40
      %s186 = smul.addr %s185, 8
      %s187 = scalar_lea.vmem %s4, %s186
      %p188 = scmp.lt.s32.totalorder %s15, 1
      %s189 = scalar_select %p188, %s15, 1
      %s190 = smul.addr %s189, 40
      %s191 = smul.addr %s190, 8
      %s192 = scalar_lea.vmem %s0, %s191
      %p193 = scmp.lt.s32.totalorder %s15, 1
      %s194 = scalar_select %p193, %s15, 1
      %s195 = smul.addr %s194, 40
      %s196 = smul.addr %s195, 8
      %s197 = scalar_lea.vmem %s4, %s196
      %v199 = vld [vmem:[%s192] sm:$0xff]
      %v200 = vld [vmem:[%s192 + $0x8] sm:$0xff]
      %v201 = vld [vmem:[%s192 + $0x10] sm:$0xff]
      %v202 = vld [vmem:[%s192 + $0x18] sm:$0xff]
      %v203 = vld [vmem:[%s192 + $0x20] sm:$0xff]
      %v204 = vld [vmem:[%s192 + $0x28] sm:$0xff]
      %v205 = vld [vmem:[%s192 + $0x30] sm:$0xff]
      %v206 = vld [vmem:[%s192 + $0x38] sm:$0xff]
      %v207 = vld [vmem:[%s192 + $0x40] sm:$0xff]
      %v208 = vld [vmem:[%s192 + $0x48] sm:$0xff]
      %v209 = vld [vmem:[%s192 + $0x50] sm:$0xff]
      %v210 = vld [vmem:[%s192 + $0x58] sm:$0xff]
      %v211 = vld [vmem:[%s192 + $0x60] sm:$0xff]
      %v212 = vld [vmem:[%s192 + $0x68] sm:$0xff]
      %v213 = vld [vmem:[%s192 + $0x70] sm:$0xff]
      %v214 = vld [vmem:[%s192 + $0x78] sm:$0xff]
      %v215 = vld [vmem:[%s192 + $0x80] sm:$0xff]
      %v216 = vld [vmem:[%s192 + $0x88] sm:$0xff]
      %v217 = vld [vmem:[%s192 + $0x90] sm:$0xff]
      %v218 = vld [vmem:[%s192 + $0x98] sm:$0xff]
      %v219 = vld [vmem:[%s192 + $0xa0] sm:$0xff]
      %v220 = vld [vmem:[%s192 + $0xa8] sm:$0xff]
      %v221 = vld [vmem:[%s192 + $0xb0] sm:$0xff]
      %v222 = vld [vmem:[%s192 + $0xb8] sm:$0xff]
      %v223 = vld [vmem:[%s192 + $0xc0] sm:$0xff]
      %v224 = vld [vmem:[%s192 + $0xc8] sm:$0xff]
      %v225 = vld [vmem:[%s192 + $0xd0] sm:$0xff]
      %v226 = vld [vmem:[%s192 + $0xd8] sm:$0xff]
      %v227 = vld [vmem:[%s192 + $0xe0] sm:$0xff]
      %v228 = vld [vmem:[%s192 + $0xe8] sm:$0xff]
      %v229 = vld [vmem:[%s192 + $0xf0] sm:$0xff]
      %v230 = vld [vmem:[%s192 + $0xf8] sm:$0xff]
      %v231 = vld [vmem:[%s192 + $0x100] sm:$0xff]
      %v232 = vld [vmem:[%s192 + $0x108] sm:$0xff]
      %v233 = vld [vmem:[%s192 + $0x110] sm:$0xff]
      %v234 = vld [vmem:[%s192 + $0x118] sm:$0xff]
      %v235 = vld [vmem:[%s192 + $0x120] sm:$0xff]
      %v236 = vld [vmem:[%s192 + $0x128] sm:$0xff]
      %v237 = vld [vmem:[%s192 + $0x130] sm:$0xff]
      %v238 = vld [vmem:[%s192 + $0x138] sm:$0x7f]
      %v239 = vpack.c.bf16 %v200, %v199
      %v240 = vpack.c.bf16 %v202, %v201
      %v241 = vpack.c.bf16 %v204, %v203
      %v242 = vpack.c.bf16 %v206, %v205
      %v243 = vpack.c.bf16 %v208, %v207
      %v244 = vpack.c.bf16 %v210, %v209
      %v245 = vpack.c.bf16 %v212, %v211
      %v246 = vpack.c.bf16 %v214, %v213
      %v247 = vpack.c.bf16 %v216, %v215
      %v248 = vpack.c.bf16 %v218, %v217
      %v249 = vpack.c.bf16 %v220, %v219
      %v250 = vpack.c.bf16 %v222, %v221
      %v251 = vpack.c.bf16 %v224, %v223
      %v252 = vpack.c.bf16 %v226, %v225
      %v253 = vpack.c.bf16 %v228, %v227
      %v254 = vpack.c.bf16 %v230, %v229
      %v255 = vpack.c.bf16 %v232, %v231
      %v256 = vpack.c.bf16 %v234, %v233
      %v257 = vpack.c.bf16 %v236, %v235
      %v258 = vpack.c.bf16 %v238, %v237
      %v259 = vld [vmem:[%s1] sm:$0xf]
      %v260 = vld [vmem:[%s1 + $0x4] sm:$0x1]
      %v263 = vunpack.c.l.b16 %v259
      %v264 = vunpack.c.l.b16 %v260
      %v265 = vpack.c.b16 %v264, %v263
      %vm266 = vcmask 80896
      %v268 = vsel %vm266, %v239, 0
      %v271 = vsel %vm266, %v240, 0
      %v274 = vsel %vm266, %v241, 0
      %v277 = vsel %vm266, %v242, 0
      %v280 = vsel %vm266, %v243, 0
      %v283 = vsel %vm266, %v244, 0
      %v286 = vsel %vm266, %v245, 0
      %v289 = vsel %vm266, %v246, 0
      %v292 = vsel %vm266, %v247, 0
      %v295 = vsel %vm266, %v248, 0
      %v298 = vsel %vm266, %v249, 0
      %v301 = vsel %vm266, %v250, 0
      %v304 = vsel %vm266, %v251, 0
      %v307 = vsel %vm266, %v252, 0
      %v310 = vsel %vm266, %v253, 0
      %v313 = vsel %vm266, %v254, 0
      %v316 = vsel %vm266, %v255, 0
      %v319 = vsel %vm266, %v256, 0
      %v322 = vsel %vm266, %v257, 0
      %v325 = vsel %vm266, %v258, 0
      %vm327 = vcmask 1044480
      %v329 = vsel %vm327, %v265, 0
      %331 = vmatpush.bf16.msra.mxu0 0
      %332 = vmatpush.bf16.msra.mxu0 0
      %333 = vmatpush.bf16.msra.mxu0 0
      %334 = vmatpush.bf16.msra.mxu0 0
      %335 = vmatpush.bf16.msra.mxu0 0
      %336 = vmatpush.bf16.msra.mxu0 0
      %337 = vmatpush.bf16.msra.mxu0 0
      %338 = vmatpush.bf16.msra.mxu0 %v329
      %339 = vmatmul.bf16.gmra.mxu0 %v268
      %v340 = vpop.f32.mrf.mxu0
      %v341 = vadd.f32 0.0, %v340
      %v342 = vpop.f32.mrf.mxu0
      %v343 = vadd.f32 0.0, %v342
      %344 = vmatmul.bf16.gmra.mxu0 %v271
      %v345 = vpop.f32.mrf.mxu0
      %v346 = vadd.f32 0.0, %v345
      %v347 = vpop.f32.mrf.mxu0
      %v348 = vadd.f32 0.0, %v347
      %349 = vmatmul.bf16.gmra.mxu0 %v274
      %v350 = vpop.f32.mrf.mxu0
      %v351 = vadd.f32 0.0, %v350
      %v352 = vpop.f32.mrf.mxu0
      %v353 = vadd.f32 0.0, %v352
      %354 = vmatmul.bf16.gmra.mxu0 %v277
      %v355 = vpop.f32.mrf.mxu0
      %v356 = vadd.f32 0.0, %v355
      %v357 = vpop.f32.mrf.mxu0
      %v358 = vadd.f32 0.0, %v357
      %359 = vmatmul.bf16.gmra.mxu0 %v280
      %v360 = vpop.f32.mrf.mxu0
      %v361 = vadd.f32 0.0, %v360
      %v362 = vpop.f32.mrf.mxu0
      %v363 = vadd.f32 0.0, %v362
      %364 = vmatmul.bf16.gmra.mxu0 %v283
      %v365 = vpop.f32.mrf.mxu0
      %v366 = vadd.f32 0.0, %v365
      %v367 = vpop.f32.mrf.mxu0
      %v368 = vadd.f32 0.0, %v367
      %369 = vmatmul.bf16.gmra.mxu0 %v286
      %v370 = vpop.f32.mrf.mxu0
      %v371 = vadd.f32 0.0, %v370
      %v372 = vpop.f32.mrf.mxu0
      %v373 = vadd.f32 0.0, %v372
      %374 = vmatmul.bf16.gmra.mxu0 %v289
      %v375 = vpop.f32.mrf.mxu0
      %v376 = vadd.f32 0.0, %v375
      %v377 = vpop.f32.mrf.mxu0
      %v378 = vadd.f32 0.0, %v377
      %379 = vmatmul.bf16.gmra.mxu0 %v292
      %v380 = vpop.f32.mrf.mxu0
      %v381 = vadd.f32 0.0, %v380
      %v382 = vpop.f32.mrf.mxu0
      %v383 = vadd.f32 0.0, %v382
      %384 = vmatmul.bf16.gmra.mxu0 %v295
      %v385 = vpop.f32.mrf.mxu0
      %v386 = vadd.f32 0.0, %v385
      %v387 = vpop.f32.mrf.mxu0
      %v388 = vadd.f32 0.0, %v387
      %389 = vmatmul.bf16.gmra.mxu0 %v298
      %v390 = vpop.f32.mrf.mxu0
      %v391 = vadd.f32 0.0, %v390
      %v392 = vpop.f32.mrf.mxu0
      %v393 = vadd.f32 0.0, %v392
      %394 = vmatmul.bf16.gmra.mxu0 %v301
      %v395 = vpop.f32.mrf.mxu0
      %v396 = vadd.f32 0.0, %v395
      %v397 = vpop.f32.mrf.mxu0
      %v398 = vadd.f32 0.0, %v397
      %399 = vmatmul.bf16.gmra.mxu0 %v304
      %v400 = vpop.f32.mrf.mxu0
      %v401 = vadd.f32 0.0, %v400
      %v402 = vpop.f32.mrf.mxu0
      %v403 = vadd.f32 0.0, %v402
      %404 = vmatmul.bf16.gmra.mxu0 %v307
      %v405 = vpop.f32.mrf.mxu0
      %v406 = vadd.f32 0.0, %v405
      %v407 = vpop.f32.mrf.mxu0
      %v408 = vadd.f32 0.0, %v407
      %409 = vmatmul.bf16.gmra.mxu0 %v310
      %v410 = vpop.f32.mrf.mxu0
      %v411 = vadd.f32 0.0, %v410
      %v412 = vpop.f32.mrf.mxu0
      %v413 = vadd.f32 0.0, %v412
      %414 = vmatmul.bf16.gmra.mxu0 %v313
      %v415 = vpop.f32.mrf.mxu0
      %v416 = vadd.f32 0.0, %v415
      %v417 = vpop.f32.mrf.mxu0
      %v418 = vadd.f32 0.0, %v417
      %419 = vmatmul.bf16.gmra.mxu0 %v316
      %v420 = vpop.f32.mrf.mxu0
      %v421 = vadd.f32 0.0, %v420
      %v422 = vpop.f32.mrf.mxu0
      %v423 = vadd.f32 0.0, %v422
      %424 = vmatmul.bf16.gmra.mxu0 %v319
      %v425 = vpop.f32.mrf.mxu0
      %v426 = vadd.f32 0.0, %v425
      %v427 = vpop.f32.mrf.mxu0
      %v428 = vadd.f32 0.0, %v427
      %429 = vmatmul.bf16.gmra.mxu0 %v322
      %v430 = vpop.f32.mrf.mxu0
      %v431 = vadd.f32 0.0, %v430
      %v432 = vpop.f32.mrf.mxu0
      %v433 = vadd.f32 0.0, %v432
      %434 = vmatmul.bf16.gmra.mxu0 %v325
      %v435 = vpop.f32.mrf.mxu0
      %v436 = vadd.f32 0.0, %v435
      %v437 = vpop.f32.mrf.mxu0
      %v438 = vadd.f32 0.0, %v437
      %439 = vdwg.mxu0
      %vm440 = vcmask 261120
      %v441 = vsel %vm440, %v341, 0.0
      %v442 = vsel %vm440, %v343, 0.0
      %v443 = vadd.f32 %v441, %v442
      %v444 = vsel %vm440, %v346, 0.0
      %v445 = vadd.f32 %v443, %v444
      %v446 = vsel %vm440, %v348, 0.0
      %v447 = vadd.f32 %v445, %v446
      %v448 = vsel %vm440, %v351, 0.0
      %v449 = vadd.f32 %v447, %v448
      %v450 = vsel %vm440, %v353, 0.0
      %v451 = vadd.f32 %v449, %v450
      %v452 = vsel %vm440, %v356, 0.0
      %v453 = vadd.f32 %v451, %v452
      %v454 = vsel %vm440, %v358, 0.0
      %v455 = vadd.f32 %v453, %v454
      %v456 = vsel %vm440, %v361, 0.0
      %v457 = vadd.f32 %v455, %v456
      %v458 = vsel %vm440, %v363, 0.0
      %v459 = vadd.f32 %v457, %v458
      %v460 = vsel %vm440, %v366, 0.0
      %v461 = vadd.f32 %v459, %v460
      %v462 = vsel %vm440, %v368, 0.0
      %v463 = vadd.f32 %v461, %v462
      %v464 = vsel %vm440, %v371, 0.0
      %v465 = vadd.f32 %v463, %v464
      %v466 = vsel %vm440, %v373, 0.0
      %v467 = vadd.f32 %v465, %v466
      %v468 = vsel %vm440, %v376, 0.0
      %v469 = vadd.f32 %v467, %v468
      %v470 = vsel %vm440, %v378, 0.0
      %v471 = vadd.f32 %v469, %v470
      %v472 = vsel %vm440, %v381, 0.0
      %v473 = vadd.f32 %v471, %v472
      %v474 = vsel %vm440, %v383, 0.0
      %v475 = vadd.f32 %v473, %v474
      %v476 = vsel %vm440, %v386, 0.0
      %v477 = vadd.f32 %v475, %v476
      %v478 = vsel %vm440, %v388, 0.0
      %v479 = vadd.f32 %v477, %v478
      %v480 = vsel %vm440, %v391, 0.0
      %v481 = vadd.f32 %v479, %v480
      %v482 = vsel %vm440, %v393, 0.0
      %v483 = vadd.f32 %v481, %v482
      %v484 = vsel %vm440, %v396, 0.0
      %v485 = vadd.f32 %v483, %v484
      %v486 = vsel %vm440, %v398, 0.0
      %v487 = vadd.f32 %v485, %v486
      %v488 = vsel %vm440, %v401, 0.0
      %v489 = vadd.f32 %v487, %v488
      %v490 = vsel %vm440, %v403, 0.0
      %v491 = vadd.f32 %v489, %v490
      %v492 = vsel %vm440, %v406, 0.0
      %v493 = vadd.f32 %v491, %v492
      %v494 = vsel %vm440, %v408, 0.0
      %v495 = vadd.f32 %v493, %v494
      %v496 = vsel %vm440, %v411, 0.0
      %v497 = vadd.f32 %v495, %v496
      %v498 = vsel %vm440, %v413, 0.0
      %v499 = vadd.f32 %v497, %v498
      %v500 = vsel %vm440, %v416, 0.0
      %v501 = vadd.f32 %v499, %v500
      %v502 = vsel %vm440, %v418, 0.0
      %v503 = vadd.f32 %v501, %v502
      %v504 = vsel %vm440, %v421, 0.0
      %v505 = vadd.f32 %v503, %v504
      %v506 = vsel %vm440, %v423, 0.0
      %v507 = vadd.f32 %v505, %v506
      %v508 = vsel %vm440, %v426, 0.0
      %v509 = vadd.f32 %v507, %v508
      %v510 = vsel %vm440, %v428, 0.0
      %v511 = vadd.f32 %v509, %v510
      %v512 = vsel %vm440, %v431, 0.0
      %v513 = vadd.f32 %v511, %v512
      %v514 = vsel %vm440, %v433, 0.0
      %v515 = vadd.f32 %v513, %v514
      %v516 = vsel %vm440, %v436, 0.0
      %v517 = vadd.f32 %v515, %v516
      %vm518 = vcmask 260096
      %v519 = vsel %vm518, %v438, 0.0
      %v520 = vadd.f32 %v517, %v519
      %v521 = vrot.slane %v520, 4
      %v522 = vadd.f32 %v520, %v521
      %v523 = vrot.slane %v522, 2
      %v524 = vadd.f32 %v522, %v523
      %v525 = vrot.slane %v524, 1
      %v526 = vadd.f32 %v524, %v525
      %v527 = vrcp.pop 319.0
      %v528 = vmul.f32 319.0, %v527
      %v529 = vsub.f32 1.0, %v528
      %v530 = vmul.f32 %v527, %v529
      %v531 = vadd.f32 %v527, %v530
      %vm532 = vweird.f32 %v527
      %v533 = vsel %vm532, %v527, %v531
      %v534 = vmul.f32 %v526, %v533
      %v535 = vsub.f32 %v341, %v534
      %v536 = vsub.f32 %v343, %v534
      %v537 = vsub.f32 %v346, %v534
      %v538 = vsub.f32 %v348, %v534
      %v539 = vsub.f32 %v351, %v534
      %v540 = vsub.f32 %v353, %v534
      %v541 = vsub.f32 %v356, %v534
      %v542 = vsub.f32 %v358, %v534
      %v543 = vsub.f32 %v361, %v534
      %v544 = vsub.f32 %v363, %v534
      %v545 = vsub.f32 %v366, %v534
      %v546 = vsub.f32 %v368, %v534
      %v547 = vsub.f32 %v371, %v534
      %v548 = vsub.f32 %v373, %v534
      %v549 = vsub.f32 %v376, %v534
      %v550 = vsub.f32 %v378, %v534
      %v551 = vsub.f32 %v381, %v534
      %v552 = vsub.f32 %v383, %v534
      %v553 = vsub.f32 %v386, %v534
      %v554 = vsub.f32 %v388, %v534
      %v555 = vsub.f32 %v391, %v534
      %v556 = vsub.f32 %v393, %v534
      %v557 = vsub.f32 %v396, %v534
      %v558 = vsub.f32 %v398, %v534
      %v559 = vsub.f32 %v401, %v534
      %v560 = vsub.f32 %v403, %v534
      %v561 = vsub.f32 %v406, %v534
      %v562 = vsub.f32 %v408, %v534
      %v563 = vsub.f32 %v411, %v534
      %v564 = vsub.f32 %v413, %v534
      %v565 = vsub.f32 %v416, %v534
      %v566 = vsub.f32 %v418, %v534
      %v567 = vsub.f32 %v421, %v534
      %v568 = vsub.f32 %v423, %v534
      %v569 = vsub.f32 %v426, %v534
      %v570 = vsub.f32 %v428, %v534
      %v571 = vsub.f32 %v431, %v534
      %v572 = vsub.f32 %v433, %v534
      %v573 = vsub.f32 %v436, %v534
      %v574 = vsub.f32 %v438, %v534
      %v575 = vmul.f32 %v535, %v535
      %v576 = vmul.f32 %v536, %v536
      %v577 = vmul.f32 %v537, %v537
      %v578 = vmul.f32 %v538, %v538
      %v579 = vmul.f32 %v539, %v539
      %v580 = vmul.f32 %v540, %v540
      %v581 = vmul.f32 %v541, %v541
      %v582 = vmul.f32 %v542, %v542
      %v583 = vmul.f32 %v543, %v543
      %v584 = vmul.f32 %v544, %v544
      %v585 = vmul.f32 %v545, %v545
      %v586 = vmul.f32 %v546, %v546
      %v587 = vmul.f32 %v547, %v547
      %v588 = vmul.f32 %v548, %v548
      %v589 = vmul.f32 %v549, %v549
      %v590 = vmul.f32 %v550, %v550
      %v591 = vmul.f32 %v551, %v551
      %v592 = vmul.f32 %v552, %v552
      %v593 = vmul.f32 %v553, %v553
      %v594 = vmul.f32 %v554, %v554
      %v595 = vmul.f32 %v555, %v555
      %v596 = vmul.f32 %v556, %v556
      %v597 = vmul.f32 %v557, %v557
      %v598 = vmul.f32 %v558, %v558
      %v599 = vmul.f32 %v559, %v559
      %v600 = vmul.f32 %v560, %v560
      %v601 = vmul.f32 %v561, %v561
      %v602 = vmul.f32 %v562, %v562
      %v603 = vmul.f32 %v563, %v563
      %v604 = vmul.f32 %v564, %v564
      %v605 = vmul.f32 %v565, %v565
      %v606 = vmul.f32 %v566, %v566
      %v607 = vmul.f32 %v567, %v567
      %v608 = vmul.f32 %v568, %v568
      %v609 = vmul.f32 %v569, %v569
      %v610 = vmul.f32 %v570, %v570
      %v611 = vmul.f32 %v571, %v571
      %v612 = vmul.f32 %v572, %v572
      %v613 = vmul.f32 %v573, %v573
      %v614 = vmul.f32 %v574, %v574
      %v615 = vsel %vm440, %v575, 0.0
      %v616 = vsel %vm440, %v576, 0.0
      %v617 = vadd.f32 %v615, %v616
      %v618 = vsel %vm440, %v577, 0.0
      %v619 = vadd.f32 %v617, %v618
      %v620 = vsel %vm440, %v578, 0.0
      %v621 = vadd.f32 %v619, %v620
      %v622 = vsel %vm440, %v579, 0.0
      %v623 = vadd.f32 %v621, %v622
      %v624 = vsel %vm440, %v580, 0.0
      %v625 = vadd.f32 %v623, %v624
      %v626 = vsel %vm440, %v581, 0.0
      %v627 = vadd.f32 %v625, %v626
      %v628 = vsel %vm440, %v582, 0.0
      %v629 = vadd.f32 %v627, %v628
      %v630 = vsel %vm440, %v583, 0.0
      %v631 = vadd.f32 %v629, %v630
      %v632 = vsel %vm440, %v584, 0.0
      %v633 = vadd.f32 %v631, %v632
      %v634 = vsel %vm440, %v585, 0.0
      %v635 = vadd.f32 %v633, %v634
      %v636 = vsel %vm440, %v586, 0.0
      %v637 = vadd.f32 %v635, %v636
      %v638 = vsel %vm440, %v587, 0.0
      %v639 = vadd.f32 %v637, %v638
      %v640 = vsel %vm440, %v588, 0.0
      %v641 = vadd.f32 %v639, %v640
      %v642 = vsel %vm440, %v589, 0.0
      %v643 = vadd.f32 %v641, %v642
      %v644 = vsel %vm440, %v590, 0.0
      %v645 = vadd.f32 %v643, %v644
      %v646 = vsel %vm440, %v591, 0.0
      %v647 = vadd.f32 %v645, %v646
      %v648 = vsel %vm440, %v592, 0.0
      %v649 = vadd.f32 %v647, %v648
      %v650 = vsel %vm440, %v593, 0.0
      %v651 = vadd.f32 %v649, %v650
      %v652 = vsel %vm440, %v594, 0.0
      %v653 = vadd.f32 %v651, %v652
      %v654 = vsel %vm440, %v595, 0.0
      %v655 = vadd.f32 %v653, %v654
      %v656 = vsel %vm440, %v596, 0.0
      %v657 = vadd.f32 %v655, %v656
      %v658 = vsel %vm440, %v597, 0.0
      %v659 = vadd.f32 %v657, %v658
      %v660 = vsel %vm440, %v598, 0.0
      %v661 = vadd.f32 %v659, %v660
      %v662 = vsel %vm440, %v599, 0.0
      %v663 = vadd.f32 %v661, %v662
      %v664 = vsel %vm440, %v600, 0.0
      %v665 = vadd.f32 %v663, %v664
      %v666 = vsel %vm440, %v601, 0.0
      %v667 = vadd.f32 %v665, %v666
      %v668 = vsel %vm440, %v602, 0.0
      %v669 = vadd.f32 %v667, %v668
      %v670 = vsel %vm440, %v603, 0.0
      %v671 = vadd.f32 %v669, %v670
      %v672 = vsel %vm440, %v604, 0.0
      %v673 = vadd.f32 %v671, %v672
      %v674 = vsel %vm440, %v605, 0.0
      %v675 = vadd.f32 %v673, %v674
      %v676 = vsel %vm440, %v606, 0.0
      %v677 = vadd.f32 %v675, %v676
      %v678 = vsel %vm440, %v607, 0.0
      %v679 = vadd.f32 %v677, %v678
      %v680 = vsel %vm440, %v608, 0.0
      %v681 = vadd.f32 %v679, %v680
      %v682 = vsel %vm440, %v609, 0.0
      %v683 = vadd.f32 %v681, %v682
      %v684 = vsel %vm440, %v610, 0.0
      %v685 = vadd.f32 %v683, %v684
      %v686 = vsel %vm440, %v611, 0.0
      %v687 = vadd.f32 %v685, %v686
      %v688 = vsel %vm440, %v612, 0.0
      %v689 = vadd.f32 %v687, %v688
      %v690 = vsel %vm440, %v613, 0.0
      %v691 = vadd.f32 %v689, %v690
      %v692 = vsel %vm518, %v614, 0.0
      %v693 = vadd.f32 %v691, %v692
      %v694 = vrot.slane %v693, 4
      %v695 = vadd.f32 %v693, %v694
      %v696 = vrot.slane %v695, 2
      %v697 = vadd.f32 %v695, %v696
      %v698 = vrot.slane %v697, 1
      %v699 = vadd.f32 %v697, %v698
      %v700 = vmul.f32 %v699, %v533
      %v701 = vadd.f32 %v700, 1e-05
      %v702 = vrsqrt.pop %v701
      %v703 = vmul.f32 %v702, %v701
      %v704 = vmul.f32 %v703, %v702
      %v705 = vmul.f32 0.5, %v704
      %v706 = vsub.f32 1.5, %v705
      %v707 = vmul.f32 %v702, %v706
      %vm708 = vweird.f32 %v701
      %vm709 = vweird.f32 %v702
      %vm710 = vmor %vm708, %vm709
      %v711 = vsel %vm710, %v702, %v707
      %v712 = vmul.f32 %v535, %v711
      %v713 = vmul.f32 %v536, %v711
      %v714 = vmul.f32 %v537, %v711
      %v715 = vmul.f32 %v538, %v711
      %v716 = vmul.f32 %v539, %v711
      %v717 = vmul.f32 %v540, %v711
      %v718 = vmul.f32 %v541, %v711
      %v719 = vmul.f32 %v542, %v711
      %v720 = vmul.f32 %v543, %v711
      %v721 = vmul.f32 %v544, %v711
      %v722 = vmul.f32 %v545, %v711
      %v723 = vmul.f32 %v546, %v711
      %v724 = vmul.f32 %v547, %v711
      %v725 = vmul.f32 %v548, %v711
      %v726 = vmul.f32 %v549, %v711
      %v727 = vmul.f32 %v550, %v711
      %v728 = vmul.f32 %v551, %v711
      %v729 = vmul.f32 %v552, %v711
      %v730 = vmul.f32 %v553, %v711
      %v731 = vmul.f32 %v554, %v711
      %v732 = vmul.f32 %v555, %v711
      %v733 = vmul.f32 %v556, %v711
      %v734 = vmul.f32 %v557, %v711
      %v735 = vmul.f32 %v558, %v711
      %v736 = vmul.f32 %v559, %v711
      %v737 = vmul.f32 %v560, %v711
      %v738 = vmul.f32 %v561, %v711
      %v739 = vmul.f32 %v562, %v711
      %v740 = vmul.f32 %v563, %v711
      %v741 = vmul.f32 %v564, %v711
      %v742 = vmul.f32 %v565, %v711
      %v743 = vmul.f32 %v566, %v711
      %v744 = vmul.f32 %v567, %v711
      %v745 = vmul.f32 %v568, %v711
      %v746 = vmul.f32 %v569, %v711
      %v747 = vmul.f32 %v570, %v711
      %v748 = vmul.f32 %v571, %v711
      %v749 = vmul.f32 %v572, %v711
      %v750 = vmul.f32 %v573, %v711
      %v751 = vmul.f32 %v574, %v711
      %v752 = vld [vmem:[%s2] sm:$0x1]
      %v754 = vperm.slane %v752, 0
      %v756 = vmul.f32 %v712, %v754
      %v757 = vmul.f32 %v713, %v754
      %v758 = vmul.f32 %v714, %v754
      %v759 = vmul.f32 %v715, %v754
      %v760 = vmul.f32 %v716, %v754
      %v761 = vmul.f32 %v717, %v754
      %v762 = vmul.f32 %v718, %v754
      %v763 = vmul.f32 %v719, %v754
      %v764 = vmul.f32 %v720, %v754
      %v765 = vmul.f32 %v721, %v754
      %v766 = vmul.f32 %v722, %v754
      %v767 = vmul.f32 %v723, %v754
      %v768 = vmul.f32 %v724, %v754
      %v769 = vmul.f32 %v725, %v754
      %v770 = vmul.f32 %v726, %v754
      %v771 = vmul.f32 %v727, %v754
      %v772 = vmul.f32 %v728, %v754
      %v773 = vmul.f32 %v729, %v754
      %v774 = vmul.f32 %v730, %v754
      %v775 = vmul.f32 %v731, %v754
      %v776 = vmul.f32 %v732, %v754
      %v777 = vmul.f32 %v733, %v754
      %v778 = vmul.f32 %v734, %v754
      %v779 = vmul.f32 %v735, %v754
      %v780 = vmul.f32 %v736, %v754
      %v781 = vmul.f32 %v737, %v754
      %v782 = vmul.f32 %v738, %v754
      %v783 = vmul.f32 %v739, %v754
      %v784 = vmul.f32 %v740, %v754
      %v785 = vmul.f32 %v741, %v754
      %v786 = vmul.f32 %v742, %v754
      %v787 = vmul.f32 %v743, %v754
      %v788 = vmul.f32 %v744, %v754
      %v789 = vmul.f32 %v745, %v754
      %v790 = vmul.f32 %v746, %v754
      %v791 = vmul.f32 %v747, %v754
      %v792 = vmul.f32 %v748, %v754
      %v793 = vmul.f32 %v749, %v754
      %v794 = vmul.f32 %v750, %v754
      %v795 = vmul.f32 %v751, %v754
      %v796 = vld [vmem:[%s3] sm:$0x1]
      %v798 = vperm.slane %v796, 0
      %v800 = vadd.f32 %v756, %v798
      %v801 = vadd.f32 %v757, %v798
      %v802 = vadd.f32 %v758, %v798
      %v803 = vadd.f32 %v759, %v798
      %v804 = vadd.f32 %v760, %v798
      %v805 = vadd.f32 %v761, %v798
      %v806 = vadd.f32 %v762, %v798
      %v807 = vadd.f32 %v763, %v798
      %v808 = vadd.f32 %v764, %v798
      %v809 = vadd.f32 %v765, %v798
      %v810 = vadd.f32 %v766, %v798
      %v811 = vadd.f32 %v767, %v798
      %v812 = vadd.f32 %v768, %v798
      %v813 = vadd.f32 %v769, %v798
      %v814 = vadd.f32 %v770, %v798
      %v815 = vadd.f32 %v771, %v798
      %v816 = vadd.f32 %v772, %v798
      %v817 = vadd.f32 %v773, %v798
      %v818 = vadd.f32 %v774, %v798
      %v819 = vadd.f32 %v775, %v798
      %v820 = vadd.f32 %v776, %v798
      %v821 = vadd.f32 %v777, %v798
      %v822 = vadd.f32 %v778, %v798
      %v823 = vadd.f32 %v779, %v798
      %v824 = vadd.f32 %v780, %v798
      %v825 = vadd.f32 %v781, %v798
      %v826 = vadd.f32 %v782, %v798
      %v827 = vadd.f32 %v783, %v798
      %v828 = vadd.f32 %v784, %v798
      %v829 = vadd.f32 %v785, %v798
      %v830 = vadd.f32 %v786, %v798
      %v831 = vadd.f32 %v787, %v798
      %v832 = vadd.f32 %v788, %v798
      %v833 = vadd.f32 %v789, %v798
      %v834 = vadd.f32 %v790, %v798
      %v835 = vadd.f32 %v791, %v798
      %v836 = vadd.f32 %v792, %v798
      %v837 = vadd.f32 %v793, %v798
      %v838 = vadd.f32 %v794, %v798
      %v839 = vadd.f32 %v795, %v798
      %v840 = vmul.f32 %v800, %v800
      %v841 = vmul.f32 %v801, %v801
      %v842 = vmul.f32 %v802, %v802
      %v843 = vmul.f32 %v803, %v803
      %v844 = vmul.f32 %v804, %v804
      %v845 = vmul.f32 %v805, %v805
      %v846 = vmul.f32 %v806, %v806
      %v847 = vmul.f32 %v807, %v807
      %v848 = vmul.f32 %v808, %v808
      %v849 = vmul.f32 %v809, %v809
      %v850 = vmul.f32 %v810, %v810
      %v851 = vmul.f32 %v811, %v811
      %v852 = vmul.f32 %v812, %v812
      %v853 = vmul.f32 %v813, %v813
      %v854 = vmul.f32 %v814, %v814
      %v855 = vmul.f32 %v815, %v815
      %v856 = vmul.f32 %v816, %v816
      %v857 = vmul.f32 %v817, %v817
      %v858 = vmul.f32 %v818, %v818
      %v859 = vmul.f32 %v819, %v819
      %v860 = vmul.f32 %v820, %v820
      %v861 = vmul.f32 %v821, %v821
      %v862 = vmul.f32 %v822, %v822
      %v863 = vmul.f32 %v823, %v823
      %v864 = vmul.f32 %v824, %v824
      %v865 = vmul.f32 %v825, %v825
      %v866 = vmul.f32 %v826, %v826
      %v867 = vmul.f32 %v827, %v827
      %v868 = vmul.f32 %v828, %v828
      %v869 = vmul.f32 %v829, %v829
      %v870 = vmul.f32 %v830, %v830
      %v871 = vmul.f32 %v831, %v831
      %v872 = vmul.f32 %v832, %v832
      %v873 = vmul.f32 %v833, %v833
      %v874 = vmul.f32 %v834, %v834
      %v875 = vmul.f32 %v835, %v835
      %v876 = vmul.f32 %v836, %v836
      %v877 = vmul.f32 %v837, %v837
      %v878 = vmul.f32 %v838, %v838
      %v879 = vmul.f32 %v839, %v839
      %v880 = vmul.f32 %v800, %v840
      %v881 = vmul.f32 %v801, %v841
      %v882 = vmul.f32 %v802, %v842
      %v883 = vmul.f32 %v803, %v843
      %v884 = vmul.f32 %v804, %v844
      %v885 = vmul.f32 %v805, %v845
      %v886 = vmul.f32 %v806, %v846
      %v887 = vmul.f32 %v807, %v847
      %v888 = vmul.f32 %v808, %v848
      %v889 = vmul.f32 %v809, %v849
      %v890 = vmul.f32 %v810, %v850
      %v891 = vmul.f32 %v811, %v851
      %v892 = vmul.f32 %v812, %v852
      %v893 = vmul.f32 %v813, %v853
      %v894 = vmul.f32 %v814, %v854
      %v895 = vmul.f32 %v815, %v855
      %v896 = vmul.f32 %v816, %v856
      %v897 = vmul.f32 %v817, %v857
      %v898 = vmul.f32 %v818, %v858
      %v899 = vmul.f32 %v819, %v859
      %v900 = vmul.f32 %v820, %v860
      %v901 = vmul.f32 %v821, %v861
      %v902 = vmul.f32 %v822, %v862
      %v903 = vmul.f32 %v823, %v863
      %v904 = vmul.f32 %v824, %v864
      %v905 = vmul.f32 %v825, %v865
      %v906 = vmul.f32 %v826, %v866
      %v907 = vmul.f32 %v827, %v867
      %v908 = vmul.f32 %v828, %v868
      %v909 = vmul.f32 %v829, %v869
      %v910 = vmul.f32 %v830, %v870
      %v911 = vmul.f32 %v831, %v871
      %v912 = vmul.f32 %v832, %v872
      %v913 = vmul.f32 %v833, %v873
      %v914 = vmul.f32 %v834, %v874
      %v915 = vmul.f32 %v835, %v875
      %v916 = vmul.f32 %v836, %v876
      %v917 = vmul.f32 %v837, %v877
      %v918 = vmul.f32 %v838, %v878
      %v919 = vmul.f32 %v839, %v879
      %v920 = vmul.f32 %v880, 0.044715
      %v921 = vmul.f32 %v881, 0.044715
      %v922 = vmul.f32 %v882, 0.044715
      %v923 = vmul.f32 %v883, 0.044715
      %v924 = vmul.f32 %v884, 0.044715
      %v925 = vmul.f32 %v885, 0.044715
      %v926 = vmul.f32 %v886, 0.044715
      %v927 = vmul.f32 %v887, 0.044715
      %v928 = vmul.f32 %v888, 0.044715
      %v929 = vmul.f32 %v889, 0.044715
      %v930 = vmul.f32 %v890, 0.044715
      %v931 = vmul.f32 %v891, 0.044715
      %v932 = vmul.f32 %v892, 0.044715
      %v933 = vmul.f32 %v893, 0.044715
      %v934 = vmul.f32 %v894, 0.044715
      %v935 = vmul.f32 %v895, 0.044715
      %v936 = vmul.f32 %v896, 0.044715
      %v937 = vmul.f32 %v897, 0.044715
      %v938 = vmul.f32 %v898, 0.044715
      %v939 = vmul.f32 %v899, 0.044715
      %v940 = vmul.f32 %v900, 0.044715
      %v941 = vmul.f32 %v901, 0.044715
      %v942 = vmul.f32 %v902, 0.044715
      %v943 = vmul.f32 %v903, 0.044715
      %v944 = vmul.f32 %v904, 0.044715
      %v945 = vmul.f32 %v905, 0.044715
      %v946 = vmul.f32 %v906, 0.044715
      %v947 = vmul.f32 %v907, 0.044715
      %v948 = vmul.f32 %v908, 0.044715
      %v949 = vmul.f32 %v909, 0.044715
      %v950 = vmul.f32 %v910, 0.044715
      %v951 = vmul.f32 %v911, 0.044715
      %v952 = vmul.f32 %v912, 0.044715
      %v953 = vmul.f32 %v913, 0.044715
      %v954 = vmul.f32 %v914, 0.044715
      %v955 = vmul.f32 %v915, 0.044715
      %v956 = vmul.f32 %v916, 0.044715
      %v957 = vmul.f32 %v917, 0.044715
      %v958 = vmul.f32 %v918, 0.044715
      %v959 = vmul.f32 %v919, 0.044715
      %v960 = vadd.f32 %v800, %v920
      %v961 = vadd.f32 %v801, %v921
      %v962 = vadd.f32 %v802, %v922
      %v963 = vadd.f32 %v803, %v923
      %v964 = vadd.f32 %v804, %v924
      %v965 = vadd.f32 %v805, %v925
      %v966 = vadd.f32 %v806, %v926
      %v967 = vadd.f32 %v807, %v927
      %v968 = vadd.f32 %v808, %v928
      %v969 = vadd.f32 %v809, %v929
      %v970 = vadd.f32 %v810, %v930
      %v971 = vadd.f32 %v811, %v931
      %v972 = vadd.f32 %v812, %v932
      %v973 = vadd.f32 %v813, %v933
      %v974 = vadd.f32 %v814, %v934
      %v975 = vadd.f32 %v815, %v935
      %v976 = vadd.f32 %v816, %v936
      %v977 = vadd.f32 %v817, %v937
      %v978 = vadd.f32 %v818, %v938
      %v979 = vadd.f32 %v819, %v939
      %v980 = vadd.f32 %v820, %v940
      %v981 = vadd.f32 %v821, %v941
      %v982 = vadd.f32 %v822, %v942
      %v983 = vadd.f32 %v823, %v943
      %v984 = vadd.f32 %v824, %v944
      %v985 = vadd.f32 %v825, %v945
      %v986 = vadd.f32 %v826, %v946
      %v987 = vadd.f32 %v827, %v947
      %v988 = vadd.f32 %v828, %v948
      %v989 = vadd.f32 %v829, %v949
      %v990 = vadd.f32 %v830, %v950
      %v991 = vadd.f32 %v831, %v951
      %v992 = vadd.f32 %v832, %v952
      %v993 = vadd.f32 %v833, %v953
      %v994 = vadd.f32 %v834, %v954
      %v995 = vadd.f32 %v835, %v955
      %v996 = vadd.f32 %v836, %v956
      %v997 = vadd.f32 %v837, %v957
      %v998 = vadd.f32 %v838, %v958
      %v999 = vadd.f32 %v839, %v959
      %v1000 = vmul.f32 %v960, 0.7978846
      %v1001 = vmul.f32 %v961, 0.7978846
      %v1002 = vmul.f32 %v962, 0.7978846
      %v1003 = vmul.f32 %v963, 0.7978846
      %v1004 = vmul.f32 %v964, 0.7978846
      %v1005 = vmul.f32 %v965, 0.7978846
      %v1006 = vmul.f32 %v966, 0.7978846
      %v1007 = vmul.f32 %v967, 0.7978846
      %v1008 = vmul.f32 %v968, 0.7978846
      %v1009 = vmul.f32 %v969, 0.7978846
      %v1010 = vmul.f32 %v970, 0.7978846
      %v1011 = vmul.f32 %v971, 0.7978846
      %v1012 = vmul.f32 %v972, 0.7978846
      %v1013 = vmul.f32 %v973, 0.7978846
      %v1014 = vmul.f32 %v974, 0.7978846
      %v1015 = vmul.f32 %v975, 0.7978846
      %v1016 = vmul.f32 %v976, 0.7978846
      %v1017 = vmul.f32 %v977, 0.7978846
      %v1018 = vmul.f32 %v978, 0.7978846
      %v1019 = vmul.f32 %v979, 0.7978846
      %v1020 = vmul.f32 %v980, 0.7978846
      %v1021 = vmul.f32 %v981, 0.7978846
      %v1022 = vmul.f32 %v982, 0.7978846
      %v1023 = vmul.f32 %v983, 0.7978846
      %v1024 = vmul.f32 %v984, 0.7978846
      %v1025 = vmul.f32 %v985, 0.7978846
      %v1026 = vmul.f32 %v986, 0.7978846
      %v1027 = vmul.f32 %v987, 0.7978846
      %v1028 = vmul.f32 %v988, 0.7978846
      %v1029 = vmul.f32 %v989, 0.7978846
      %v1030 = vmul.f32 %v990, 0.7978846
      %v1031 = vmul.f32 %v991, 0.7978846
      %v1032 = vmul.f32 %v992, 0.7978846
      %v1033 = vmul.f32 %v993, 0.7978846
      %v1034 = vmul.f32 %v994, 0.7978846
      %v1035 = vmul.f32 %v995, 0.7978846
      %v1036 = vmul.f32 %v996, 0.7978846
      %v1037 = vmul.f32 %v997, 0.7978846
      %v1038 = vmul.f32 %v998, 0.7978846
      %v1039 = vmul.f32 %v999, 0.7978846
      %v1040 = vtanh.pop %v1000
      %v1041 = vtanh.pop %v1001
      %v1042 = vtanh.pop %v1002
      %v1043 = vtanh.pop %v1003
      %v1044 = vtanh.pop %v1004
      %v1045 = vtanh.pop %v1005
      %v1046 = vtanh.pop %v1006
      %v1047 = vtanh.pop %v1007
      %v1048 = vtanh.pop %v1008
      %v1049 = vtanh.pop %v1009
      %v1050 = vtanh.pop %v1010
      %v1051 = vtanh.pop %v1011
      %v1052 = vtanh.pop %v1012
      %v1053 = vtanh.pop %v1013
      %v1054 = vtanh.pop %v1014
      %v1055 = vtanh.pop %v1015
      %v1056 = vtanh.pop %v1016
      %v1057 = vtanh.pop %v1017
      %v1058 = vtanh.pop %v1018
      %v1059 = vtanh.pop %v1019
      %v1060 = vtanh.pop %v1020
      %v1061 = vtanh.pop %v1021
      %v1062 = vtanh.pop %v1022
      %v1063 = vtanh.pop %v1023
      %v1064 = vtanh.pop %v1024
      %v1065 = vtanh.pop %v1025
      %v1066 = vtanh.pop %v1026
      %v1067 = vtanh.pop %v1027
      %v1068 = vtanh.pop %v1028
      %v1069 = vtanh.pop %v1029
      %v1070 = vtanh.pop %v1030
      %v1071 = vtanh.pop %v1031
      %v1072 = vtanh.pop %v1032
      %v1073 = vtanh.pop %v1033
      %v1074 = vtanh.pop %v1034
      %v1075 = vtanh.pop %v1035
      %v1076 = vtanh.pop %v1036
      %v1077 = vtanh.pop %v1037
      %v1078 = vtanh.pop %v1038
      %v1079 = vtanh.pop %v1039
      %v1080 = vadd.f32 %v1040, 1.0
      %v1081 = vadd.f32 %v1041, 1.0
      %v1082 = vadd.f32 %v1042, 1.0
      %v1083 = vadd.f32 %v1043, 1.0
      %v1084 = vadd.f32 %v1044, 1.0
      %v1085 = vadd.f32 %v1045, 1.0
      %v1086 = vadd.f32 %v1046, 1.0
      %v1087 = vadd.f32 %v1047, 1.0
      %v1088 = vadd.f32 %v1048, 1.0
      %v1089 = vadd.f32 %v1049, 1.0
      %v1090 = vadd.f32 %v1050, 1.0
      %v1091 = vadd.f32 %v1051, 1.0
      %v1092 = vadd.f32 %v1052, 1.0
      %v1093 = vadd.f32 %v1053, 1.0
      %v1094 = vadd.f32 %v1054, 1.0
      %v1095 = vadd.f32 %v1055, 1.0
      %v1096 = vadd.f32 %v1056, 1.0
      %v1097 = vadd.f32 %v1057, 1.0
      %v1098 = vadd.f32 %v1058, 1.0
      %v1099 = vadd.f32 %v1059, 1.0
      %v1100 = vadd.f32 %v1060, 1.0
      %v1101 = vadd.f32 %v1061, 1.0
      %v1102 = vadd.f32 %v1062, 1.0
      %v1103 = vadd.f32 %v1063, 1.0
      %v1104 = vadd.f32 %v1064, 1.0
      %v1105 = vadd.f32 %v1065, 1.0
      %v1106 = vadd.f32 %v1066, 1.0
      %v1107 = vadd.f32 %v1067, 1.0
      %v1108 = vadd.f32 %v1068, 1.0
      %v1109 = vadd.f32 %v1069, 1.0
      %v1110 = vadd.f32 %v1070, 1.0
      %v1111 = vadd.f32 %v1071, 1.0
      %v1112 = vadd.f32 %v1072, 1.0
      %v1113 = vadd.f32 %v1073, 1.0
      %v1114 = vadd.f32 %v1074, 1.0
      %v1115 = vadd.f32 %v1075, 1.0
      %v1116 = vadd.f32 %v1076, 1.0
      %v1117 = vadd.f32 %v1077, 1.0
      %v1118 = vadd.f32 %v1078, 1.0
      %v1119 = vadd.f32 %v1079, 1.0
      %v1120 = vmul.f32 %v1080, 0.5
      %v1121 = vmul.f32 %v1081, 0.5
      %v1122 = vmul.f32 %v1082, 0.5
      %v1123 = vmul.f32 %v1083, 0.5
      %v1124 = vmul.f32 %v1084, 0.5
      %v1125 = vmul.f32 %v1085, 0.5
      %v1126 = vmul.f32 %v1086, 0.5
      %v1127 = vmul.f32 %v1087, 0.5
      %v1128 = vmul.f32 %v1088, 0.5
      %v1129 = vmul.f32 %v1089, 0.5
      %v1130 = vmul.f32 %v1090, 0.5
      %v1131 = vmul.f32 %v1091, 0.5
      %v1132 = vmul.f32 %v1092, 0.5
      %v1133 = vmul.f32 %v1093, 0.5
      %v1134 = vmul.f32 %v1094, 0.5
      %v1135 = vmul.f32 %v1095, 0.5
      %v1136 = vmul.f32 %v1096, 0.5
      %v1137 = vmul.f32 %v1097, 0.5
      %v1138 = vmul.f32 %v1098, 0.5
      %v1139 = vmul.f32 %v1099, 0.5
      %v1140 = vmul.f32 %v1100, 0.5
      %v1141 = vmul.f32 %v1101, 0.5
      %v1142 = vmul.f32 %v1102, 0.5
      %v1143 = vmul.f32 %v1103, 0.5
      %v1144 = vmul.f32 %v1104, 0.5
      %v1145 = vmul.f32 %v1105, 0.5
      %v1146 = vmul.f32 %v1106, 0.5
      %v1147 = vmul.f32 %v1107, 0.5
      %v1148 = vmul.f32 %v1108, 0.5
      %v1149 = vmul.f32 %v1109, 0.5
      %v1150 = vmul.f32 %v1110, 0.5
      %v1151 = vmul.f32 %v1111, 0.5
      %v1152 = vmul.f32 %v1112, 0.5
      %v1153 = vmul.f32 %v1113, 0.5
      %v1154 = vmul.f32 %v1114, 0.5
      %v1155 = vmul.f32 %v1115, 0.5
      %v1156 = vmul.f32 %v1116, 0.5
      %v1157 = vmul.f32 %v1117, 0.5
      %v1158 = vmul.f32 %v1118, 0.5
      %v1159 = vmul.f32 %v1119, 0.5
      %v1160 = vmul.f32 %v800, %v1120
      %v1161 = vmul.f32 %v801, %v1121
      %v1162 = vmul.f32 %v802, %v1122
      %v1163 = vmul.f32 %v803, %v1123
      %v1164 = vmul.f32 %v804, %v1124
      %v1165 = vmul.f32 %v805, %v1125
      %v1166 = vmul.f32 %v806, %v1126
      %v1167 = vmul.f32 %v807, %v1127
      %v1168 = vmul.f32 %v808, %v1128
      %v1169 = vmul.f32 %v809, %v1129
      %v1170 = vmul.f32 %v810, %v1130
      %v1171 = vmul.f32 %v811, %v1131
      %v1172 = vmul.f32 %v812, %v1132
      %v1173 = vmul.f32 %v813, %v1133
      %v1174 = vmul.f32 %v814, %v1134
      %v1175 = vmul.f32 %v815, %v1135
      %v1176 = vmul.f32 %v816, %v1136
      %v1177 = vmul.f32 %v817, %v1137
      %v1178 = vmul.f32 %v818, %v1138
      %v1179 = vmul.f32 %v819, %v1139
      %v1180 = vmul.f32 %v820, %v1140
      %v1181 = vmul.f32 %v821, %v1141
      %v1182 = vmul.f32 %v822, %v1142
      %v1183 = vmul.f32 %v823, %v1143
      %v1184 = vmul.f32 %v824, %v1144
      %v1185 = vmul.f32 %v825, %v1145
      %v1186 = vmul.f32 %v826, %v1146
      %v1187 = vmul.f32 %v827, %v1147
      %v1188 = vmul.f32 %v828, %v1148
      %v1189 = vmul.f32 %v829, %v1149
      %v1190 = vmul.f32 %v830, %v1150
      %v1191 = vmul.f32 %v831, %v1151
      %v1192 = vmul.f32 %v832, %v1152
      %v1193 = vmul.f32 %v833, %v1153
      %v1194 = vmul.f32 %v834, %v1154
      %v1195 = vmul.f32 %v835, %v1155
      %v1196 = vmul.f32 %v836, %v1156
      %v1197 = vmul.f32 %v837, %v1157
      %v1198 = vmul.f32 %v838, %v1158
      %v1199 = vmul.f32 %v839, %v1159
      %1200 = vst.msk [vmem:[%s197] sm:$0xff] %vm440, %v1160
      %1201 = vst.msk [vmem:[%s197 + $0x8] sm:$0xff] %vm440, %v1161
      %1202 = vst.msk [vmem:[%s197 + $0x10] sm:$0xff] %vm440, %v1162
      %1203 = vst.msk [vmem:[%s197 + $0x18] sm:$0xff] %vm440, %v1163
      %1204 = vst.msk [vmem:[%s197 + $0x20] sm:$0xff] %vm440, %v1164
      %1205 = vst.msk [vmem:[%s197 + $0x28] sm:$0xff] %vm440, %v1165
      %1206 = vst.msk [vmem:[%s197 + $0x30] sm:$0xff] %vm440, %v1166
      %1207 = vst.msk [vmem:[%s197 + $0x38] sm:$0xff] %vm440, %v1167
      %1208 = vst.msk [vmem:[%s197 + $0x40] sm:$0xff] %vm440, %v1168
      %1209 = vst.msk [vmem:[%s197 + $0x48] sm:$0xff] %vm440, %v1169
      %1210 = vst.msk [vmem:[%s197 + $0x50] sm:$0xff] %vm440, %v1170
      %1211 = vst.msk [vmem:[%s197 + $0x58] sm:$0xff] %vm440, %v1171
      %1212 = vst.msk [vmem:[%s197 + $0x60] sm:$0xff] %vm440, %v1172
      %1213 = vst.msk [vmem:[%s197 + $0x68] sm:$0xff] %vm440, %v1173
      %1214 = vst.msk [vmem:[%s197 + $0x70] sm:$0xff] %vm440, %v1174
      %1215 = vst.msk [vmem:[%s197 + $0x78] sm:$0xff] %vm440, %v1175
      %1216 = vst.msk [vmem:[%s197 + $0x80] sm:$0xff] %vm440, %v1176
      %1217 = vst.msk [vmem:[%s197 + $0x88] sm:$0xff] %vm440, %v1177
      %1218 = vst.msk [vmem:[%s197 + $0x90] sm:$0xff] %vm440, %v1178
      %1219 = vst.msk [vmem:[%s197 + $0x98] sm:$0xff] %vm440, %v1179
      %1220 = vst.msk [vmem:[%s197 + $0xa0] sm:$0xff] %vm440, %v1180
      %1221 = vst.msk [vmem:[%s197 + $0xa8] sm:$0xff] %vm440, %v1181
      %1222 = vst.msk [vmem:[%s197 + $0xb0] sm:$0xff] %vm440, %v1182
      %1223 = vst.msk [vmem:[%s197 + $0xb8] sm:$0xff] %vm440, %v1183
      %1224 = vst.msk [vmem:[%s197 + $0xc0] sm:$0xff] %vm440, %v1184
      %1225 = vst.msk [vmem:[%s197 + $0xc8] sm:$0xff] %vm440, %v1185
      %1226 = vst.msk [vmem:[%s197 + $0xd0] sm:$0xff] %vm440, %v1186
      %1227 = vst.msk [vmem:[%s197 + $0xd8] sm:$0xff] %vm440, %v1187
      %1228 = vst.msk [vmem:[%s197 + $0xe0] sm:$0xff] %vm440, %v1188
      %1229 = vst.msk [vmem:[%s197 + $0xe8] sm:$0xff] %vm440, %v1189
      %1230 = vst.msk [vmem:[%s197 + $0xf0] sm:$0xff] %vm440, %v1190
      %1231 = vst.msk [vmem:[%s197 + $0xf8] sm:$0xff] %vm440, %v1191
      %1232 = vst.msk [vmem:[%s197 + $0x100] sm:$0xff] %vm440, %v1192
      %1233 = vst.msk [vmem:[%s197 + $0x108] sm:$0xff] %vm440, %v1193
      %1234 = vst.msk [vmem:[%s197 + $0x110] sm:$0xff] %vm440, %v1194
      %1235 = vst.msk [vmem:[%s197 + $0x118] sm:$0xff] %vm440, %v1195
      %1236 = vst.msk [vmem:[%s197 + $0x120] sm:$0xff] %vm440, %v1196
      %1237 = vst.msk [vmem:[%s197 + $0x128] sm:$0xff] %vm440, %v1197
      %1238 = vst.msk [vmem:[%s197 + $0x130] sm:$0xff] %vm440, %v1198
      %1239 = vst.msk [vmem:[%s197 + $0x138] sm:$0x7f] %vm518, %v1199
      %p1240 = scmp.lt.s32.totalorder %s15, 1
      %s1241 = scalar_select %p1240, %s15, 1
      %s1242 = smul.addr %s1241, 40
      %s1243 = smul.addr %s1242, 8
      %s1244 = scalar_lea.vmem %s4, %s1243
      // Predicated region
      $region37: #{ssl_extractor_forward.11} parent=35 // pred_check
        %p1245 = pneg %p122
      $region38: #{ssl_extractor_forward.11} parent=35 // pred_check_branch
        %1247 = sbr.rel (%p1245) target = $region40
      $region39: #{ssl_extractor_forward.11} parent=35 // pred_region
        _
      $region40: #{ssl_extractor_forward.11} parent=35 // pred_fallthru
        _
    $region36: #{ssl_extractor_forward.11} parent=5 // pred_fallthru
      _
    %p1248 = scmp.le.s32.totalorder 2, %s10
    // Predicated region
    $region41: #{ssl_extractor_forward.11} parent=5 // pred_check
      %p1249 = pneg %p1248
    $region42: #{ssl_extractor_forward.11} parent=5 // pred_check_branch
      %1251 = sbr.rel (%p1249) target = $region44
    $region43: #{ssl_extractor_forward.11} parent=5 // pred_region
      %s1252 = ssub.s32 %s10, 2
      // Predicated region
      $region45: #{ssl_extractor_forward.11} parent=43 // pred_check
        %p1253 = pneg %p128
      $region46: #{ssl_extractor_forward.11} parent=43 // pred_check_branch
        %1255 = sbr.rel (%p1253) target = $region48
      $region47: #{ssl_extractor_forward.11} parent=43 // pred_region
        %p1256 = scmp.lt.s32.totalorder %s16, 1
        %s1257 = scalar_select %p1256, %s16, 1
        %s1258 = smul.addr %s1257, 40
        %s1259 = smul.addr %s1258, 8
        %s1260 = scalar_lea.vmem %s4, %s1259
      $region48: #{ssl_extractor_forward.11} parent=43 // pred_fallthru
        _
    $region44: #{ssl_extractor_forward.11} parent=5 // pred_fallthru
      _
  $region6: #{ssl_extractor_forward.11} parent=0 // loop_footer
    %s14 = sadd.s32 1, %s10
  $region7: #{ssl_extractor_forward.11} parent=0 // loop_footer_branch
    %9 = sbr.rel target = $region3
  $region8: #{ssl_extractor_forward.11} parent=0 // loop_exit
    _

// kernel: ssl_extractor_forward.12
$region0: #{ssl_extractor_forward.12}
  #allocation0 [shape = 'u32[]', space=smem, size = 0x4, offset = 0x4, fixed_abs, tag = 'smem constant byte address 0x4 - core index']
  #allocation1 [shape = 'u32[72,128]{1,0:T(1,128)}', space=vmem, size = 0x9000, scoped, tag = 'internal scratch']
  %s0 = inlined_call_operand.vmem [shape: f32[512,96], index: 0, kind: input, shape index: {}]
  %s1 = inlined_call_operand.vmem [shape: bf16[96,32], index: 1, kind: input, shape index: {}]
  %s2 = inlined_call_operand.vmem [shape: f32[1,32], index: 2, kind: input, shape index: {}]
  %s3 = inlined_call_operand.vmem [shape: f32[512,32], index: 3, kind: output, shape index: {}]
  %s4 = sld [smem:[#allocation0]]
  $region45: #{ssl_extractor_forward.12} parent=0
    _
  %s6 = ssub.s32 1, %s4
  %s7 = scalar_select 0, %s6, %s4
  loop: start=0, step=1, limit=4
  $region2: #{ssl_extractor_forward.12} parent=0 // loop_pre_header
    _
  $region3: #{ssl_extractor_forward.12} parent=0 // loop_header
    %s9 = sphi 0, %s13
    %p10 = scmp.ge.s32.totalorder %s9, 4
    %s19 = sphi 0, %s21
    %s22 = sphi 0, %s19
    %s23 = sphi 0, %s22
    %s39 = sphi 0, %s23
    %s43 = sphi 0, %s43
    %s45 = sphi 0, %s43
    %s46 = sphi 0, %s45
    %s60 = sphi 0, %s46
    %s64 = sphi 0, %s64
    %s66 = sphi 0, %s64
    %s67 = sphi 0, %s66
    %s81 = sphi 0, %s67
    %s87 = sphi 0, %s89
    %s90 = sphi 0, %s87
    %s91 = sphi 0, %s90
    %s107 = sphi 0, %s91
  $region4: #{ssl_extractor_forward.12} parent=0 // loop_header_branch
    %12 = sbr.rel (%p10) target = $region8
  $region5: #{ssl_extractor_forward.12} parent=0 // loop_body
    %s14 = ssub.s32 %s9, 1
    %s15 = ssub.s32 %s9, 2
    %s16 = sadd.s32 %s9, 1
    %s17 = ssub.s32 %s9, %s16
    %p18 = scmp.eq.s32.totalorder %s17, 0
    %s20 = sadd.s32 %s19, 1
    %s21 = scalar_select %p18, %s19, %s20
    %p24 = pneg %p18
    %p25 = scmp.eq.s32.totalorder %s9, 1
    %p26 = por %p24, %p25
    %p27 = scmp.ne.s32.totalorder %s19, %s22
    %p28 = scmp.eq.s32.totalorder %s9, 0
    %p29 = por %p27, %p28
    %p30 = scmp.ne.s32.totalorder %s19, %s22
    %p31 = scmp.eq.s32.totalorder %s14, 1
    %p32 = por %p30, %p31
    %p33 = scmp.ne.s32.totalorder %s22, %s23
    %p34 = scmp.eq.s32.totalorder %s14, 0
    %p35 = por %p33, %p34
    %p36 = scmp.ne.s32.totalorder %s22, %s23
    %p37 = scmp.eq.s32.totalorder %s15, 1
    %p38 = por %p36, %p37
    %p40 = scmp.ne.s32.totalorder %s23, %s39
    %p41 = scmp.eq.s32.totalorder %s15, 0
    %p42 = por %p40, %p41
    %s44 = sadd.s32 %s43, 1
    %p47 = scmp.eq.s32.totalorder %s9, 1
    %p48 = scmp.ne.s32.totalorder %s43, %s45
    %p49 = scmp.eq.s32.totalorder %s9, 0
    %p50 = por %p48, %p49
    %p51 = scmp.ne.s32.totalorder %s43, %s45
    %p52 = scmp.eq.s32.totalorder %s14, 1
    %p53 = por %p51, %p52
    %p54 = scmp.ne.s32.totalorder %s45, %s46
    %p55 = scmp.eq.s32.totalorder %s14, 0
    %p56 = por %p54, %p55
    %p57 = scmp.ne.s32.totalorder %s45, %s46
    %p58 = scmp.eq.s32.totalorder %s15, 1
    %p59 = por %p57, %p58
    %p61 = scmp.ne.s32.totalorder %s46, %s60
    %p62 = scmp.eq.s32.totalorder %s15, 0
    %p63 = por %p61, %p62
    %s65 = sadd.s32 %s64, 1
    %p68 = scmp.eq.s32.totalorder %s9, 1
    %p69 = scmp.ne.s32.totalorder %s64, %s66
    %p70 = scmp.eq.s32.totalorder %s9, 0
    %p71 = por %p69, %p70
    %p72 = scmp.ne.s32.totalorder %s64, %s66
    %p73 = scmp.eq.s32.totalorder %s14, 1
    %p74 = por %p72, %p73
    %p75 = scmp.ne.s32.totalorder %s66, %s67
    %p76 = scmp.eq.s32.totalorder %s14, 0
    %p77 = por %p75, %p76
    %p78 = scmp.ne.s32.totalorder %s66, %s67
    %p79 = scmp.eq.s32.totalorder %s15, 1
    %p80 = por %p78, %p79
    %p82 = scmp.ne.s32.totalorder %s67, %s81
    %p83 = scmp.eq.s32.totalorder %s15, 0
    %p84 = por %p82, %p83
    %s85 = ssub.s32 %s9, %s16
    %p86 = scmp.eq.s32.totalorder %s85, 0
    %s88 = sadd.s32 %s87, 1
    %s89 = scalar_select %p86, %s87, %s88
    %p92 = pneg %p86
    %p93 = scmp.eq.s32.totalorder %s9, 1
    %p94 = por %p92, %p93
    %p95 = scmp.ne.s32.totalorder %s87, %s90
    %p96 = scmp.eq.s32.totalorder %s9, 0
    %p97 = por %p95, %p96
    %p98 = scmp.ne.s32.totalorder %s87, %s90
    %p99 = scmp.eq.s32.totalorder %s14, 1
    %p100 = por %p98, %p99
    %p101 = scmp.ne.s32.totalorder %s90, %s91
    %p102 = scmp.eq.s32.totalorder %s14, 0
    %p103 = por %p101, %p102
    %p104 = scmp.ne.s32.totalorder %s90, %s91
    %p105 = scmp.eq.s32.totalorder %s15, 1
    %p106 = por %p104, %p105
    %p108 = scmp.ne.s32.totalorder %s91, %s107
    %p109 = scmp.eq.s32.totalorder %s15, 0
    %p110 = por %p108, %p109
    %p111 = scmp.le.s32.totalorder 1, %s9
    %p112 = scmp.lt.s32.totalorder %s9, 3
    %p113 = pnand %p111, %p112
    %p114 = pneg %p113
    // Predicated region
    $region9: #{ssl_extractor_forward.12} parent=5 // pred_check
      _
    $region10: #{ssl_extractor_forward.12} parent=5 // pred_check_branch
      %116 = sbr.rel (%p113) target = $region12
    $region11: #{ssl_extractor_forward.12} parent=5 // pred_region
      %s117 = ssub.s32 %s9, 1
      // Predicated region
      $region13: #{ssl_extractor_forward.12} parent=11 // pred_check
        %p118 = pneg %p56
      $region14: #{ssl_extractor_forward.12} parent=11 // pred_check_branch
        %120 = sbr.rel (%p118) target = $region16
      $region15: #{ssl_extractor_forward.12} parent=11 // pred_region
        _
      $region16: #{ssl_extractor_forward.12} parent=11 // pred_fallthru
        _
      // Predicated region
      $region17: #{ssl_extractor_forward.12} parent=11 // pred_check
        %p121 = pneg %p77
      $region18: #{ssl_extractor_forward.12} parent=11 // pred_check_branch
        %123 = sbr.rel (%p121) target = $region20
      $region19: #{ssl_extractor_forward.12} parent=11 // pred_region
        _
      $region20: #{ssl_extractor_forward.12} parent=11 // pred_fallthru
        _
    $region12: #{ssl_extractor_forward.12} parent=5 // pred_fallthru
      _
    %p124 = scmp.lt.s32.totalorder %s9, 2
    // Predicated region
    $region21: #{ssl_extractor_forward.12} parent=5 // pred_check
      %p125 = pneg %p124
    $region22: #{ssl_extractor_forward.12} parent=5 // pred_check_branch
      %127 = sbr.rel (%p125) target = $region24
    $region23: #{ssl_extractor_forward.12} parent=5 // pred_region
      // Predicated region
      $region25: #{ssl_extractor_forward.12} parent=23 // pred_check
        %p128 = pneg %p29
      $region26: #{ssl_extractor_forward.12} parent=23 // pred_check_branch
        %130 = sbr.rel (%p128) target = $region28
      $region27: #{ssl_extractor_forward.12} parent=23 // pred_region
        %s131 = smul.u32 32, %s9
        %p132 = scmp.lt.s32.totalorder %s131, 63
        %s133 = scalar_select %p132, %s131, 63
        %s134 = smul.addr %s133, 8
        %s135 = scalar_lea.vmem %s0, %s134
        %s136 = smul.u32 32, %s9
      $region28: #{ssl_extractor_forward.12} parent=23 // pred_fallthru
        _
    $region24: #{ssl_extractor_forward.12} parent=5 // pred_fallthru
      _
    %p137 = scmp.le.s32.totalorder 1, %s9
    %p138 = scmp.lt.s32.totalorder %s9, 3
    %p139 = pnand %p137, %p138
    %p140 = pneg %p139
    // Predicated region
    $region29: #{ssl_extractor_forward.12} parent=5 // pred_check
      _
    $region30: #{ssl_extractor_forward.12} parent=5 // pred_check_branch
      %142 = sbr.rel (%p139) target = $region32
    $region31: #{ssl_extractor_forward.12} parent=5 // pred_region
      %s143 = ssub.s32 %s9, 1
      %s144 = smul.u32 32, %s14
      %p145 = scmp.lt.s32.totalorder %s144, 63
      %s146 = scalar_select %p145, %s144, 63
      %s147 = smul.addr %s146, 8
      %s148 = scalar_lea.vmem %s0, %s147
      %p149 = pneg %p35
      %p150 = pneg %p32
      %p151 = pneg %p56
      %p152 = pneg %p53
      %p153 = pneg %p77
      %p154 = pneg %p74
      %p155 = pneg %p103
      %p156 = pneg %p100
      %s157 = smul.u32 32, %s14
      %p158 = scmp.lt.s32.totalorder %s157, 63
      %s159 = scalar_select %p158, %s157, 63
      %s160 = smul.addr %s159, 8
      %s161 = scalar_lea.vmem %s3, %s160
      %s162 = smul.u32 32, %s14
      %p163 = scmp.lt.s32.totalorder %s162, 63
      %s164 = scalar_select %p163, %s162, 63
      %s165 = smul.addr %s164, 8
      %s166 = scalar_lea.vmem %s0, %s165
      %s167 = smul.u32 32, %s14
      %s168 = smul.u32 32, %s14
      %p169 = scmp.lt.s32.totalorder %s168, 63
      %s170 = scalar_select %p169, %s168, 63
      %s171 = smul.addr %s170, 8
      %s172 = scalar_lea.vmem %s3, %s171
      %s173 = smul.u32 32, %s14
      %v175 = vld [vmem:[%s166] sm:$0xff]
      %v176 = vld [vmem:[%s166 + $0x8] sm:$0xff]
      %v177 = vld [vmem:[%s166 + $0x10] sm:$0xff]
      %v178 = vld [vmem:[%s166 + $0x18] sm:$0xff]
      %v179 = vld [vmem:[%s166 + $0x20] sm:$0xff]
      %v180 = vld [vmem:[%s166 + $0x28] sm:$0xff]
      %v181 = vld [vmem:[%s166 + $0x30] sm:$0xff]
      %v182 = vld [vmem:[%s166 + $0x38] sm:$0xff]
      %v183 = vld [vmem:[%s166 + $0x40] sm:$0xff]
      %v184 = vld [vmem:[%s166 + $0x48] sm:$0xff]
      %v185 = vld [vmem:[%s166 + $0x50] sm:$0xff]
      %v186 = vld [vmem:[%s166 + $0x58] sm:$0xff]
      %v187 = vld [vmem:[%s166 + $0x60] sm:$0xff]
      %v188 = vld [vmem:[%s166 + $0x68] sm:$0xff]
      %v189 = vld [vmem:[%s166 + $0x70] sm:$0xff]
      %v190 = vld [vmem:[%s166 + $0x78] sm:$0xff]
      %v191 = vld [vmem:[%s166 + $0x80] sm:$0xff]
      %v192 = vld [vmem:[%s166 + $0x88] sm:$0xff]
      %v193 = vld [vmem:[%s166 + $0x90] sm:$0xff]
      %v194 = vld [vmem:[%s166 + $0x98] sm:$0xff]
      %v195 = vld [vmem:[%s166 + $0xa0] sm:$0xff]
      %v196 = vld [vmem:[%s166 + $0xa8] sm:$0xff]
      %v197 = vld [vmem:[%s166 + $0xb0] sm:$0xff]
      %v198 = vld [vmem:[%s166 + $0xb8] sm:$0xff]
      %v199 = vld [vmem:[%s166 + $0xc0] sm:$0xff]
      %v200 = vld [vmem:[%s166 + $0xc8] sm:$0xff]
      %v201 = vld [vmem:[%s166 + $0xd0] sm:$0xff]
      %v202 = vld [vmem:[%s166 + $0xd8] sm:$0xff]
      %v203 = vld [vmem:[%s166 + $0xe0] sm:$0xff]
      %v204 = vld [vmem:[%s166 + $0xe8] sm:$0xff]
      %v205 = vld [vmem:[%s166 + $0xf0] sm:$0xff]
      %v206 = vld [vmem:[%s166 + $0xf8] sm:$0xff]
      %v207 = vpack.c.bf16 %v176, %v175
      %v208 = vpack.c.bf16 %v178, %v177
      %v209 = vpack.c.bf16 %v180, %v179
      %v210 = vpack.c.bf16 %v182, %v181
      %v211 = vpack.c.bf16 %v184, %v183
      %v212 = vpack.c.bf16 %v186, %v185
      %v213 = vpack.c.bf16 %v188, %v187
      %v214 = vpack.c.bf16 %v190, %v189
      %v215 = vpack.c.bf16 %v192, %v191
      %v216 = vpack.c.bf16 %v194, %v193
      %v217 = vpack.c.bf16 %v196, %v195
      %v218 = vpack.c.bf16 %v198, %v197
      %v219 = vpack.c.bf16 %v200, %v199
      %v220 = vpack.c.bf16 %v202, %v201
      %v221 = vpack.c.bf16 %v204, %v203
      %v222 = vpack.c.bf16 %v206, %v205
      %v223 = vld [vmem:[%s1] sm:$0xf]
      %v224 = vld [vmem:[%s1 + $0x4] sm:$0xf]
      %v225 = vld [vmem:[%s1 + $0x8] sm:$0xf]
      %v226 = vld [vmem:[%s1 + $0xc] sm:$0xf]
      %v227 = vld [vmem:[%s1 + $0x10] sm:$0xf]
      %v228 = vld [vmem:[%s1 + $0x14] sm:$0xf]
      %v229 = vld [vmem:[%s1 + $0x18] sm:$0xf]
      %v230 = vld [vmem:[%s1 + $0x1c] sm:$0xf]
      %v231 = vld [vmem:[%s1 + $0x20] sm:$0xf]
      %v232 = vld [vmem:[%s1 + $0x24] sm:$0xf]
      %v233 = vld [vmem:[%s1 + $0x28] sm:$0xf]
      %v234 = vld [vmem:[%s1 + $0x2c] sm:$0xf]
      %v235 = vld [vmem:[%s2] sm:$0x1]
      %v237 = vperm.slane %v235, 0
      %v251 = vunpack.c.l.b16 %v223
      %v252 = vunpack.c.l.b16 %v224
      %v253 = vunpack.c.l.b16 %v225
      %v254 = vunpack.c.l.b16 %v226
      %v255 = vunpack.c.l.b16 %v227
      %v256 = vunpack.c.l.b16 %v228
      %v257 = vunpack.c.l.b16 %v229
      %v258 = vunpack.c.l.b16 %v230
      %v259 = vunpack.c.l.b16 %v231
      %v260 = vunpack.c.l.b16 %v232
      %v261 = vunpack.c.l.b16 %v233
      %v262 = vunpack.c.l.b16 %v234
      %v263 = vpack.c.b16 %v252, %v251
      %v264 = vpack.c.b16 %v254, %v253
      %v265 = vpack.c.b16 %v256, %v255
      %v266 = vpack.c.b16 %v258, %v257
      %v267 = vpack.c.b16 %v260, %v259
      %v268 = vpack.c.b16 %v262, %v261
      %vm275 = vcmask 785408
      %v277 = vsel %vm275, %v207, 0
      %v280 = vsel %vm275, %v208, 0
      %v283 = vsel %vm275, %v209, 0
      %v286 = vsel %vm275, %v210, 0
      %v289 = vsel %vm275, %v211, 0
      %v292 = vsel %vm275, %v212, 0
      %v295 = vsel %vm275, %v213, 0
      %v298 = vsel %vm275, %v214, 0
      %v301 = vsel %vm275, %v215, 0
      %v304 = vsel %vm275, %v216, 0
      %v307 = vsel %vm275, %v217, 0
      %v310 = vsel %vm275, %v218, 0
      %v313 = vsel %vm275, %v219, 0
      %v316 = vsel %vm275, %v220, 0
      %v319 = vsel %vm275, %v221, 0
      %v322 = vsel %vm275, %v222, 0
      %324 = vmatpush.bf16.msra.mxu0 0
      %325 = vmatpush.bf16.msra.mxu0 0
      %326 = vmatpush.bf16.msra.mxu0 %v268
      %327 = vmatpush.bf16.msra.mxu0 %v267
      %328 = vmatpush.bf16.msra.mxu0 %v266
      %329 = vmatpush.bf16.msra.mxu0 %v265
      %330 = vmatpush.bf16.msra.mxu0 %v264
      %331 = vmatpush.bf16.msra.mxu0 %v263
      %332 = vmatmul.bf16.gmra.mxu0 %v277
      %v333 = vpop.f32.mrf.mxu0
      %v334 = vadd.f32 %v237, %v333
      %v335 = vpop.f32.mrf.mxu0
      %v336 = vadd.f32 %v237, %v335
      %337 = vmatmul.bf16.gmra.mxu0 %v280
      %v338 = vpop.f32.mrf.mxu0
      %v339 = vadd.f32 %v237, %v338
      %v340 = vpop.f32.mrf.mxu0
      %v341 = vadd.f32 %v237, %v340
      %342 = vmatmul.bf16.gmra.mxu0 %v283
      %v343 = vpop.f32.mrf.mxu0
      %v344 = vadd.f32 %v237, %v343
      %v345 = vpop.f32.mrf.mxu0
      %v346 = vadd.f32 %v237, %v345
      %347 = vmatmul.bf16.gmra.mxu0 %v286
      %v348 = vpop.f32.mrf.mxu0
      %v349 = vadd.f32 %v237, %v348
      %v350 = vpop.f32.mrf.mxu0
      %v351 = vadd.f32 %v237, %v350
      %352 = vmatmul.bf16.gmra.mxu0 %v289
      %v353 = vpop.f32.mrf.mxu0
      %v354 = vadd.f32 %v237, %v353
      %v355 = vpop.f32.mrf.mxu0
      %v356 = vadd.f32 %v237, %v355
      %357 = vmatmul.bf16.gmra.mxu0 %v292
      %v358 = vpop.f32.mrf.mxu0
      %v359 = vadd.f32 %v237, %v358
      %v360 = vpop.f32.mrf.mxu0
      %v361 = vadd.f32 %v237, %v360
      %362 = vmatmul.bf16.gmra.mxu0 %v295
      %v363 = vpop.f32.mrf.mxu0
      %v364 = vadd.f32 %v237, %v363
      %v365 = vpop.f32.mrf.mxu0
      %v366 = vadd.f32 %v237, %v365
      %367 = vmatmul.bf16.gmra.mxu0 %v298
      %v368 = vpop.f32.mrf.mxu0
      %v369 = vadd.f32 %v237, %v368
      %v370 = vpop.f32.mrf.mxu0
      %v371 = vadd.f32 %v237, %v370
      %372 = vmatmul.bf16.gmra.mxu0 %v301
      %v373 = vpop.f32.mrf.mxu0
      %v374 = vadd.f32 %v237, %v373
      %v375 = vpop.f32.mrf.mxu0
      %v376 = vadd.f32 %v237, %v375
      %377 = vmatmul.bf16.gmra.mxu0 %v304
      %v378 = vpop.f32.mrf.mxu0
      %v379 = vadd.f32 %v237, %v378
      %v380 = vpop.f32.mrf.mxu0
      %v381 = vadd.f32 %v237, %v380
      %382 = vmatmul.bf16.gmra.mxu0 %v307
      %v383 = vpop.f32.mrf.mxu0
      %v384 = vadd.f32 %v237, %v383
      %v385 = vpop.f32.mrf.mxu0
      %v386 = vadd.f32 %v237, %v385
      %387 = vmatmul.bf16.gmra.mxu0 %v310
      %v388 = vpop.f32.mrf.mxu0
      %v389 = vadd.f32 %v237, %v388
      %v390 = vpop.f32.mrf.mxu0
      %v391 = vadd.f32 %v237, %v390
      %392 = vmatmul.bf16.gmra.mxu0 %v313
      %v393 = vpop.f32.mrf.mxu0
      %v394 = vadd.f32 %v237, %v393
      %v395 = vpop.f32.mrf.mxu0
      %v396 = vadd.f32 %v237, %v395
      %397 = vmatmul.bf16.gmra.mxu0 %v316
      %v398 = vpop.f32.mrf.mxu0
      %v399 = vadd.f32 %v237, %v398
      %v400 = vpop.f32.mrf.mxu0
      %v401 = vadd.f32 %v237, %v400
      %402 = vmatmul.bf16.gmra.mxu0 %v319
      %v403 = vpop.f32.mrf.mxu0
      %v404 = vadd.f32 %v237, %v403
      %v405 = vpop.f32.mrf.mxu0
      %v406 = vadd.f32 %v237, %v405
      %407 = vmatmul.bf16.gmra.mxu0 %v322
      %v408 = vpop.f32.mrf.mxu0
      %v409 = vadd.f32 %v237, %v408
      %v410 = vpop.f32.mrf.mxu0
      %v411 = vadd.f32 %v237, %v410
      %412 = vdwg.mxu0
      %v413 = vmul.f32 %v334, %v334
      %v414 = vmul.f32 %v336, %v336
      %v415 = vmul.f32 %v339, %v339
      %v416 = vmul.f32 %v341, %v341
      %v417 = vmul.f32 %v344, %v344
      %v418 = vmul.f32 %v346, %v346
      %v419 = vmul.f32 %v349, %v349
      %v420 = vmul.f32 %v351, %v351
      %v421 = vmul.f32 %v354, %v354
      %v422 = vmul.f32 %v356, %v356
      %v423 = vmul.f32 %v359, %v359
      %v424 = vmul.f32 %v361, %v361
      %v425 = vmul.f32 %v364, %v364
      %v426 = vmul.f32 %v366, %v366
      %v427 = vmul.f32 %v369, %v369
      %v428 = vmul.f32 %v371, %v371
      %v429 = vmul.f32 %v374, %v374
      %v430 = vmul.f32 %v376, %v376
      %v431 = vmul.f32 %v379, %v379
      %v432 = vmul.f32 %v381, %v381
      %v433 = vmul.f32 %v384, %v384
      %v434 = vmul.f32 %v386, %v386
      %v435 = vmul.f32 %v389, %v389
      %v436 = vmul.f32 %v391, %v391
      %v437 = vmul.f32 %v394, %v394
      %v438 = vmul.f32 %v396, %v396
      %v439 = vmul.f32 %v399, %v399
      %v440 = vmul.f32 %v401, %v401
      %v441 = vmul.f32 %v404, %v404
      %v442 = vmul.f32 %v406, %v406
      %v443 = vmul.f32 %v409, %v409
      %v444 = vmul.f32 %v411, %v411
      %v445 = vmul.f32 %v334, %v413
      %v446 = vmul.f32 %v336, %v414
      %v447 = vmul.f32 %v339, %v415
      %v448 = vmul.f32 %v341, %v416
      %v449 = vmul.f32 %v344, %v417
      %v450 = vmul.f32 %v346, %v418
      %v451 = vmul.f32 %v349, %v419
      %v452 = vmul.f32 %v351, %v420
      %v453 = vmul.f32 %v354, %v421
      %v454 = vmul.f32 %v356, %v422
      %v455 = vmul.f32 %v359, %v423
      %v456 = vmul.f32 %v361, %v424
      %v457 = vmul.f32 %v364, %v425
      %v458 = vmul.f32 %v366, %v426
      %v459 = vmul.f32 %v369, %v427
      %v460 = vmul.f32 %v371, %v428
      %v461 = vmul.f32 %v374, %v429
      %v462 = vmul.f32 %v376, %v430
      %v463 = vmul.f32 %v379, %v431
      %v464 = vmul.f32 %v381, %v432
      %v465 = vmul.f32 %v384, %v433
      %v466 = vmul.f32 %v386, %v434
      %v467 = vmul.f32 %v389, %v435
      %v468 = vmul.f32 %v391, %v436
      %v469 = vmul.f32 %v394, %v437
      %v470 = vmul.f32 %v396, %v438
      %v471 = vmul.f32 %v399, %v439
      %v472 = vmul.f32 %v401, %v440
      %v473 = vmul.f32 %v404, %v441
      %v474 = vmul.f32 %v406, %v442
      %v475 = vmul.f32 %v409, %v443
      %v476 = vmul.f32 %v411, %v444
      %v477 = vmul.f32 %v445, 0.044715
      %v478 = vmul.f32 %v446, 0.044715
      %v479 = vmul.f32 %v447, 0.044715
      %v480 = vmul.f32 %v448, 0.044715
      %v481 = vmul.f32 %v449, 0.044715
      %v482 = vmul.f32 %v450, 0.044715
      %v483 = vmul.f32 %v451, 0.044715
      %v484 = vmul.f32 %v452, 0.044715
      %v485 = vmul.f32 %v453, 0.044715
      %v486 = vmul.f32 %v454, 0.044715
      %v487 = vmul.f32 %v455, 0.044715
      %v488 = vmul.f32 %v456, 0.044715
      %v489 = vmul.f32 %v457, 0.044715
      %v490 = vmul.f32 %v458, 0.044715
      %v491 = vmul.f32 %v459, 0.044715
      %v492 = vmul.f32 %v460, 0.044715
      %v493 = vmul.f32 %v461, 0.044715
      %v494 = vmul.f32 %v462, 0.044715
      %v495 = vmul.f32 %v463, 0.044715
      %v496 = vmul.f32 %v464, 0.044715
      %v497 = vmul.f32 %v465, 0.044715
      %v498 = vmul.f32 %v466, 0.044715
      %v499 = vmul.f32 %v467, 0.044715
      %v500 = vmul.f32 %v468, 0.044715
      %v501 = vmul.f32 %v469, 0.044715
      %v502 = vmul.f32 %v470, 0.044715
      %v503 = vmul.f32 %v471, 0.044715
      %v504 = vmul.f32 %v472, 0.044715
      %v505 = vmul.f32 %v473, 0.044715
      %v506 = vmul.f32 %v474, 0.044715
      %v507 = vmul.f32 %v475, 0.044715
      %v508 = vmul.f32 %v476, 0.044715
      %v509 = vadd.f32 %v334, %v477
      %v510 = vadd.f32 %v336, %v478
      %v511 = vadd.f32 %v339, %v479
      %v512 = vadd.f32 %v341, %v480
      %v513 = vadd.f32 %v344, %v481
      %v514 = vadd.f32 %v346, %v482
      %v515 = vadd.f32 %v349, %v483
      %v516 = vadd.f32 %v351, %v484
      %v517 = vadd.f32 %v354, %v485
      %v518 = vadd.f32 %v356, %v486
      %v519 = vadd.f32 %v359, %v487
      %v520 = vadd.f32 %v361, %v488
      %v521 = vadd.f32 %v364, %v489
      %v522 = vadd.f32 %v366, %v490
      %v523 = vadd.f32 %v369, %v491
      %v524 = vadd.f32 %v371, %v492
      %v525 = vadd.f32 %v374, %v493
      %v526 = vadd.f32 %v376, %v494
      %v527 = vadd.f32 %v379, %v495
      %v528 = vadd.f32 %v381, %v496
      %v529 = vadd.f32 %v384, %v497
      %v530 = vadd.f32 %v386, %v498
      %v531 = vadd.f32 %v389, %v499
      %v532 = vadd.f32 %v391, %v500
      %v533 = vadd.f32 %v394, %v501
      %v534 = vadd.f32 %v396, %v502
      %v535 = vadd.f32 %v399, %v503
      %v536 = vadd.f32 %v401, %v504
      %v537 = vadd.f32 %v404, %v505
      %v538 = vadd.f32 %v406, %v506
      %v539 = vadd.f32 %v409, %v507
      %v540 = vadd.f32 %v411, %v508
      %v541 = vmul.f32 %v509, 0.7978846
      %v542 = vmul.f32 %v510, 0.7978846
      %v543 = vmul.f32 %v511, 0.7978846
      %v544 = vmul.f32 %v512, 0.7978846
      %v545 = vmul.f32 %v513, 0.7978846
      %v546 = vmul.f32 %v514, 0.7978846
      %v547 = vmul.f32 %v515, 0.7978846
      %v548 = vmul.f32 %v516, 0.7978846
      %v549 = vmul.f32 %v517, 0.7978846
      %v550 = vmul.f32 %v518, 0.7978846
      %v551 = vmul.f32 %v519, 0.7978846
      %v552 = vmul.f32 %v520, 0.7978846
      %v553 = vmul.f32 %v521, 0.7978846
      %v554 = vmul.f32 %v522, 0.7978846
      %v555 = vmul.f32 %v523, 0.7978846
      %v556 = vmul.f32 %v524, 0.7978846
      %v557 = vmul.f32 %v525, 0.7978846
      %v558 = vmul.f32 %v526, 0.7978846
      %v559 = vmul.f32 %v527, 0.7978846
      %v560 = vmul.f32 %v528, 0.7978846
      %v561 = vmul.f32 %v529, 0.7978846
      %v562 = vmul.f32 %v530, 0.7978846
      %v563 = vmul.f32 %v531, 0.7978846
      %v564 = vmul.f32 %v532, 0.7978846
      %v565 = vmul.f32 %v533, 0.7978846
      %v566 = vmul.f32 %v534, 0.7978846
      %v567 = vmul.f32 %v535, 0.7978846
      %v568 = vmul.f32 %v536, 0.7978846
      %v569 = vmul.f32 %v537, 0.7978846
      %v570 = vmul.f32 %v538, 0.7978846
      %v571 = vmul.f32 %v539, 0.7978846
      %v572 = vmul.f32 %v540, 0.7978846
      %v573 = vtanh.pop %v541
      %v574 = vtanh.pop %v542
      %v575 = vtanh.pop %v543
      %v576 = vtanh.pop %v544
      %v577 = vtanh.pop %v545
      %v578 = vtanh.pop %v546
      %v579 = vtanh.pop %v547
      %v580 = vtanh.pop %v548
      %v581 = vtanh.pop %v549
      %v582 = vtanh.pop %v550
      %v583 = vtanh.pop %v551
      %v584 = vtanh.pop %v552
      %v585 = vtanh.pop %v553
      %v586 = vtanh.pop %v554
      %v587 = vtanh.pop %v555
      %v588 = vtanh.pop %v556
      %v589 = vtanh.pop %v557
      %v590 = vtanh.pop %v558
      %v591 = vtanh.pop %v559
      %v592 = vtanh.pop %v560
      %v593 = vtanh.pop %v561
      %v594 = vtanh.pop %v562
      %v595 = vtanh.pop %v563
      %v596 = vtanh.pop %v564
      %v597 = vtanh.pop %v565
      %v598 = vtanh.pop %v566
      %v599 = vtanh.pop %v567
      %v600 = vtanh.pop %v568
      %v601 = vtanh.pop %v569
      %v602 = vtanh.pop %v570
      %v603 = vtanh.pop %v571
      %v604 = vtanh.pop %v572
      %v605 = vadd.f32 %v573, 1.0
      %v606 = vadd.f32 %v574, 1.0
      %v607 = vadd.f32 %v575, 1.0
      %v608 = vadd.f32 %v576, 1.0
      %v609 = vadd.f32 %v577, 1.0
      %v610 = vadd.f32 %v578, 1.0
      %v611 = vadd.f32 %v579, 1.0
      %v612 = vadd.f32 %v580, 1.0
      %v613 = vadd.f32 %v581, 1.0
      %v614 = vadd.f32 %v582, 1.0
      %v615 = vadd.f32 %v583, 1.0
      %v616 = vadd.f32 %v584, 1.0
      %v617 = vadd.f32 %v585, 1.0
      %v618 = vadd.f32 %v586, 1.0
      %v619 = vadd.f32 %v587, 1.0
      %v620 = vadd.f32 %v588, 1.0
      %v621 = vadd.f32 %v589, 1.0
      %v622 = vadd.f32 %v590, 1.0
      %v623 = vadd.f32 %v591, 1.0
      %v624 = vadd.f32 %v592, 1.0
      %v625 = vadd.f32 %v593, 1.0
      %v626 = vadd.f32 %v594, 1.0
      %v627 = vadd.f32 %v595, 1.0
      %v628 = vadd.f32 %v596, 1.0
      %v629 = vadd.f32 %v597, 1.0
      %v630 = vadd.f32 %v598, 1.0
      %v631 = vadd.f32 %v599, 1.0
      %v632 = vadd.f32 %v600, 1.0
      %v633 = vadd.f32 %v601, 1.0
      %v634 = vadd.f32 %v602, 1.0
      %v635 = vadd.f32 %v603, 1.0
      %v636 = vadd.f32 %v604, 1.0
      %v637 = vmul.f32 %v605, 0.5
      %v638 = vmul.f32 %v606, 0.5
      %v639 = vmul.f32 %v607, 0.5
      %v640 = vmul.f32 %v608, 0.5
      %v641 = vmul.f32 %v609, 0.5
      %v642 = vmul.f32 %v610, 0.5
      %v643 = vmul.f32 %v611, 0.5
      %v644 = vmul.f32 %v612, 0.5
      %v645 = vmul.f32 %v613, 0.5
      %v646 = vmul.f32 %v614, 0.5
      %v647 = vmul.f32 %v615, 0.5
      %v648 = vmul.f32 %v616, 0.5
      %v649 = vmul.f32 %v617, 0.5
      %v650 = vmul.f32 %v618, 0.5
      %v651 = vmul.f32 %v619, 0.5
      %v652 = vmul.f32 %v620, 0.5
      %v653 = vmul.f32 %v621, 0.5
      %v654 = vmul.f32 %v622, 0.5
      %v655 = vmul.f32 %v623, 0.5
      %v656 = vmul.f32 %v624, 0.5
      %v657 = vmul.f32 %v625, 0.5
      %v658 = vmul.f32 %v626, 0.5
      %v659 = vmul.f32 %v627, 0.5
      %v660 = vmul.f32 %v628, 0.5
      %v661 = vmul.f32 %v629, 0.5
      %v662 = vmul.f32 %v630, 0.5
      %v663 = vmul.f32 %v631, 0.5
      %v664 = vmul.f32 %v632, 0.5
      %v665 = vmul.f32 %v633, 0.5
      %v666 = vmul.f32 %v634, 0.5
      %v667 = vmul.f32 %v635, 0.5
      %v668 = vmul.f32 %v636, 0.5
      %v669 = vmul.f32 %v334, %v637
      %v670 = vmul.f32 %v336, %v638
      %v671 = vmul.f32 %v339, %v639
      %v672 = vmul.f32 %v341, %v640
      %v673 = vmul.f32 %v344, %v641
      %v674 = vmul.f32 %v346, %v642
      %v675 = vmul.f32 %v349, %v643
      %v676 = vmul.f32 %v351, %v644
      %v677 = vmul.f32 %v354, %v645
      %v678 = vmul.f32 %v356, %v646
      %v679 = vmul.f32 %v359, %v647
      %v680 = vmul.f32 %v361, %v648
      %v681 = vmul.f32 %v364, %v649
      %v682 = vmul.f32 %v366, %v650
      %v683 = vmul.f32 %v369, %v651
      %v684 = vmul.f32 %v371, %v652
      %v685 = vmul.f32 %v374, %v653
      %v686 = vmul.f32 %v376, %v654
      %v687 = vmul.f32 %v379, %v655
      %v688 = vmul.f32 %v381, %v656
      %v689 = vmul.f32 %v384, %v657
      %v690 = vmul.f32 %v386, %v658
      %v691 = vmul.f32 %v389, %v659
      %v692 = vmul.f32 %v391, %v660
      %v693 = vmul.f32 %v394, %v661
      %v694 = vmul.f32 %v396, %v662
      %v695 = vmul.f32 %v399, %v663
      %v696 = vmul.f32 %v401, %v664
      %v697 = vmul.f32 %v404, %v665
      %v698 = vmul.f32 %v406, %v666
      %v699 = vmul.f32 %v409, %v667
      %v700 = vmul.f32 %v411, %v668
      %vm701 = vcmask 261120
      %702 = vst.msk [vmem:[%s172] sm:$0xff] %vm701, %v669
      %703 = vst.msk [vmem:[%s172 + $0x8] sm:$0xff] %vm701, %v670
      %704 = vst.msk [vmem:[%s172 + $0x10] sm:$0xff] %vm701, %v671
      %705 = vst.msk [vmem:[%s172 + $0x18] sm:$0xff] %vm701, %v672
      %706 = vst.msk [vmem:[%s172 + $0x20] sm:$0xff] %vm701, %v673
      %707 = vst.msk [vmem:[%s172 + $0x28] sm:$0xff] %vm701, %v674
      %708 = vst.msk [vmem:[%s172 + $0x30] sm:$0xff] %vm701, %v675
      %709 = vst.msk [vmem:[%s172 + $0x38] sm:$0xff] %vm701, %v676
      %710 = vst.msk [vmem:[%s172 + $0x40] sm:$0xff] %vm701, %v677
      %711 = vst.msk [vmem:[%s172 + $0x48] sm:$0xff] %vm701, %v678
      %712 = vst.msk [vmem:[%s172 + $0x50] sm:$0xff] %vm701, %v679
      %713 = vst.msk [vmem:[%s172 + $0x58] sm:$0xff] %vm701, %v680
      %714 = vst.msk [vmem:[%s172 + $0x60] sm:$0xff] %vm701, %v681
      %715 = vst.msk [vmem:[%s172 + $0x68] sm:$0xff] %vm701, %v682
      %716 = vst.msk [vmem:[%s172 + $0x70] sm:$0xff] %vm701, %v683
      %717 = vst.msk [vmem:[%s172 + $0x78] sm:$0xff] %vm701, %v684
      %718 = vst.msk [vmem:[%s172 + $0x80] sm:$0xff] %vm701, %v685
      %719 = vst.msk [vmem:[%s172 + $0x88] sm:$0xff] %vm701, %v686
      %720 = vst.msk [vmem:[%s172 + $0x90] sm:$0xff] %vm701, %v687
      %721 = vst.msk [vmem:[%s172 + $0x98] sm:$0xff] %vm701, %v688
      %722 = vst.msk [vmem:[%s172 + $0xa0] sm:$0xff] %vm701, %v689
      %723 = vst.msk [vmem:[%s172 + $0xa8] sm:$0xff] %vm701, %v690
      %724 = vst.msk [vmem:[%s172 + $0xb0] sm:$0xff] %vm701, %v691
      %725 = vst.msk [vmem:[%s172 + $0xb8] sm:$0xff] %vm701, %v692
      %726 = vst.msk [vmem:[%s172 + $0xc0] sm:$0xff] %vm701, %v693
      %727 = vst.msk [vmem:[%s172 + $0xc8] sm:$0xff] %vm701, %v694
      %728 = vst.msk [vmem:[%s172 + $0xd0] sm:$0xff] %vm701, %v695
      %729 = vst.msk [vmem:[%s172 + $0xd8] sm:$0xff] %vm701, %v696
      %730 = vst.msk [vmem:[%s172 + $0xe0] sm:$0xff] %vm701, %v697
      %731 = vst.msk [vmem:[%s172 + $0xe8] sm:$0xff] %vm701, %v698
      %732 = vst.msk [vmem:[%s172 + $0xf0] sm:$0xff] %vm701, %v699
      %733 = vst.msk [vmem:[%s172 + $0xf8] sm:$0xff] %vm701, %v700
      %s734 = smul.u32 32, %s14
      %p735 = scmp.lt.s32.totalorder %s734, 63
      %s736 = scalar_select %p735, %s734, 63
      %s737 = smul.addr %s736, 8
      %s738 = scalar_lea.vmem %s3, %s737
      // Predicated region
      $region33: #{ssl_extractor_forward.12} parent=31 // pred_check
        %p739 = pneg %p100
      $region34: #{ssl_extractor_forward.12} parent=31 // pred_check_branch
        %741 = sbr.rel (%p739) target = $region36
      $region35: #{ssl_extractor_forward.12} parent=31 // pred_region
        %s742 = smul.u32 32, %s14
      $region36: #{ssl_extractor_forward.12} parent=31 // pred_fallthru
        _
    $region32: #{ssl_extractor_forward.12} parent=5 // pred_fallthru
      _
    %p743 = scmp.le.s32.totalorder 2, %s9
    // Predicated region
    $region37: #{ssl_extractor_forward.12} parent=5 // pred_check
      %p744 = pneg %p743
    $region38: #{ssl_extractor_forward.12} parent=5 // pred_check_branch
      %746 = sbr.rel (%p744) target = $region40
    $region39: #{ssl_extractor_forward.12} parent=5 // pred_region
      %s747 = ssub.s32 %s9, 2
      // Predicated region
      $region41: #{ssl_extractor_forward.12} parent=39 // pred_check
        %p748 = pneg %p106
      $region42: #{ssl_extractor_forward.12} parent=39 // pred_check_branch
        %750 = sbr.rel (%p748) target = $region44
      $region43: #{ssl_extractor_forward.12} parent=39 // pred_region
        %s751 = smul.u32 32, %s15
        %p752 = scmp.lt.s32.totalorder %s751, 63
        %s753 = scalar_select %p752, %s751, 63
        %s754 = smul.addr %s753, 8
        %s755 = scalar_lea.vmem %s3, %s754
      $region44: #{ssl_extractor_forward.12} parent=39 // pred_fallthru
        _
    $region40: #{ssl_extractor_forward.12} parent=5 // pred_fallthru
      _
  $region6: #{ssl_extractor_forward.12} parent=0 // loop_footer
    %s13 = sadd.s32 1, %s9
  $region7: #{ssl_extractor_forward.12} parent=0 // loop_footer_branch
    %8 = sbr.rel target = $region3
  $region8: #{ssl_extractor_forward.12} parent=0 // loop_exit
    _

// kernel: ssl_extractor_forward.13
$region0: #{ssl_extractor_forward.13}
  #allocation0 [shape = 'u32[]', space=smem, size = 0x4, offset = 0x4, fixed_abs, tag = 'smem constant byte address 0x4 - core index']
  #allocation1 [shape = 'u32[72,128]{1,0:T(1,128)}', space=vmem, size = 0x9000, scoped, tag = 'internal scratch']
  %s0 = inlined_call_operand.vmem [shape: f32[160,96], index: 0, kind: input, shape index: {}]
  %s1 = inlined_call_operand.vmem [shape: bf16[96,32], index: 1, kind: input, shape index: {}]
  %s2 = inlined_call_operand.vmem [shape: f32[1,32], index: 2, kind: input, shape index: {}]
  %s3 = inlined_call_operand.vmem [shape: f32[160,32], index: 3, kind: output, shape index: {}]
  %s4 = sld [smem:[#allocation0]]
  $region22: #{ssl_extractor_forward.13} parent=0
    _
  %s6 = ssub.s32 1, %s4
  %s7 = scalar_select 0, %s6, %s4
  // Predicated region
  $region2: #{ssl_extractor_forward.13} parent=0 // pred_check
    _
  $region3: #{ssl_extractor_forward.13} parent=0 // pred_check_branch
    %9 = sbr.rel (0) target = $region5
  $region4: #{ssl_extractor_forward.13} parent=0 // pred_region
    _
  $region5: #{ssl_extractor_forward.13} parent=0 // pred_fallthru
    _
  // Predicated region
  $region6: #{ssl_extractor_forward.13} parent=0 // pred_check
    _
  $region7: #{ssl_extractor_forward.13} parent=0 // pred_check_branch
    %11 = sbr.rel (0) target = $region9
  $region8: #{ssl_extractor_forward.13} parent=0 // pred_region
    _
  $region9: #{ssl_extractor_forward.13} parent=0 // pred_fallthru
    _
  // Predicated region
  $region10: #{ssl_extractor_forward.13} parent=0 // pred_check
    _
  $region11: #{ssl_extractor_forward.13} parent=0 // pred_check_branch
    %13 = sbr.rel (0) target = $region13
  $region12: #{ssl_extractor_forward.13} parent=0 // pred_region
    _
  $region13: #{ssl_extractor_forward.13} parent=0 // pred_fallthru
    _
  %v15 = vld [vmem:[%s0] sm:$0xff]
  %v16 = vld [vmem:[%s0 + $0x8] sm:$0xff]
  %v17 = vld [vmem:[%s0 + $0x10] sm:$0xff]
  %v18 = vld [vmem:[%s0 + $0x18] sm:$0xff]
  %v19 = vld [vmem:[%s0 + $0x20] sm:$0xff]
  %v20 = vld [vmem:[%s0 + $0x28] sm:$0xff]
  %v21 = vld [vmem:[%s0 + $0x30] sm:$0xff]
  %v22 = vld [vmem:[%s0 + $0x38] sm:$0xff]
  %v23 = vld [vmem:[%s0 + $0x40] sm:$0xff]
  %v24 = vld [vmem:[%s0 + $0x48] sm:$0xff]
  %v25 = vld [vmem:[%s0 + $0x50] sm:$0xff]
  %v26 = vld [vmem:[%s0 + $0x58] sm:$0xff]
  %v27 = vld [vmem:[%s0 + $0x60] sm:$0xff]
  %v28 = vld [vmem:[%s0 + $0x68] sm:$0xff]
  %v29 = vld [vmem:[%s0 + $0x70] sm:$0xff]
  %v30 = vld [vmem:[%s0 + $0x78] sm:$0xff]
  %v31 = vld [vmem:[%s0 + $0x80] sm:$0xff]
  %v32 = vld [vmem:[%s0 + $0x88] sm:$0xff]
  %v33 = vld [vmem:[%s0 + $0x90] sm:$0xff]
  %v34 = vld [vmem:[%s0 + $0x98] sm:$0xff]
  %v35 = vpack.c.bf16 %v16, %v15
  %v36 = vpack.c.bf16 %v18, %v17
  %v37 = vpack.c.bf16 %v20, %v19
  %v38 = vpack.c.bf16 %v22, %v21
  %v39 = vpack.c.bf16 %v24, %v23
  %v40 = vpack.c.bf16 %v26, %v25
  %v41 = vpack.c.bf16 %v28, %v27
  %v42 = vpack.c.bf16 %v30, %v29
  %v43 = vpack.c.bf16 %v32, %v31
  %v44 = vpack.c.bf16 %v34, %v33
  %v45 = vld [vmem:[%s1] sm:$0xf]
  %v46 = vld [vmem:[%s1 + $0x4] sm:$0xf]
  %v47 = vld [vmem:[%s1 + $0x8] sm:$0xf]
  %v48 = vld [vmem:[%s1 + $0xc] sm:$0xf]
  %v49 = vld [vmem:[%s1 + $0x10] sm:$0xf]
  %v50 = vld [vmem:[%s1 + $0x14] sm:$0xf]
  %v51 = vld [vmem:[%s1 + $0x18] sm:$0xf]
  %v52 = vld [vmem:[%s1 + $0x1c] sm:$0xf]
  %v53 = vld [vmem:[%s1 + $0x20] sm:$0xf]
  %v54 = vld [vmem:[%s1 + $0x24] sm:$0xf]
  %v55 = vld [vmem:[%s1 + $0x28] sm:$0xf]
  %v56 = vld [vmem:[%s1 + $0x2c] sm:$0xf]
  %v57 = vld [vmem:[%s2] sm:$0x1]
  %v59 = vperm.slane %v57, 0
  %v73 = vunpack.c.l.b16 %v45
  %v74 = vunpack.c.l.b16 %v46
  %v75 = vunpack.c.l.b16 %v47
  %v76 = vunpack.c.l.b16 %v48
  %v77 = vunpack.c.l.b16 %v49
  %v78 = vunpack.c.l.b16 %v50
  %v79 = vunpack.c.l.b16 %v51
  %v80 = vunpack.c.l.b16 %v52
  %v81 = vunpack.c.l.b16 %v53
  %v82 = vunpack.c.l.b16 %v54
  %v83 = vunpack.c.l.b16 %v55
  %v84 = vunpack.c.l.b16 %v56
  %v85 = vpack.c.b16 %v74, %v73
  %v86 = vpack.c.b16 %v76, %v75
  %v87 = vpack.c.b16 %v78, %v77
  %v88 = vpack.c.b16 %v80, %v79
  %v89 = vpack.c.b16 %v82, %v81
  %v90 = vpack.c.b16 %v84, %v83
  %vm97 = vcmask 785408
  %v99 = vsel %vm97, %v35, 0
  %v102 = vsel %vm97, %v36, 0
  %v105 = vsel %vm97, %v37, 0
  %v108 = vsel %vm97, %v38, 0
  %v111 = vsel %vm97, %v39, 0
  %v114 = vsel %vm97, %v40, 0
  %v117 = vsel %vm97, %v41, 0
  %v120 = vsel %vm97, %v42, 0
  %v123 = vsel %vm97, %v43, 0
  %v126 = vsel %vm97, %v44, 0
  %128 = vmatpush.bf16.msra.mxu0 0
  %129 = vmatpush.bf16.msra.mxu0 0
  %130 = vmatpush.bf16.msra.mxu0 %v90
  %131 = vmatpush.bf16.msra.mxu0 %v89
  %132 = vmatpush.bf16.msra.mxu0 %v88
  %133 = vmatpush.bf16.msra.mxu0 %v87
  %134 = vmatpush.bf16.msra.mxu0 %v86
  %135 = vmatpush.bf16.msra.mxu0 %v85
  %136 = vmatmul.bf16.gmra.mxu0 %v99
  %v137 = vpop.f32.mrf.mxu0
  %v138 = vadd.f32 %v59, %v137
  %v139 = vpop.f32.mrf.mxu0
  %v140 = vadd.f32 %v59, %v139
  %141 = vmatmul.bf16.gmra.mxu0 %v102
  %v142 = vpop.f32.mrf.mxu0
  %v143 = vadd.f32 %v59, %v142
  %v144 = vpop.f32.mrf.mxu0
  %v145 = vadd.f32 %v59, %v144
  %146 = vmatmul.bf16.gmra.mxu0 %v105
  %v147 = vpop.f32.mrf.mxu0
  %v148 = vadd.f32 %v59, %v147
  %v149 = vpop.f32.mrf.mxu0
  %v150 = vadd.f32 %v59, %v149
  %151 = vmatmul.bf16.gmra.mxu0 %v108
  %v152 = vpop.f32.mrf.mxu0
  %v153 = vadd.f32 %v59, %v152
  %v154 = vpop.f32.mrf.mxu0
  %v155 = vadd.f32 %v59, %v154
  %156 = vmatmul.bf16.gmra.mxu0 %v111
  %v157 = vpop.f32.mrf.mxu0
  %v158 = vadd.f32 %v59, %v157
  %v159 = vpop.f32.mrf.mxu0
  %v160 = vadd.f32 %v59, %v159
  %161 = vmatmul.bf16.gmra.mxu0 %v114
  %v162 = vpop.f32.mrf.mxu0
  %v163 = vadd.f32 %v59, %v162
  %v164 = vpop.f32.mrf.mxu0
  %v165 = vadd.f32 %v59, %v164
  %166 = vmatmul.bf16.gmra.mxu0 %v117
  %v167 = vpop.f32.mrf.mxu0
  %v168 = vadd.f32 %v59, %v167
  %v169 = vpop.f32.mrf.mxu0
  %v170 = vadd.f32 %v59, %v169
  %171 = vmatmul.bf16.gmra.mxu0 %v120
  %v172 = vpop.f32.mrf.mxu0
  %v173 = vadd.f32 %v59, %v172
  %v174 = vpop.f32.mrf.mxu0
  %v175 = vadd.f32 %v59, %v174
  %176 = vmatmul.bf16.gmra.mxu0 %v123
  %v177 = vpop.f32.mrf.mxu0
  %v178 = vadd.f32 %v59, %v177
  %v179 = vpop.f32.mrf.mxu0
  %v180 = vadd.f32 %v59, %v179
  %181 = vmatmul.bf16.gmra.mxu0 %v126
  %v182 = vpop.f32.mrf.mxu0
  %v183 = vadd.f32 %v59, %v182
  %v184 = vpop.f32.mrf.mxu0
  %v185 = vadd.f32 %v59, %v184
  %186 = vdwg.mxu0
  %v187 = vmul.f32 %v138, %v138
  %v188 = vmul.f32 %v140, %v140
  %v189 = vmul.f32 %v143, %v143
  %v190 = vmul.f32 %v145, %v145
  %v191 = vmul.f32 %v148, %v148
  %v192 = vmul.f32 %v150, %v150
  %v193 = vmul.f32 %v153, %v153
  %v194 = vmul.f32 %v155, %v155
  %v195 = vmul.f32 %v158, %v158
  %v196 = vmul.f32 %v160, %v160
  %v197 = vmul.f32 %v163, %v163
  %v198 = vmul.f32 %v165, %v165
  %v199 = vmul.f32 %v168, %v168
  %v200 = vmul.f32 %v170, %v170
  %v201 = vmul.f32 %v173, %v173
  %v202 = vmul.f32 %v175, %v175
  %v203 = vmul.f32 %v178, %v178
  %v204 = vmul.f32 %v180, %v180
  %v205 = vmul.f32 %v183, %v183
  %v206 = vmul.f32 %v185, %v185
  %v207 = vmul.f32 %v138, %v187
  %v208 = vmul.f32 %v140, %v188
  %v209 = vmul.f32 %v143, %v189
  %v210 = vmul.f32 %v145, %v190
  %v211 = vmul.f32 %v148, %v191
  %v212 = vmul.f32 %v150, %v192
  %v213 = vmul.f32 %v153, %v193
  %v214 = vmul.f32 %v155, %v194
  %v215 = vmul.f32 %v158, %v195
  %v216 = vmul.f32 %v160, %v196
  %v217 = vmul.f32 %v163, %v197
  %v218 = vmul.f32 %v165, %v198
  %v219 = vmul.f32 %v168, %v199
  %v220 = vmul.f32 %v170, %v200
  %v221 = vmul.f32 %v173, %v201
  %v222 = vmul.f32 %v175, %v202
  %v223 = vmul.f32 %v178, %v203
  %v224 = vmul.f32 %v180, %v204
  %v225 = vmul.f32 %v183, %v205
  %v226 = vmul.f32 %v185, %v206
  %v227 = vmul.f32 %v207, 0.044715
  %v228 = vmul.f32 %v208, 0.044715
  %v229 = vmul.f32 %v209, 0.044715
  %v230 = vmul.f32 %v210, 0.044715
  %v231 = vmul.f32 %v211, 0.044715
  %v232 = vmul.f32 %v212, 0.044715
  %v233 = vmul.f32 %v213, 0.044715
  %v234 = vmul.f32 %v214, 0.044715
  %v235 = vmul.f32 %v215, 0.044715
  %v236 = vmul.f32 %v216, 0.044715
  %v237 = vmul.f32 %v217, 0.044715
  %v238 = vmul.f32 %v218, 0.044715
  %v239 = vmul.f32 %v219, 0.044715
  %v240 = vmul.f32 %v220, 0.044715
  %v241 = vmul.f32 %v221, 0.044715
  %v242 = vmul.f32 %v222, 0.044715
  %v243 = vmul.f32 %v223, 0.044715
  %v244 = vmul.f32 %v224, 0.044715
  %v245 = vmul.f32 %v225, 0.044715
  %v246 = vmul.f32 %v226, 0.044715
  %v247 = vadd.f32 %v138, %v227
  %v248 = vadd.f32 %v140, %v228
  %v249 = vadd.f32 %v143, %v229
  %v250 = vadd.f32 %v145, %v230
  %v251 = vadd.f32 %v148, %v231
  %v252 = vadd.f32 %v150, %v232
  %v253 = vadd.f32 %v153, %v233
  %v254 = vadd.f32 %v155, %v234
  %v255 = vadd.f32 %v158, %v235
  %v256 = vadd.f32 %v160, %v236
  %v257 = vadd.f32 %v163, %v237
  %v258 = vadd.f32 %v165, %v238
  %v259 = vadd.f32 %v168, %v239
  %v260 = vadd.f32 %v170, %v240
  %v261 = vadd.f32 %v173, %v241
  %v262 = vadd.f32 %v175, %v242
  %v263 = vadd.f32 %v178, %v243
  %v264 = vadd.f32 %v180, %v244
  %v265 = vadd.f32 %v183, %v245
  %v266 = vadd.f32 %v185, %v246
  %v267 = vmul.f32 %v247, 0.7978846
  %v268 = vmul.f32 %v248, 0.7978846
  %v269 = vmul.f32 %v249, 0.7978846
  %v270 = vmul.f32 %v250, 0.7978846
  %v271 = vmul.f32 %v251, 0.7978846
  %v272 = vmul.f32 %v252, 0.7978846
  %v273 = vmul.f32 %v253, 0.7978846
  %v274 = vmul.f32 %v254, 0.7978846
  %v275 = vmul.f32 %v255, 0.7978846
  %v276 = vmul.f32 %v256, 0.7978846
  %v277 = vmul.f32 %v257, 0.7978846
  %v278 = vmul.f32 %v258, 0.7978846
  %v279 = vmul.f32 %v259, 0.7978846
  %v280 = vmul.f32 %v260, 0.7978846
  %v281 = vmul.f32 %v261, 0.7978846
  %v282 = vmul.f32 %v262, 0.7978846
  %v283 = vmul.f32 %v263, 0.7978846
  %v284 = vmul.f32 %v264, 0.7978846
  %v285 = vmul.f32 %v265, 0.7978846
  %v286 = vmul.f32 %v266, 0.7978846
  %v287 = vtanh.pop %v267
  %v288 = vtanh.pop %v268
  %v289 = vtanh.pop %v269
  %v290 = vtanh.pop %v270
  %v291 = vtanh.pop %v271
  %v292 = vtanh.pop %v272
  %v293 = vtanh.pop %v273
  %v294 = vtanh.pop %v274
  %v295 = vtanh.pop %v275
  %v296 = vtanh.pop %v276
  %v297 = vtanh.pop %v277
  %v298 = vtanh.pop %v278
  %v299 = vtanh.pop %v279
  %v300 = vtanh.pop %v280
  %v301 = vtanh.pop %v281
  %v302 = vtanh.pop %v282
  %v303 = vtanh.pop %v283
  %v304 = vtanh.pop %v284
  %v305 = vtanh.pop %v285
  %v306 = vtanh.pop %v286
  %v307 = vadd.f32 %v287, 1.0
  %v308 = vadd.f32 %v288, 1.0
  %v309 = vadd.f32 %v289, 1.0
  %v310 = vadd.f32 %v290, 1.0
  %v311 = vadd.f32 %v291, 1.0
  %v312 = vadd.f32 %v292, 1.0
  %v313 = vadd.f32 %v293, 1.0
  %v314 = vadd.f32 %v294, 1.0
  %v315 = vadd.f32 %v295, 1.0
  %v316 = vadd.f32 %v296, 1.0
  %v317 = vadd.f32 %v297, 1.0
  %v318 = vadd.f32 %v298, 1.0
  %v319 = vadd.f32 %v299, 1.0
  %v320 = vadd.f32 %v300, 1.0
  %v321 = vadd.f32 %v301, 1.0
  %v322 = vadd.f32 %v302, 1.0
  %v323 = vadd.f32 %v303, 1.0
  %v324 = vadd.f32 %v304, 1.0
  %v325 = vadd.f32 %v305, 1.0
  %v326 = vadd.f32 %v306, 1.0
  %v327 = vmul.f32 %v307, 0.5
  %v328 = vmul.f32 %v308, 0.5
  %v329 = vmul.f32 %v309, 0.5
  %v330 = vmul.f32 %v310, 0.5
  %v331 = vmul.f32 %v311, 0.5
  %v332 = vmul.f32 %v312, 0.5
  %v333 = vmul.f32 %v313, 0.5
  %v334 = vmul.f32 %v314, 0.5
  %v335 = vmul.f32 %v315, 0.5
  %v336 = vmul.f32 %v316, 0.5
  %v337 = vmul.f32 %v317, 0.5
  %v338 = vmul.f32 %v318, 0.5
  %v339 = vmul.f32 %v319, 0.5
  %v340 = vmul.f32 %v320, 0.5
  %v341 = vmul.f32 %v321, 0.5
  %v342 = vmul.f32 %v322, 0.5
  %v343 = vmul.f32 %v323, 0.5
  %v344 = vmul.f32 %v324, 0.5
  %v345 = vmul.f32 %v325, 0.5
  %v346 = vmul.f32 %v326, 0.5
  %v347 = vmul.f32 %v138, %v327
  %v348 = vmul.f32 %v140, %v328
  %v349 = vmul.f32 %v143, %v329
  %v350 = vmul.f32 %v145, %v330
  %v351 = vmul.f32 %v148, %v331
  %v352 = vmul.f32 %v150, %v332
  %v353 = vmul.f32 %v153, %v333
  %v354 = vmul.f32 %v155, %v334
  %v355 = vmul.f32 %v158, %v335
  %v356 = vmul.f32 %v160, %v336
  %v357 = vmul.f32 %v163, %v337
  %v358 = vmul.f32 %v165, %v338
  %v359 = vmul.f32 %v168, %v339
  %v360 = vmul.f32 %v170, %v340
  %v361 = vmul.f32 %v173, %v341
  %v362 = vmul.f32 %v175, %v342
  %v363 = vmul.f32 %v178, %v343
  %v364 = vmul.f32 %v180, %v344
  %v365 = vmul.f32 %v183, %v345
  %v366 = vmul.f32 %v185, %v346
  %vm367 = vcmask 261120
  %368 = vst.msk [vmem:[%s3] sm:$0xff] %vm367, %v347
  %369 = vst.msk [vmem:[%s3 + $0x8] sm:$0xff] %vm367, %v348
  %370 = vst.msk [vmem:[%s3 + $0x10] sm:$0xff] %vm367, %v349
  %371 = vst.msk [vmem:[%s3 + $0x18] sm:$0xff] %vm367, %v350
  %372 = vst.msk [vmem:[%s3 + $0x20] sm:$0xff] %vm367, %v351
  %373 = vst.msk [vmem:[%s3 + $0x28] sm:$0xff] %vm367, %v352
  %374 = vst.msk [vmem:[%s3 + $0x30] sm:$0xff] %vm367, %v353
  %375 = vst.msk [vmem:[%s3 + $0x38] sm:$0xff] %vm367, %v354
  %376 = vst.msk [vmem:[%s3 + $0x40] sm:$0xff] %vm367, %v355
  %377 = vst.msk [vmem:[%s3 + $0x48] sm:$0xff] %vm367, %v356
  %378 = vst.msk [vmem:[%s3 + $0x50] sm:$0xff] %vm367, %v357
  %379 = vst.msk [vmem:[%s3 + $0x58] sm:$0xff] %vm367, %v358
  %380 = vst.msk [vmem:[%s3 + $0x60] sm:$0xff] %vm367, %v359
  %381 = vst.msk [vmem:[%s3 + $0x68] sm:$0xff] %vm367, %v360
  %382 = vst.msk [vmem:[%s3 + $0x70] sm:$0xff] %vm367, %v361
  %383 = vst.msk [vmem:[%s3 + $0x78] sm:$0xff] %vm367, %v362
  %384 = vst.msk [vmem:[%s3 + $0x80] sm:$0xff] %vm367, %v363
  %385 = vst.msk [vmem:[%s3 + $0x88] sm:$0xff] %vm367, %v364
  %386 = vst.msk [vmem:[%s3 + $0x90] sm:$0xff] %vm367, %v365
  %387 = vst.msk [vmem:[%s3 + $0x98] sm:$0xff] %vm367, %v366
  // Predicated region
  $region14: #{ssl_extractor_forward.13} parent=0 // pred_check
    _
  $region15: #{ssl_extractor_forward.13} parent=0 // pred_check_branch
    %389 = sbr.rel (0) target = $region17
  $region16: #{ssl_extractor_forward.13} parent=0 // pred_region
    _
  $region17: #{ssl_extractor_forward.13} parent=0 // pred_fallthru
    _
  // Predicated region
  $region18: #{ssl_extractor_forward.13} parent=0 // pred_check
    _
  $region19: #{ssl_extractor_forward.13} parent=0 // pred_check_branch
    %391 = sbr.rel (0) target = $region21
  $region20: #{ssl_extractor_forward.13} parent=0 // pred_region
    _
  $region21: #{ssl_extractor_forward.13} parent=0 // pred_fallthru
    _

// kernel: ssl_extractor_forward.14
$region0: #{ssl_extractor_forward.14}
  #allocation0 [shape = 'u32[]', space=smem, size = 0x4, offset = 0x4, fixed_abs, tag = 'smem constant byte address 0x4 - core index']
  #allocation1 [shape = 'u32[72,128]{1,0:T(1,128)}', space=vmem, size = 0x9000, scoped, tag = 'internal scratch']
  %s0 = inlined_call_operand.vmem [shape: f32[80,96], index: 0, kind: input, shape index: {}]
  %s1 = inlined_call_operand.vmem [shape: bf16[96,32], index: 1, kind: input, shape index: {}]
  %s2 = inlined_call_operand.vmem [shape: f32[1,32], index: 2, kind: input, shape index: {}]
  %s3 = inlined_call_operand.vmem [shape: f32[80,32], index: 3, kind: output, shape index: {}]
  %s4 = sld [smem:[#allocation0]]
  $region22: #{ssl_extractor_forward.14} parent=0
    _
  %s6 = ssub.s32 1, %s4
  %s7 = scalar_select 0, %s6, %s4
  // Predicated region
  $region2: #{ssl_extractor_forward.14} parent=0 // pred_check
    _
  $region3: #{ssl_extractor_forward.14} parent=0 // pred_check_branch
    %9 = sbr.rel (0) target = $region5
  $region4: #{ssl_extractor_forward.14} parent=0 // pred_region
    _
  $region5: #{ssl_extractor_forward.14} parent=0 // pred_fallthru
    _
  // Predicated region
  $region6: #{ssl_extractor_forward.14} parent=0 // pred_check
    _
  $region7: #{ssl_extractor_forward.14} parent=0 // pred_check_branch
    %11 = sbr.rel (0) target = $region9
  $region8: #{ssl_extractor_forward.14} parent=0 // pred_region
    _
  $region9: #{ssl_extractor_forward.14} parent=0 // pred_fallthru
    _
  // Predicated region
  $region10: #{ssl_extractor_forward.14} parent=0 // pred_check
    _
  $region11: #{ssl_extractor_forward.14} parent=0 // pred_check_branch
    %13 = sbr.rel (0) target = $region13
  $region12: #{ssl_extractor_forward.14} parent=0 // pred_region
    _
  $region13: #{ssl_extractor_forward.14} parent=0 // pred_fallthru
    _
  %v15 = vld [vmem:[%s0] sm:$0xff]
  %v16 = vld [vmem:[%s0 + $0x8] sm:$0xff]
  %v17 = vld [vmem:[%s0 + $0x10] sm:$0xff]
  %v18 = vld [vmem:[%s0 + $0x18] sm:$0xff]
  %v19 = vld [vmem:[%s0 + $0x20] sm:$0xff]
  %v20 = vld [vmem:[%s0 + $0x28] sm:$0xff]
  %v21 = vld [vmem:[%s0 + $0x30] sm:$0xff]
  %v22 = vld [vmem:[%s0 + $0x38] sm:$0xff]
  %v23 = vld [vmem:[%s0 + $0x40] sm:$0xff]
  %v24 = vld [vmem:[%s0 + $0x48] sm:$0xff]
  %v25 = vpack.c.bf16 %v16, %v15
  %v26 = vpack.c.bf16 %v18, %v17
  %v27 = vpack.c.bf16 %v20, %v19
  %v28 = vpack.c.bf16 %v22, %v21
  %v29 = vpack.c.bf16 %v24, %v23
  %v30 = vld [vmem:[%s1] sm:$0xf]
  %v31 = vld [vmem:[%s1 + $0x4] sm:$0xf]
  %v32 = vld [vmem:[%s1 + $0x8] sm:$0xf]
  %v33 = vld [vmem:[%s1 + $0xc] sm:$0xf]
  %v34 = vld [vmem:[%s1 + $0x10] sm:$0xf]
  %v35 = vld [vmem:[%s1 + $0x14] sm:$0xf]
  %v36 = vld [vmem:[%s1 + $0x18] sm:$0xf]
  %v37 = vld [vmem:[%s1 + $0x1c] sm:$0xf]
  %v38 = vld [vmem:[%s1 + $0x20] sm:$0xf]
  %v39 = vld [vmem:[%s1 + $0x24] sm:$0xf]
  %v40 = vld [vmem:[%s1 + $0x28] sm:$0xf]
  %v41 = vld [vmem:[%s1 + $0x2c] sm:$0xf]
  %v42 = vld [vmem:[%s2] sm:$0x1]
  %v44 = vperm.slane %v42, 0
  %v58 = vunpack.c.l.b16 %v30
  %v59 = vunpack.c.l.b16 %v31
  %v60 = vunpack.c.l.b16 %v32
  %v61 = vunpack.c.l.b16 %v33
  %v62 = vunpack.c.l.b16 %v34
  %v63 = vunpack.c.l.b16 %v35
  %v64 = vunpack.c.l.b16 %v36
  %v65 = vunpack.c.l.b16 %v37
  %v66 = vunpack.c.l.b16 %v38
  %v67 = vunpack.c.l.b16 %v39
  %v68 = vunpack.c.l.b16 %v40
  %v69 = vunpack.c.l.b16 %v41
  %v70 = vpack.c.b16 %v59, %v58
  %v71 = vpack.c.b16 %v61, %v60
  %v72 = vpack.c.b16 %v63, %v62
  %v73 = vpack.c.b16 %v65, %v64
  %v74 = vpack.c.b16 %v67, %v66
  %v75 = vpack.c.b16 %v69, %v68
  %vm82 = vcmask 785408
  %v84 = vsel %vm82, %v25, 0
  %v87 = vsel %vm82, %v26, 0
  %v90 = vsel %vm82, %v27, 0
  %v93 = vsel %vm82, %v28, 0
  %v96 = vsel %vm82, %v29, 0
  %98 = vmatpush.bf16.msra.mxu0 0
  %99 = vmatpush.bf16.msra.mxu0 0
  %100 = vmatpush.bf16.msra.mxu0 %v75
  %101 = vmatpush.bf16.msra.mxu0 %v74
  %102 = vmatpush.bf16.msra.mxu0 %v73
  %103 = vmatpush.bf16.msra.mxu0 %v72
  %104 = vmatpush.bf16.msra.mxu0 %v71
  %105 = vmatpush.bf16.msra.mxu0 %v70
  %106 = vmatmul.bf16.gmra.mxu0 %v84
  %v107 = vpop.f32.mrf.mxu0
  %v108 = vadd.f32 %v44, %v107
  %v109 = vpop.f32.mrf.mxu0
  %v110 = vadd.f32 %v44, %v109
  %111 = vmatmul.bf16.gmra.mxu0 %v87
  %v112 = vpop.f32.mrf.mxu0
  %v113 = vadd.f32 %v44, %v112
  %v114 = vpop.f32.mrf.mxu0
  %v115 = vadd.f32 %v44, %v114
  %116 = vmatmul.bf16.gmra.mxu0 %v90
  %v117 = vpop.f32.mrf.mxu0
  %v118 = vadd.f32 %v44, %v117
  %v119 = vpop.f32.mrf.mxu0
  %v120 = vadd.f32 %v44, %v119
  %121 = vmatmul.bf16.gmra.mxu0 %v93
  %v122 = vpop.f32.mrf.mxu0
  %v123 = vadd.f32 %v44, %v122
  %v124 = vpop.f32.mrf.mxu0
  %v125 = vadd.f32 %v44, %v124
  %126 = vmatmul.bf16.gmra.mxu0 %v96
  %v127 = vpop.f32.mrf.mxu0
  %v128 = vadd.f32 %v44, %v127
  %v129 = vpop.f32.mrf.mxu0
  %v130 = vadd.f32 %v44, %v129
  %131 = vdwg.mxu0
  %v132 = vmul.f32 %v108, %v108
  %v133 = vmul.f32 %v110, %v110
  %v134 = vmul.f32 %v113, %v113
  %v135 = vmul.f32 %v115, %v115
  %v136 = vmul.f32 %v118, %v118
  %v137 = vmul.f32 %v120, %v120
  %v138 = vmul.f32 %v123, %v123
  %v139 = vmul.f32 %v125, %v125
  %v140 = vmul.f32 %v128, %v128
  %v141 = vmul.f32 %v130, %v130
  %v142 = vmul.f32 %v108, %v132
  %v143 = vmul.f32 %v110, %v133
  %v144 = vmul.f32 %v113, %v134
  %v145 = vmul.f32 %v115, %v135
  %v146 = vmul.f32 %v118, %v136
  %v147 = vmul.f32 %v120, %v137
  %v148 = vmul.f32 %v123, %v138
  %v149 = vmul.f32 %v125, %v139
  %v150 = vmul.f32 %v128, %v140
  %v151 = vmul.f32 %v130, %v141
  %v152 = vmul.f32 %v142, 0.044715
  %v153 = vmul.f32 %v143, 0.044715
  %v154 = vmul.f32 %v144, 0.044715
  %v155 = vmul.f32 %v145, 0.044715
  %v156 = vmul.f32 %v146, 0.044715
  %v157 = vmul.f32 %v147, 0.044715
  %v158 = vmul.f32 %v148, 0.044715
  %v159 = vmul.f32 %v149, 0.044715
  %v160 = vmul.f32 %v150, 0.044715
  %v161 = vmul.f32 %v151, 0.044715
  %v162 = vadd.f32 %v108, %v152
  %v163 = vadd.f32 %v110, %v153
  %v164 = vadd.f32 %v113, %v154
  %v165 = vadd.f32 %v115, %v155
  %v166 = vadd.f32 %v118, %v156
  %v167 = vadd.f32 %v120, %v157
  %v168 = vadd.f32 %v123, %v158
  %v169 = vadd.f32 %v125, %v159
  %v170 = vadd.f32 %v128, %v160
  %v171 = vadd.f32 %v130, %v161
  %v172 = vmul.f32 %v162, 0.7978846
  %v173 = vmul.f32 %v163, 0.7978846
  %v174 = vmul.f32 %v164, 0.7978846
  %v175 = vmul.f32 %v165, 0.7978846
  %v176 = vmul.f32 %v166, 0.7978846
  %v177 = vmul.f32 %v167, 0.7978846
  %v178 = vmul.f32 %v168, 0.7978846
  %v179 = vmul.f32 %v169, 0.7978846
  %v180 = vmul.f32 %v170, 0.7978846
  %v181 = vmul.f32 %v171, 0.7978846
  %v182 = vtanh.pop %v172
  %v183 = vtanh.pop %v173
  %v184 = vtanh.pop %v174
  %v185 = vtanh.pop %v175
  %v186 = vtanh.pop %v176
  %v187 = vtanh.pop %v177
  %v188 = vtanh.pop %v178
  %v189 = vtanh.pop %v179
  %v190 = vtanh.pop %v180
  %v191 = vtanh.pop %v181
  %v192 = vadd.f32 %v182, 1.0
  %v193 = vadd.f32 %v183, 1.0
  %v194 = vadd.f32 %v184, 1.0
  %v195 = vadd.f32 %v185, 1.0
  %v196 = vadd.f32 %v186, 1.0
  %v197 = vadd.f32 %v187, 1.0
  %v198 = vadd.f32 %v188, 1.0
  %v199 = vadd.f32 %v189, 1.0
  %v200 = vadd.f32 %v190, 1.0
  %v201 = vadd.f32 %v191, 1.0
  %v202 = vmul.f32 %v192, 0.5
  %v203 = vmul.f32 %v193, 0.5
  %v204 = vmul.f32 %v194, 0.5
  %v205 = vmul.f32 %v195, 0.5
  %v206 = vmul.f32 %v196, 0.5
  %v207 = vmul.f32 %v197, 0.5
  %v208 = vmul.f32 %v198, 0.5
  %v209 = vmul.f32 %v199, 0.5
  %v210 = vmul.f32 %v200, 0.5
  %v211 = vmul.f32 %v201, 0.5
  %v212 = vmul.f32 %v108, %v202
  %v213 = vmul.f32 %v110, %v203
  %v214 = vmul.f32 %v113, %v204
  %v215 = vmul.f32 %v115, %v205
  %v216 = vmul.f32 %v118, %v206
  %v217 = vmul.f32 %v120, %v207
  %v218 = vmul.f32 %v123, %v208
  %v219 = vmul.f32 %v125, %v209
  %v220 = vmul.f32 %v128, %v210
  %v221 = vmul.f32 %v130, %v211
  %vm222 = vcmask 261120
  %223 = vst.msk [vmem:[%s3] sm:$0xff] %vm222, %v212
  %224 = vst.msk [vmem:[%s3 + $0x8] sm:$0xff] %vm222, %v213
  %225 = vst.msk [vmem:[%s3 + $0x10] sm:$0xff] %vm222, %v214
  %226 = vst.msk [vmem:[%s3 + $0x18] sm:$0xff] %vm222, %v215
  %227 = vst.msk [vmem:[%s3 + $0x20] sm:$0xff] %vm222, %v216
  %228 = vst.msk [vmem:[%s3 + $0x28] sm:$0xff] %vm222, %v217
  %229 = vst.msk [vmem:[%s3 + $0x30] sm:$0xff] %vm222, %v218
  %230 = vst.msk [vmem:[%s3 + $0x38] sm:$0xff] %vm222, %v219
  %231 = vst.msk [vmem:[%s3 + $0x40] sm:$0xff] %vm222, %v220
  %232 = vst.msk [vmem:[%s3 + $0x48] sm:$0xff] %vm222, %v221
  // Predicated region
  $region14: #{ssl_extractor_forward.14} parent=0 // pred_check
    _
  $region15: #{ssl_extractor_forward.14} parent=0 // pred_check_branch
    %234 = sbr.rel (0) target = $region17
  $region16: #{ssl_extractor_forward.14} parent=0 // pred_region
    _
  $region17: #{ssl_extractor_forward.14} parent=0 // pred_fallthru
    _
  // Predicated region
  $region18: #{ssl_extractor_forward.14} parent=0 // pred_check
    _
  $region19: #{ssl_extractor_forward.14} parent=0 // pred_check_branch
    %236 = sbr.rel (0) target = $region21
  $region20: #{ssl_extractor_forward.14} parent=0 // pred_region
    _
  $region21: #{ssl_extractor_forward.14} parent=0 // pred_fallthru
    _

// kernel: ssl_extractor_forward.15
$region0: #{ssl_extractor_forward.15}
  #allocation0 [shape = 'u32[]', space=smem, size = 0x4, offset = 0x4, fixed_abs, tag = 'smem constant byte address 0x4 - core index']
  #allocation1 [shape = 'u32[72,128]{1,0:T(1,128)}', space=vmem, size = 0x9000, scoped, tag = 'internal scratch']
  %s0 = inlined_call_operand.vmem [shape: f32[40,96], index: 0, kind: input, shape index: {}]
  %s1 = inlined_call_operand.vmem [shape: bf16[96,32], index: 1, kind: input, shape index: {}]
  %s2 = inlined_call_operand.vmem [shape: f32[1,32], index: 2, kind: input, shape index: {}]
  %s3 = inlined_call_operand.vmem [shape: f32[40,32], index: 3, kind: output, shape index: {}]
  %s4 = sld [smem:[#allocation0]]
  $region22: #{ssl_extractor_forward.15} parent=0
    _
  %s6 = ssub.s32 1, %s4
  %s7 = scalar_select 0, %s6, %s4
  // Predicated region
  $region2: #{ssl_extractor_forward.15} parent=0 // pred_check
    _
  $region3: #{ssl_extractor_forward.15} parent=0 // pred_check_branch
    %9 = sbr.rel (0) target = $region5
  $region4: #{ssl_extractor_forward.15} parent=0 // pred_region
    _
  $region5: #{ssl_extractor_forward.15} parent=0 // pred_fallthru
    _
  // Predicated region
  $region6: #{ssl_extractor_forward.15} parent=0 // pred_check
    _
  $region7: #{ssl_extractor_forward.15} parent=0 // pred_check_branch
    %11 = sbr.rel (0) target = $region9
  $region8: #{ssl_extractor_forward.15} parent=0 // pred_region
    _
  $region9: #{ssl_extractor_forward.15} parent=0 // pred_fallthru
    _
  // Predicated region
  $region10: #{ssl_extractor_forward.15} parent=0 // pred_check
    _
  $region11: #{ssl_extractor_forward.15} parent=0 // pred_check_branch
    %13 = sbr.rel (0) target = $region13
  $region12: #{ssl_extractor_forward.15} parent=0 // pred_region
    _
  $region13: #{ssl_extractor_forward.15} parent=0 // pred_fallthru
    _
  %v15 = vld [vmem:[%s0] sm:$0xff]
  %v16 = vld [vmem:[%s0 + $0x8] sm:$0xff]
  %v17 = vld [vmem:[%s0 + $0x10] sm:$0xff]
  %v18 = vld [vmem:[%s0 + $0x18] sm:$0xff]
  %v19 = vld [vmem:[%s0 + $0x20] sm:$0xff]
  %v20 = vpack.c.bf16 %v16, %v15
  %v21 = vpack.c.bf16 %v18, %v17
  %v22 = vpack.c.bf16 %v19, %v19
  %v23 = vld [vmem:[%s1] sm:$0xf]
  %v24 = vld [vmem:[%s1 + $0x4] sm:$0xf]
  %v25 = vld [vmem:[%s1 + $0x8] sm:$0xf]
  %v26 = vld [vmem:[%s1 + $0xc] sm:$0xf]
  %v27 = vld [vmem:[%s1 + $0x10] sm:$0xf]
  %v28 = vld [vmem:[%s1 + $0x14] sm:$0xf]
  %v29 = vld [vmem:[%s1 + $0x18] sm:$0xf]
  %v30 = vld [vmem:[%s1 + $0x1c] sm:$0xf]
  %v31 = vld [vmem:[%s1 + $0x20] sm:$0xf]
  %v32 = vld [vmem:[%s1 + $0x24] sm:$0xf]
  %v33 = vld [vmem:[%s1 + $0x28] sm:$0xf]
  %v34 = vld [vmem:[%s1 + $0x2c] sm:$0xf]
  %v35 = vld [vmem:[%s2] sm:$0x1]
  %v37 = vperm.slane %v35, 0
  %v51 = vunpack.c.l.b16 %v23
  %v52 = vunpack.c.l.b16 %v24
  %v53 = vunpack.c.l.b16 %v25
  %v54 = vunpack.c.l.b16 %v26
  %v55 = vunpack.c.l.b16 %v27
  %v56 = vunpack.c.l.b16 %v28
  %v57 = vunpack.c.l.b16 %v29
  %v58 = vunpack.c.l.b16 %v30
  %v59 = vunpack.c.l.b16 %v31
  %v60 = vunpack.c.l.b16 %v32
  %v61 = vunpack.c.l.b16 %v33
  %v62 = vunpack.c.l.b16 %v34
  %v63 = vpack.c.b16 %v52, %v51
  %v64 = vpack.c.b16 %v54, %v53
  %v65 = vpack.c.b16 %v56, %v55
  %v66 = vpack.c.b16 %v58, %v57
  %v67 = vpack.c.b16 %v60, %v59
  %v68 = vpack.c.b16 %v62, %v61
  %vm75 = vcmask 785408
  %v77 = vsel %vm75, %v20, 0
  %v80 = vsel %vm75, %v21, 0
  %v83 = vsel %vm75, %v22, 0
  %85 = vmatpush.bf16.msra.mxu0 0
  %86 = vmatpush.bf16.msra.mxu0 0
  %87 = vmatpush.bf16.msra.mxu0 %v68
  %88 = vmatpush.bf16.msra.mxu0 %v67
  %89 = vmatpush.bf16.msra.mxu0 %v66
  %90 = vmatpush.bf16.msra.mxu0 %v65
  %91 = vmatpush.bf16.msra.mxu0 %v64
  %92 = vmatpush.bf16.msra.mxu0 %v63
  %93 = vmatmul.bf16.gmra.mxu0 %v77
  %v94 = vpop.f32.mrf.mxu0
  %v95 = vadd.f32 %v37, %v94
  %v96 = vpop.f32.mrf.mxu0
  %v97 = vadd.f32 %v37, %v96
  %98 = vmatmul.bf16.gmra.mxu0 %v80
  %v99 = vpop.f32.mrf.mxu0
  %v100 = vadd.f32 %v37, %v99
  %v101 = vpop.f32.mrf.mxu0
  %v102 = vadd.f32 %v37, %v101
  %103 = vmatmul.bf16.gmra.mxu0 %v83
  %v104 = vpop.f32.mrf.mxu0
  %v105 = vadd.f32 %v37, %v104
  %v106 = vpop.f32.mrf.mxu0
  %107 = vdwg.mxu0
  %v108 = vmul.f32 %v95, %v95
  %v109 = vmul.f32 %v97, %v97
  %v110 = vmul.f32 %v100, %v100
  %v111 = vmul.f32 %v102, %v102
  %v112 = vmul.f32 %v105, %v105
  %v113 = vmul.f32 %v95, %v108
  %v114 = vmul.f32 %v97, %v109
  %v115 = vmul.f32 %v100, %v110
  %v116 = vmul.f32 %v102, %v111
  %v117 = vmul.f32 %v105, %v112
  %v118 = vmul.f32 %v113, 0.044715
  %v119 = vmul.f32 %v114, 0.044715
  %v120 = vmul.f32 %v115, 0.044715
  %v121 = vmul.f32 %v116, 0.044715
  %v122 = vmul.f32 %v117, 0.044715
  %v123 = vadd.f32 %v95, %v118
  %v124 = vadd.f32 %v97, %v119
  %v125 = vadd.f32 %v100, %v120
  %v126 = vadd.f32 %v102, %v121
  %v127 = vadd.f32 %v105, %v122
  %v128 = vmul.f32 %v123, 0.7978846
  %v129 = vmul.f32 %v124, 0.7978846
  %v130 = vmul.f32 %v125, 0.7978846
  %v131 = vmul.f32 %v126, 0.7978846
  %v132 = vmul.f32 %v127, 0.7978846
  %v133 = vtanh.pop %v128
  %v134 = vtanh.pop %v129
  %v135 = vtanh.pop %v130
  %v136 = vtanh.pop %v131
  %v137 = vtanh.pop %v132
  %v138 = vadd.f32 %v133, 1.0
  %v139 = vadd.f32 %v134, 1.0
  %v140 = vadd.f32 %v135, 1.0
  %v141 = vadd.f32 %v136, 1.0
  %v142 = vadd.f32 %v137, 1.0
  %v143 = vmul.f32 %v138, 0.5
  %v144 = vmul.f32 %v139, 0.5
  %v145 = vmul.f32 %v140, 0.5
  %v146 = vmul.f32 %v141, 0.5
  %v147 = vmul.f32 %v142, 0.5
  %v148 = vmul.f32 %v95, %v143
  %v149 = vmul.f32 %v97, %v144
  %v150 = vmul.f32 %v100, %v145
  %v151 = vmul.f32 %v102, %v146
  %v152 = vmul.f32 %v105, %v147
  %vm153 = vcmask 261120
  %154 = vst.msk [vmem:[%s3] sm:$0xff] %vm153, %v148
  %155 = vst.msk [vmem:[%s3 + $0x8] sm:$0xff] %vm153, %v149
  %156 = vst.msk [vmem:[%s3 + $0x10] sm:$0xff] %vm153, %v150
  %157 = vst.msk [vmem:[%s3 + $0x18] sm:$0xff] %vm153, %v151
  %158 = vst.msk [vmem:[%s3 + $0x20] sm:$0xff] %vm153, %v152
  // Predicated region
  $region14: #{ssl_extractor_forward.15} parent=0 // pred_check
    _
  $region15: #{ssl_extractor_forward.15} parent=0 // pred_check_branch
    %160 = sbr.rel (0) target = $region17
  $region16: #{ssl_extractor_forward.15} parent=0 // pred_region
    _
  $region17: #{ssl_extractor_forward.15} parent=0 // pred_fallthru
    _
  // Predicated region
  $region18: #{ssl_extractor_forward.15} parent=0 // pred_check
    _
  $region19: #{ssl_extractor_forward.15} parent=0 // pred_check_branch
    %162 = sbr.rel (0) target = $region21
  $region20: #{ssl_extractor_forward.15} parent=0 // pred_region
    _
  $region21: #{ssl_extractor_forward.15} parent=0 // pred_fallthru
    _

// kernel: ssl_extractor_forward.16
$region0: #{ssl_extractor_forward.16}
  #allocation0 [shape = 'u32[]', space=smem, size = 0x4, offset = 0x4, fixed_abs, tag = 'smem constant byte address 0x4 - core index']
  #allocation1 [shape = 'u32[72,128]{1,0:T(1,128)}', space=vmem, size = 0x9000, scoped, tag = 'internal scratch']
  %s0 = inlined_call_operand.vmem [shape: f32[24,64], index: 0, kind: input, shape index: {}]
  %s1 = inlined_call_operand.vmem [shape: bf16[64,32], index: 1, kind: input, shape index: {}]
  %s2 = inlined_call_operand.vmem [shape: f32[1,32], index: 2, kind: input, shape index: {}]
  %s3 = inlined_call_operand.vmem [shape: f32[24,32], index: 3, kind: output, shape index: {}]
  %s4 = sld [smem:[#allocation0]]
  $region22: #{ssl_extractor_forward.16} parent=0
    _
  %s6 = ssub.s32 1, %s4
  %s7 = scalar_select 0, %s6, %s4
  // Predicated region
  $region2: #{ssl_extractor_forward.16} parent=0 // pred_check
    _
  $region3: #{ssl_extractor_forward.16} parent=0 // pred_check_branch
    %9 = sbr.rel (0) target = $region5
  $region4: #{ssl_extractor_forward.16} parent=0 // pred_region
    _
  $region5: #{ssl_extractor_forward.16} parent=0 // pred_fallthru
    _
  // Predicated region
  $region6: #{ssl_extractor_forward.16} parent=0 // pred_check
    _
  $region7: #{ssl_extractor_forward.16} parent=0 // pred_check_branch
    %11 = sbr.rel (0) target = $region9
  $region8: #{ssl_extractor_forward.16} parent=0 // pred_region
    _
  $region9: #{ssl_extractor_forward.16} parent=0 // pred_fallthru
    _
  // Predicated region
  $region10: #{ssl_extractor_forward.16} parent=0 // pred_check
    _
  $region11: #{ssl_extractor_forward.16} parent=0 // pred_check_branch
    %13 = sbr.rel (0) target = $region13
  $region12: #{ssl_extractor_forward.16} parent=0 // pred_region
    _
  $region13: #{ssl_extractor_forward.16} parent=0 // pred_fallthru
    _
  %v15 = vld [vmem:[%s0] sm:$0xff]
  %v16 = vld [vmem:[%s0 + $0x8] sm:$0xff]
  %v17 = vld [vmem:[%s0 + $0x10] sm:$0xff]
  %v18 = vpack.c.bf16 %v16, %v15
  %v19 = vpack.c.bf16 %v17, %v17
  %v20 = vld [vmem:[%s1] sm:$0xf]
  %v21 = vld [vmem:[%s1 + $0x4] sm:$0xf]
  %v22 = vld [vmem:[%s1 + $0x8] sm:$0xf]
  %v23 = vld [vmem:[%s1 + $0xc] sm:$0xf]
  %v24 = vld [vmem:[%s1 + $0x10] sm:$0xf]
  %v25 = vld [vmem:[%s1 + $0x14] sm:$0xf]
  %v26 = vld [vmem:[%s1 + $0x18] sm:$0xf]
  %v27 = vld [vmem:[%s1 + $0x1c] sm:$0xf]
  %v28 = vld [vmem:[%s2] sm:$0x1]
  %v30 = vperm.slane %v28, 0
  %v40 = vunpack.c.l.b16 %v20
  %v41 = vunpack.c.l.b16 %v21
  %v42 = vunpack.c.l.b16 %v22
  %v43 = vunpack.c.l.b16 %v23
  %v44 = vunpack.c.l.b16 %v24
  %v45 = vunpack.c.l.b16 %v25
  %v46 = vunpack.c.l.b16 %v26
  %v47 = vunpack.c.l.b16 %v27
  %v48 = vpack.c.b16 %v41, %v40
  %v49 = vpack.c.b16 %v43, %v42
  %v50 = vpack.c.b16 %v45, %v44
  %v51 = vpack.c.b16 %v47, %v46
  %vm56 = vcmask 523264
  %v58 = vsel %vm56, %v18, 0
  %v61 = vsel %vm56, %v19, 0
  %63 = vmatpush.bf16.msra.mxu0 0
  %64 = vmatpush.bf16.msra.mxu0 0
  %65 = vmatpush.bf16.msra.mxu0 0
  %66 = vmatpush.bf16.msra.mxu0 0
  %67 = vmatpush.bf16.msra.mxu0 %v51
  %68 = vmatpush.bf16.msra.mxu0 %v50
  %69 = vmatpush.bf16.msra.mxu0 %v49
  %70 = vmatpush.bf16.msra.mxu0 %v48
  %71 = vmatmul.bf16.gmra.mxu0 %v58
  %v72 = vpop.f32.mrf.mxu0
  %v73 = vadd.f32 %v30, %v72
  %v74 = vpop.f32.mrf.mxu0
  %v75 = vadd.f32 %v30, %v74
  %76 = vmatmul.bf16.gmra.mxu0 %v61
  %v77 = vpop.f32.mrf.mxu0
  %v78 = vadd.f32 %v30, %v77
  %v79 = vpop.f32.mrf.mxu0
  %80 = vdwg.mxu0
  %v81 = vmul.f32 %v73, %v73
  %v82 = vmul.f32 %v75, %v75
  %v83 = vmul.f32 %v78, %v78
  %v84 = vmul.f32 %v73, %v81
  %v85 = vmul.f32 %v75, %v82
  %v86 = vmul.f32 %v78, %v83
  %v87 = vmul.f32 %v84, 0.044715
  %v88 = vmul.f32 %v85, 0.044715
  %v89 = vmul.f32 %v86, 0.044715
  %v90 = vadd.f32 %v73, %v87
  %v91 = vadd.f32 %v75, %v88
  %v92 = vadd.f32 %v78, %v89
  %v93 = vmul.f32 %v90, 0.7978846
  %v94 = vmul.f32 %v91, 0.7978846
  %v95 = vmul.f32 %v92, 0.7978846
  %v96 = vtanh.pop %v93
  %v97 = vtanh.pop %v94
  %v98 = vtanh.pop %v95
  %v99 = vadd.f32 %v96, 1.0
  %v100 = vadd.f32 %v97, 1.0
  %v101 = vadd.f32 %v98, 1.0
  %v102 = vmul.f32 %v99, 0.5
  %v103 = vmul.f32 %v100, 0.5
  %v104 = vmul.f32 %v101, 0.5
  %v105 = vmul.f32 %v73, %v102
  %v106 = vmul.f32 %v75, %v103
  %v107 = vmul.f32 %v78, %v104
  %vm108 = vcmask 261120
  %109 = vst.msk [vmem:[%s3] sm:$0xff] %vm108, %v105
  %110 = vst.msk [vmem:[%s3 + $0x8] sm:$0xff] %vm108, %v106
  %111 = vst.msk [vmem:[%s3 + $0x10] sm:$0xff] %vm108, %v107
  // Predicated region
  $region14: #{ssl_extractor_forward.16} parent=0 // pred_check
    _
  $region15: #{ssl_extractor_forward.16} parent=0 // pred_check_branch
    %113 = sbr.rel (0) target = $region17
  $region16: #{ssl_extractor_forward.16} parent=0 // pred_region
    _
  $region17: #{ssl_extractor_forward.16} parent=0 // pred_fallthru
    _
  // Predicated region
  $region18: #{ssl_extractor_forward.16} parent=0 // pred_check
    _
  $region19: #{ssl_extractor_forward.16} parent=0 // pred_check_branch
    %115 = sbr.rel (0) target = $region21
  $region20: #{ssl_extractor_forward.16} parent=0 // pred_region
    _
  $region21: #{ssl_extractor_forward.16} parent=0 // pred_fallthru
    _

// kernel: ssl_extractor_forward.19
$region0: #{ssl_extractor_forward.19}
  #allocation0 [shape = 'u32[]', space=smem, size = 0x4, offset = 0x4, fixed_abs, tag = 'smem constant byte address 0x4 - core index']
  #allocation1 [shape = 'u32[72,128]{1,0:T(1,128)}', space=vmem, size = 0x9000, scoped, tag = 'internal scratch']
  %s0 = inlined_call_operand.vmem [shape: f32[2,6,32], index: 0, kind: input, shape index: {}]
  %s1 = inlined_call_operand.vmem [shape: bf16[96,32], index: 1, kind: input, shape index: {}]
  %s2 = inlined_call_operand.vmem [shape: f32[1,32], index: 2, kind: input, shape index: {}]
  %s3 = inlined_call_operand.vmem [shape: f32[1,32], index: 3, kind: input, shape index: {}]
  %s4 = inlined_call_operand.vmem [shape: f32[1,32], index: 4, kind: input, shape index: {}]
  %s5 = inlined_call_operand.vmem [shape: f32[2,4,32], index: 5, kind: output, shape index: {}]
  %s6 = sld [smem:[#allocation0]]
  $region53: #{ssl_extractor_forward.19} parent=0
    _
  %s8 = ssub.s32 1, %s6
  %s9 = scalar_select 0, %s8, %s6
  loop: start=0, step=1, limit=4
  $region2: #{ssl_extractor_forward.19} parent=0 // loop_pre_header
    _
  $region3: #{ssl_extractor_forward.19} parent=0 // loop_header
    %s11 = sphi 0, %s15
    %p12 = scmp.ge.s32.totalorder %s11, 4
    %s21 = sphi 0, %s23
    %s24 = sphi 0, %s21
    %s25 = sphi 0, %s24
    %s41 = sphi 0, %s25
    %s45 = sphi 0, %s45
    %s47 = sphi 0, %s45
    %s48 = sphi 0, %s47
    %s62 = sphi 0, %s48
    %s66 = sphi 0, %s66
    %s68 = sphi 0, %s66
    %s69 = sphi 0, %s68
    %s83 = sphi 0, %s69
    %s87 = sphi 0, %s87
    %s89 = sphi 0, %s87
    %s90 = sphi 0, %s89
    %s104 = sphi 0, %s90
    %s108 = sphi 0, %s108
    %s110 = sphi 0, %s108
    %s111 = sphi 0, %s110
    %s125 = sphi 0, %s111
    %s131 = sphi 0, %s133
    %s134 = sphi 0, %s131
    %s135 = sphi 0, %s134
    %s151 = sphi 0, %s135
  $region4: #{ssl_extractor_forward.19} parent=0 // loop_header_branch
    %14 = sbr.rel (%p12) target = $region8
  $region5: #{ssl_extractor_forward.19} parent=0 // loop_body
    %s16 = ssub.s32 %s11, 1
    %s17 = ssub.s32 %s11, 2
    %s18 = sadd.s32 %s11, 1
    %s19 = ssub.s32 %s11, %s18
    %p20 = scmp.eq.s32.totalorder %s19, 0
    %s22 = sadd.s32 %s21, 1
    %s23 = scalar_select %p20, %s21, %s22
    %p26 = pneg %p20
    %p27 = scmp.eq.s32.totalorder %s11, 1
    %p28 = por %p26, %p27
    %p29 = scmp.ne.s32.totalorder %s21, %s24
    %p30 = scmp.eq.s32.totalorder %s11, 0
    %p31 = por %p29, %p30
    %p32 = scmp.ne.s32.totalorder %s21, %s24
    %p33 = scmp.eq.s32.totalorder %s16, 1
    %p34 = por %p32, %p33
    %p35 = scmp.ne.s32.totalorder %s24, %s25
    %p36 = scmp.eq.s32.totalorder %s16, 0
    %p37 = por %p35, %p36
    %p38 = scmp.ne.s32.totalorder %s24, %s25
    %p39 = scmp.eq.s32.totalorder %s17, 1
    %p40 = por %p38, %p39
    %p42 = scmp.ne.s32.totalorder %s25, %s41
    %p43 = scmp.eq.s32.totalorder %s17, 0
    %p44 = por %p42, %p43
    %s46 = sadd.s32 %s45, 1
    %p49 = scmp.eq.s32.totalorder %s11, 1
    %p50 = scmp.ne.s32.totalorder %s45, %s47
    %p51 = scmp.eq.s32.totalorder %s11, 0
    %p52 = por %p50, %p51
    %p53 = scmp.ne.s32.totalorder %s45, %s47
    %p54 = scmp.eq.s32.totalorder %s16, 1
    %p55 = por %p53, %p54
    %p56 = scmp.ne.s32.totalorder %s47, %s48
    %p57 = scmp.eq.s32.totalorder %s16, 0
    %p58 = por %p56, %p57
    %p59 = scmp.ne.s32.totalorder %s47, %s48
    %p60 = scmp.eq.s32.totalorder %s17, 1
    %p61 = por %p59, %p60
    %p63 = scmp.ne.s32.totalorder %s48, %s62
    %p64 = scmp.eq.s32.totalorder %s17, 0
    %p65 = por %p63, %p64
    %s67 = sadd.s32 %s66, 1
    %p70 = scmp.eq.s32.totalorder %s11, 1
    %p71 = scmp.ne.s32.totalorder %s66, %s68
    %p72 = scmp.eq.s32.totalorder %s11, 0
    %p73 = por %p71, %p72
    %p74 = scmp.ne.s32.totalorder %s66, %s68
    %p75 = scmp.eq.s32.totalorder %s16, 1
    %p76 = por %p74, %p75
    %p77 = scmp.ne.s32.totalorder %s68, %s69
    %p78 = scmp.eq.s32.totalorder %s16, 0
    %p79 = por %p77, %p78
    %p80 = scmp.ne.s32.totalorder %s68, %s69
    %p81 = scmp.eq.s32.totalorder %s17, 1
    %p82 = por %p80, %p81
    %p84 = scmp.ne.s32.totalorder %s69, %s83
    %p85 = scmp.eq.s32.totalorder %s17, 0
    %p86 = por %p84, %p85
    %s88 = sadd.s32 %s87, 1
    %p91 = scmp.eq.s32.totalorder %s11, 1
    %p92 = scmp.ne.s32.totalorder %s87, %s89
    %p93 = scmp.eq.s32.totalorder %s11, 0
    %p94 = por %p92, %p93
    %p95 = scmp.ne.s32.totalorder %s87, %s89
    %p96 = scmp.eq.s32.totalorder %s16, 1
    %p97 = por %p95, %p96
    %p98 = scmp.ne.s32.totalorder %s89, %s90
    %p99 = scmp.eq.s32.totalorder %s16, 0
    %p100 = por %p98, %p99
    %p101 = scmp.ne.s32.totalorder %s89, %s90
    %p102 = scmp.eq.s32.totalorder %s17, 1
    %p103 = por %p101, %p102
    %p105 = scmp.ne.s32.totalorder %s90, %s104
    %p106 = scmp.eq.s32.totalorder %s17, 0
    %p107 = por %p105, %p106
    %s109 = sadd.s32 %s108, 1
    %p112 = scmp.eq.s32.totalorder %s11, 1
    %p113 = scmp.ne.s32.totalorder %s108, %s110
    %p114 = scmp.eq.s32.totalorder %s11, 0
    %p115 = por %p113, %p114
    %p116 = scmp.ne.s32.totalorder %s108, %s110
    %p117 = scmp.eq.s32.totalorder %s16, 1
    %p118 = por %p116, %p117
    %p119 = scmp.ne.s32.totalorder %s110, %s111
    %p120 = scmp.eq.s32.totalorder %s16, 0
    %p121 = por %p119, %p120
    %p122 = scmp.ne.s32.totalorder %s110, %s111
    %p123 = scmp.eq.s32.totalorder %s17, 1
    %p124 = por %p122, %p123
    %p126 = scmp.ne.s32.totalorder %s111, %s125
    %p127 = scmp.eq.s32.totalorder %s17, 0
    %p128 = por %p126, %p127
    %s129 = ssub.s32 %s11, %s18
    %p130 = scmp.eq.s32.totalorder %s129, 0
    %s132 = sadd.s32 %s131, 1
    %s133 = scalar_select %p130, %s131, %s132
    %p136 = pneg %p130
    %p137 = scmp.eq.s32.totalorder %s11, 1
    %p138 = por %p136, %p137
    %p139 = scmp.ne.s32.totalorder %s131, %s134
    %p140 = scmp.eq.s32.totalorder %s11, 0
    %p141 = por %p139, %p140
    %p142 = scmp.ne.s32.totalorder %s131, %s134
    %p143 = scmp.eq.s32.totalorder %s16, 1
    %p144 = por %p142, %p143
    %p145 = scmp.ne.s32.totalorder %s134, %s135
    %p146 = scmp.eq.s32.totalorder %s16, 0
    %p147 = por %p145, %p146
    %p148 = scmp.ne.s32.totalorder %s134, %s135
    %p149 = scmp.eq.s32.totalorder %s17, 1
    %p150 = por %p148, %p149
    %p152 = scmp.ne.s32.totalorder %s135, %s151
    %p153 = scmp.eq.s32.totalorder %s17, 0
    %p154 = por %p152, %p153
    %p155 = scmp.le.s32.totalorder 1, %s11
    %p156 = scmp.lt.s32.totalorder %s11, 3
    %p157 = pnand %p155, %p156
    %p158 = pneg %p157
    // Predicated region
    $region9: #{ssl_extractor_forward.19} parent=5 // pred_check
      _
    $region10: #{ssl_extractor_forward.19} parent=5 // pred_check_branch
      %160 = sbr.rel (%p157) target = $region12
    $region11: #{ssl_extractor_forward.19} parent=5 // pred_region
      %s161 = ssub.s32 %s11, 1
      // Predicated region
      $region13: #{ssl_extractor_forward.19} parent=11 // pred_check
        %p162 = pneg %p58
      $region14: #{ssl_extractor_forward.19} parent=11 // pred_check_branch
        %164 = sbr.rel (%p162) target = $region16
      $region15: #{ssl_extractor_forward.19} parent=11 // pred_region
        _
      $region16: #{ssl_extractor_forward.19} parent=11 // pred_fallthru
        _
      // Predicated region
      $region17: #{ssl_extractor_forward.19} parent=11 // pred_check
        %p165 = pneg %p79
      $region18: #{ssl_extractor_forward.19} parent=11 // pred_check_branch
        %167 = sbr.rel (%p165) target = $region20
      $region19: #{ssl_extractor_forward.19} parent=11 // pred_region
        _
      $region20: #{ssl_extractor_forward.19} parent=11 // pred_fallthru
        _
      // Predicated region
      $region21: #{ssl_extractor_forward.19} parent=11 // pred_check
        %p168 = pneg %p100
      $region22: #{ssl_extractor_forward.19} parent=11 // pred_check_branch
        %170 = sbr.rel (%p168) target = $region24
      $region23: #{ssl_extractor_forward.19} parent=11 // pred_region
        _
      $region24: #{ssl_extractor_forward.19} parent=11 // pred_fallthru
        _
      // Predicated region
      $region25: #{ssl_extractor_forward.19} parent=11 // pred_check
        %p171 = pneg %p121
      $region26: #{ssl_extractor_forward.19} parent=11 // pred_check_branch
        %173 = sbr.rel (%p171) target = $region28
      $region27: #{ssl_extractor_forward.19} parent=11 // pred_region
        _
      $region28: #{ssl_extractor_forward.19} parent=11 // pred_fallthru
        _
    $region12: #{ssl_extractor_forward.19} parent=5 // pred_fallthru
      _
    %p174 = scmp.lt.s32.totalorder %s11, 2
    // Predicated region
    $region29: #{ssl_extractor_forward.19} parent=5 // pred_check
      %p175 = pneg %p174
    $region30: #{ssl_extractor_forward.19} parent=5 // pred_check_branch
      %177 = sbr.rel (%p175) target = $region32
    $region31: #{ssl_extractor_forward.19} parent=5 // pred_region
      // Predicated region
      $region33: #{ssl_extractor_forward.19} parent=31 // pred_check
        %p178 = pneg %p31
      $region34: #{ssl_extractor_forward.19} parent=31 // pred_check_branch
        %180 = sbr.rel (%p178) target = $region36
      $region35: #{ssl_extractor_forward.19} parent=31 // pred_region
        %p181 = scmp.lt.s32.totalorder %s11, 1
        %s182 = scalar_select %p181, %s11, 1
        %s183 = smul.addr %s182, 8
        %s184 = scalar_lea.vmem %s0, %s183
      $region36: #{ssl_extractor_forward.19} parent=31 // pred_fallthru
        _
    $region32: #{ssl_extractor_forward.19} parent=5 // pred_fallthru
      _
    %p185 = scmp.le.s32.totalorder 1, %s11
    %p186 = scmp.lt.s32.totalorder %s11, 3
    %p187 = pnand %p185, %p186
    %p188 = pneg %p187
    // Predicated region
    $region37: #{ssl_extractor_forward.19} parent=5 // pred_check
      _
    $region38: #{ssl_extractor_forward.19} parent=5 // pred_check_branch
      %190 = sbr.rel (%p187) target = $region40
    $region39: #{ssl_extractor_forward.19} parent=5 // pred_region
      %s191 = ssub.s32 %s11, 1
      %p192 = scmp.lt.s32.totalorder %s16, 1
      %s193 = scalar_select %p192, %s16, 1
      %s194 = smul.addr %s193, 8
      %s195 = scalar_lea.vmem %s0, %s194
      %p196 = pneg %p37
      %p197 = pneg %p34
      %p198 = pneg %p58
      %p199 = pneg %p55
      %p200 = pneg %p79
      %p201 = pneg %p76
      %p202 = pneg %p100
      %p203 = pneg %p97
      %p204 = pneg %p121
      %p205 = pneg %p118
      %p206 = pneg %p147
      %p207 = pneg %p144
      %p208 = scmp.lt.s32.totalorder %s16, 1
      %s209 = scalar_select %p208, %s16, 1
      %s210 = smul.addr %s209, 4
      %s211 = scalar_lea.vmem %s5, %s210
      %p212 = scmp.lt.s32.totalorder %s16, 1
      %s213 = scalar_select %p212, %s16, 1
      %s214 = smul.addr %s213, 8
      %s215 = scalar_lea.vmem %s0, %s214
      %p216 = scmp.lt.s32.totalorder %s16, 1
      %s217 = scalar_select %p216, %s16, 1
      %s218 = smul.addr %s217, 4
      %s219 = scalar_lea.vmem %s5, %s218
      %v221 = vld [vmem:[%s215] sm:$0x3f]
      %v222 = vpack.c.bf16 %v221, %v221
      %v223 = vld [vmem:[%s1] sm:$0xf]
      %v224 = vld [vmem:[%s1 + $0x4] sm:$0xf]
      %v225 = vld [vmem:[%s1 + $0x8] sm:$0xf]
      %v226 = vld [vmem:[%s1 + $0xc] sm:$0xf]
      %v227 = vld [vmem:[%s1 + $0x10] sm:$0xf]
      %v228 = vld [vmem:[%s1 + $0x14] sm:$0xf]
      %v229 = vld [vmem:[%s1 + $0x18] sm:$0xf]
      %v230 = vld [vmem:[%s1 + $0x1c] sm:$0xf]
      %v231 = vld [vmem:[%s1 + $0x20] sm:$0xf]
      %v232 = vld [vmem:[%s1 + $0x24] sm:$0xf]
      %v233 = vld [vmem:[%s1 + $0x28] sm:$0xf]
      %v234 = vld [vmem:[%s1 + $0x2c] sm:$0xf]
      %v236 = vunpack.c.l.b16 %v222
      %v237 = vpack.c.b16 %v236, %v236
      %v239 = vshrl.u32 %v237, 16
      %v241 = vshll.u32 %v237, 16
      %v243 = vrot.slane %v241, 1
      %v244 = vor.u32 %v239, %v243
      %v249 = vunpack.c.l.b16 %v227
      %v250 = vunpack.c.l.b16 %v228
      %v251 = vunpack.c.l.b16 %v229
      %v252 = vunpack.c.l.b16 %v230
      %v253 = vpack.c.b16 %v250, %v249
      %v254 = vpack.c.b16 %v252, %v251
      %vm257 = vcmask 261120
      %v259 = vsel %vm257, %v244, 0
      %261 = vmatpush.bf16.msra.mxu0 0
      %262 = vmatpush.bf16.msra.mxu0 0
      %263 = vmatpush.bf16.msra.mxu0 0
      %264 = vmatpush.bf16.msra.mxu0 0
      %265 = vmatpush.bf16.msra.mxu0 0
      %266 = vmatpush.bf16.msra.mxu0 0
      %267 = vmatpush.bf16.msra.mxu0 %v254
      %268 = vmatpush.bf16.msra.mxu0 %v253
      %269 = vmatmul.bf16.gmra.mxu0 %v259
      %v270 = vpop.f32.mrf.mxu0
      %v271 = vadd.f32 0.0, %v270
      %v272 = vpop.f32.mrf.mxu0
      %273 = vdwg.mxu0
      %v278 = vunpack.c.l.b16 %v223
      %v279 = vunpack.c.l.b16 %v224
      %v280 = vunpack.c.l.b16 %v225
      %v281 = vunpack.c.l.b16 %v226
      %v282 = vpack.c.b16 %v279, %v278
      %v283 = vpack.c.b16 %v281, %v280
      %v287 = vsel %vm257, %v222, 0
      %289 = vmatpush.bf16.msra.mxu0 0
      %290 = vmatpush.bf16.msra.mxu0 0
      %291 = vmatpush.bf16.msra.mxu0 0
      %292 = vmatpush.bf16.msra.mxu0 0
      %293 = vmatpush.bf16.msra.mxu0 0
      %294 = vmatpush.bf16.msra.mxu0 0
      %295 = vmatpush.bf16.msra.mxu0 %v283
      %296 = vmatpush.bf16.msra.mxu0 %v282
      %297 = vmatmul.bf16.gmra.mxu0 %v287
      %v298 = vpop.f32.mrf.mxu0
      %v299 = vadd.f32 %v271, %v298
      %v300 = vpop.f32.mrf.mxu0
      %301 = vdwg.mxu0
      %v302 = vrot.slane %v237, 1
      %v307 = vunpack.c.l.b16 %v231
      %v308 = vunpack.c.l.b16 %v232
      %v309 = vunpack.c.l.b16 %v233
      %v310 = vunpack.c.l.b16 %v234
      %v311 = vpack.c.b16 %v308, %v307
      %v312 = vpack.c.b16 %v310, %v309
      %v316 = vsel %vm257, %v302, 0
      %318 = vmatpush.bf16.msra.mxu0 0
      %319 = vmatpush.bf16.msra.mxu0 0
      %320 = vmatpush.bf16.msra.mxu0 0
      %321 = vmatpush.bf16.msra.mxu0 0
      %322 = vmatpush.bf16.msra.mxu0 0
      %323 = vmatpush.bf16.msra.mxu0 0
      %324 = vmatpush.bf16.msra.mxu0 %v312
      %325 = vmatpush.bf16.msra.mxu0 %v311
      %326 = vmatmul.bf16.gmra.mxu0 %v316
      %v327 = vpop.f32.mrf.mxu0
      %v328 = vadd.f32 0.0, %v327
      %v329 = vpop.f32.mrf.mxu0
      %330 = vdwg.mxu0
      %v331 = vadd.f32 %v299, %v328
      %v332 = vld [vmem:[%s2] sm:$0x1]
      %v334 = vperm.slane %v332, 0
      %v336 = vadd.f32 %v331, %v334
      %v337 = vmul.f32 %v336, %v336
      %v338 = vmul.f32 %v336, %v337
      %v339 = vmul.f32 %v338, 0.044715
      %v340 = vadd.f32 %v336, %v339
      %v341 = vmul.f32 %v340, 0.7978846
      %v342 = vtanh.pop %v341
      %v343 = vadd.f32 %v342, 1.0
      %v344 = vmul.f32 %v343, 0.5
      %v345 = vmul.f32 %v336, %v344
      %v347 = vrot.slane %v345, 7
      %v349 = vadd.f32 %v221, %v347
      %v350 = vld [vmem:[%s3] sm:$0x1]
      %v351 = vld [vmem:[%s4] sm:$0x1]
      %vm352 = vcmask 258049
      %v353 = vsel %vm352, %v349, 0.0
      %354 = vadd.xlane.f32.xlu0 %v353
      %v355 = vpop.xlane.xlu0 %354
      %v356 = vrcp.pop 32.0
      %v357 = vmul.f32 32.0, %v356
      %v358 = vsub.f32 1.0, %v357
      %v359 = vmul.f32 %v356, %v358
      %v360 = vadd.f32 %v356, %v359
      %vm361 = vweird.f32 %v356
      %v362 = vsel %vm361, %v356, %v360
      %v363 = vmul.f32 %v355, %v362
      %v364 = vsub.f32 %v349, %v363
      %v365 = vmul.f32 %v364, %v364
      %v366 = vsel %vm352, %v365, 0.0
      %367 = vadd.xlane.f32.xlu0 %v366
      %v368 = vpop.xlane.xlu0 %367
      %v369 = vmul.f32 %v368, %v362
      %v370 = vadd.f32 %v369, 1e-05
      %v371 = vrsqrt.pop %v370
      %v372 = vmul.f32 %v371, %v370
      %v373 = vmul.f32 %v372, %v371
      %v374 = vmul.f32 0.5, %v373
      %v375 = vsub.f32 1.5, %v374
      %v376 = vmul.f32 %v371, %v375
      %vm377 = vweird.f32 %v370
      %vm378 = vweird.f32 %v371
      %vm379 = vmor %vm377, %vm378
      %v380 = vsel %vm379, %v371, %v376
      %v381 = vmul.f32 %v364, %v380
      %v383 = vperm.slane %v350, 0
      %v385 = vmul.f32 %v381, %v383
      %v387 = vperm.slane %v351, 0
      %v389 = vadd.f32 %v385, %v387
      %390 = vst.msk [vmem:[%s219 - $0x1] sm:$0x1e] %vm352, %v389
      %p391 = scmp.lt.s32.totalorder %s16, 1
      %s392 = scalar_select %p391, %s16, 1
      %s393 = smul.addr %s392, 4
      %s394 = scalar_lea.vmem %s5, %s393
      // Predicated region
      $region41: #{ssl_extractor_forward.19} parent=39 // pred_check
        %p395 = pneg %p144
      $region42: #{ssl_extractor_forward.19} parent=39 // pred_check_branch
        %397 = sbr.rel (%p395) target = $region44
      $region43: #{ssl_extractor_forward.19} parent=39 // pred_region
        _
      $region44: #{ssl_extractor_forward.19} parent=39 // pred_fallthru
        _
    $region40: #{ssl_extractor_forward.19} parent=5 // pred_fallthru
      _
    %p398 = scmp.le.s32.totalorder 2, %s11
    // Predicated region
    $region45: #{ssl_extractor_forward.19} parent=5 // pred_check
      %p399 = pneg %p398
    $region46: #{ssl_extractor_forward.19} parent=5 // pred_check_branch
      %401 = sbr.rel (%p399) target = $region48
    $region47: #{ssl_extractor_forward.19} parent=5 // pred_region
      %s402 = ssub.s32 %s11, 2
      // Predicated region
      $region49: #{ssl_extractor_forward.19} parent=47 // pred_check
        %p403 = pneg %p150
      $region50: #{ssl_extractor_forward.19} parent=47 // pred_check_branch
        %405 = sbr.rel (%p403) target = $region52
      $region51: #{ssl_extractor_forward.19} parent=47 // pred_region
        %p406 = scmp.lt.s32.totalorder %s17, 1
        %s407 = scalar_select %p406, %s17, 1
        %s408 = smul.addr %s407, 4
        %s409 = scalar_lea.vmem %s5, %s408
      $region52: #{ssl_extractor_forward.19} parent=47 // pred_fallthru
        _
    $region48: #{ssl_extractor_forward.19} parent=5 // pred_fallthru
      _
  $region6: #{ssl_extractor_forward.19} parent=0 // loop_footer
    %s15 = sadd.s32 1, %s11
  $region7: #{ssl_extractor_forward.19} parent=0 // loop_footer_branch
    %10 = sbr.rel target = $region3
  $region8: #{ssl_extractor_forward.19} parent=0 // loop_exit
    _

// kernel: ssl_extractor_forward.18
$region0: #{ssl_extractor_forward.18}
  #allocation0 [shape = 'u32[]', space=smem, size = 0x4, offset = 0x4, fixed_abs, tag = 'smem constant byte address 0x4 - core index']
  #allocation1 [shape = 'u32[72,128]{1,0:T(1,128)}', space=vmem, size = 0x9000, scoped, tag = 'internal scratch']
  %s0 = inlined_call_operand.vmem [shape: f32[2,4,32], index: 0, kind: input, shape index: {}]
  %s1 = inlined_call_operand.vmem [shape: f32[1,32], index: 1, kind: input, shape index: {}]
  %s2 = inlined_call_operand.vmem [shape: f32[1,32], index: 2, kind: input, shape index: {}]
  %s3 = inlined_call_operand.vmem [shape: bf16[32,32], index: 3, kind: input, shape index: {}]
  %s4 = inlined_call_operand.vmem [shape: f32[1,32], index: 4, kind: input, shape index: {}]
  %s5 = inlined_call_operand.vmem [shape: f32[2,4,32], index: 5, kind: output, shape index: {}]
  %s6 = sld [smem:[#allocation0]]
  $region53: #{ssl_extractor_forward.18} parent=0
    _
  %s8 = ssub.s32 1, %s6
  %s9 = scalar_select 0, %s8, %s6
  loop: start=0, step=1, limit=4
  $region2: #{ssl_extractor_forward.18} parent=0 // loop_pre_header
    _
  $region3: #{ssl_extractor_forward.18} parent=0 // loop_header
    %s11 = sphi 0, %s15
    %p12 = scmp.ge.s32.totalorder %s11, 4
    %s21 = sphi 0, %s23
    %s24 = sphi 0, %s21
    %s25 = sphi 0, %s24
    %s41 = sphi 0, %s25
    %s45 = sphi 0, %s45
    %s47 = sphi 0, %s45
    %s48 = sphi 0, %s47
    %s62 = sphi 0, %s48
    %s66 = sphi 0, %s66
    %s68 = sphi 0, %s66
    %s69 = sphi 0, %s68
    %s83 = sphi 0, %s69
    %s87 = sphi 0, %s87
    %s89 = sphi 0, %s87
    %s90 = sphi 0, %s89
    %s104 = sphi 0, %s90
    %s108 = sphi 0, %s108
    %s110 = sphi 0, %s108
    %s111 = sphi 0, %s110
    %s125 = sphi 0, %s111
    %s131 = sphi 0, %s133
    %s134 = sphi 0, %s131
    %s135 = sphi 0, %s134
    %s151 = sphi 0, %s135
  $region4: #{ssl_extractor_forward.18} parent=0 // loop_header_branch
    %14 = sbr.rel (%p12) target = $region8
  $region5: #{ssl_extractor_forward.18} parent=0 // loop_body
    %s16 = ssub.s32 %s11, 1
    %s17 = ssub.s32 %s11, 2
    %s18 = sadd.s32 %s11, 1
    %s19 = ssub.s32 %s11, %s18
    %p20 = scmp.eq.s32.totalorder %s19, 0
    %s22 = sadd.s32 %s21, 1
    %s23 = scalar_select %p20, %s21, %s22
    %p26 = pneg %p20
    %p27 = scmp.eq.s32.totalorder %s11, 1
    %p28 = por %p26, %p27
    %p29 = scmp.ne.s32.totalorder %s21, %s24
    %p30 = scmp.eq.s32.totalorder %s11, 0
    %p31 = por %p29, %p30
    %p32 = scmp.ne.s32.totalorder %s21, %s24
    %p33 = scmp.eq.s32.totalorder %s16, 1
    %p34 = por %p32, %p33
    %p35 = scmp.ne.s32.totalorder %s24, %s25
    %p36 = scmp.eq.s32.totalorder %s16, 0
    %p37 = por %p35, %p36
    %p38 = scmp.ne.s32.totalorder %s24, %s25
    %p39 = scmp.eq.s32.totalorder %s17, 1
    %p40 = por %p38, %p39
    %p42 = scmp.ne.s32.totalorder %s25, %s41
    %p43 = scmp.eq.s32.totalorder %s17, 0
    %p44 = por %p42, %p43
    %s46 = sadd.s32 %s45, 1
    %p49 = scmp.eq.s32.totalorder %s11, 1
    %p50 = scmp.ne.s32.totalorder %s45, %s47
    %p51 = scmp.eq.s32.totalorder %s11, 0
    %p52 = por %p50, %p51
    %p53 = scmp.ne.s32.totalorder %s45, %s47
    %p54 = scmp.eq.s32.totalorder %s16, 1
    %p55 = por %p53, %p54
    %p56 = scmp.ne.s32.totalorder %s47, %s48
    %p57 = scmp.eq.s32.totalorder %s16, 0
    %p58 = por %p56, %p57
    %p59 = scmp.ne.s32.totalorder %s47, %s48
    %p60 = scmp.eq.s32.totalorder %s17, 1
    %p61 = por %p59, %p60
    %p63 = scmp.ne.s32.totalorder %s48, %s62
    %p64 = scmp.eq.s32.totalorder %s17, 0
    %p65 = por %p63, %p64
    %s67 = sadd.s32 %s66, 1
    %p70 = scmp.eq.s32.totalorder %s11, 1
    %p71 = scmp.ne.s32.totalorder %s66, %s68
    %p72 = scmp.eq.s32.totalorder %s11, 0
    %p73 = por %p71, %p72
    %p74 = scmp.ne.s32.totalorder %s66, %s68
    %p75 = scmp.eq.s32.totalorder %s16, 1
    %p76 = por %p74, %p75
    %p77 = scmp.ne.s32.totalorder %s68, %s69
    %p78 = scmp.eq.s32.totalorder %s16, 0
    %p79 = por %p77, %p78
    %p80 = scmp.ne.s32.totalorder %s68, %s69
    %p81 = scmp.eq.s32.totalorder %s17, 1
    %p82 = por %p80, %p81
    %p84 = scmp.ne.s32.totalorder %s69, %s83
    %p85 = scmp.eq.s32.totalorder %s17, 0
    %p86 = por %p84, %p85
    %s88 = sadd.s32 %s87, 1
    %p91 = scmp.eq.s32.totalorder %s11, 1
    %p92 = scmp.ne.s32.totalorder %s87, %s89
    %p93 = scmp.eq.s32.totalorder %s11, 0
    %p94 = por %p92, %p93
    %p95 = scmp.ne.s32.totalorder %s87, %s89
    %p96 = scmp.eq.s32.totalorder %s16, 1
    %p97 = por %p95, %p96
    %p98 = scmp.ne.s32.totalorder %s89, %s90
    %p99 = scmp.eq.s32.totalorder %s16, 0
    %p100 = por %p98, %p99
    %p101 = scmp.ne.s32.totalorder %s89, %s90
    %p102 = scmp.eq.s32.totalorder %s17, 1
    %p103 = por %p101, %p102
    %p105 = scmp.ne.s32.totalorder %s90, %s104
    %p106 = scmp.eq.s32.totalorder %s17, 0
    %p107 = por %p105, %p106
    %s109 = sadd.s32 %s108, 1
    %p112 = scmp.eq.s32.totalorder %s11, 1
    %p113 = scmp.ne.s32.totalorder %s108, %s110
    %p114 = scmp.eq.s32.totalorder %s11, 0
    %p115 = por %p113, %p114
    %p116 = scmp.ne.s32.totalorder %s108, %s110
    %p117 = scmp.eq.s32.totalorder %s16, 1
    %p118 = por %p116, %p117
    %p119 = scmp.ne.s32.totalorder %s110, %s111
    %p120 = scmp.eq.s32.totalorder %s16, 0
    %p121 = por %p119, %p120
    %p122 = scmp.ne.s32.totalorder %s110, %s111
    %p123 = scmp.eq.s32.totalorder %s17, 1
    %p124 = por %p122, %p123
    %p126 = scmp.ne.s32.totalorder %s111, %s125
    %p127 = scmp.eq.s32.totalorder %s17, 0
    %p128 = por %p126, %p127
    %s129 = ssub.s32 %s11, %s18
    %p130 = scmp.eq.s32.totalorder %s129, 0
    %s132 = sadd.s32 %s131, 1
    %s133 = scalar_select %p130, %s131, %s132
    %p136 = pneg %p130
    %p137 = scmp.eq.s32.totalorder %s11, 1
    %p138 = por %p136, %p137
    %p139 = scmp.ne.s32.totalorder %s131, %s134
    %p140 = scmp.eq.s32.totalorder %s11, 0
    %p141 = por %p139, %p140
    %p142 = scmp.ne.s32.totalorder %s131, %s134
    %p143 = scmp.eq.s32.totalorder %s16, 1
    %p144 = por %p142, %p143
    %p145 = scmp.ne.s32.totalorder %s134, %s135
    %p146 = scmp.eq.s32.totalorder %s16, 0
    %p147 = por %p145, %p146
    %p148 = scmp.ne.s32.totalorder %s134, %s135
    %p149 = scmp.eq.s32.totalorder %s17, 1
    %p150 = por %p148, %p149
    %p152 = scmp.ne.s32.totalorder %s135, %s151
    %p153 = scmp.eq.s32.totalorder %s17, 0
    %p154 = por %p152, %p153
    %p155 = scmp.le.s32.totalorder 1, %s11
    %p156 = scmp.lt.s32.totalorder %s11, 3
    %p157 = pnand %p155, %p156
    %p158 = pneg %p157
    // Predicated region
    $region9: #{ssl_extractor_forward.18} parent=5 // pred_check
      _
    $region10: #{ssl_extractor_forward.18} parent=5 // pred_check_branch
      %160 = sbr.rel (%p157) target = $region12
    $region11: #{ssl_extractor_forward.18} parent=5 // pred_region
      %s161 = ssub.s32 %s11, 1
      // Predicated region
      $region13: #{ssl_extractor_forward.18} parent=11 // pred_check
        %p162 = pneg %p58
      $region14: #{ssl_extractor_forward.18} parent=11 // pred_check_branch
        %164 = sbr.rel (%p162) target = $region16
      $region15: #{ssl_extractor_forward.18} parent=11 // pred_region
        _
      $region16: #{ssl_extractor_forward.18} parent=11 // pred_fallthru
        _
      // Predicated region
      $region17: #{ssl_extractor_forward.18} parent=11 // pred_check
        %p165 = pneg %p79
      $region18: #{ssl_extractor_forward.18} parent=11 // pred_check_branch
        %167 = sbr.rel (%p165) target = $region20
      $region19: #{ssl_extractor_forward.18} parent=11 // pred_region
        _
      $region20: #{ssl_extractor_forward.18} parent=11 // pred_fallthru
        _
      // Predicated region
      $region21: #{ssl_extractor_forward.18} parent=11 // pred_check
        %p168 = pneg %p100
      $region22: #{ssl_extractor_forward.18} parent=11 // pred_check_branch
        %170 = sbr.rel (%p168) target = $region24
      $region23: #{ssl_extractor_forward.18} parent=11 // pred_region
        _
      $region24: #{ssl_extractor_forward.18} parent=11 // pred_fallthru
        _
      // Predicated region
      $region25: #{ssl_extractor_forward.18} parent=11 // pred_check
        %p171 = pneg %p121
      $region26: #{ssl_extractor_forward.18} parent=11 // pred_check_branch
        %173 = sbr.rel (%p171) target = $region28
      $region27: #{ssl_extractor_forward.18} parent=11 // pred_region
        _
      $region28: #{ssl_extractor_forward.18} parent=11 // pred_fallthru
        _
    $region12: #{ssl_extractor_forward.18} parent=5 // pred_fallthru
      _
    %p174 = scmp.lt.s32.totalorder %s11, 2
    // Predicated region
    $region29: #{ssl_extractor_forward.18} parent=5 // pred_check
      %p175 = pneg %p174
    $region30: #{ssl_extractor_forward.18} parent=5 // pred_check_branch
      %177 = sbr.rel (%p175) target = $region32
    $region31: #{ssl_extractor_forward.18} parent=5 // pred_region
      // Predicated region
      $region33: #{ssl_extractor_forward.18} parent=31 // pred_check
        %p178 = pneg %p31
      $region34: #{ssl_extractor_forward.18} parent=31 // pred_check_branch
        %180 = sbr.rel (%p178) target = $region36
      $region35: #{ssl_extractor_forward.18} parent=31 // pred_region
        %p181 = scmp.lt.s32.totalorder %s11, 1
        %s182 = scalar_select %p181, %s11, 1
        %s183 = smul.addr %s182, 4
        %s184 = scalar_lea.vmem %s0, %s183
      $region36: #{ssl_extractor_forward.18} parent=31 // pred_fallthru
        _
    $region32: #{ssl_extractor_forward.18} parent=5 // pred_fallthru
      _
    %p185 = scmp.le.s32.totalorder 1, %s11
    %p186 = scmp.lt.s32.totalorder %s11, 3
    %p187 = pnand %p185, %p186
    %p188 = pneg %p187
    // Predicated region
    $region37: #{ssl_extractor_forward.18} parent=5 // pred_check
      _
    $region38: #{ssl_extractor_forward.18} parent=5 // pred_check_branch
      %190 = sbr.rel (%p187) target = $region40
    $region39: #{ssl_extractor_forward.18} parent=5 // pred_region
      %s191 = ssub.s32 %s11, 1
      %p192 = scmp.lt.s32.totalorder %s16, 1
      %s193 = scalar_select %p192, %s16, 1
      %s194 = smul.addr %s193, 4
      %s195 = scalar_lea.vmem %s0, %s194
      %p196 = pneg %p37
      %p197 = pneg %p34
      %p198 = pneg %p58
      %p199 = pneg %p55
      %p200 = pneg %p79
      %p201 = pneg %p76
      %p202 = pneg %p100
      %p203 = pneg %p97
      %p204 = pneg %p121
      %p205 = pneg %p118
      %p206 = pneg %p147
      %p207 = pneg %p144
      %p208 = scmp.lt.s32.totalorder %s16, 1
      %s209 = scalar_select %p208, %s16, 1
      %s210 = smul.addr %s209, 4
      %s211 = scalar_lea.vmem %s5, %s210
      %p212 = scmp.lt.s32.totalorder %s16, 1
      %s213 = scalar_select %p212, %s16, 1
      %s214 = smul.addr %s213, 4
      %s215 = scalar_lea.vmem %s0, %s214
      %p216 = scmp.lt.s32.totalorder %s16, 1
      %s217 = scalar_select %p216, %s16, 1
      %s218 = smul.addr %s217, 4
      %s219 = scalar_lea.vmem %s5, %s218
      %v221 = vld [vmem:[%s215] sm:$0xf]
      %v222 = vld [vmem:[%s1] sm:$0x1]
      %v223 = vld [vmem:[%s2] sm:$0x1]
      %vm224 = vcmask 257024
      %v225 = vsel %vm224, %v221, 0.0
      %226 = vadd.xlane.f32.xlu0 %v225
      %v227 = vpop.xlane.xlu0 %226
      %v228 = vrcp.pop 32.0
      %v229 = vmul.f32 32.0, %v228
      %v230 = vsub.f32 1.0, %v229
      %v231 = vmul.f32 %v228, %v230
      %v232 = vadd.f32 %v228, %v231
      %vm233 = vweird.f32 %v228
      %v234 = vsel %vm233, %v228, %v232
      %v235 = vmul.f32 %v227, %v234
      %v236 = vsub.f32 %v221, %v235
      %v237 = vmul.f32 %v236, %v236
      %v238 = vsel %vm224, %v237, 0.0
      %239 = vadd.xlane.f32.xlu0 %v238
      %v240 = vpop.xlane.xlu0 %239
      %v241 = vmul.f32 %v240, %v234
      %v242 = vadd.f32 %v241, 1e-05
      %v243 = vrsqrt.pop %v242
      %v244 = vmul.f32 %v243, %v242
      %v245 = vmul.f32 %v244, %v243
      %v246 = vmul.f32 0.5, %v245
      %v247 = vsub.f32 1.5, %v246
      %v248 = vmul.f32 %v243, %v247
      %vm249 = vweird.f32 %v242
      %vm250 = vweird.f32 %v243
      %vm251 = vmor %vm249, %vm250
      %v252 = vsel %vm251, %v243, %v248
      %v253 = vmul.f32 %v236, %v252
      %v255 = vperm.slane %v222, 0
      %v257 = vmul.f32 %v253, %v255
      %v259 = vperm.slane %v223, 0
      %v261 = vadd.f32 %v257, %v259
      %v262 = vpack.c.bf16 %v261, %v261
      %v263 = vld [vmem:[%s3] sm:$0xf]
      %v264 = vld [vmem:[%s3 + $0x4] sm:$0xf]
      %v265 = vld [vmem:[%s3 + $0x8] sm:$0xf]
      %v266 = vld [vmem:[%s3 + $0xc] sm:$0xf]
      %v267 = vld [vmem:[%s4] sm:$0x1]
      %v269 = vperm.slane %v267, 0
      %v275 = vunpack.c.l.b16 %v263
      %v276 = vunpack.c.l.b16 %v264
      %v277 = vunpack.c.l.b16 %v265
      %v278 = vunpack.c.l.b16 %v266
      %v279 = vpack.c.b16 %v276, %v275
      %v280 = vpack.c.b16 %v278, %v277
      %vm283 = vcmask 261120
      %v285 = vsel %vm283, %v262, 0
      %287 = vmatpush.bf16.msra.mxu0 0
      %288 = vmatpush.bf16.msra.mxu0 0
      %289 = vmatpush.bf16.msra.mxu0 0
      %290 = vmatpush.bf16.msra.mxu0 0
      %291 = vmatpush.bf16.msra.mxu0 0
      %292 = vmatpush.bf16.msra.mxu0 0
      %293 = vmatpush.bf16.msra.mxu0 %v280
      %294 = vmatpush.bf16.msra.mxu0 %v279
      %295 = vmatmul.bf16.gmra.mxu0 %v285
      %v296 = vpop.f32.mrf.mxu0
      %v297 = vadd.f32 %v269, %v296
      %v298 = vpop.f32.mrf.mxu0
      %299 = vdwg.mxu0
      %300 = vst.msk [vmem:[%s219] sm:$0xf] %vm224, %v297
      %p301 = scmp.lt.s32.totalorder %s16, 1
      %s302 = scalar_select %p301, %s16, 1
      %s303 = smul.addr %s302, 4
      %s304 = scalar_lea.vmem %s5, %s303
      // Predicated region
      $region41: #{ssl_extractor_forward.18} parent=39 // pred_check
        %p305 = pneg %p144
      $region42: #{ssl_extractor_forward.18} parent=39 // pred_check_branch
        %307 = sbr.rel (%p305) target = $region44
      $region43: #{ssl_extractor_forward.18} parent=39 // pred_region
        _
      $region44: #{ssl_extractor_forward.18} parent=39 // pred_fallthru
        _
    $region40: #{ssl_extractor_forward.18} parent=5 // pred_fallthru
      _
    %p308 = scmp.le.s32.totalorder 2, %s11
    // Predicated region
    $region45: #{ssl_extractor_forward.18} parent=5 // pred_check
      %p309 = pneg %p308
    $region46: #{ssl_extractor_forward.18} parent=5 // pred_check_branch
      %311 = sbr.rel (%p309) target = $region48
    $region47: #{ssl_extractor_forward.18} parent=5 // pred_region
      %s312 = ssub.s32 %s11, 2
      // Predicated region
      $region49: #{ssl_extractor_forward.18} parent=47 // pred_check
        %p313 = pneg %p150
      $region50: #{ssl_extractor_forward.18} parent=47 // pred_check_branch
        %315 = sbr.rel (%p313) target = $region52
      $region51: #{ssl_extractor_forward.18} parent=47 // pred_region
        %p316 = scmp.lt.s32.totalorder %s17, 1
        %s317 = scalar_select %p316, %s17, 1
        %s318 = smul.addr %s317, 4
        %s319 = scalar_lea.vmem %s5, %s318
      $region52: #{ssl_extractor_forward.18} parent=47 // pred_fallthru
        _
    $region48: #{ssl_extractor_forward.18} parent=5 // pred_fallthru
      _
  $region6: #{ssl_extractor_forward.18} parent=0 // loop_footer
    %s15 = sadd.s32 1, %s11
  $region7: #{ssl_extractor_forward.18} parent=0 // loop_footer_branch
    %10 = sbr.rel target = $region3
  $region8: #{ssl_extractor_forward.18} parent=0 // loop_exit
    _

// kernel: ssl_extractor_forward.20
$region0: #{ssl_extractor_forward.20}
  #allocation0 [shape = 'u32[]', space=smem, size = 0x4, offset = 0x4, fixed_abs, tag = 'smem constant byte address 0x4 - core index']
  #allocation1 [shape = 'u32[72,128]{1,0:T(1,128)}', space=vmem, size = 0x9000, scoped, tag = 'internal scratch']
  %s0 = inlined_call_operand.vmem [shape: f32[2,4,32], index: 0, kind: input, shape index: {}]
  %s1 = inlined_call_operand.vmem [shape: bf16[32,96], index: 1, kind: input, shape index: {}]
  %s2 = inlined_call_operand.vmem [shape: f32[1,96], index: 2, kind: input, shape index: {}]
  %s3 = inlined_call_operand.vmem [shape: bf16[32,32], index: 3, kind: input, shape index: {}]
  %s4 = inlined_call_operand.vmem [shape: f32[1,32], index: 4, kind: input, shape index: {}]
  %s5 = inlined_call_operand.vmem [shape: f32[1,32], index: 5, kind: input, shape index: {}]
  %s6 = inlined_call_operand.vmem [shape: f32[1,32], index: 6, kind: input, shape index: {}]
  %s7 = inlined_call_operand.vmem [shape: bf16[32,64], index: 7, kind: input, shape index: {}]
  %s8 = inlined_call_operand.vmem [shape: f32[1,64], index: 8, kind: input, shape index: {}]
  %s9 = inlined_call_operand.vmem [shape: bf16[64,32], index: 9, kind: input, shape index: {}]
  %s10 = inlined_call_operand.vmem [shape: f32[1,32], index: 10, kind: input, shape index: {}]
  %s11 = inlined_call_operand.vmem [shape: f32[1,32], index: 11, kind: input, shape index: {}]
  %s12 = inlined_call_operand.vmem [shape: f32[1,32], index: 12, kind: input, shape index: {}]
  %s13 = inlined_call_operand.vmem [shape: f32[2,4,32], index: 13, kind: output, shape index: {}]
  %s14 = sld [smem:[#allocation0]]
  $region85: #{ssl_extractor_forward.20} parent=0
    _
  %s16 = ssub.s32 1, %s14
  %s17 = scalar_select 0, %s16, %s14
  loop: start=0, step=1, limit=4
  $region2: #{ssl_extractor_forward.20} parent=0 // loop_pre_header
    _
  $region3: #{ssl_extractor_forward.20} parent=0 // loop_header
    %s19 = sphi 0, %s23
    %p20 = scmp.ge.s32.totalorder %s19, 4
    %s29 = sphi 0, %s31
    %s32 = sphi 0, %s29
    %s33 = sphi 0, %s32
    %s49 = sphi 0, %s33
    %s53 = sphi 0, %s53
    %s55 = sphi 0, %s53
    %s56 = sphi 0, %s55
    %s70 = sphi 0, %s56
    %s74 = sphi 0, %s74
    %s76 = sphi 0, %s74
    %s77 = sphi 0, %s76
    %s91 = sphi 0, %s77
    %s95 = sphi 0, %s95
    %s97 = sphi 0, %s95
    %s98 = sphi 0, %s97
    %s112 = sphi 0, %s98
    %s116 = sphi 0, %s116
    %s118 = sphi 0, %s116
    %s119 = sphi 0, %s118
    %s133 = sphi 0, %s119
    %s137 = sphi 0, %s137
    %s139 = sphi 0, %s137
    %s140 = sphi 0, %s139
    %s154 = sphi 0, %s140
    %s158 = sphi 0, %s158
    %s160 = sphi 0, %s158
    %s161 = sphi 0, %s160
    %s175 = sphi 0, %s161
    %s179 = sphi 0, %s179
    %s181 = sphi 0, %s179
    %s182 = sphi 0, %s181
    %s196 = sphi 0, %s182
    %s200 = sphi 0, %s200
    %s202 = sphi 0, %s200
    %s203 = sphi 0, %s202
    %s217 = sphi 0, %s203
    %s221 = sphi 0, %s221
    %s223 = sphi 0, %s221
    %s224 = sphi 0, %s223
    %s238 = sphi 0, %s224
    %s242 = sphi 0, %s242
    %s244 = sphi 0, %s242
    %s245 = sphi 0, %s244
    %s259 = sphi 0, %s245
    %s263 = sphi 0, %s263
    %s265 = sphi 0, %s263
    %s266 = sphi 0, %s265
    %s280 = sphi 0, %s266
    %s284 = sphi 0, %s284
    %s286 = sphi 0, %s284
    %s287 = sphi 0, %s286
    %s301 = sphi 0, %s287
    %s307 = sphi 0, %s309
    %s310 = sphi 0, %s307
    %s311 = sphi 0, %s310
    %s327 = sphi 0, %s311
  $region4: #{ssl_extractor_forward.20} parent=0 // loop_header_branch
    %22 = sbr.rel (%p20) target = $region8
  $region5: #{ssl_extractor_forward.20} parent=0 // loop_body
    %s24 = ssub.s32 %s19, 1
    %s25 = ssub.s32 %s19, 2
    %s26 = sadd.s32 %s19, 1
    %s27 = ssub.s32 %s19, %s26
    %p28 = scmp.eq.s32.totalorder %s27, 0
    %s30 = sadd.s32 %s29, 1
    %s31 = scalar_select %p28, %s29, %s30
    %p34 = pneg %p28
    %p35 = scmp.eq.s32.totalorder %s19, 1
    %p36 = por %p34, %p35
    %p37 = scmp.ne.s32.totalorder %s29, %s32
    %p38 = scmp.eq.s32.totalorder %s19, 0
    %p39 = por %p37, %p38
    %p40 = scmp.ne.s32.totalorder %s29, %s32
    %p41 = scmp.eq.s32.totalorder %s24, 1
    %p42 = por %p40, %p41
    %p43 = scmp.ne.s32.totalorder %s32, %s33
    %p44 = scmp.eq.s32.totalorder %s24, 0
    %p45 = por %p43, %p44
    %p46 = scmp.ne.s32.totalorder %s32, %s33
    %p47 = scmp.eq.s32.totalorder %s25, 1
    %p48 = por %p46, %p47
    %p50 = scmp.ne.s32.totalorder %s33, %s49
    %p51 = scmp.eq.s32.totalorder %s25, 0
    %p52 = por %p50, %p51
    %s54 = sadd.s32 %s53, 1
    %p57 = scmp.eq.s32.totalorder %s19, 1
    %p58 = scmp.ne.s32.totalorder %s53, %s55
    %p59 = scmp.eq.s32.totalorder %s19, 0
    %p60 = por %p58, %p59
    %p61 = scmp.ne.s32.totalorder %s53, %s55
    %p62 = scmp.eq.s32.totalorder %s24, 1
    %p63 = por %p61, %p62
    %p64 = scmp.ne.s32.totalorder %s55, %s56
    %p65 = scmp.eq.s32.totalorder %s24, 0
    %p66 = por %p64, %p65
    %p67 = scmp.ne.s32.totalorder %s55, %s56
    %p68 = scmp.eq.s32.totalorder %s25, 1
    %p69 = por %p67, %p68
    %p71 = scmp.ne.s32.totalorder %s56, %s70
    %p72 = scmp.eq.s32.totalorder %s25, 0
    %p73 = por %p71, %p72
    %s75 = sadd.s32 %s74, 1
    %p78 = scmp.eq.s32.totalorder %s19, 1
    %p79 = scmp.ne.s32.totalorder %s74, %s76
    %p80 = scmp.eq.s32.totalorder %s19, 0
    %p81 = por %p79, %p80
    %p82 = scmp.ne.s32.totalorder %s74, %s76
    %p83 = scmp.eq.s32.totalorder %s24, 1
    %p84 = por %p82, %p83
    %p85 = scmp.ne.s32.totalorder %s76, %s77
    %p86 = scmp.eq.s32.totalorder %s24, 0
    %p87 = por %p85, %p86
    %p88 = scmp.ne.s32.totalorder %s76, %s77
    %p89 = scmp.eq.s32.totalorder %s25, 1
    %p90 = por %p88, %p89
    %p92 = scmp.ne.s32.totalorder %s77, %s91
    %p93 = scmp.eq.s32.totalorder %s25, 0
    %p94 = por %p92, %p93
    %s96 = sadd.s32 %s95, 1
    %p99 = scmp.eq.s32.totalorder %s19, 1
    %p100 = scmp.ne.s32.totalorder %s95, %s97
    %p101 = scmp.eq.s32.totalorder %s19, 0
    %p102 = por %p100, %p101
    %p103 = scmp.ne.s32.totalorder %s95, %s97
    %p104 = scmp.eq.s32.totalorder %s24, 1
    %p105 = por %p103, %p104
    %p106 = scmp.ne.s32.totalorder %s97, %s98
    %p107 = scmp.eq.s32.totalorder %s24, 0
    %p108 = por %p106, %p107
    %p109 = scmp.ne.s32.totalorder %s97, %s98
    %p110 = scmp.eq.s32.totalorder %s25, 1
    %p111 = por %p109, %p110
    %p113 = scmp.ne.s32.totalorder %s98, %s112
    %p114 = scmp.eq.s32.totalorder %s25, 0
    %p115 = por %p113, %p114
    %s117 = sadd.s32 %s116, 1
    %p120 = scmp.eq.s32.totalorder %s19, 1
    %p121 = scmp.ne.s32.totalorder %s116, %s118
    %p122 = scmp.eq.s32.totalorder %s19, 0
    %p123 = por %p121, %p122
    %p124 = scmp.ne.s32.totalorder %s116, %s118
    %p125 = scmp.eq.s32.totalorder %s24, 1
    %p126 = por %p124, %p125
    %p127 = scmp.ne.s32.totalorder %s118, %s119
    %p128 = scmp.eq.s32.totalorder %s24, 0
    %p129 = por %p127, %p128
    %p130 = scmp.ne.s32.totalorder %s118, %s119
    %p131 = scmp.eq.s32.totalorder %s25, 1
    %p132 = por %p130, %p131
    %p134 = scmp.ne.s32.totalorder %s119, %s133
    %p135 = scmp.eq.s32.totalorder %s25, 0
    %p136 = por %p134, %p135
    %s138 = sadd.s32 %s137, 1
    %p141 = scmp.eq.s32.totalorder %s19, 1
    %p142 = scmp.ne.s32.totalorder %s137, %s139
    %p143 = scmp.eq.s32.totalorder %s19, 0
    %p144 = por %p142, %p143
    %p145 = scmp.ne.s32.totalorder %s137, %s139
    %p146 = scmp.eq.s32.totalorder %s24, 1
    %p147 = por %p145, %p146
    %p148 = scmp.ne.s32.totalorder %s139, %s140
    %p149 = scmp.eq.s32.totalorder %s24, 0
    %p150 = por %p148, %p149
    %p151 = scmp.ne.s32.totalorder %s139, %s140
    %p152 = scmp.eq.s32.totalorder %s25, 1
    %p153 = por %p151, %p152
    %p155 = scmp.ne.s32.totalorder %s140, %s154
    %p156 = scmp.eq.s32.totalorder %s25, 0
    %p157 = por %p155, %p156
    %s159 = sadd.s32 %s158, 1
    %p162 = scmp.eq.s32.totalorder %s19, 1
    %p163 = scmp.ne.s32.totalorder %s158, %s160
    %p164 = scmp.eq.s32.totalorder %s19, 0
    %p165 = por %p163, %p164
    %p166 = scmp.ne.s32.totalorder %s158, %s160
    %p167 = scmp.eq.s32.totalorder %s24, 1
    %p168 = por %p166, %p167
    %p169 = scmp.ne.s32.totalorder %s160, %s161
    %p170 = scmp.eq.s32.totalorder %s24, 0
    %p171 = por %p169, %p170
    %p172 = scmp.ne.s32.totalorder %s160, %s161
    %p173 = scmp.eq.s32.totalorder %s25, 1
    %p174 = por %p172, %p173
    %p176 = scmp.ne.s32.totalorder %s161, %s175
    %p177 = scmp.eq.s32.totalorder %s25, 0
    %p178 = por %p176, %p177
    %s180 = sadd.s32 %s179, 1
    %p183 = scmp.eq.s32.totalorder %s19, 1
    %p184 = scmp.ne.s32.totalorder %s179, %s181
    %p185 = scmp.eq.s32.totalorder %s19, 0
    %p186 = por %p184, %p185
    %p187 = scmp.ne.s32.totalorder %s179, %s181
    %p188 = scmp.eq.s32.totalorder %s24, 1
    %p189 = por %p187, %p188
    %p190 = scmp.ne.s32.totalorder %s181, %s182
    %p191 = scmp.eq.s32.totalorder %s24, 0
    %p192 = por %p190, %p191
    %p193 = scmp.ne.s32.totalorder %s181, %s182
    %p194 = scmp.eq.s32.totalorder %s25, 1
    %p195 = por %p193, %p194
    %p197 = scmp.ne.s32.totalorder %s182, %s196
    %p198 = scmp.eq.s32.totalorder %s25, 0
    %p199 = por %p197, %p198
    %s201 = sadd.s32 %s200, 1
    %p204 = scmp.eq.s32.totalorder %s19, 1
    %p205 = scmp.ne.s32.totalorder %s200, %s202
    %p206 = scmp.eq.s32.totalorder %s19, 0
    %p207 = por %p205, %p206
    %p208 = scmp.ne.s32.totalorder %s200, %s202
    %p209 = scmp.eq.s32.totalorder %s24, 1
    %p210 = por %p208, %p209
    %p211 = scmp.ne.s32.totalorder %s202, %s203
    %p212 = scmp.eq.s32.totalorder %s24, 0
    %p213 = por %p211, %p212
    %p214 = scmp.ne.s32.totalorder %s202, %s203
    %p215 = scmp.eq.s32.totalorder %s25, 1
    %p216 = por %p214, %p215
    %p218 = scmp.ne.s32.totalorder %s203, %s217
    %p219 = scmp.eq.s32.totalorder %s25, 0
    %p220 = por %p218, %p219
    %s222 = sadd.s32 %s221, 1
    %p225 = scmp.eq.s32.totalorder %s19, 1
    %p226 = scmp.ne.s32.totalorder %s221, %s223
    %p227 = scmp.eq.s32.totalorder %s19, 0
    %p228 = por %p226, %p227
    %p229 = scmp.ne.s32.totalorder %s221, %s223
    %p230 = scmp.eq.s32.totalorder %s24, 1
    %p231 = por %p229, %p230
    %p232 = scmp.ne.s32.totalorder %s223, %s224
    %p233 = scmp.eq.s32.totalorder %s24, 0
    %p234 = por %p232, %p233
    %p235 = scmp.ne.s32.totalorder %s223, %s224
    %p236 = scmp.eq.s32.totalorder %s25, 1
    %p237 = por %p235, %p236
    %p239 = scmp.ne.s32.totalorder %s224, %s238
    %p240 = scmp.eq.s32.totalorder %s25, 0
    %p241 = por %p239, %p240
    %s243 = sadd.s32 %s242, 1
    %p246 = scmp.eq.s32.totalorder %s19, 1
    %p247 = scmp.ne.s32.totalorder %s242, %s244
    %p248 = scmp.eq.s32.totalorder %s19, 0
    %p249 = por %p247, %p248
    %p250 = scmp.ne.s32.totalorder %s242, %s244
    %p251 = scmp.eq.s32.totalorder %s24, 1
    %p252 = por %p250, %p251
    %p253 = scmp.ne.s32.totalorder %s244, %s245
    %p254 = scmp.eq.s32.totalorder %s24, 0
    %p255 = por %p253, %p254
    %p256 = scmp.ne.s32.totalorder %s244, %s245
    %p257 = scmp.eq.s32.totalorder %s25, 1
    %p258 = por %p256, %p257
    %p260 = scmp.ne.s32.totalorder %s245, %s259
    %p261 = scmp.eq.s32.totalorder %s25, 0
    %p262 = por %p260, %p261
    %s264 = sadd.s32 %s263, 1
    %p267 = scmp.eq.s32.totalorder %s19, 1
    %p268 = scmp.ne.s32.totalorder %s263, %s265
    %p269 = scmp.eq.s32.totalorder %s19, 0
    %p270 = por %p268, %p269
    %p271 = scmp.ne.s32.totalorder %s263, %s265
    %p272 = scmp.eq.s32.totalorder %s24, 1
    %p273 = por %p271, %p272
    %p274 = scmp.ne.s32.totalorder %s265, %s266
    %p275 = scmp.eq.s32.totalorder %s24, 0
    %p276 = por %p274, %p275
    %p277 = scmp.ne.s32.totalorder %s265, %s266
    %p278 = scmp.eq.s32.totalorder %s25, 1
    %p279 = por %p277, %p278
    %p281 = scmp.ne.s32.totalorder %s266, %s280
    %p282 = scmp.eq.s32.totalorder %s25, 0
    %p283 = por %p281, %p282
    %s285 = sadd.s32 %s284, 1
    %p288 = scmp.eq.s32.totalorder %s19, 1
    %p289 = scmp.ne.s32.totalorder %s284, %s286
    %p290 = scmp.eq.s32.totalorder %s19, 0
    %p291 = por %p289, %p290
    %p292 = scmp.ne.s32.totalorder %s284, %s286
    %p293 = scmp.eq.s32.totalorder %s24, 1
    %p294 = por %p292, %p293
    %p295 = scmp.ne.s32.totalorder %s286, %s287
    %p296 = scmp.eq.s32.totalorder %s24, 0
    %p297 = por %p295, %p296
    %p298 = scmp.ne.s32.totalorder %s286, %s287
    %p299 = scmp.eq.s32.totalorder %s25, 1
    %p300 = por %p298, %p299
    %p302 = scmp.ne.s32.totalorder %s287, %s301
    %p303 = scmp.eq.s32.totalorder %s25, 0
    %p304 = por %p302, %p303
    %s305 = ssub.s32 %s19, %s26
    %p306 = scmp.eq.s32.totalorder %s305, 0
    %s308 = sadd.s32 %s307, 1
    %s309 = scalar_select %p306, %s307, %s308
    %p312 = pneg %p306
    %p313 = scmp.eq.s32.totalorder %s19, 1
    %p314 = por %p312, %p313
    %p315 = scmp.ne.s32.totalorder %s307, %s310
    %p316 = scmp.eq.s32.totalorder %s19, 0
    %p317 = por %p315, %p316
    %p318 = scmp.ne.s32.totalorder %s307, %s310
    %p319 = scmp.eq.s32.totalorder %s24, 1
    %p320 = por %p318, %p319
    %p321 = scmp.ne.s32.totalorder %s310, %s311
    %p322 = scmp.eq.s32.totalorder %s24, 0
    %p323 = por %p321, %p322
    %p324 = scmp.ne.s32.totalorder %s310, %s311
    %p325 = scmp.eq.s32.totalorder %s25, 1
    %p326 = por %p324, %p325
    %p328 = scmp.ne.s32.totalorder %s311, %s327
    %p329 = scmp.eq.s32.totalorder %s25, 0
    %p330 = por %p328, %p329
    %p331 = scmp.le.s32.totalorder 1, %s19
    %p332 = scmp.lt.s32.totalorder %s19, 3
    %p333 = pnand %p331, %p332
    %p334 = pneg %p333
    // Predicated region
    $region9: #{ssl_extractor_forward.20} parent=5 // pred_check
      _
    $region10: #{ssl_extractor_forward.20} parent=5 // pred_check_branch
      %336 = sbr.rel (%p333) target = $region12
    $region11: #{ssl_extractor_forward.20} parent=5 // pred_region
      %s337 = ssub.s32 %s19, 1
      // Predicated region
      $region13: #{ssl_extractor_forward.20} parent=11 // pred_check
        %p338 = pneg %p66
      $region14: #{ssl_extractor_forward.20} parent=11 // pred_check_branch
        %340 = sbr.rel (%p338) target = $region16
      $region15: #{ssl_extractor_forward.20} parent=11 // pred_region
        _
      $region16: #{ssl_extractor_forward.20} parent=11 // pred_fallthru
        _
      // Predicated region
      $region17: #{ssl_extractor_forward.20} parent=11 // pred_check
        %p341 = pneg %p87
      $region18: #{ssl_extractor_forward.20} parent=11 // pred_check_branch
        %343 = sbr.rel (%p341) target = $region20
      $region19: #{ssl_extractor_forward.20} parent=11 // pred_region
        _
      $region20: #{ssl_extractor_forward.20} parent=11 // pred_fallthru
        _
      // Predicated region
      $region21: #{ssl_extractor_forward.20} parent=11 // pred_check
        %p344 = pneg %p108
      $region22: #{ssl_extractor_forward.20} parent=11 // pred_check_branch
        %346 = sbr.rel (%p344) target = $region24
      $region23: #{ssl_extractor_forward.20} parent=11 // pred_region
        _
      $region24: #{ssl_extractor_forward.20} parent=11 // pred_fallthru
        _
      // Predicated region
      $region25: #{ssl_extractor_forward.20} parent=11 // pred_check
        %p347 = pneg %p129
      $region26: #{ssl_extractor_forward.20} parent=11 // pred_check_branch
        %349 = sbr.rel (%p347) target = $region28
      $region27: #{ssl_extractor_forward.20} parent=11 // pred_region
        _
      $region28: #{ssl_extractor_forward.20} parent=11 // pred_fallthru
        _
      // Predicated region
      $region29: #{ssl_extractor_forward.20} parent=11 // pred_check
        %p350 = pneg %p150
      $region30: #{ssl_extractor_forward.20} parent=11 // pred_check_branch
        %352 = sbr.rel (%p350) target = $region32
      $region31: #{ssl_extractor_forward.20} parent=11 // pred_region
        _
      $region32: #{ssl_extractor_forward.20} parent=11 // pred_fallthru
        _
      // Predicated region
      $region33: #{ssl_extractor_forward.20} parent=11 // pred_check
        %p353 = pneg %p171
      $region34: #{ssl_extractor_forward.20} parent=11 // pred_check_branch
        %355 = sbr.rel (%p353) target = $region36
      $region35: #{ssl_extractor_forward.20} parent=11 // pred_region
        _
      $region36: #{ssl_extractor_forward.20} parent=11 // pred_fallthru
        _
      // Predicated region
      $region37: #{ssl_extractor_forward.20} parent=11 // pred_check
        %p356 = pneg %p192
      $region38: #{ssl_extractor_forward.20} parent=11 // pred_check_branch
        %358 = sbr.rel (%p356) target = $region40
      $region39: #{ssl_extractor_forward.20} parent=11 // pred_region
        _
      $region40: #{ssl_extractor_forward.20} parent=11 // pred_fallthru
        _
      // Predicated region
      $region41: #{ssl_extractor_forward.20} parent=11 // pred_check
        %p359 = pneg %p213
      $region42: #{ssl_extractor_forward.20} parent=11 // pred_check_branch
        %361 = sbr.rel (%p359) target = $region44
      $region43: #{ssl_extractor_forward.20} parent=11 // pred_region
        _
      $region44: #{ssl_extractor_forward.20} parent=11 // pred_fallthru
        _
      // Predicated region
      $region45: #{ssl_extractor_forward.20} parent=11 // pred_check
        %p362 = pneg %p234
      $region46: #{ssl_extractor_forward.20} parent=11 // pred_check_branch
        %364 = sbr.rel (%p362) target = $region48
      $region47: #{ssl_extractor_forward.20} parent=11 // pred_region
        _
      $region48: #{ssl_extractor_forward.20} parent=11 // pred_fallthru
        _
      // Predicated region
      $region49: #{ssl_extractor_forward.20} parent=11 // pred_check
        %p365 = pneg %p255
      $region50: #{ssl_extractor_forward.20} parent=11 // pred_check_branch
        %367 = sbr.rel (%p365) target = $region52
      $region51: #{ssl_extractor_forward.20} parent=11 // pred_region
        _
      $region52: #{ssl_extractor_forward.20} parent=11 // pred_fallthru
        _
      // Predicated region
      $region53: #{ssl_extractor_forward.20} parent=11 // pred_check
        %p368 = pneg %p276
      $region54: #{ssl_extractor_forward.20} parent=11 // pred_check_branch
        %370 = sbr.rel (%p368) target = $region56
      $region55: #{ssl_extractor_forward.20} parent=11 // pred_region
        _
      $region56: #{ssl_extractor_forward.20} parent=11 // pred_fallthru
        _
      // Predicated region
      $region57: #{ssl_extractor_forward.20} parent=11 // pred_check
        %p371 = pneg %p297
      $region58: #{ssl_extractor_forward.20} parent=11 // pred_check_branch
        %373 = sbr.rel (%p371) target = $region60
      $region59: #{ssl_extractor_forward.20} parent=11 // pred_region
        _
      $region60: #{ssl_extractor_forward.20} parent=11 // pred_fallthru
        _
    $region12: #{ssl_extractor_forward.20} parent=5 // pred_fallthru
      _
    %p374 = scmp.lt.s32.totalorder %s19, 2
    // Predicated region
    $region61: #{ssl_extractor_forward.20} parent=5 // pred_check
      %p375 = pneg %p374
    $region62: #{ssl_extractor_forward.20} parent=5 // pred_check_branch
      %377 = sbr.rel (%p375) target = $region64
    $region63: #{ssl_extractor_forward.20} parent=5 // pred_region
      // Predicated region
      $region65: #{ssl_extractor_forward.20} parent=63 // pred_check
        %p378 = pneg %p39
      $region66: #{ssl_extractor_forward.20} parent=63 // pred_check_branch
        %380 = sbr.rel (%p378) target = $region68
      $region67: #{ssl_extractor_forward.20} parent=63 // pred_region
        %p381 = scmp.lt.s32.totalorder %s19, 1
        %s382 = scalar_select %p381, %s19, 1
        %s383 = smul.addr %s382, 4
        %s384 = scalar_lea.vmem %s0, %s383
      $region68: #{ssl_extractor_forward.20} parent=63 // pred_fallthru
        _
    $region64: #{ssl_extractor_forward.20} parent=5 // pred_fallthru
      _
    %p385 = scmp.le.s32.totalorder 1, %s19
    %p386 = scmp.lt.s32.totalorder %s19, 3
    %p387 = pnand %p385, %p386
    %p388 = pneg %p387
    // Predicated region
    $region69: #{ssl_extractor_forward.20} parent=5 // pred_check
      _
    $region70: #{ssl_extractor_forward.20} parent=5 // pred_check_branch
      %390 = sbr.rel (%p387) target = $region72
    $region71: #{ssl_extractor_forward.20} parent=5 // pred_region
      %s391 = ssub.s32 %s19, 1
      %p392 = scmp.lt.s32.totalorder %s24, 1
      %s393 = scalar_select %p392, %s24, 1
      %s394 = smul.addr %s393, 4
      %s395 = scalar_lea.vmem %s0, %s394
      %p396 = pneg %p45
      %p397 = pneg %p42
      %p398 = pneg %p66
      %p399 = pneg %p63
      %p400 = pneg %p87
      %p401 = pneg %p84
      %p402 = pneg %p108
      %p403 = pneg %p105
      %p404 = pneg %p129
      %p405 = pneg %p126
      %p406 = pneg %p150
      %p407 = pneg %p147
      %p408 = pneg %p171
      %p409 = pneg %p168
      %p410 = pneg %p192
      %p411 = pneg %p189
      %p412 = pneg %p213
      %p413 = pneg %p210
      %p414 = pneg %p234
      %p415 = pneg %p231
      %p416 = pneg %p255
      %p417 = pneg %p252
      %p418 = pneg %p276
      %p419 = pneg %p273
      %p420 = pneg %p297
      %p421 = pneg %p294
      %p422 = pneg %p323
      %p423 = pneg %p320
      %p424 = scmp.lt.s32.totalorder %s24, 1
      %s425 = scalar_select %p424, %s24, 1
      %s426 = smul.addr %s425, 4
      %s427 = scalar_lea.vmem %s13, %s426
      %p428 = scmp.lt.s32.totalorder %s24, 1
      %s429 = scalar_select %p428, %s24, 1
      %s430 = smul.addr %s429, 4
      %s431 = scalar_lea.vmem %s0, %s430
      %p432 = scmp.lt.s32.totalorder %s24, 1
      %s433 = scalar_select %p432, %s24, 1
      %s434 = smul.addr %s433, 4
      %s435 = scalar_lea.vmem %s13, %s434
      %v437 = vld [vmem:[%s431] sm:$0xf]
      %v438 = vpack.c.bf16 %v437, %v437
      %v439 = vld [vmem:[%s1] sm:$0xf]
      %v440 = vld [vmem:[%s1 + $0x4] sm:$0xf]
      %v441 = vld [vmem:[%s1 + $0x8] sm:$0xf]
      %v442 = vld [vmem:[%s1 + $0xc] sm:$0xf]
      %v443 = vld [vmem:[%s2] sm:$0x1]
      %v445 = vperm.slane %v443, 0
      %v451 = vunpack.c.l.b16 %v439
      %v452 = vunpack.c.l.b16 %v440
      %v453 = vunpack.c.l.b16 %v441
      %v454 = vunpack.c.l.b16 %v442
      %v455 = vpack.c.b16 %v452, %v451
      %v456 = vpack.c.b16 %v454, %v453
      %vm459 = vcmask 261120
      %v461 = vsel %vm459, %v438, 0
      %463 = vmatpush.bf16.msra.mxu0 0
      %464 = vmatpush.bf16.msra.mxu0 0
      %465 = vmatpush.bf16.msra.mxu0 0
      %466 = vmatpush.bf16.msra.mxu0 0
      %467 = vmatpush.bf16.msra.mxu0 0
      %468 = vmatpush.bf16.msra.mxu0 0
      %469 = vmatpush.bf16.msra.mxu0 %v456
      %470 = vmatpush.bf16.msra.mxu0 %v455
      %471 = vmatmul.bf16.gmra.mxu0 %v461
      %v472 = vpop.f32.mrf.mxu0
      %v473 = vadd.f32 %v445, %v472
      %v474 = vpop.f32.mrf.mxu0
      %475 = vdwg.mxu0
      %v476 = vmul.f32 %v473, 0.35355338
      %478 = vrot.lane.b32.xlu0 %v473, 96
      %v479 = vpop.permute.xlu0 %478
      %vm480 = vcmask 64512
      %v482 = vsel %vm480, %v476, 0
      %v484 = vsel %vm480, %v479, 0
      %486 = vmatpush.xpose.msra.mxu0 0.0
      %487 = vmatpush.xpose.msra.mxu0 0.0
      %488 = vmatpush.xpose.msra.mxu0 0.0
      %489 = vmatpush.xpose.msra.mxu0 0.0
      %490 = vmatpush.xpose.msra.mxu0 0.0
      %491 = vmatpush.xpose.msra.mxu0 0.0
      %492 = vmatpush.xpose.msra.mxu0 0.0
      %493 = vmatpush.xpose.msra.mxu0 0.0
      %494 = vmatpush.xpose.msra.mxu0 0.0
      %495 = vmatpush.xpose.msra.mxu0 0.0
      %496 = vmatpush.xpose.msra.mxu0 0.0
      %497 = vmatpush.xpose.msra.mxu0 0.0
      %498 = vmatpush.xpose.msra.mxu0 0.0
      %499 = vmatpush.xpose.msra.mxu0 0.0
      %500 = vmatpush.xpose.msra.mxu0 0.0
      %501 = vmatpush.xpose.msra.mxu0 %v484
      %502 = vmatmul.f32.gmra.mxu0 %v482
      %v503 = vpop.f32.mrf.mxu0
      %v504 = vadd.f32 0.0, %v503
      %505 = vdwg.mxu0
      %vm506 = vcmask 27648
      %v507 = vsel %vm506, %v504, -inf
      %508 = vmax.xlane.f32.xlu0 %v507
      %v509 = vpop.xlane.xlu0 %508
      %v510 = vsub.f32 %v504, %v509
      %v511 = vmul.f32 %v510, 1.442695
      %v512 = vpow.pop %v511
      %v513 = vsel %vm506, %v512, 0.0
      %514 = vadd.xlane.f32.xlu0 %v513
      %v515 = vpop.xlane.xlu0 %514
      %v516 = vrcp.pop %v515
      %v517 = vmul.f32 %v512, %v516
      %518 = vrot.lane.b32.xlu0 %v473, 64
      %v519 = vpop.permute.xlu0 %518
      %vm520 = vcmask 31744
      %v522 = vsel %vm520, %v517, 0
      %vm524 = vcmask 1043456
      %v525 = vsel %vm524, %v519, 0
      %527 = vmatpush.msra.mxu0 0.0
      %528 = vmatpush.msra.mxu0 0.0
      %529 = vmatpush.msra.mxu0 0.0
      %530 = vmatpush.msra.mxu0 0.0
      %531 = vmatpush.msra.mxu0 0.0
      %532 = vmatpush.msra.mxu0 0.0
      %533 = vmatpush.msra.mxu0 0.0
      %534 = vmatpush.msra.mxu0 0.0
      %535 = vmatpush.msra.mxu0 0.0
      %536 = vmatpush.msra.mxu0 0.0
      %537 = vmatpush.msra.mxu0 0.0
      %538 = vmatpush.msra.mxu0 0.0
      %539 = vmatpush.msra.mxu0 0.0
      %540 = vmatpush.msra.mxu0 0.0
      %541 = vmatpush.msra.mxu0 0.0
      %542 = vmatpush.msra.mxu0 %v525
      %543 = vmatmul.f32.gmra.mxu0 %v522
      %v544 = vpop.f32.mrf.mxu0
      %v545 = vadd.f32 0.0, %v544
      %546 = vdwg.mxu0
      %547 = vrot.lane.b32.xlu0 %v476, 120
      %v548 = vpop.permute.xlu0 %547
      %549 = vrot.lane.b32.xlu0 %v473, 88
      %v550 = vpop.permute.xlu0 %549
      %v551 = vsel %vm480, %v548, 0
      %v553 = vsel %vm480, %v550, 0
      %555 = vmatpush.xpose.msra.mxu0 0.0
      %556 = vmatpush.xpose.msra.mxu0 0.0
      %557 = vmatpush.xpose.msra.mxu0 0.0
      %558 = vmatpush.xpose.msra.mxu0 0.0
      %559 = vmatpush.xpose.msra.mxu0 0.0
      %560 = vmatpush.xpose.msra.mxu0 0.0
      %561 = vmatpush.xpose.msra.mxu0 0.0
      %562 = vmatpush.xpose.msra.mxu0 0.0
      %563 = vmatpush.xpose.msra.mxu0 0.0
      %564 = vmatpush.xpose.msra.mxu0 0.0
      %565 = vmatpush.xpose.msra.mxu0 0.0
      %566 = vmatpush.xpose.msra.mxu0 0.0
      %567 = vmatpush.xpose.msra.mxu0 0.0
      %568 = vmatpush.xpose.msra.mxu0 0.0
      %569 = vmatpush.xpose.msra.mxu0 0.0
      %570 = vmatpush.xpose.msra.mxu0 %v553
      %571 = vmatmul.f32.gmra.mxu0 %v551
      %v572 = vpop.f32.mrf.mxu0
      %v573 = vadd.f32 0.0, %v572
      %574 = vdwg.mxu0
      %v575 = vsel %vm506, %v573, -inf
      %576 = vmax.xlane.f32.xlu0 %v575
      %v577 = vpop.xlane.xlu0 %576
      %v578 = vsub.f32 %v573, %v577
      %v579 = vmul.f32 %v578, 1.442695
      %v580 = vpow.pop %v579
      %v581 = vsel %vm506, %v580, 0.0
      %582 = vadd.xlane.f32.xlu0 %v581
      %v583 = vpop.xlane.xlu0 %582
      %v584 = vrcp.pop %v583
      %v585 = vmul.f32 %v580, %v584
      %586 = vrot.lane.b32.xlu0 %v473, 56
      %v587 = vpop.permute.xlu0 %586
      %v589 = vsel %vm520, %v585, 0
      %v591 = vsel %vm524, %v587, 0
      %593 = vmatpush.msra.mxu0 0.0
      %594 = vmatpush.msra.mxu0 0.0
      %595 = vmatpush.msra.mxu0 0.0
      %596 = vmatpush.msra.mxu0 0.0
      %597 = vmatpush.msra.mxu0 0.0
      %598 = vmatpush.msra.mxu0 0.0
      %599 = vmatpush.msra.mxu0 0.0
      %600 = vmatpush.msra.mxu0 0.0
      %601 = vmatpush.msra.mxu0 0.0
      %602 = vmatpush.msra.mxu0 0.0
      %603 = vmatpush.msra.mxu0 0.0
      %604 = vmatpush.msra.mxu0 0.0
      %605 = vmatpush.msra.mxu0 0.0
      %606 = vmatpush.msra.mxu0 0.0
      %607 = vmatpush.msra.mxu0 0.0
      %608 = vmatpush.msra.mxu0 %v591
      %609 = vmatmul.f32.gmra.mxu0 %v589
      %v610 = vpop.f32.mrf.mxu0
      %v611 = vadd.f32 0.0, %v610
      %612 = vdwg.mxu0
      %613 = vrot.lane.b32.xlu0 %v476, 112
      %v614 = vpop.permute.xlu0 %613
      %615 = vrot.lane.b32.xlu0 %v473, 80
      %v616 = vpop.permute.xlu0 %615
      %v617 = vsel %vm480, %v614, 0
      %v619 = vsel %vm480, %v616, 0
      %621 = vmatpush.xpose.msra.mxu0 0.0
      %622 = vmatpush.xpose.msra.mxu0 0.0
      %623 = vmatpush.xpose.msra.mxu0 0.0
      %624 = vmatpush.xpose.msra.mxu0 0.0
      %625 = vmatpush.xpose.msra.mxu0 0.0
      %626 = vmatpush.xpose.msra.mxu0 0.0
      %627 = vmatpush.xpose.msra.mxu0 0.0
      %628 = vmatpush.xpose.msra.mxu0 0.0
      %629 = vmatpush.xpose.msra.mxu0 0.0
      %630 = vmatpush.xpose.msra.mxu0 0.0
      %631 = vmatpush.xpose.msra.mxu0 0.0
      %632 = vmatpush.xpose.msra.mxu0 0.0
      %633 = vmatpush.xpose.msra.mxu0 0.0
      %634 = vmatpush.xpose.msra.mxu0 0.0
      %635 = vmatpush.xpose.msra.mxu0 0.0
      %636 = vmatpush.xpose.msra.mxu0 %v619
      %637 = vmatmul.f32.gmra.mxu0 %v617
      %v638 = vpop.f32.mrf.mxu0
      %v639 = vadd.f32 0.0, %v638
      %640 = vdwg.mxu0
      %v641 = vsel %vm506, %v639, -inf
      %642 = vmax.xlane.f32.xlu0 %v641
      %v643 = vpop.xlane.xlu0 %642
      %v644 = vsub.f32 %v639, %v643
      %v645 = vmul.f32 %v644, 1.442695
      %v646 = vpow.pop %v645
      %v647 = vsel %vm506, %v646, 0.0
      %648 = vadd.xlane.f32.xlu0 %v647
      %v649 = vpop.xlane.xlu0 %648
      %v650 = vrcp.pop %v649
      %v651 = vmul.f32 %v646, %v650
      %652 = vrot.lane.b32.xlu0 %v473, 48
      %v653 = vpop.permute.xlu0 %652
      %v655 = vsel %vm520, %v651, 0
      %v657 = vsel %vm524, %v653, 0
      %659 = vmatpush.msra.mxu0 0.0
      %660 = vmatpush.msra.mxu0 0.0
      %661 = vmatpush.msra.mxu0 0.0
      %662 = vmatpush.msra.mxu0 0.0
      %663 = vmatpush.msra.mxu0 0.0
      %664 = vmatpush.msra.mxu0 0.0
      %665 = vmatpush.msra.mxu0 0.0
      %666 = vmatpush.msra.mxu0 0.0
      %667 = vmatpush.msra.mxu0 0.0
      %668 = vmatpush.msra.mxu0 0.0
      %669 = vmatpush.msra.mxu0 0.0
      %670 = vmatpush.msra.mxu0 0.0
      %671 = vmatpush.msra.mxu0 0.0
      %672 = vmatpush.msra.mxu0 0.0
      %673 = vmatpush.msra.mxu0 0.0
      %674 = vmatpush.msra.mxu0 %v657
      %675 = vmatmul.f32.gmra.mxu0 %v655
      %v676 = vpop.f32.mrf.mxu0
      %v677 = vadd.f32 0.0, %v676
      %678 = vdwg.mxu0
      %679 = vrot.lane.b32.xlu0 %v476, 104
      %v680 = vpop.permute.xlu0 %679
      %681 = vrot.lane.b32.xlu0 %v473, 72
      %v682 = vpop.permute.xlu0 %681
      %v683 = vsel %vm480, %v680, 0
      %v685 = vsel %vm480, %v682, 0
      %687 = vmatpush.xpose.msra.mxu0 0.0
      %688 = vmatpush.xpose.msra.mxu0 0.0
      %689 = vmatpush.xpose.msra.mxu0 0.0
      %690 = vmatpush.xpose.msra.mxu0 0.0
      %691 = vmatpush.xpose.msra.mxu0 0.0
      %692 = vmatpush.xpose.msra.mxu0 0.0
      %693 = vmatpush.xpose.msra.mxu0 0.0
      %694 = vmatpush.xpose.msra.mxu0 0.0
      %695 = vmatpush.xpose.msra.mxu0 0.0
      %696 = vmatpush.xpose.msra.mxu0 0.0
      %697 = vmatpush.xpose.msra.mxu0 0.0
      %698 = vmatpush.xpose.msra.mxu0 0.0
      %699 = vmatpush.xpose.msra.mxu0 0.0
      %700 = vmatpush.xpose.msra.mxu0 0.0
      %701 = vmatpush.xpose.msra.mxu0 0.0
      %702 = vmatpush.xpose.msra.mxu0 %v685
      %703 = vmatmul.f32.gmra.mxu0 %v683
      %v704 = vpop.f32.mrf.mxu0
      %v705 = vadd.f32 0.0, %v704
      %706 = vdwg.mxu0
      %v707 = vsel %vm506, %v705, -inf
      %708 = vmax.xlane.f32.xlu0 %v707
      %v709 = vpop.xlane.xlu0 %708
      %v710 = vsub.f32 %v705, %v709
      %v711 = vmul.f32 %v710, 1.442695
      %v712 = vpow.pop %v711
      %v713 = vsel %vm506, %v712, 0.0
      %714 = vadd.xlane.f32.xlu0 %v713
      %v715 = vpop.xlane.xlu0 %714
      %v716 = vrcp.pop %v715
      %v717 = vmul.f32 %v712, %v716
      %718 = vrot.lane.b32.xlu0 %v473, 40
      %v719 = vpop.permute.xlu0 %718
      %v721 = vsel %vm520, %v717, 0
      %v723 = vsel %vm524, %v719, 0
      %725 = vmatpush.msra.mxu0 0.0
      %726 = vmatpush.msra.mxu0 0.0
      %727 = vmatpush.msra.mxu0 0.0
      %728 = vmatpush.msra.mxu0 0.0
      %729 = vmatpush.msra.mxu0 0.0
      %730 = vmatpush.msra.mxu0 0.0
      %731 = vmatpush.msra.mxu0 0.0
      %732 = vmatpush.msra.mxu0 0.0
      %733 = vmatpush.msra.mxu0 0.0
      %734 = vmatpush.msra.mxu0 0.0
      %735 = vmatpush.msra.mxu0 0.0
      %736 = vmatpush.msra.mxu0 0.0
      %737 = vmatpush.msra.mxu0 0.0
      %738 = vmatpush.msra.mxu0 0.0
      %739 = vmatpush.msra.mxu0 0.0
      %740 = vmatpush.msra.mxu0 %v723
      %741 = vmatmul.f32.gmra.mxu0 %v721
      %v742 = vpop.f32.mrf.mxu0
      %v743 = vadd.f32 0.0, %v742
      %744 = vdwg.mxu0
      %746 = vrot.lane.b32.xlu0 %v611, 8
      %v747 = vpop.permute.xlu0 %746
      %750 = vrot.lane.b32.xlu0 %v677, 16
      %v751 = vpop.permute.xlu0 %750
      %754 = vrot.lane.b32.xlu0 %v743, 24
      %v755 = vpop.permute.xlu0 %754
      %v757 = vsel %vm480, %v545, %v747
      %vm758 = vcmask 130048
      %v759 = vsel %vm758, %v757, %v751
      %vm760 = vcmask 195584
      %v761 = vsel %vm760, %v759, %v755
      %v762 = vpack.c.bf16 %v761, %v761
      %v763 = vld [vmem:[%s3] sm:$0xf]
      %v764 = vld [vmem:[%s3 + $0x4] sm:$0xf]
      %v765 = vld [vmem:[%s3 + $0x8] sm:$0xf]
      %v766 = vld [vmem:[%s3 + $0xc] sm:$0xf]
      %v767 = vld [vmem:[%s4] sm:$0x1]
      %v769 = vperm.slane %v767, 0
      %v775 = vunpack.c.l.b16 %v763
      %v776 = vunpack.c.l.b16 %v764
      %v777 = vunpack.c.l.b16 %v765
      %v778 = vunpack.c.l.b16 %v766
      %v779 = vpack.c.b16 %v776, %v775
      %v780 = vpack.c.b16 %v778, %v777
      %v784 = vsel %vm459, %v762, 0
      %786 = vmatpush.bf16.msra.mxu0 0
      %787 = vmatpush.bf16.msra.mxu0 0
      %788 = vmatpush.bf16.msra.mxu0 0
      %789 = vmatpush.bf16.msra.mxu0 0
      %790 = vmatpush.bf16.msra.mxu0 0
      %791 = vmatpush.bf16.msra.mxu0 0
      %792 = vmatpush.bf16.msra.mxu0 %v780
      %793 = vmatpush.bf16.msra.mxu0 %v779
      %794 = vmatmul.bf16.gmra.mxu0 %v784
      %v795 = vpop.f32.mrf.mxu0
      %v796 = vadd.f32 %v769, %v795
      %v797 = vpop.f32.mrf.mxu0
      %798 = vdwg.mxu0
      %v799 = vadd.f32 %v437, %v796
      %v800 = vld [vmem:[%s5] sm:$0x1]
      %v801 = vld [vmem:[%s6] sm:$0x1]
      %vm802 = vcmask 257024
      %v803 = vsel %vm802, %v799, 0.0
      %804 = vadd.xlane.f32.xlu0 %v803
      %v805 = vpop.xlane.xlu0 %804
      %v806 = vrcp.pop 32.0
      %v807 = vmul.f32 32.0, %v806
      %v808 = vsub.f32 1.0, %v807
      %v809 = vmul.f32 %v806, %v808
      %v810 = vadd.f32 %v806, %v809
      %vm811 = vweird.f32 %v806
      %v812 = vsel %vm811, %v806, %v810
      %v813 = vmul.f32 %v805, %v812
      %v814 = vsub.f32 %v799, %v813
      %v815 = vmul.f32 %v814, %v814
      %v816 = vsel %vm802, %v815, 0.0
      %817 = vadd.xlane.f32.xlu0 %v816
      %v818 = vpop.xlane.xlu0 %817
      %v819 = vmul.f32 %v818, %v812
      %v820 = vadd.f32 %v819, 1e-05
      %v821 = vrsqrt.pop %v820
      %v822 = vmul.f32 %v821, %v820
      %v823 = vmul.f32 %v822, %v821
      %v824 = vmul.f32 0.5, %v823
      %v825 = vsub.f32 1.5, %v824
      %v826 = vmul.f32 %v821, %v825
      %vm827 = vweird.f32 %v820
      %vm828 = vweird.f32 %v821
      %vm829 = vmor %vm827, %vm828
      %v830 = vsel %vm829, %v821, %v826
      %v831 = vmul.f32 %v814, %v830
      %v833 = vperm.slane %v800, 0
      %v835 = vmul.f32 %v831, %v833
      %v837 = vperm.slane %v801, 0
      %v839 = vadd.f32 %v835, %v837
      %v840 = vpack.c.bf16 %v839, %v839
      %v841 = vld [vmem:[%s7] sm:$0xf]
      %v842 = vld [vmem:[%s7 + $0x4] sm:$0xf]
      %v843 = vld [vmem:[%s7 + $0x8] sm:$0xf]
      %v844 = vld [vmem:[%s7 + $0xc] sm:$0xf]
      %v845 = vld [vmem:[%s8] sm:$0x1]
      %v847 = vperm.slane %v845, 0
      %v853 = vunpack.c.l.b16 %v841
      %v854 = vunpack.c.l.b16 %v842
      %v855 = vunpack.c.l.b16 %v843
      %v856 = vunpack.c.l.b16 %v844
      %v857 = vpack.c.b16 %v854, %v853
      %v858 = vpack.c.b16 %v856, %v855
      %v862 = vsel %vm459, %v840, 0
      %864 = vmatpush.bf16.msra.mxu0 0
      %865 = vmatpush.bf16.msra.mxu0 0
      %866 = vmatpush.bf16.msra.mxu0 0
      %867 = vmatpush.bf16.msra.mxu0 0
      %868 = vmatpush.bf16.msra.mxu0 0
      %869 = vmatpush.bf16.msra.mxu0 0
      %870 = vmatpush.bf16.msra.mxu0 %v858
      %871 = vmatpush.bf16.msra.mxu0 %v857
      %872 = vmatmul.bf16.gmra.mxu0 %v862
      %v873 = vpop.f32.mrf.mxu0
      %v874 = vadd.f32 %v847, %v873
      %v875 = vpop.f32.mrf.mxu0
      %876 = vdwg.mxu0
      %v877 = vmul.f32 %v874, %v874
      %v878 = vmul.f32 %v874, %v877
      %v879 = vmul.f32 %v878, 0.044715
      %v880 = vadd.f32 %v874, %v879
      %v881 = vmul.f32 %v880, 0.7978846
      %v882 = vtanh.pop %v881
      %v883 = vadd.f32 %v882, 1.0
      %v884 = vmul.f32 %v883, 0.5
      %v885 = vmul.f32 %v874, %v884
      %v886 = vpack.c.bf16 %v885, %v885
      %v887 = vld [vmem:[%s9] sm:$0xf]
      %v888 = vld [vmem:[%s9 + $0x4] sm:$0xf]
      %v889 = vld [vmem:[%s9 + $0x8] sm:$0xf]
      %v890 = vld [vmem:[%s9 + $0xc] sm:$0xf]
      %v891 = vld [vmem:[%s9 + $0x10] sm:$0xf]
      %v892 = vld [vmem:[%s9 + $0x14] sm:$0xf]
      %v893 = vld [vmem:[%s9 + $0x18] sm:$0xf]
      %v894 = vld [vmem:[%s9 + $0x1c] sm:$0xf]
      %v895 = vld [vmem:[%s10] sm:$0x1]
      %v897 = vperm.slane %v895, 0
      %v907 = vunpack.c.l.b16 %v887
      %v908 = vunpack.c.l.b16 %v888
      %v909 = vunpack.c.l.b16 %v889
      %v910 = vunpack.c.l.b16 %v890
      %v911 = vunpack.c.l.b16 %v891
      %v912 = vunpack.c.l.b16 %v892
      %v913 = vunpack.c.l.b16 %v893
      %v914 = vunpack.c.l.b16 %v894
      %v915 = vpack.c.b16 %v908, %v907
      %v916 = vpack.c.b16 %v910, %v909
      %v917 = vpack.c.b16 %v912, %v911
      %v918 = vpack.c.b16 %v914, %v913
      %vm923 = vcmask 523264
      %v925 = vsel %vm923, %v886, 0
      %927 = vmatpush.bf16.msra.mxu0 0
      %928 = vmatpush.bf16.msra.mxu0 0
      %929 = vmatpush.bf16.msra.mxu0 0
      %930 = vmatpush.bf16.msra.mxu0 0
      %931 = vmatpush.bf16.msra.mxu0 %v918
      %932 = vmatpush.bf16.msra.mxu0 %v917
      %933 = vmatpush.bf16.msra.mxu0 %v916
      %934 = vmatpush.bf16.msra.mxu0 %v915
      %935 = vmatmul.bf16.gmra.mxu0 %v925
      %v936 = vpop.f32.mrf.mxu0
      %v937 = vadd.f32 %v897, %v936
      %v938 = vpop.f32.mrf.mxu0
      %939 = vdwg.mxu0
      %v940 = vadd.f32 %v839, %v937
      %v941 = vld [vmem:[%s11] sm:$0x1]
      %v942 = vld [vmem:[%s12] sm:$0x1]
      %v943 = vsel %vm802, %v940, 0.0
      %944 = vadd.xlane.f32.xlu0 %v943
      %v945 = vpop.xlane.xlu0 %944
      %v946 = vmul.f32 %v945, %v812
      %v947 = vsub.f32 %v940, %v946
      %v948 = vmul.f32 %v947, %v947
      %v949 = vsel %vm802, %v948, 0.0
      %950 = vadd.xlane.f32.xlu0 %v949
      %v951 = vpop.xlane.xlu0 %950
      %v952 = vmul.f32 %v951, %v812
      %v953 = vadd.f32 %v952, 1e-05
      %v954 = vrsqrt.pop %v953
      %v955 = vmul.f32 %v954, %v953
      %v956 = vmul.f32 %v955, %v954
      %v957 = vmul.f32 0.5, %v956
      %v958 = vsub.f32 1.5, %v957
      %v959 = vmul.f32 %v954, %v958
      %vm960 = vweird.f32 %v953
      %vm961 = vweird.f32 %v954
      %vm962 = vmor %vm960, %vm961
      %v963 = vsel %vm962, %v954, %v959
      %v964 = vmul.f32 %v947, %v963
      %v966 = vperm.slane %v941, 0
      %v968 = vmul.f32 %v964, %v966
      %v970 = vperm.slane %v942, 0
      %v972 = vadd.f32 %v968, %v970
      %973 = vst.msk [vmem:[%s435] sm:$0xf] %vm802, %v972
      %p974 = scmp.lt.s32.totalorder %s24, 1
      %s975 = scalar_select %p974, %s24, 1
      %s976 = smul.addr %s975, 4
      %s977 = scalar_lea.vmem %s13, %s976
      // Predicated region
      $region73: #{ssl_extractor_forward.20} parent=71 // pred_check
        %p978 = pneg %p320
      $region74: #{ssl_extractor_forward.20} parent=71 // pred_check_branch
        %980 = sbr.rel (%p978) target = $region76
      $region75: #{ssl_extractor_forward.20} parent=71 // pred_region
        _
      $region76: #{ssl_extractor_forward.20} parent=71 // pred_fallthru
        _
    $region72: #{ssl_extractor_forward.20} parent=5 // pred_fallthru
      _
    %p981 = scmp.le.s32.totalorder 2, %s19
    // Predicated region
    $region77: #{ssl_extractor_forward.20} parent=5 // pred_check
      %p982 = pneg %p981
    $region78: #{ssl_extractor_forward.20} parent=5 // pred_check_branch
      %984 = sbr.rel (%p982) target = $region80
    $region79: #{ssl_extractor_forward.20} parent=5 // pred_region
      %s985 = ssub.s32 %s19, 2
      // Predicated region
      $region81: #{ssl_extractor_forward.20} parent=79 // pred_check
        %p986 = pneg %p326
      $region82: #{ssl_extractor_forward.20} parent=79 // pred_check_branch
        %988 = sbr.rel (%p986) target = $region84
      $region83: #{ssl_extractor_forward.20} parent=79 // pred_region
        %p989 = scmp.lt.s32.totalorder %s25, 1
        %s990 = scalar_select %p989, %s25, 1
        %s991 = smul.addr %s990, 4
        %s992 = scalar_lea.vmem %s13, %s991
      $region84: #{ssl_extractor_forward.20} parent=79 // pred_fallthru
        _
    $region80: #{ssl_extractor_forward.20} parent=5 // pred_fallthru
      _
  $region6: #{ssl_extractor_forward.20} parent=0 // loop_footer
    %s23 = sadd.s32 1, %s19
  $region7: #{ssl_extractor_forward.20} parent=0 // loop_footer_branch
    %18 = sbr.rel target = $region3
  $region8: #{ssl_extractor_forward.20} parent=0 // loop_exit
    _

// kernel: ssl_extractor_forward.17
$region0: #{ssl_extractor_forward.17}
  #allocation0 [shape = 'u32[]', space=smem, size = 0x4, offset = 0x4, fixed_abs, tag = 'smem constant byte address 0x4 - core index']
  #allocation1 [shape = 'u32[72,128]{1,0:T(1,128)}', space=vmem, size = 0x9000, scoped, tag = 'internal scratch']
  %s0 = inlined_call_operand.vmem [shape: f32[8,64], index: 0, kind: input, shape index: {}]
  %s1 = inlined_call_operand.vmem [shape: bf16[64,32], index: 1, kind: input, shape index: {}]
  %s2 = inlined_call_operand.vmem [shape: f32[1,32], index: 2, kind: input, shape index: {}]
  %s3 = inlined_call_operand.vmem [shape: f32[8,32], index: 3, kind: output, shape index: {}]
  %s4 = sld [smem:[#allocation0]]
  $region22: #{ssl_extractor_forward.17} parent=0
    _
  %s6 = ssub.s32 1, %s4
  %s7 = scalar_select 0, %s6, %s4
  // Predicated region
  $region2: #{ssl_extractor_forward.17} parent=0 // pred_check
    _
  $region3: #{ssl_extractor_forward.17} parent=0 // pred_check_branch
    %9 = sbr.rel (0) target = $region5
  $region4: #{ssl_extractor_forward.17} parent=0 // pred_region
    _
  $region5: #{ssl_extractor_forward.17} parent=0 // pred_fallthru
    _
  // Predicated region
  $region6: #{ssl_extractor_forward.17} parent=0 // pred_check
    _
  $region7: #{ssl_extractor_forward.17} parent=0 // pred_check_branch
    %11 = sbr.rel (0) target = $region9
  $region8: #{ssl_extractor_forward.17} parent=0 // pred_region
    _
  $region9: #{ssl_extractor_forward.17} parent=0 // pred_fallthru
    _
  // Predicated region
  $region10: #{ssl_extractor_forward.17} parent=0 // pred_check
    _
  $region11: #{ssl_extractor_forward.17} parent=0 // pred_check_branch
    %13 = sbr.rel (0) target = $region13
  $region12: #{ssl_extractor_forward.17} parent=0 // pred_region
    _
  $region13: #{ssl_extractor_forward.17} parent=0 // pred_fallthru
    _
  %v15 = vld [vmem:[%s0] sm:$0xff]
  %v16 = vpack.c.bf16 %v15, %v15
  %v17 = vld [vmem:[%s1] sm:$0xf]
  %v18 = vld [vmem:[%s1 + $0x4] sm:$0xf]
  %v19 = vld [vmem:[%s1 + $0x8] sm:$0xf]
  %v20 = vld [vmem:[%s1 + $0xc] sm:$0xf]
  %v21 = vld [vmem:[%s1 + $0x10] sm:$0xf]
  %v22 = vld [vmem:[%s1 + $0x14] sm:$0xf]
  %v23 = vld [vmem:[%s1 + $0x18] sm:$0xf]
  %v24 = vld [vmem:[%s1 + $0x1c] sm:$0xf]
  %v25 = vld [vmem:[%s2] sm:$0x1]
  %v27 = vperm.slane %v25, 0
  %v37 = vunpack.c.l.b16 %v17
  %v38 = vunpack.c.l.b16 %v18
  %v39 = vunpack.c.l.b16 %v19
  %v40 = vunpack.c.l.b16 %v20
  %v41 = vunpack.c.l.b16 %v21
  %v42 = vunpack.c.l.b16 %v22
  %v43 = vunpack.c.l.b16 %v23
  %v44 = vunpack.c.l.b16 %v24
  %v45 = vpack.c.b16 %v38, %v37
  %v46 = vpack.c.b16 %v40, %v39
  %v47 = vpack.c.b16 %v42, %v41
  %v48 = vpack.c.b16 %v44, %v43
  %vm53 = vcmask 523264
  %v55 = vsel %vm53, %v16, 0
  %57 = vmatpush.bf16.msra.mxu0 0
  %58 = vmatpush.bf16.msra.mxu0 0
  %59 = vmatpush.bf16.msra.mxu0 0
  %60 = vmatpush.bf16.msra.mxu0 0
  %61 = vmatpush.bf16.msra.mxu0 %v48
  %62 = vmatpush.bf16.msra.mxu0 %v47
  %63 = vmatpush.bf16.msra.mxu0 %v46
  %64 = vmatpush.bf16.msra.mxu0 %v45
  %65 = vmatmul.bf16.gmra.mxu0 %v55
  %v66 = vpop.f32.mrf.mxu0
  %v67 = vadd.f32 %v27, %v66
  %v68 = vpop.f32.mrf.mxu0
  %69 = vdwg.mxu0
  %v70 = vmul.f32 %v67, %v67
  %v71 = vmul.f32 %v67, %v70
  %v72 = vmul.f32 %v71, 0.044715
  %v73 = vadd.f32 %v67, %v72
  %v74 = vmul.f32 %v73, 0.7978846
  %v75 = vtanh.pop %v74
  %v76 = vadd.f32 %v75, 1.0
  %v77 = vmul.f32 %v76, 0.5
  %v78 = vmul.f32 %v67, %v77
  %vm79 = vcmask 261120
  %80 = vst.msk [vmem:[%s3] sm:$0xff] %vm79, %v78
  // Predicated region
  $region14: #{ssl_extractor_forward.17} parent=0 // pred_check
    _
  $region15: #{ssl_extractor_forward.17} parent=0 // pred_check_branch
    %82 = sbr.rel (0) target = $region17
  $region16: #{ssl_extractor_forward.17} parent=0 // pred_region
    _
  $region17: #{ssl_extractor_forward.17} parent=0 // pred_fallthru
    _
  // Predicated region
  $region18: #{ssl_extractor_forward.17} parent=0 // pred_check
    _
  $region19: #{ssl_extractor_forward.17} parent=0 // pred_check_branch
    %84 = sbr.rel (0) target = $region21
  $region20: #{ssl_extractor_forward.17} parent=0 // pred_region
    _
  $region21: #{ssl_extractor_forward.17} parent=0 // pred_fallthru
    _

// kernel: ssl_extractor_forward.21
$region0: #{ssl_extractor_forward.21}
  #allocation0 [shape = 'u32[]', space=smem, size = 0x4, offset = 0x4, fixed_abs, tag = 'smem constant byte address 0x4 - core index']
  #allocation1 [shape = 'u32[72,128]{1,0:T(1,128)}', space=vmem, size = 0x9000, scoped, tag = 'internal scratch']
  %s0 = inlined_call_operand.vmem [shape: f32[2,4,32], index: 0, kind: input, shape index: {}]
  %s1 = inlined_call_operand.vmem [shape: bf16[32,96], index: 1, kind: input, shape index: {}]
  %s2 = inlined_call_operand.vmem [shape: f32[1,96], index: 2, kind: input, shape index: {}]
  %s3 = inlined_call_operand.vmem [shape: bf16[32,32], index: 3, kind: input, shape index: {}]
  %s4 = inlined_call_operand.vmem [shape: f32[1,32], index: 4, kind: input, shape index: {}]
  %s5 = inlined_call_operand.vmem [shape: f32[1,32], index: 5, kind: input, shape index: {}]
  %s6 = inlined_call_operand.vmem [shape: f32[1,32], index: 6, kind: input, shape index: {}]
  %s7 = inlined_call_operand.vmem [shape: bf16[32,64], index: 7, kind: input, shape index: {}]
  %s8 = inlined_call_operand.vmem [shape: f32[1,64], index: 8, kind: input, shape index: {}]
  %s9 = inlined_call_operand.vmem [shape: bf16[64,32], index: 9, kind: input, shape index: {}]
  %s10 = inlined_call_operand.vmem [shape: f32[1,32], index: 10, kind: input, shape index: {}]
  %s11 = inlined_call_operand.vmem [shape: f32[1,32], index: 11, kind: input, shape index: {}]
  %s12 = inlined_call_operand.vmem [shape: f32[1,32], index: 12, kind: input, shape index: {}]
  %s13 = inlined_call_operand.hbm [shape: f32[2,4,32], index: 13, kind: output, shape index: {}]
  %s14 = sld [smem:[#allocation0]]
  $region85: #{ssl_extractor_forward.21} parent=0
    _
  %s16 = ssub.s32 1, %s14
  %s17 = scalar_select 0, %s16, %s14
  $region1: #{ssl_extractor_forward.21} parent=0
    #allocation2 [shape = 'u8[4096]{0}', space=vmem, size = 0x1000, scoped, tag = 'output window, operand 0']
    #allocation3 [shape = 's32[2]{0}', space=sflag, size = 0x8, scoped, tag = 'scoped memory for ssl_extractor_forward.21']
    %18 = vsyncpa [#allocation3], 0
    %s19 = scalar_lea.sflag [#allocation3], 1
    %20 = vsyncpa %s19, 0
    loop: start=0, step=1, limit=4
    $region2: #{ssl_extractor_forward.21} parent=1 // loop_pre_header
      _
    $region3: #{ssl_extractor_forward.21} parent=1 // loop_header
      %s22 = sphi 0, %s26
      %p23 = scmp.ge.s32.totalorder %s22, 4
      %s32 = sphi 0, %s34
      %s35 = sphi 0, %s32
      %s36 = sphi 0, %s35
      %s52 = sphi 0, %s36
      %s56 = sphi 0, %s56
      %s58 = sphi 0, %s56
      %s59 = sphi 0, %s58
      %s73 = sphi 0, %s59
      %s77 = sphi 0, %s77
      %s79 = sphi 0, %s77
      %s80 = sphi 0, %s79
      %s94 = sphi 0, %s80
      %s98 = sphi 0, %s98
      %s100 = sphi 0, %s98
      %s101 = sphi 0, %s100
      %s115 = sphi 0, %s101
      %s119 = sphi 0, %s119
      %s121 = sphi 0, %s119
      %s122 = sphi 0, %s121
      %s136 = sphi 0, %s122
      %s140 = sphi 0, %s140
      %s142 = sphi 0, %s140
      %s143 = sphi 0, %s142
      %s157 = sphi 0, %s143
      %s161 = sphi 0, %s161
      %s163 = sphi 0, %s161
      %s164 = sphi 0, %s163
      %s178 = sphi 0, %s164
      %s182 = sphi 0, %s182
      %s184 = sphi 0, %s182
      %s185 = sphi 0, %s184
      %s199 = sphi 0, %s185
      %s203 = sphi 0, %s203
      %s205 = sphi 0, %s203
      %s206 = sphi 0, %s205
      %s220 = sphi 0, %s206
      %s224 = sphi 0, %s224
      %s226 = sphi 0, %s224
      %s227 = sphi 0, %s226
      %s241 = sphi 0, %s227
      %s245 = sphi 0, %s245
      %s247 = sphi 0, %s245
      %s248 = sphi 0, %s247
      %s262 = sphi 0, %s248
      %s266 = sphi 0, %s266
      %s268 = sphi 0, %s266
      %s269 = sphi 0, %s268
      %s283 = sphi 0, %s269
      %s287 = sphi 0, %s287
      %s289 = sphi 0, %s287
      %s290 = sphi 0, %s289
      %s304 = sphi 0, %s290
      %s310 = sphi 0, %s312
      %s313 = sphi 0, %s310
      %s314 = sphi 0, %s313
      %s330 = sphi 0, %s314
    $region4: #{ssl_extractor_forward.21} parent=1 // loop_header_branch
      %25 = sbr.rel (%p23) target = $region8
    $region5: #{ssl_extractor_forward.21} parent=1 // loop_body
      %s27 = ssub.s32 %s22, 1
      %s28 = ssub.s32 %s22, 2
      %s29 = sadd.s32 %s22, 1
      %s30 = ssub.s32 %s22, %s29
      %p31 = scmp.eq.s32.totalorder %s30, 0
      %s33 = sadd.s32 %s32, 1
      %s34 = scalar_select %p31, %s32, %s33
      %p37 = pneg %p31
      %p38 = scmp.eq.s32.totalorder %s22, 1
      %p39 = por %p37, %p38
      %p40 = scmp.ne.s32.totalorder %s32, %s35
      %p41 = scmp.eq.s32.totalorder %s22, 0
      %p42 = por %p40, %p41
      %p43 = scmp.ne.s32.totalorder %s32, %s35
      %p44 = scmp.eq.s32.totalorder %s27, 1
      %p45 = por %p43, %p44
      %p46 = scmp.ne.s32.totalorder %s35, %s36
      %p47 = scmp.eq.s32.totalorder %s27, 0
      %p48 = por %p46, %p47
      %p49 = scmp.ne.s32.totalorder %s35, %s36
      %p50 = scmp.eq.s32.totalorder %s28, 1
      %p51 = por %p49, %p50
      %p53 = scmp.ne.s32.totalorder %s36, %s52
      %p54 = scmp.eq.s32.totalorder %s28, 0
      %p55 = por %p53, %p54
      %s57 = sadd.s32 %s56, 1
      %p60 = scmp.eq.s32.totalorder %s22, 1
      %p61 = scmp.ne.s32.totalorder %s56, %s58
      %p62 = scmp.eq.s32.totalorder %s22, 0
      %p63 = por %p61, %p62
      %p64 = scmp.ne.s32.totalorder %s56, %s58
      %p65 = scmp.eq.s32.totalorder %s27, 1
      %p66 = por %p64, %p65
      %p67 = scmp.ne.s32.totalorder %s58, %s59
      %p68 = scmp.eq.s32.totalorder %s27, 0
      %p69 = por %p67, %p68
      %p70 = scmp.ne.s32.totalorder %s58, %s59
      %p71 = scmp.eq.s32.totalorder %s28, 1
      %p72 = por %p70, %p71
      %p74 = scmp.ne.s32.totalorder %s59, %s73
      %p75 = scmp.eq.s32.totalorder %s28, 0
      %p76 = por %p74, %p75
      %s78 = sadd.s32 %s77, 1
      %p81 = scmp.eq.s32.totalorder %s22, 1
      %p82 = scmp.ne.s32.totalorder %s77, %s79
      %p83 = scmp.eq.s32.totalorder %s22, 0
      %p84 = por %p82, %p83
      %p85 = scmp.ne.s32.totalorder %s77, %s79
      %p86 = scmp.eq.s32.totalorder %s27, 1
      %p87 = por %p85, %p86
      %p88 = scmp.ne.s32.totalorder %s79, %s80
      %p89 = scmp.eq.s32.totalorder %s27, 0
      %p90 = por %p88, %p89
      %p91 = scmp.ne.s32.totalorder %s79, %s80
      %p92 = scmp.eq.s32.totalorder %s28, 1
      %p93 = por %p91, %p92
      %p95 = scmp.ne.s32.totalorder %s80, %s94
      %p96 = scmp.eq.s32.totalorder %s28, 0
      %p97 = por %p95, %p96
      %s99 = sadd.s32 %s98, 1
      %p102 = scmp.eq.s32.totalorder %s22, 1
      %p103 = scmp.ne.s32.totalorder %s98, %s100
      %p104 = scmp.eq.s32.totalorder %s22, 0
      %p105 = por %p103, %p104
      %p106 = scmp.ne.s32.totalorder %s98, %s100
      %p107 = scmp.eq.s32.totalorder %s27, 1
      %p108 = por %p106, %p107
      %p109 = scmp.ne.s32.totalorder %s100, %s101
      %p110 = scmp.eq.s32.totalorder %s27, 0
      %p111 = por %p109, %p110
      %p112 = scmp.ne.s32.totalorder %s100, %s101
      %p113 = scmp.eq.s32.totalorder %s28, 1
      %p114 = por %p112, %p113
      %p116 = scmp.ne.s32.totalorder %s101, %s115
      %p117 = scmp.eq.s32.totalorder %s28, 0
      %p118 = por %p116, %p117
      %s120 = sadd.s32 %s119, 1
      %p123 = scmp.eq.s32.totalorder %s22, 1
      %p124 = scmp.ne.s32.totalorder %s119, %s121
      %p125 = scmp.eq.s32.totalorder %s22, 0
      %p126 = por %p124, %p125
      %p127 = scmp.ne.s32.totalorder %s119, %s121
      %p128 = scmp.eq.s32.totalorder %s27, 1
      %p129 = por %p127, %p128
      %p130 = scmp.ne.s32.totalorder %s121, %s122
      %p131 = scmp.eq.s32.totalorder %s27, 0
      %p132 = por %p130, %p131
      %p133 = scmp.ne.s32.totalorder %s121, %s122
      %p134 = scmp.eq.s32.totalorder %s28, 1
      %p135 = por %p133, %p134
      %p137 = scmp.ne.s32.totalorder %s122, %s136
      %p138 = scmp.eq.s32.totalorder %s28, 0
      %p139 = por %p137, %p138
      %s141 = sadd.s32 %s140, 1
      %p144 = scmp.eq.s32.totalorder %s22, 1
      %p145 = scmp.ne.s32.totalorder %s140, %s142
      %p146 = scmp.eq.s32.totalorder %s22, 0
      %p147 = por %p145, %p146
      %p148 = scmp.ne.s32.totalorder %s140, %s142
      %p149 = scmp.eq.s32.totalorder %s27, 1
      %p150 = por %p148, %p149
      %p151 = scmp.ne.s32.totalorder %s142, %s143
      %p152 = scmp.eq.s32.totalorder %s27, 0
      %p153 = por %p151, %p152
      %p154 = scmp.ne.s32.totalorder %s142, %s143
      %p155 = scmp.eq.s32.totalorder %s28, 1
      %p156 = por %p154, %p155
      %p158 = scmp.ne.s32.totalorder %s143, %s157
      %p159 = scmp.eq.s32.totalorder %s28, 0
      %p160 = por %p158, %p159
      %s162 = sadd.s32 %s161, 1
      %p165 = scmp.eq.s32.totalorder %s22, 1
      %p166 = scmp.ne.s32.totalorder %s161, %s163
      %p167 = scmp.eq.s32.totalorder %s22, 0
      %p168 = por %p166, %p167
      %p169 = scmp.ne.s32.totalorder %s161, %s163
      %p170 = scmp.eq.s32.totalorder %s27, 1
      %p171 = por %p169, %p170
      %p172 = scmp.ne.s32.totalorder %s163, %s164
      %p173 = scmp.eq.s32.totalorder %s27, 0
      %p174 = por %p172, %p173
      %p175 = scmp.ne.s32.totalorder %s163, %s164
      %p176 = scmp.eq.s32.totalorder %s28, 1
      %p177 = por %p175, %p176
      %p179 = scmp.ne.s32.totalorder %s164, %s178
      %p180 = scmp.eq.s32.totalorder %s28, 0
      %p181 = por %p179, %p180
      %s183 = sadd.s32 %s182, 1
      %p186 = scmp.eq.s32.totalorder %s22, 1
      %p187 = scmp.ne.s32.totalorder %s182, %s184
      %p188 = scmp.eq.s32.totalorder %s22, 0
      %p189 = por %p187, %p188
      %p190 = scmp.ne.s32.totalorder %s182, %s184
      %p191 = scmp.eq.s32.totalorder %s27, 1
      %p192 = por %p190, %p191
      %p193 = scmp.ne.s32.totalorder %s184, %s185
      %p194 = scmp.eq.s32.totalorder %s27, 0
      %p195 = por %p193, %p194
      %p196 = scmp.ne.s32.totalorder %s184, %s185
      %p197 = scmp.eq.s32.totalorder %s28, 1
      %p198 = por %p196, %p197
      %p200 = scmp.ne.s32.totalorder %s185, %s199
      %p201 = scmp.eq.s32.totalorder %s28, 0
      %p202 = por %p200, %p201
      %s204 = sadd.s32 %s203, 1
      %p207 = scmp.eq.s32.totalorder %s22, 1
      %p208 = scmp.ne.s32.totalorder %s203, %s205
      %p209 = scmp.eq.s32.totalorder %s22, 0
      %p210 = por %p208, %p209
      %p211 = scmp.ne.s32.totalorder %s203, %s205
      %p212 = scmp.eq.s32.totalorder %s27, 1
      %p213 = por %p211, %p212
      %p214 = scmp.ne.s32.totalorder %s205, %s206
      %p215 = scmp.eq.s32.totalorder %s27, 0
      %p216 = por %p214, %p215
      %p217 = scmp.ne.s32.totalorder %s205, %s206
      %p218 = scmp.eq.s32.totalorder %s28, 1
      %p219 = por %p217, %p218
      %p221 = scmp.ne.s32.totalorder %s206, %s220
      %p222 = scmp.eq.s32.totalorder %s28, 0
      %p223 = por %p221, %p222
      %s225 = sadd.s32 %s224, 1
      %p228 = scmp.eq.s32.totalorder %s22, 1
      %p229 = scmp.ne.s32.totalorder %s224, %s226
      %p230 = scmp.eq.s32.totalorder %s22, 0
      %p231 = por %p229, %p230
      %p232 = scmp.ne.s32.totalorder %s224, %s226
      %p233 = scmp.eq.s32.totalorder %s27, 1
      %p234 = por %p232, %p233
      %p235 = scmp.ne.s32.totalorder %s226, %s227
      %p236 = scmp.eq.s32.totalorder %s27, 0
      %p237 = por %p235, %p236
      %p238 = scmp.ne.s32.totalorder %s226, %s227
      %p239 = scmp.eq.s32.totalorder %s28, 1
      %p240 = por %p238, %p239
      %p242 = scmp.ne.s32.totalorder %s227, %s241
      %p243 = scmp.eq.s32.totalorder %s28, 0
      %p244 = por %p242, %p243
      %s246 = sadd.s32 %s245, 1
      %p249 = scmp.eq.s32.totalorder %s22, 1
      %p250 = scmp.ne.s32.totalorder %s245, %s247
      %p251 = scmp.eq.s32.totalorder %s22, 0
      %p252 = por %p250, %p251
      %p253 = scmp.ne.s32.totalorder %s245, %s247
      %p254 = scmp.eq.s32.totalorder %s27, 1
      %p255 = por %p253, %p254
      %p256 = scmp.ne.s32.totalorder %s247, %s248
      %p257 = scmp.eq.s32.totalorder %s27, 0
      %p258 = por %p256, %p257
      %p259 = scmp.ne.s32.totalorder %s247, %s248
      %p260 = scmp.eq.s32.totalorder %s28, 1
      %p261 = por %p259, %p260
      %p263 = scmp.ne.s32.totalorder %s248, %s262
      %p264 = scmp.eq.s32.totalorder %s28, 0
      %p265 = por %p263, %p264
      %s267 = sadd.s32 %s266, 1
      %p270 = scmp.eq.s32.totalorder %s22, 1
      %p271 = scmp.ne.s32.totalorder %s266, %s268
      %p272 = scmp.eq.s32.totalorder %s22, 0
      %p273 = por %p271, %p272
      %p274 = scmp.ne.s32.totalorder %s266, %s268
      %p275 = scmp.eq.s32.totalorder %s27, 1
      %p276 = por %p274, %p275
      %p277 = scmp.ne.s32.totalorder %s268, %s269
      %p278 = scmp.eq.s32.totalorder %s27, 0
      %p279 = por %p277, %p278
      %p280 = scmp.ne.s32.totalorder %s268, %s269
      %p281 = scmp.eq.s32.totalorder %s28, 1
      %p282 = por %p280, %p281
      %p284 = scmp.ne.s32.totalorder %s269, %s283
      %p285 = scmp.eq.s32.totalorder %s28, 0
      %p286 = por %p284, %p285
      %s288 = sadd.s32 %s287, 1
      %p291 = scmp.eq.s32.totalorder %s22, 1
      %p292 = scmp.ne.s32.totalorder %s287, %s289
      %p293 = scmp.eq.s32.totalorder %s22, 0
      %p294 = por %p292, %p293
      %p295 = scmp.ne.s32.totalorder %s287, %s289
      %p296 = scmp.eq.s32.totalorder %s27, 1
      %p297 = por %p295, %p296
      %p298 = scmp.ne.s32.totalorder %s289, %s290
      %p299 = scmp.eq.s32.totalorder %s27, 0
      %p300 = por %p298, %p299
      %p301 = scmp.ne.s32.totalorder %s289, %s290
      %p302 = scmp.eq.s32.totalorder %s28, 1
      %p303 = por %p301, %p302
      %p305 = scmp.ne.s32.totalorder %s290, %s304
      %p306 = scmp.eq.s32.totalorder %s28, 0
      %p307 = por %p305, %p306
      %s308 = ssub.s32 %s22, %s29
      %p309 = scmp.eq.s32.totalorder %s308, 0
      %s311 = sadd.s32 %s310, 1
      %s312 = scalar_select %p309, %s310, %s311
      %p315 = pneg %p309
      %p316 = scmp.eq.s32.totalorder %s22, 1
      %p317 = por %p315, %p316
      %p318 = scmp.ne.s32.totalorder %s310, %s313
      %p319 = scmp.eq.s32.totalorder %s22, 0
      %p320 = por %p318, %p319
      %p321 = scmp.ne.s32.totalorder %s310, %s313
      %p322 = scmp.eq.s32.totalorder %s27, 1
      %p323 = por %p321, %p322
      %p324 = scmp.ne.s32.totalorder %s313, %s314
      %p325 = scmp.eq.s32.totalorder %s27, 0
      %p326 = por %p324, %p325
      %p327 = scmp.ne.s32.totalorder %s313, %s314
      %p328 = scmp.eq.s32.totalorder %s28, 1
      %p329 = por %p327, %p328
      %p331 = scmp.ne.s32.totalorder %s314, %s330
      %p332 = scmp.eq.s32.totalorder %s28, 0
      %p333 = por %p331, %p332
      %p334 = scmp.le.s32.totalorder 1, %s22
      %p335 = scmp.lt.s32.totalorder %s22, 3
      %p336 = pnand %p334, %p335
      %p337 = pneg %p336
      // Predicated region
      $region9: #{ssl_extractor_forward.21} parent=5 // pred_check
        _
      $region10: #{ssl_extractor_forward.21} parent=5 // pred_check_branch
        %339 = sbr.rel (%p336) target = $region12
      $region11: #{ssl_extractor_forward.21} parent=5 // pred_region
        %s340 = ssub.s32 %s22, 1
        // Predicated region
        $region13: #{ssl_extractor_forward.21} parent=11 // pred_check
          %p341 = pneg %p69
        $region14: #{ssl_extractor_forward.21} parent=11 // pred_check_branch
          %343 = sbr.rel (%p341) target = $region16
        $region15: #{ssl_extractor_forward.21} parent=11 // pred_region
          _
        $region16: #{ssl_extractor_forward.21} parent=11 // pred_fallthru
          _
        // Predicated region
        $region17: #{ssl_extractor_forward.21} parent=11 // pred_check
          %p344 = pneg %p90
        $region18: #{ssl_extractor_forward.21} parent=11 // pred_check_branch
          %346 = sbr.rel (%p344) target = $region20
        $region19: #{ssl_extractor_forward.21} parent=11 // pred_region
          _
        $region20: #{ssl_extractor_forward.21} parent=11 // pred_fallthru
          _
        // Predicated region
        $region21: #{ssl_extractor_forward.21} parent=11 // pred_check
          %p347 = pneg %p111
        $region22: #{ssl_extractor_forward.21} parent=11 // pred_check_branch
          %349 = sbr.rel (%p347) target = $region24
        $region23: #{ssl_extractor_forward.21} parent=11 // pred_region
          _
        $region24: #{ssl_extractor_forward.21} parent=11 // pred_fallthru
          _
        // Predicated region
        $region25: #{ssl_extractor_forward.21} parent=11 // pred_check
          %p350 = pneg %p132
        $region26: #{ssl_extractor_forward.21} parent=11 // pred_check_branch
          %352 = sbr.rel (%p350) target = $region28
        $region27: #{ssl_extractor_forward.21} parent=11 // pred_region
          _
        $region28: #{ssl_extractor_forward.21} parent=11 // pred_fallthru
          _
        // Predicated region
        $region29: #{ssl_extractor_forward.21} parent=11 // pred_check
          %p353 = pneg %p153
        $region30: #{ssl_extractor_forward.21} parent=11 // pred_check_branch
          %355 = sbr.rel (%p353) target = $region32
        $region31: #{ssl_extractor_forward.21} parent=11 // pred_region
          _
        $region32: #{ssl_extractor_forward.21} parent=11 // pred_fallthru
          _
        // Predicated region
        $region33: #{ssl_extractor_forward.21} parent=11 // pred_check
          %p356 = pneg %p174
        $region34: #{ssl_extractor_forward.21} parent=11 // pred_check_branch
          %358 = sbr.rel (%p356) target = $region36
        $region35: #{ssl_extractor_forward.21} parent=11 // pred_region
          _
        $region36: #{ssl_extractor_forward.21} parent=11 // pred_fallthru
          _
        // Predicated region
        $region37: #{ssl_extractor_forward.21} parent=11 // pred_check
          %p359 = pneg %p195
        $region38: #{ssl_extractor_forward.21} parent=11 // pred_check_branch
          %361 = sbr.rel (%p359) target = $region40
        $region39: #{ssl_extractor_forward.21} parent=11 // pred_region
          _
        $region40: #{ssl_extractor_forward.21} parent=11 // pred_fallthru
          _
        // Predicated region
        $region41: #{ssl_extractor_forward.21} parent=11 // pred_check
          %p362 = pneg %p216
        $region42: #{ssl_extractor_forward.21} parent=11 // pred_check_branch
          %364 = sbr.rel (%p362) target = $region44
        $region43: #{ssl_extractor_forward.21} parent=11 // pred_region
          _
        $region44: #{ssl_extractor_forward.21} parent=11 // pred_fallthru
          _
        // Predicated region
        $region45: #{ssl_extractor_forward.21} parent=11 // pred_check
          %p365 = pneg %p237
        $region46: #{ssl_extractor_forward.21} parent=11 // pred_check_branch
          %367 = sbr.rel (%p365) target = $region48
        $region47: #{ssl_extractor_forward.21} parent=11 // pred_region
          _
        $region48: #{ssl_extractor_forward.21} parent=11 // pred_fallthru
          _
        // Predicated region
        $region49: #{ssl_extractor_forward.21} parent=11 // pred_check
          %p368 = pneg %p258
        $region50: #{ssl_extractor_forward.21} parent=11 // pred_check_branch
          %370 = sbr.rel (%p368) target = $region52
        $region51: #{ssl_extractor_forward.21} parent=11 // pred_region
          _
        $region52: #{ssl_extractor_forward.21} parent=11 // pred_fallthru
          _
        // Predicated region
        $region53: #{ssl_extractor_forward.21} parent=11 // pred_check
          %p371 = pneg %p279
        $region54: #{ssl_extractor_forward.21} parent=11 // pred_check_branch
          %373 = sbr.rel (%p371) target = $region56
        $region55: #{ssl_extractor_forward.21} parent=11 // pred_region
          _
        $region56: #{ssl_extractor_forward.21} parent=11 // pred_fallthru
          _
        // Predicated region
        $region57: #{ssl_extractor_forward.21} parent=11 // pred_check
          %p374 = pneg %p300
        $region58: #{ssl_extractor_forward.21} parent=11 // pred_check_branch
          %376 = sbr.rel (%p374) target = $region60
        $region59: #{ssl_extractor_forward.21} parent=11 // pred_region
          _
        $region60: #{ssl_extractor_forward.21} parent=11 // pred_fallthru
          _
      $region12: #{ssl_extractor_forward.21} parent=5 // pred_fallthru
        _
      %p377 = scmp.lt.s32.totalorder %s22, 2
      // Predicated region
      $region61: #{ssl_extractor_forward.21} parent=5 // pred_check
        %p378 = pneg %p377
      $region62: #{ssl_extractor_forward.21} parent=5 // pred_check_branch
        %380 = sbr.rel (%p378) target = $region64
      $region63: #{ssl_extractor_forward.21} parent=5 // pred_region
        // Predicated region
        $region65: #{ssl_extractor_forward.21} parent=63 // pred_check
          %p381 = pneg %p42
        $region66: #{ssl_extractor_forward.21} parent=63 // pred_check_branch
          %383 = sbr.rel (%p381) target = $region68
        $region67: #{ssl_extractor_forward.21} parent=63 // pred_region
          %p384 = scmp.lt.s32.totalorder %s22, 1
          %s385 = scalar_select %p384, %s22, 1
          %s386 = smul.addr %s385, 4
          %s387 = scalar_lea.vmem %s0, %s386
        $region68: #{ssl_extractor_forward.21} parent=63 // pred_fallthru
          _
      $region64: #{ssl_extractor_forward.21} parent=5 // pred_fallthru
        _
      %p388 = scmp.le.s32.totalorder 1, %s22
      %p389 = scmp.lt.s32.totalorder %s22, 3
      %p390 = pnand %p388, %p389
      %p391 = pneg %p390
      // Predicated region
      $region69: #{ssl_extractor_forward.21} parent=5 // pred_check
        _
      $region70: #{ssl_extractor_forward.21} parent=5 // pred_check_branch
        %393 = sbr.rel (%p390) target = $region72
      $region71: #{ssl_extractor_forward.21} parent=5 // pred_region
        %s394 = ssub.s32 %s22, 1
        %p395 = scmp.lt.s32.totalorder %s27, 1
        %s396 = scalar_select %p395, %s27, 1
        %s397 = smul.addr %s396, 4
        %s398 = scalar_lea.vmem %s0, %s397
        %p399 = pneg %p48
        %p400 = pneg %p45
        %p401 = pneg %p69
        %p402 = pneg %p66
        %p403 = pneg %p90
        %p404 = pneg %p87
        %p405 = pneg %p111
        %p406 = pneg %p108
        %p407 = pneg %p132
        %p408 = pneg %p129
        %p409 = pneg %p153
        %p410 = pneg %p150
        %p411 = pneg %p174
        %p412 = pneg %p171
        %p413 = pneg %p195
        %p414 = pneg %p192
        %p415 = pneg %p216
        %p416 = pneg %p213
        %p417 = pneg %p237
        %p418 = pneg %p234
        %p419 = pneg %p258
        %p420 = pneg %p255
        %p421 = pneg %p279
        %p422 = pneg %p276
        %p423 = pneg %p300
        %p424 = pneg %p297
        %p425 = pneg %p326
        %p426 = pneg %p323
        %s427 = sand.u32 %s313, 1
        %s428 = scalar_lea.sflag [#allocation3], %s427
        %s429 = sand.u32 %s313, 1
        %s430 = smul.addr %s429, 4
        %s431 = scalar_lea.vmem [#allocation2], %s430
        %p432 = scmp.lt.s32.totalorder %s27, 1
        %s433 = scalar_select %p432, %s27, 1
        %s434 = smul.addr %s433, 4
        %s435 = scalar_lea.vmem %s0, %s434
        %v437 = vld [vmem:[%s435] sm:$0xf]
        %v438 = vpack.c.bf16 %v437, %v437
        %v439 = vld [vmem:[%s1] sm:$0xf]
        %v440 = vld [vmem:[%s1 + $0x4] sm:$0xf]
        %v441 = vld [vmem:[%s1 + $0x8] sm:$0xf]
        %v442 = vld [vmem:[%s1 + $0xc] sm:$0xf]
        %v443 = vld [vmem:[%s2] sm:$0x1]
        %v445 = vperm.slane %v443, 0
        %v451 = vunpack.c.l.b16 %v439
        %v452 = vunpack.c.l.b16 %v440
        %v453 = vunpack.c.l.b16 %v441
        %v454 = vunpack.c.l.b16 %v442
        %v455 = vpack.c.b16 %v452, %v451
        %v456 = vpack.c.b16 %v454, %v453
        %vm459 = vcmask 261120
        %v461 = vsel %vm459, %v438, 0
        %463 = vmatpush.bf16.msra.mxu0 0
        %464 = vmatpush.bf16.msra.mxu0 0
        %465 = vmatpush.bf16.msra.mxu0 0
        %466 = vmatpush.bf16.msra.mxu0 0
        %467 = vmatpush.bf16.msra.mxu0 0
        %468 = vmatpush.bf16.msra.mxu0 0
        %469 = vmatpush.bf16.msra.mxu0 %v456
        %470 = vmatpush.bf16.msra.mxu0 %v455
        %471 = vmatmul.bf16.gmra.mxu0 %v461
        %v472 = vpop.f32.mrf.mxu0
        %v473 = vadd.f32 %v445, %v472
        %v474 = vpop.f32.mrf.mxu0
        %475 = vdwg.mxu0
        %v476 = vmul.f32 %v473, 0.35355338
        %478 = vrot.lane.b32.xlu0 %v473, 96
        %v479 = vpop.permute.xlu0 %478
        %vm480 = vcmask 64512
        %v482 = vsel %vm480, %v476, 0
        %v484 = vsel %vm480, %v479, 0
        %486 = vmatpush.xpose.msra.mxu0 0.0
        %487 = vmatpush.xpose.msra.mxu0 0.0
        %488 = vmatpush.xpose.msra.mxu0 0.0
        %489 = vmatpush.xpose.msra.mxu0 0.0
        %490 = vmatpush.xpose.msra.mxu0 0.0
        %491 = vmatpush.xpose.msra.mxu0 0.0
        %492 = vmatpush.xpose.msra.mxu0 0.0
        %493 = vmatpush.xpose.msra.mxu0 0.0
        %494 = vmatpush.xpose.msra.mxu0 0.0
        %495 = vmatpush.xpose.msra.mxu0 0.0
        %496 = vmatpush.xpose.msra.mxu0 0.0
        %497 = vmatpush.xpose.msra.mxu0 0.0
        %498 = vmatpush.xpose.msra.mxu0 0.0
        %499 = vmatpush.xpose.msra.mxu0 0.0
        %500 = vmatpush.xpose.msra.mxu0 0.0
        %501 = vmatpush.xpose.msra.mxu0 %v484
        %502 = vmatmul.f32.gmra.mxu0 %v482
        %v503 = vpop.f32.mrf.mxu0
        %v504 = vadd.f32 0.0, %v503
        %505 = vdwg.mxu0
        %vm506 = vcmask 27648
        %v507 = vsel %vm506, %v504, -inf
        %508 = vmax.xlane.f32.xlu0 %v507
        %v509 = vpop.xlane.xlu0 %508
        %v510 = vsub.f32 %v504, %v509
        %v511 = vmul.f32 %v510, 1.442695
        %v512 = vpow.pop %v511
        %v513 = vsel %vm506, %v512, 0.0
        %514 = vadd.xlane.f32.xlu0 %v513
        %v515 = vpop.xlane.xlu0 %514
        %v516 = vrcp.pop %v515
        %v517 = vmul.f32 %v512, %v516
        %518 = vrot.lane.b32.xlu0 %v473, 64
        %v519 = vpop.permute.xlu0 %518
        %vm520 = vcmask 31744
        %v522 = vsel %vm520, %v517, 0
        %vm524 = vcmask 1043456
        %v525 = vsel %vm524, %v519, 0
        %527 = vmatpush.msra.mxu0 0.0
        %528 = vmatpush.msra.mxu0 0.0
        %529 = vmatpush.msra.mxu0 0.0
        %530 = vmatpush.msra.mxu0 0.0
        %531 = vmatpush.msra.mxu0 0.0
        %532 = vmatpush.msra.mxu0 0.0
        %533 = vmatpush.msra.mxu0 0.0
        %534 = vmatpush.msra.mxu0 0.0
        %535 = vmatpush.msra.mxu0 0.0
        %536 = vmatpush.msra.mxu0 0.0
        %537 = vmatpush.msra.mxu0 0.0
        %538 = vmatpush.msra.mxu0 0.0
        %539 = vmatpush.msra.mxu0 0.0
        %540 = vmatpush.msra.mxu0 0.0
        %541 = vmatpush.msra.mxu0 0.0
        %542 = vmatpush.msra.mxu0 %v525
        %543 = vmatmul.f32.gmra.mxu0 %v522
        %v544 = vpop.f32.mrf.mxu0
        %v545 = vadd.f32 0.0, %v544
        %546 = vdwg.mxu0
        %547 = vrot.lane.b32.xlu0 %v476, 120
        %v548 = vpop.permute.xlu0 %547
        %549 = vrot.lane.b32.xlu0 %v473, 88
        %v550 = vpop.permute.xlu0 %549
        %v551 = vsel %vm480, %v548, 0
        %v553 = vsel %vm480, %v550, 0
        %555 = vmatpush.xpose.msra.mxu0 0.0
        %556 = vmatpush.xpose.msra.mxu0 0.0
        %557 = vmatpush.xpose.msra.mxu0 0.0
        %558 = vmatpush.xpose.msra.mxu0 0.0
        %559 = vmatpush.xpose.msra.mxu0 0.0
        %560 = vmatpush.xpose.msra.mxu0 0.0
        %561 = vmatpush.xpose.msra.mxu0 0.0
        %562 = vmatpush.xpose.msra.mxu0 0.0
        %563 = vmatpush.xpose.msra.mxu0 0.0
        %564 = vmatpush.xpose.msra.mxu0 0.0
        %565 = vmatpush.xpose.msra.mxu0 0.0
        %566 = vmatpush.xpose.msra.mxu0 0.0
        %567 = vmatpush.xpose.msra.mxu0 0.0
        %568 = vmatpush.xpose.msra.mxu0 0.0
        %569 = vmatpush.xpose.msra.mxu0 0.0
        %570 = vmatpush.xpose.msra.mxu0 %v553
        %571 = vmatmul.f32.gmra.mxu0 %v551
        %v572 = vpop.f32.mrf.mxu0
        %v573 = vadd.f32 0.0, %v572
        %574 = vdwg.mxu0
        %v575 = vsel %vm506, %v573, -inf
        %576 = vmax.xlane.f32.xlu0 %v575
        %v577 = vpop.xlane.xlu0 %576
        %v578 = vsub.f32 %v573, %v577
        %v579 = vmul.f32 %v578, 1.442695
        %v580 = vpow.pop %v579
        %v581 = vsel %vm506, %v580, 0.0
        %582 = vadd.xlane.f32.xlu0 %v581
        %v583 = vpop.xlane.xlu0 %582
        %v584 = vrcp.pop %v583
        %v585 = vmul.f32 %v580, %v584
        %586 = vrot.lane.b32.xlu0 %v473, 56
        %v587 = vpop.permute.xlu0 %586
        %v589 = vsel %vm520, %v585, 0
        %v591 = vsel %vm524, %v587, 0
        %593 = vmatpush.msra.mxu0 0.0
        %594 = vmatpush.msra.mxu0 0.0
        %595 = vmatpush.msra.mxu0 0.0
        %596 = vmatpush.msra.mxu0 0.0
        %597 = vmatpush.msra.mxu0 0.0
        %598 = vmatpush.msra.mxu0 0.0
        %599 = vmatpush.msra.mxu0 0.0
        %600 = vmatpush.msra.mxu0 0.0
        %601 = vmatpush.msra.mxu0 0.0
        %602 = vmatpush.msra.mxu0 0.0
        %603 = vmatpush.msra.mxu0 0.0
        %604 = vmatpush.msra.mxu0 0.0
        %605 = vmatpush.msra.mxu0 0.0
        %606 = vmatpush.msra.mxu0 0.0
        %607 = vmatpush.msra.mxu0 0.0
        %608 = vmatpush.msra.mxu0 %v591
        %609 = vmatmul.f32.gmra.mxu0 %v589
        %v610 = vpop.f32.mrf.mxu0
        %v611 = vadd.f32 0.0, %v610
        %612 = vdwg.mxu0
        %613 = vrot.lane.b32.xlu0 %v476, 112
        %v614 = vpop.permute.xlu0 %613
        %615 = vrot.lane.b32.xlu0 %v473, 80
        %v616 = vpop.permute.xlu0 %615
        %v617 = vsel %vm480, %v614, 0
        %v619 = vsel %vm480, %v616, 0
        %621 = vmatpush.xpose.msra.mxu0 0.0
        %622 = vmatpush.xpose.msra.mxu0 0.0
        %623 = vmatpush.xpose.msra.mxu0 0.0
        %624 = vmatpush.xpose.msra.mxu0 0.0
        %625 = vmatpush.xpose.msra.mxu0 0.0
        %626 = vmatpush.xpose.msra.mxu0 0.0
        %627 = vmatpush.xpose.msra.mxu0 0.0
        %628 = vmatpush.xpose.msra.mxu0 0.0
        %629 = vmatpush.xpose.msra.mxu0 0.0
        %630 = vmatpush.xpose.msra.mxu0 0.0
        %631 = vmatpush.xpose.msra.mxu0 0.0
        %632 = vmatpush.xpose.msra.mxu0 0.0
        %633 = vmatpush.xpose.msra.mxu0 0.0
        %634 = vmatpush.xpose.msra.mxu0 0.0
        %635 = vmatpush.xpose.msra.mxu0 0.0
        %636 = vmatpush.xpose.msra.mxu0 %v619
        %637 = vmatmul.f32.gmra.mxu0 %v617
        %v638 = vpop.f32.mrf.mxu0
        %v639 = vadd.f32 0.0, %v638
        %640 = vdwg.mxu0
        %v641 = vsel %vm506, %v639, -inf
        %642 = vmax.xlane.f32.xlu0 %v641
        %v643 = vpop.xlane.xlu0 %642
        %v644 = vsub.f32 %v639, %v643
        %v645 = vmul.f32 %v644, 1.442695
        %v646 = vpow.pop %v645
        %v647 = vsel %vm506, %v646, 0.0
        %648 = vadd.xlane.f32.xlu0 %v647
        %v649 = vpop.xlane.xlu0 %648
        %v650 = vrcp.pop %v649
        %v651 = vmul.f32 %v646, %v650
        %652 = vrot.lane.b32.xlu0 %v473, 48
        %v653 = vpop.permute.xlu0 %652
        %v655 = vsel %vm520, %v651, 0
        %v657 = vsel %vm524, %v653, 0
        %659 = vmatpush.msra.mxu0 0.0
        %660 = vmatpush.msra.mxu0 0.0
        %661 = vmatpush.msra.mxu0 0.0
        %662 = vmatpush.msra.mxu0 0.0
        %663 = vmatpush.msra.mxu0 0.0
        %664 = vmatpush.msra.mxu0 0.0
        %665 = vmatpush.msra.mxu0 0.0
        %666 = vmatpush.msra.mxu0 0.0
        %667 = vmatpush.msra.mxu0 0.0
        %668 = vmatpush.msra.mxu0 0.0
        %669 = vmatpush.msra.mxu0 0.0
        %670 = vmatpush.msra.mxu0 0.0
        %671 = vmatpush.msra.mxu0 0.0
        %672 = vmatpush.msra.mxu0 0.0
        %673 = vmatpush.msra.mxu0 0.0
        %674 = vmatpush.msra.mxu0 %v657
        %675 = vmatmul.f32.gmra.mxu0 %v655
        %v676 = vpop.f32.mrf.mxu0
        %v677 = vadd.f32 0.0, %v676
        %678 = vdwg.mxu0
        %679 = vrot.lane.b32.xlu0 %v476, 104
        %v680 = vpop.permute.xlu0 %679
        %681 = vrot.lane.b32.xlu0 %v473, 72
        %v682 = vpop.permute.xlu0 %681
        %v683 = vsel %vm480, %v680, 0
        %v685 = vsel %vm480, %v682, 0
        %687 = vmatpush.xpose.msra.mxu0 0.0
        %688 = vmatpush.xpose.msra.mxu0 0.0
        %689 = vmatpush.xpose.msra.mxu0 0.0
        %690 = vmatpush.xpose.msra.mxu0 0.0
        %691 = vmatpush.xpose.msra.mxu0 0.0
        %692 = vmatpush.xpose.msra.mxu0 0.0
        %693 = vmatpush.xpose.msra.mxu0 0.0
        %694 = vmatpush.xpose.msra.mxu0 0.0
        %695 = vmatpush.xpose.msra.mxu0 0.0
        %696 = vmatpush.xpose.msra.mxu0 0.0
        %697 = vmatpush.xpose.msra.mxu0 0.0
        %698 = vmatpush.xpose.msra.mxu0 0.0
        %699 = vmatpush.xpose.msra.mxu0 0.0
        %700 = vmatpush.xpose.msra.mxu0 0.0
        %701 = vmatpush.xpose.msra.mxu0 0.0
        %702 = vmatpush.xpose.msra.mxu0 %v685
        %703 = vmatmul.f32.gmra.mxu0 %v683
        %v704 = vpop.f32.mrf.mxu0
        %v705 = vadd.f32 0.0, %v704
        %706 = vdwg.mxu0
        %v707 = vsel %vm506, %v705, -inf
        %708 = vmax.xlane.f32.xlu0 %v707
        %v709 = vpop.xlane.xlu0 %708
        %v710 = vsub.f32 %v705, %v709
        %v711 = vmul.f32 %v710, 1.442695
        %v712 = vpow.pop %v711
        %v713 = vsel %vm506, %v712, 0.0
        %714 = vadd.xlane.f32.xlu0 %v713
        %v715 = vpop.xlane.xlu0 %714
        %v716 = vrcp.pop %v715
        %v717 = vmul.f32 %v712, %v716
        %718 = vrot.lane.b32.xlu0 %v473, 40
        %v719 = vpop.permute.xlu0 %718
        %v721 = vsel %vm520, %v717, 0
        %v723 = vsel %vm524, %v719, 0
        %725 = vmatpush.msra.mxu0 0.0
        %726 = vmatpush.msra.mxu0 0.0
        %727 = vmatpush.msra.mxu0 0.0
        %728 = vmatpush.msra.mxu0 0.0
        %729 = vmatpush.msra.mxu0 0.0
        %730 = vmatpush.msra.mxu0 0.0
        %731 = vmatpush.msra.mxu0 0.0
        %732 = vmatpush.msra.mxu0 0.0
        %733 = vmatpush.msra.mxu0 0.0
        %734 = vmatpush.msra.mxu0 0.0
        %735 = vmatpush.msra.mxu0 0.0
        %736 = vmatpush.msra.mxu0 0.0
        %737 = vmatpush.msra.mxu0 0.0
        %738 = vmatpush.msra.mxu0 0.0
        %739 = vmatpush.msra.mxu0 0.0
        %740 = vmatpush.msra.mxu0 %v723
        %741 = vmatmul.f32.gmra.mxu0 %v721
        %v742 = vpop.f32.mrf.mxu0
        %v743 = vadd.f32 0.0, %v742
        %744 = vdwg.mxu0
        %746 = vrot.lane.b32.xlu0 %v611, 8
        %v747 = vpop.permute.xlu0 %746
        %750 = vrot.lane.b32.xlu0 %v677, 16
        %v751 = vpop.permute.xlu0 %750
        %754 = vrot.lane.b32.xlu0 %v743, 24
        %v755 = vpop.permute.xlu0 %754
        %v757 = vsel %vm480, %v545, %v747
        %vm758 = vcmask 130048
        %v759 = vsel %vm758, %v757, %v751
        %vm760 = vcmask 195584
        %v761 = vsel %vm760, %v759, %v755
        %v762 = vpack.c.bf16 %v761, %v761
        %v763 = vld [vmem:[%s3] sm:$0xf]
        %v764 = vld [vmem:[%s3 + $0x4] sm:$0xf]
        %v765 = vld [vmem:[%s3 + $0x8] sm:$0xf]
        %v766 = vld [vmem:[%s3 + $0xc] sm:$0xf]
        %v767 = vld [vmem:[%s4] sm:$0x1]
        %v769 = vperm.slane %v767, 0
        %v775 = vunpack.c.l.b16 %v763
        %v776 = vunpack.c.l.b16 %v764
        %v777 = vunpack.c.l.b16 %v765
        %v778 = vunpack.c.l.b16 %v766
        %v779 = vpack.c.b16 %v776, %v775
        %v780 = vpack.c.b16 %v778, %v777
        %v784 = vsel %vm459, %v762, 0
        %786 = vmatpush.bf16.msra.mxu0 0
        %787 = vmatpush.bf16.msra.mxu0 0
        %788 = vmatpush.bf16.msra.mxu0 0
        %789 = vmatpush.bf16.msra.mxu0 0
        %790 = vmatpush.bf16.msra.mxu0 0
        %791 = vmatpush.bf16.msra.mxu0 0
        %792 = vmatpush.bf16.msra.mxu0 %v780
        %793 = vmatpush.bf16.msra.mxu0 %v779
        %794 = vmatmul.bf16.gmra.mxu0 %v784
        %v795 = vpop.f32.mrf.mxu0
        %v796 = vadd.f32 %v769, %v795
        %v797 = vpop.f32.mrf.mxu0
        %798 = vdwg.mxu0
        %v799 = vadd.f32 %v437, %v796
        %v800 = vld [vmem:[%s5] sm:$0x1]
        %v801 = vld [vmem:[%s6] sm:$0x1]
        %vm802 = vcmask 257024
        %v803 = vsel %vm802, %v799, 0.0
        %804 = vadd.xlane.f32.xlu0 %v803
        %v805 = vpop.xlane.xlu0 %804
        %v806 = vrcp.pop 32.0
        %v807 = vmul.f32 32.0, %v806
        %v808 = vsub.f32 1.0, %v807
        %v809 = vmul.f32 %v806, %v808
        %v810 = vadd.f32 %v806, %v809
        %vm811 = vweird.f32 %v806
        %v812 = vsel %vm811, %v806, %v810
        %v813 = vmul.f32 %v805, %v812
        %v814 = vsub.f32 %v799, %v813
        %v815 = vmul.f32 %v814, %v814
        %v816 = vsel %vm802, %v815, 0.0
        %817 = vadd.xlane.f32.xlu0 %v816
        %v818 = vpop.xlane.xlu0 %817
        %v819 = vmul.f32 %v818, %v812
        %v820 = vadd.f32 %v819, 1e-05
        %v821 = vrsqrt.pop %v820
        %v822 = vmul.f32 %v821, %v820
        %v823 = vmul.f32 %v822, %v821
        %v824 = vmul.f32 0.5, %v823
        %v825 = vsub.f32 1.5, %v824
        %v826 = vmul.f32 %v821, %v825
        %vm827 = vweird.f32 %v820
        %vm828 = vweird.f32 %v821
        %vm829 = vmor %vm827, %vm828
        %v830 = vsel %vm829, %v821, %v826
        %v831 = vmul.f32 %v814, %v830
        %v833 = vperm.slane %v800, 0
        %v835 = vmul.f32 %v831, %v833
        %v837 = vperm.slane %v801, 0
        %v839 = vadd.f32 %v835, %v837
        %v840 = vpack.c.bf16 %v839, %v839
        %v841 = vld [vmem:[%s7] sm:$0xf]
        %v842 = vld [vmem:[%s7 + $0x4] sm:$0xf]
        %v843 = vld [vmem:[%s7 + $0x8] sm:$0xf]
        %v844 = vld [vmem:[%s7 + $0xc] sm:$0xf]
        %v845 = vld [vmem:[%s8] sm:$0x1]
        %v847 = vperm.slane %v845, 0
        %v853 = vunpack.c.l.b16 %v841
        %v854 = vunpack.c.l.b16 %v842
        %v855 = vunpack.c.l.b16 %v843
        %v856 = vunpack.c.l.b16 %v844
        %v857 = vpack.c.b16 %v854, %v853
        %v858 = vpack.c.b16 %v856, %v855
        %v862 = vsel %vm459, %v840, 0
        %864 = vmatpush.bf16.msra.mxu0 0
        %865 = vmatpush.bf16.msra.mxu0 0
        %866 = vmatpush.bf16.msra.mxu0 0
        %867 = vmatpush.bf16.msra.mxu0 0
        %868 = vmatpush.bf16.msra.mxu0 0
        %869 = vmatpush.bf16.msra.mxu0 0
        %870 = vmatpush.bf16.msra.mxu0 %v858
        %871 = vmatpush.bf16.msra.mxu0 %v857
        %872 = vmatmul.bf16.gmra.mxu0 %v862
        %v873 = vpop.f32.mrf.mxu0
        %v874 = vadd.f32 %v847, %v873
        %v875 = vpop.f32.mrf.mxu0
        %876 = vdwg.mxu0
        %v877 = vmul.f32 %v874, %v874
        %v878 = vmul.f32 %v874, %v877
        %v879 = vmul.f32 %v878, 0.044715
        %v880 = vadd.f32 %v874, %v879
        %v881 = vmul.f32 %v880, 0.7978846
        %v882 = vtanh.pop %v881
        %v883 = vadd.f32 %v882, 1.0
        %v884 = vmul.f32 %v883, 0.5
        %v885 = vmul.f32 %v874, %v884
        %v886 = vpack.c.bf16 %v885, %v885
        %v887 = vld [vmem:[%s9] sm:$0xf]
        %v888 = vld [vmem:[%s9 + $0x4] sm:$0xf]
        %v889 = vld [vmem:[%s9 + $0x8] sm:$0xf]
        %v890 = vld [vmem:[%s9 + $0xc] sm:$0xf]
        %v891 = vld [vmem:[%s9 + $0x10] sm:$0xf]
        %v892 = vld [vmem:[%s9 + $0x14] sm:$0xf]
        %v893 = vld [vmem:[%s9 + $0x18] sm:$0xf]
        %v894 = vld [vmem:[%s9 + $0x1c] sm:$0xf]
        %v895 = vld [vmem:[%s10] sm:$0x1]
        %v897 = vperm.slane %v895, 0
        %v907 = vunpack.c.l.b16 %v887
        %v908 = vunpack.c.l.b16 %v888
        %v909 = vunpack.c.l.b16 %v889
        %v910 = vunpack.c.l.b16 %v890
        %v911 = vunpack.c.l.b16 %v891
        %v912 = vunpack.c.l.b16 %v892
        %v913 = vunpack.c.l.b16 %v893
        %v914 = vunpack.c.l.b16 %v894
        %v915 = vpack.c.b16 %v908, %v907
        %v916 = vpack.c.b16 %v910, %v909
        %v917 = vpack.c.b16 %v912, %v911
        %v918 = vpack.c.b16 %v914, %v913
        %vm923 = vcmask 523264
        %v925 = vsel %vm923, %v886, 0
        %927 = vmatpush.bf16.msra.mxu0 0
        %928 = vmatpush.bf16.msra.mxu0 0
        %929 = vmatpush.bf16.msra.mxu0 0
        %930 = vmatpush.bf16.msra.mxu0 0
        %931 = vmatpush.bf16.msra.mxu0 %v918
        %932 = vmatpush.bf16.msra.mxu0 %v917
        %933 = vmatpush.bf16.msra.mxu0 %v916
        %934 = vmatpush.bf16.msra.mxu0 %v915
        %935 = vmatmul.bf16.gmra.mxu0 %v925
        %v936 = vpop.f32.mrf.mxu0
        %v937 = vadd.f32 %v897, %v936
        %v938 = vpop.f32.mrf.mxu0
        %939 = vdwg.mxu0
        %v940 = vadd.f32 %v839, %v937
        %v941 = vld [vmem:[%s11] sm:$0x1]
        %v942 = vld [vmem:[%s12] sm:$0x1]
        %v943 = vsel %vm802, %v940, 0.0
        %944 = vadd.xlane.f32.xlu0 %v943
        %v945 = vpop.xlane.xlu0 %944
        %v946 = vmul.f32 %v945, %v812
        %v947 = vsub.f32 %v940, %v946
        %v948 = vmul.f32 %v947, %v947
        %v949 = vsel %vm802, %v948, 0.0
        %950 = vadd.xlane.f32.xlu0 %v949
        %v951 = vpop.xlane.xlu0 %950
        %v952 = vmul.f32 %v951, %v812
        %v953 = vadd.f32 %v952, 1e-05
        %v954 = vrsqrt.pop %v953
        %v955 = vmul.f32 %v954, %v953
        %v956 = vmul.f32 %v955, %v954
        %v957 = vmul.f32 0.5, %v956
        %v958 = vsub.f32 1.5, %v957
        %v959 = vmul.f32 %v954, %v958
        %vm960 = vweird.f32 %v953
        %vm961 = vweird.f32 %v954
        %vm962 = vmor %vm960, %vm961
        %v963 = vsel %vm962, %v954, %v959
        %v964 = vmul.f32 %v947, %v963
        %v966 = vperm.slane %v941, 0
        %v968 = vmul.f32 %v964, %v966
        %v970 = vperm.slane %v942, 0
        %v972 = vadd.f32 %v968, %v970
        %973 = vst.msk [vmem:[%s431] sm:$0xf] %vm802, %v972
        %s974 = sand.u32 %s313, 1
        %s975 = scalar_lea.sflag [#allocation3], %s974
        %s976 = sand.u32 %s313, 1
        %s977 = smul.addr %s976, 4
        %s978 = scalar_lea.vmem [#allocation2], %s977
        // Predicated region
        $region73: #{ssl_extractor_forward.21} parent=71 // pred_check
          %p979 = pneg %p323
        $region74: #{ssl_extractor_forward.21} parent=71 // pred_check_branch
          %981 = sbr.rel (%p979) target = $region76
        $region75: #{ssl_extractor_forward.21} parent=71 // pred_region
          %983 = vsyncadd %s975, 0
          %s984 = smul.addr %s27, 4
          %s985 = scalar_lea.hbm %s13, %s984
          %s987 = sshll.u32 %s978, 4
          %s988 = int_to_ptr.vmem [resolvable:$true] %s987
          %s989 = sshll.u32 %s985, 4
          %s990 = int_to_ptr.hbm [resolvable:$true] %s989
          %992 = dma.vmem_to_hbm [thread:$0]  %s988, 64, %s990, %s975
        $region76: #{ssl_extractor_forward.21} parent=71 // pred_fallthru
          _
      $region72: #{ssl_extractor_forward.21} parent=5 // pred_fallthru
        _
      %p993 = scmp.le.s32.totalorder 2, %s22
      // Predicated region
      $region77: #{ssl_extractor_forward.21} parent=5 // pred_check
        %p994 = pneg %p993
      $region78: #{ssl_extractor_forward.21} parent=5 // pred_check_branch
        %996 = sbr.rel (%p994) target = $region80
      $region79: #{ssl_extractor_forward.21} parent=5 // pred_region
        %s997 = ssub.s32 %s22, 2
        // Predicated region
        $region81: #{ssl_extractor_forward.21} parent=79 // pred_check
          %p998 = pneg %p329
        $region82: #{ssl_extractor_forward.21} parent=79 // pred_check_branch
          %1000 = sbr.rel (%p998) target = $region84
        $region83: #{ssl_extractor_forward.21} parent=79 // pred_region
          %s1001 = sand.u32 %s314, 1
          %s1002 = scalar_lea.sflag [#allocation3], %s1001
          %s1003 = sand.u32 %s314, 1
          %s1004 = smul.addr %s1003, 4
          %s1005 = scalar_lea.vmem [#allocation2], %s1004
          %1007 = dma.done %s1002, 64
        $region84: #{ssl_extractor_forward.21} parent=79 // pred_fallthru
          _
      $region80: #{ssl_extractor_forward.21} parent=5 // pred_fallthru
        _
    $region6: #{ssl_extractor_forward.21} parent=1 // loop_footer
      %s26 = sadd.s32 1, %s22
    $region7: #{ssl_extractor_forward.21} parent=1 // loop_footer_branch
      %21 = sbr.rel target = $region3
    $region8: #{ssl_extractor_forward.21} parent=1 // loop_exit
      _
    %1008 = vsyncpa [#allocation3], 1
    %s1009 = scalar_lea.sflag [#allocation3], 1
    %1010 = vsyncpa %s1009, 1

</llo_original>
